<compile_context>
chip_gen: v5e
topology: v5e:2x2
jax: 0.10.0
libtpu: 0.0.40
codegen_flags: <defaults>
</compile_context>

<pallas_src>
import jax
import jax.numpy as jnp
from jax.experimental import pallas as pl
from jax.experimental.pallas import tpu as pltpu

CLASSES = 2
FILTER_SIZE1 = 10
FILTER_SIZE2 = 2
LANE_TILE = 1024  # lane-dim (spatial) block for the big first stage


# ---------------------------------------------------------------------------
# Pallas kernels
# ---------------------------------------------------------------------------
def _conv_pool_kernel(p_ref, w_ref, b_ref, o_ref):
    # p_ref: (Kbig, MB) big-patch columns, w_ref: (4, Cout, Kbig) phase weights,
    # b_ref: (Cout, 1).  out = relu(bias + max over the 4 pool phases of W@P).
    p = p_ref[...]
    z = jnp.dot(w_ref[0], p, preferred_element_type=jnp.float32)
    for a in range(1, 4):
        z = jnp.maximum(z, jnp.dot(w_ref[a], p,
                                   preferred_element_type=jnp.float32))
    o_ref[...] = jnp.maximum(z + b_ref[...], 0.0)


def _final_stage_kernel(p_ref, w_ref, b_ref, w1_ref, b1_ref, w2_ref, b2_ref,
                        o_ref):
    # conv5 + ReLU + pool (4-phase max) + GAP (1x1 -> identity) + fc1 + fc2.
    # Everything stays in the transposed (C, batch) orientation so all matmuls
    # are plain 2D dots with no in-kernel transposes.
    p = p_ref[...]
    z = jnp.dot(w_ref[0], p, preferred_element_type=jnp.float32)
    for a in range(1, 4):
        z = jnp.maximum(z, jnp.dot(w_ref[a], p,
                                   preferred_element_type=jnp.float32))
    feat = jnp.maximum(z + b_ref[...], 0.0)                       # (256, N)
    h = jnp.dot(w1_ref[...], feat,
                preferred_element_type=jnp.float32) + b1_ref[...]  # (128, N)
    o_ref[...] = jnp.dot(w2_ref[...], h,
                         preferred_element_type=jnp.float32) + b2_ref[...]


# ---------------------------------------------------------------------------
# Wrappers (XLA glue + pallas_call)
# ---------------------------------------------------------------------------
def _pool_conv_patches(act, k):
    """Stride-2 'big patch' extraction.

    act: (C, N, H, W).  Returns (patches, (N, Hp, Wp)) where patches has shape
    ((k+1)^2 * C, N*Hp*Wp): column m = (n, p, q) holds the (k+1)x(k+1) input
    window feeding the 2x2 pool window of pooled output position (p, q).
    K-order is (u, v, c); M-order is (n, p, q).
    """
    C, N, H, W = act.shape
    Hp, Wp = (H - k + 1) // 2, (W - k + 1) // 2
    ku = k + 1
    rows = jnp.stack([act[:, :, u:u + 2 * Hp:2, :] for u in range(ku)], axis=0)
    pat = jnp.stack([rows[..., v:v + 2 * Wp:2] for v in range(ku)], axis=1)
    return pat.reshape(ku * ku * C, N * Hp * Wp), (N, Hp, Wp)


def conv_relu_pool(act, w4, b_col, k):
    """One fused stage: Conv2d(k, valid) + bias + ReLU + MaxPool2d(2).

    act: (Cin, N, H, W) f32 -> (Cout, N, Hp, Wp) f32.
    """
    patches, (N, Hp, Wp) = _pool_conv_patches(act, k)
    Kbig, M = patches.shape
    Cout = w4.shape[1]
    MB = LANE_TILE if M % LANE_TILE == 0 else M
    out = pl.pallas_call(
        _conv_pool_kernel,
        out_shape=jax.ShapeDtypeStruct((Cout, M), jnp.float32),
        grid_spec=pltpu.PrefetchScalarGridSpec(
            num_scalar_prefetch=0,
            grid=(M // MB,),
            in_specs=[
                pl.BlockSpec((Kbig, MB), lambda i: (0, i)),
                pl.BlockSpec(w4.shape, lambda i: (0, 0, 0)),
                pl.BlockSpec((Cout, 1), lambda i: (0, 0)),
            ],
            out_specs=pl.BlockSpec((Cout, MB), lambda i: (0, i)),
        ),
        compiler_params=pltpu.CompilerParams(
            dimension_semantics=("parallel",)),
    )(patches, w4, b_col)
    return out.reshape(Cout, N, Hp, Wp)


def final_stage(act, w4, b_col, w1, b1_col, w2, b2_col, k):
    """conv5+ReLU+pool + AdaptiveAvgPool2d(1) + fc1 + fc2 in a single kernel."""
    patches, (N, Hp, Wp) = _pool_conv_patches(act, k)
    # For the 73x73 input the pooled conv5 map is 1x1, so GAP is the identity.
    assert Hp == 1 and Wp == 1, "fused final stage assumes a 1x1 pooled map"
    logits_t = pl.pallas_call(
        _final_stage_kernel,
        out_shape=jax.ShapeDtypeStruct((CLASSES, N), jnp.float32),
    )(patches, w4, b_col, w1, b1_col, w2, b2_col)
    return logits_t.T  # (N, CLASSES)


# ---------------------------------------------------------------------------
# Parameters (PyTorch-default-style uniform init, then kernel-ready layouts)
# ---------------------------------------------------------------------------
def _phase_weights(w):
    """(Cout, Cin, k, k) -> (4, Cout, (k+1)^2*Cin) pool-phase weight matrices.

    Phase (a, b) is w shifted by (a, b) inside the (k+1)x(k+1) big patch, so
    Wphase[a*2+b] @ patches equals the conv output at pool-window offset (a,b).
    K-order (u, v, ci) matches _pool_conv_patches.
    """
    Cout, Cin, k, _ = w.shape
    ku = k + 1
    mats = []
    for a in (0, 1):
        for b in (0, 1):
            wp = jnp.pad(w, ((0, 0), (0, 0), (a, 1 - a), (b, 1 - b)))
            mats.append(jnp.transpose(wp, (0, 2, 3, 1)).reshape(
                Cout, ku * ku * Cin))
    return jnp.stack(mats, axis=0)


def init_params(key):
    def conv_p(k, cout, cin, ksize):
        k1, k2 = jax.random.split(k)
        bound = 1.0 / (cin * ksize * ksize) ** 0.5
        w = jax.random.uniform(k1, (cout, cin, ksize, ksize), jnp.float32,
                               -bound, bound)
        b = jax.random.uniform(k2, (cout,), jnp.float32, -bound, bound)
        return w, b

    def fc_p(k, fin, fout):
        k1, k2 = jax.random.split(k)
        bound = 1.0 / fin ** 0.5
        # PyTorch nn.Linear layout (out_features, in_features): used directly
        # by the transposed head matmuls (no transpose needed).
        w = jax.random.uniform(k1, (fout, fin), jnp.float32, -bound, bound)
        b = jax.random.uniform(k2, (fout,), jnp.float32, -bound, bound)
        return w, b

    keys = jax.random.split(key, 7)
    convs = [conv_p(keys[0], 16, 1, FILTER_SIZE1),
             conv_p(keys[1], 32, 16, FILTER_SIZE2),
             conv_p(keys[2], 64, 32, FILTER_SIZE2),
             conv_p(keys[3], 128, 64, FILTER_SIZE2),
             conv_p(keys[4], 256, 128, FILTER_SIZE2)]
    fc1_w, fc1_b = fc_p(keys[5], 256, 128)
    fc2_w, fc2_b = fc_p(keys[6], 128, CLASSES)

    params = {}
    for i, (w, b) in enumerate(convs, start=1):
        params[f"conv{i}_w4"] = _phase_weights(w)   # (4, Cout, (k+1)^2*Cin)
        params[f"conv{i}_b"] = b.reshape(-1, 1)     # (Cout, 1) column bias
    params["fc1_w"] = fc1_w
    params["fc1_b"] = fc1_b.reshape(-1, 1)
    params["fc2_w"] = fc2_w
    params["fc2_b"] = fc2_b.reshape(-1, 1)
    return params


# ---------------------------------------------------------------------------
# Forward pass (matches cnn.forward in inference mode)
# ---------------------------------------------------------------------------
@jax.jit
def cnn_forward(params, img_x_nchw):
    # NCHW (PyTorch) -> channels-first (C, N, H, W); Cin == 1 so this is cheap.
    x = jnp.transpose(img_x_nchw.astype(jnp.float32), (1, 0, 2, 3))
    x = conv_relu_pool(x, params["conv1_w4"], params["conv1_b"], FILTER_SIZE1)
    x = conv_relu_pool(x, params["conv2_w4"], params["conv2_b"], FILTER_SIZE2)
    x = conv_relu_pool(x, params["conv3_w4"], params["conv3_b"], FILTER_SIZE2)
    x = conv_relu_pool(x, params["conv4_w4"], params["conv4_b"], FILTER_SIZE2)
    # Dropout(p=0.35) after every pool: identity in inference mode.
    return final_stage(x, params["conv5_w4"], params["conv5_b"],
                       params["fc1_w"], params["fc1_b"],
                       params["fc2_w"], params["fc2_b"], FILTER_SIZE2)


if __name__ == "__main__":
    key = jax.random.PRNGKey(0)
    pkey, xkey = jax.random.split(key)
    params = init_params(pkey)
    # 73x73 single-channel image: the 5 conv/pool stages reduce it to 1x1x256.
    img_x = jax.random.normal(xkey, (2, 1, 73, 73), dtype=jnp.float32)
    logits = cnn_forward(params, img_x)
    logits = jax.block_until_ready(logits)
    assert logits.shape == (2, CLASSES) and logits.dtype == jnp.float32
    print("KERNEL_OK")
</pallas_src>

<mosaic_0001>
module attributes {stable_mosaic.version = 11 : i64} {
  func.func @_conv_pool_kernel(%arg0: i32, %arg1: memref<121x1024xf32, #tpu.memory_space<vmem>>, %arg2: memref<4x16x121xf32, #tpu.memory_space<vmem>>, %arg3: memref<16x1xf32, #tpu.memory_space<vmem>>, %arg4: memref<16x1024xf32, #tpu.memory_space<vmem>>) attributes {dimension_semantics = [#tpu.dimension_semantics<parallel>], iteration_bounds = array<i64: 2>, scalar_prefetch = 0 : i64, scratch_operands = 0 : i64, tpu.core_type = #tpu.core_type<tc>, window_params = [{transform_indices = @transform_0, window_bounds = array<i64: 121, 1024>}, {pipeline_mode = #tpu.pipeline_mode<synchronous>, transform_indices = @transform_1, window_bounds = array<i64: 4, 16, 121>}, {pipeline_mode = #tpu.pipeline_mode<synchronous>, transform_indices = @transform_2, window_bounds = array<i64: 16, 1>}, {transform_indices = @transform_3, window_bounds = array<i64: 16, 1024>}]} {
    %c0 = arith.constant 0 : index
    %c0_0 = arith.constant 0 : index
    %0 = vector.load %arg1[%c0, %c0_0] : memref<121x1024xf32, #tpu.memory_space<vmem>>, vector<121x1024xf32>
    %c0_1 = arith.constant 0 : index
    %c0_2 = arith.constant 0 : index
    %c0_3 = arith.constant 0 : index
    %1 = vector.load %arg2[%c0_1, %c0_2, %c0_3] : memref<4x16x121xf32, #tpu.memory_space<vmem>>, vector<1x16x121xf32>
    %2 = vector.shape_cast %1 : vector<1x16x121xf32> to vector<16x121xf32>
    %cst = arith.constant dense<0.000000e+00> : vector<16x1024xf32>
    %3 = tpu.matmul %2, %0, %cst {dimension_numbers = #tpu.dot_dimension_numbers<[1], [0], [0], [1], [0, 0, 1, 1], [], []>} : vector<16x121xf32>, vector<121x1024xf32>, vector<16x1024xf32> -> vector<16x1024xf32>
    %c1 = arith.constant 1 : index
    %c0_4 = arith.constant 0 : index
    %c0_5 = arith.constant 0 : index
    %4 = vector.load %arg2[%c1, %c0_4, %c0_5] : memref<4x16x121xf32, #tpu.memory_space<vmem>>, vector<1x16x121xf32>
    %5 = vector.shape_cast %4 : vector<1x16x121xf32> to vector<16x121xf32>
    %cst_6 = arith.constant dense<0.000000e+00> : vector<16x1024xf32>
    %6 = tpu.matmul %5, %0, %cst_6 {dimension_numbers = #tpu.dot_dimension_numbers<[1], [0], [0], [1], [0, 0, 1, 1], [], []>} : vector<16x121xf32>, vector<121x1024xf32>, vector<16x1024xf32> -> vector<16x1024xf32>
    %7 = arith.maximumf %3, %6 : vector<16x1024xf32>
    %c2 = arith.constant 2 : index
    %c0_7 = arith.constant 0 : index
    %c0_8 = arith.constant 0 : index
    %8 = vector.load %arg2[%c2, %c0_7, %c0_8] : memref<4x16x121xf32, #tpu.memory_space<vmem>>, vector<1x16x121xf32>
    %9 = vector.shape_cast %8 : vector<1x16x121xf32> to vector<16x121xf32>
    %cst_9 = arith.constant dense<0.000000e+00> : vector<16x1024xf32>
    %10 = tpu.matmul %9, %0, %cst_9 {dimension_numbers = #tpu.dot_dimension_numbers<[1], [0], [0], [1], [0, 0, 1, 1], [], []>} : vector<16x121xf32>, vector<121x1024xf32>, vector<16x1024xf32> -> vector<16x1024xf32>
    %11 = arith.maximumf %7, %10 : vector<16x1024xf32>
    %c3 = arith.constant 3 : index
    %c0_10 = arith.constant 0 : index
    %c0_11 = arith.constant 0 : index
    %12 = vector.load %arg2[%c3, %c0_10, %c0_11] : memref<4x16x121xf32, #tpu.memory_space<vmem>>, vector<1x16x121xf32>
    %13 = vector.shape_cast %12 : vector<1x16x121xf32> to vector<16x121xf32>
    %cst_12 = arith.constant dense<0.000000e+00> : vector<16x1024xf32>
    %14 = tpu.matmul %13, %0, %cst_12 {dimension_numbers = #tpu.dot_dimension_numbers<[1], [0], [0], [1], [0, 0, 1, 1], [], []>} : vector<16x121xf32>, vector<121x1024xf32>, vector<16x1024xf32> -> vector<16x1024xf32>
    %15 = arith.maximumf %11, %14 : vector<16x1024xf32>
    %c0_13 = arith.constant 0 : index
    %c0_14 = arith.constant 0 : index
    %16 = vector.load %arg3[%c0_13, %c0_14] : memref<16x1xf32, #tpu.memory_space<vmem>>, vector<16x1xf32>
    %17 = vector.broadcast %16 : vector<16x1xf32> to vector<16x1024xf32>
    %18 = arith.addf %15, %17 : vector<16x1024xf32>
    %cst_15 = arith.constant 0.000000e+00 : f32
    %19 = vector.broadcast %cst_15 : f32 to vector<16x1024xf32>
    %20 = arith.maximumf %18, %19 : vector<16x1024xf32>
    %c0_16 = arith.constant 0 : index
    %c0_17 = arith.constant 0 : index
    %21 = vector.load %arg4[%c0_16, %c0_17] : memref<16x1024xf32, #tpu.memory_space<vmem>>, vector<16x1024xf32>
    tpu.vector_store %arg4[%c0_16, %c0_17], %20 {strides = array<i32>} : memref<16x1024xf32, #tpu.memory_space<vmem>>, vector<16x1024xf32>,
    return
  }
  func.func @transform_0(%arg0: i32) -> (i32, i32) {
    %c0_i32 = arith.constant 0 : i32
    %c0_i32_0 = arith.constant 0 : i32
    return %c0_i32, %arg0 : i32, i32
  }
  func.func @transform_1(%arg0: i32) -> (i32, i32, i32) {
    %c0_i32 = arith.constant 0 : i32
    %c0_i32_0 = arith.constant 0 : i32
    %c0_i32_1 = arith.constant 0 : i32
    %c0_i32_2 = arith.constant 0 : i32
    return %c0_i32, %c0_i32_0, %c0_i32_1 : i32, i32, i32
  }
  func.func @transform_2(%arg0: i32) -> (i32, i32) {
    %c0_i32 = arith.constant 0 : i32
    %c0_i32_0 = arith.constant 0 : i32
    %c0_i32_1 = arith.constant 0 : i32
    return %c0_i32, %c0_i32_0 : i32, i32
  }
  func.func @transform_3(%arg0: i32) -> (i32, i32) {
    %c0_i32 = arith.constant 0 : i32
    %c0_i32_0 = arith.constant 0 : i32
    return %c0_i32, %arg0 : i32, i32
  }
}

module attributes {stable_mosaic.version = 11 : i64} {
  func.func @_conv_pool_kernel(%arg0: i32, %arg1: memref<144x450xf32, #tpu.memory_space<vmem>>, %arg2: memref<4x32x144xf32, #tpu.memory_space<vmem>>, %arg3: memref<32x1xf32, #tpu.memory_space<vmem>>, %arg4: memref<32x450xf32, #tpu.memory_space<vmem>>) attributes {dimension_semantics = [#tpu.dimension_semantics<parallel>], iteration_bounds = array<i64: 1>, scalar_prefetch = 0 : i64, scratch_operands = 0 : i64, tpu.core_type = #tpu.core_type<tc>, window_params = [{transform_indices = @transform_0, window_bounds = array<i64: 144, 450>}, {pipeline_mode = #tpu.pipeline_mode<synchronous>, transform_indices = @transform_1, window_bounds = array<i64: 4, 32, 144>}, {pipeline_mode = #tpu.pipeline_mode<synchronous>, transform_indices = @transform_2, window_bounds = array<i64: 32, 1>}, {transform_indices = @transform_3, window_bounds = array<i64: 32, 450>}]} {
    %c0 = arith.constant 0 : index
    %c0_0 = arith.constant 0 : index
    %0 = vector.load %arg1[%c0, %c0_0] : memref<144x450xf32, #tpu.memory_space<vmem>>, vector<144x450xf32>
    %c0_1 = arith.constant 0 : index
    %c0_2 = arith.constant 0 : index
    %c0_3 = arith.constant 0 : index
    %1 = vector.load %arg2[%c0_1, %c0_2, %c0_3] : memref<4x32x144xf32, #tpu.memory_space<vmem>>, vector<1x32x144xf32>
    %2 = vector.shape_cast %1 : vector<1x32x144xf32> to vector<32x144xf32>
    %cst = arith.constant dense<0.000000e+00> : vector<32x450xf32>
    %3 = tpu.matmul %2, %0, %cst {dimension_numbers = #tpu.dot_dimension_numbers<[1], [0], [0], [1], [0, 0, 1, 1], [], []>} : vector<32x144xf32>, vector<144x450xf32>, vector<32x450xf32> -> vector<32x450xf32>
    %c1 = arith.constant 1 : index
    %c0_4 = arith.constant 0 : index
    %c0_5 = arith.constant 0 : index
    %4 = vector.load %arg2[%c1, %c0_4, %c0_5] : memref<4x32x144xf32, #tpu.memory_space<vmem>>, vector<1x32x144xf32>
    %5 = vector.shape_cast %4 : vector<1x32x144xf32> to vector<32x144xf32>
    %cst_6 = arith.constant dense<0.000000e+00> : vector<32x450xf32>
    %6 = tpu.matmul %5, %0, %cst_6 {dimension_numbers = #tpu.dot_dimension_numbers<[1], [0], [0], [1], [0, 0, 1, 1], [], []>} : vector<32x144xf32>, vector<144x450xf32>, vector<32x450xf32> -> vector<32x450xf32>
    %7 = arith.maximumf %3, %6 : vector<32x450xf32>
    %c2 = arith.constant 2 : index
    %c0_7 = arith.constant 0 : index
    %c0_8 = arith.constant 0 : index
    %8 = vector.load %arg2[%c2, %c0_7, %c0_8] : memref<4x32x144xf32, #tpu.memory_space<vmem>>, vector<1x32x144xf32>
    %9 = vector.shape_cast %8 : vector<1x32x144xf32> to vector<32x144xf32>
    %cst_9 = arith.constant dense<0.000000e+00> : vector<32x450xf32>
    %10 = tpu.matmul %9, %0, %cst_9 {dimension_numbers = #tpu.dot_dimension_numbers<[1], [0], [0], [1], [0, 0, 1, 1], [], []>} : vector<32x144xf32>, vector<144x450xf32>, vector<32x450xf32> -> vector<32x450xf32>
    %11 = arith.maximumf %7, %10 : vector<32x450xf32>
    %c3 = arith.constant 3 : index
    %c0_10 = arith.constant 0 : index
    %c0_11 = arith.constant 0 : index
    %12 = vector.load %arg2[%c3, %c0_10, %c0_11] : memref<4x32x144xf32, #tpu.memory_space<vmem>>, vector<1x32x144xf32>
    %13 = vector.shape_cast %12 : vector<1x32x144xf32> to vector<32x144xf32>
    %cst_12 = arith.constant dense<0.000000e+00> : vector<32x450xf32>
    %14 = tpu.matmul %13, %0, %cst_12 {dimension_numbers = #tpu.dot_dimension_numbers<[1], [0], [0], [1], [0, 0, 1, 1], [], []>} : vector<32x144xf32>, vector<144x450xf32>, vector<32x450xf32> -> vector<32x450xf32>
    %15 = arith.maximumf %11, %14 : vector<32x450xf32>
    %c0_13 = arith.constant 0 : index
    %c0_14 = arith.constant 0 : index
    %16 = vector.load %arg3[%c0_13, %c0_14] : memref<32x1xf32, #tpu.memory_space<vmem>>, vector<32x1xf32>
    %17 = vector.broadcast %16 : vector<32x1xf32> to vector<32x450xf32>
    %18 = arith.addf %15, %17 : vector<32x450xf32>
    %cst_15 = arith.constant 0.000000e+00 : f32
    %19 = vector.broadcast %cst_15 : f32 to vector<32x450xf32>
    %20 = arith.maximumf %18, %19 : vector<32x450xf32>
    %c0_16 = arith.constant 0 : index
    %c0_17 = arith.constant 0 : index
    %21 = vector.load %arg4[%c0_16, %c0_17] : memref<32x450xf32, #tpu.memory_space<vmem>>, vector<32x450xf32>
    tpu.vector_store %arg4[%c0_16, %c0_17], %20 {strides = array<i32>} : memref<32x450xf32, #tpu.memory_space<vmem>>, vector<32x450xf32>,
    return
  }
  func.func @transform_0(%arg0: i32) -> (i32, i32) {
    %c0_i32 = arith.constant 0 : i32
    %c0_i32_0 = arith.constant 0 : i32
    return %c0_i32, %arg0 : i32, i32
  }
  func.func @transform_1(%arg0: i32) -> (i32, i32, i32) {
    %c0_i32 = arith.constant 0 : i32
    %c0_i32_0 = arith.constant 0 : i32
    %c0_i32_1 = arith.constant 0 : i32
    %c0_i32_2 = arith.constant 0 : i32
    return %c0_i32, %c0_i32_0, %c0_i32_1 : i32, i32, i32
  }
  func.func @transform_2(%arg0: i32) -> (i32, i32) {
    %c0_i32 = arith.constant 0 : i32
    %c0_i32_0 = arith.constant 0 : i32
    %c0_i32_1 = arith.constant 0 : i32
    return %c0_i32, %c0_i32_0 : i32, i32
  }
  func.func @transform_3(%arg0: i32) -> (i32, i32) {
    %c0_i32 = arith.constant 0 : i32
    %c0_i32_0 = arith.constant 0 : i32
    return %c0_i32, %arg0 : i32, i32
  }
}

module attributes {stable_mosaic.version = 11 : i64} {
  func.func @_conv_pool_kernel(%arg0: i32, %arg1: memref<288x98xf32, #tpu.memory_space<vmem>>, %arg2: memref<4x64x288xf32, #tpu.memory_space<vmem>>, %arg3: memref<64x1xf32, #tpu.memory_space<vmem>>, %arg4: memref<64x98xf32, #tpu.memory_space<vmem>>) attributes {dimension_semantics = [#tpu.dimension_semantics<parallel>], iteration_bounds = array<i64: 1>, scalar_prefetch = 0 : i64, scratch_operands = 0 : i64, tpu.core_type = #tpu.core_type<tc>, window_params = [{transform_indices = @transform_0, window_bounds = array<i64: 288, 98>}, {pipeline_mode = #tpu.pipeline_mode<synchronous>, transform_indices = @transform_1, window_bounds = array<i64: 4, 64, 288>}, {pipeline_mode = #tpu.pipeline_mode<synchronous>, transform_indices = @transform_2, window_bounds = array<i64: 64, 1>}, {transform_indices = @transform_3, window_bounds = array<i64: 64, 98>}]} {
    %c0 = arith.constant 0 : index
    %c0_0 = arith.constant 0 : index
    %0 = vector.load %arg1[%c0, %c0_0] : memref<288x98xf32, #tpu.memory_space<vmem>>, vector<288x98xf32>
    %c0_1 = arith.constant 0 : index
    %c0_2 = arith.constant 0 : index
    %c0_3 = arith.constant 0 : index
    %1 = vector.load %arg2[%c0_1, %c0_2, %c0_3] : memref<4x64x288xf32, #tpu.memory_space<vmem>>, vector<1x64x288xf32>
    %2 = vector.shape_cast %1 : vector<1x64x288xf32> to vector<64x288xf32>
    %cst = arith.constant dense<0.000000e+00> : vector<64x98xf32>
    %3 = tpu.matmul %2, %0, %cst {dimension_numbers = #tpu.dot_dimension_numbers<[1], [0], [0], [1], [0, 0, 1, 1], [], []>} : vector<64x288xf32>, vector<288x98xf32>, vector<64x98xf32> -> vector<64x98xf32>
    %c1 = arith.constant 1 : index
    %c0_4 = arith.constant 0 : index
    %c0_5 = arith.constant 0 : index
    %4 = vector.load %arg2[%c1, %c0_4, %c0_5] : memref<4x64x288xf32, #tpu.memory_space<vmem>>, vector<1x64x288xf32>
    %5 = vector.shape_cast %4 : vector<1x64x288xf32> to vector<64x288xf32>
    %cst_6 = arith.constant dense<0.000000e+00> : vector<64x98xf32>
    %6 = tpu.matmul %5, %0, %cst_6 {dimension_numbers = #tpu.dot_dimension_numbers<[1], [0], [0], [1], [0, 0, 1, 1], [], []>} : vector<64x288xf32>, vector<288x98xf32>, vector<64x98xf32> -> vector<64x98xf32>
    %7 = arith.maximumf %3, %6 : vector<64x98xf32>
    %c2 = arith.constant 2 : index
    %c0_7 = arith.constant 0 : index
    %c0_8 = arith.constant 0 : index
    %8 = vector.load %arg2[%c2, %c0_7, %c0_8] : memref<4x64x288xf32, #tpu.memory_space<vmem>>, vector<1x64x288xf32>
    %9 = vector.shape_cast %8 : vector<1x64x288xf32> to vector<64x288xf32>
    %cst_9 = arith.constant dense<0.000000e+00> : vector<64x98xf32>
    %10 = tpu.matmul %9, %0, %cst_9 {dimension_numbers = #tpu.dot_dimension_numbers<[1], [0], [0], [1], [0, 0, 1, 1], [], []>} : vector<64x288xf32>, vector<288x98xf32>, vector<64x98xf32> -> vector<64x98xf32>
    %11 = arith.maximumf %7, %10 : vector<64x98xf32>
    %c3 = arith.constant 3 : index
    %c0_10 = arith.constant 0 : index
    %c0_11 = arith.constant 0 : index
    %12 = vector.load %arg2[%c3, %c0_10, %c0_11] : memref<4x64x288xf32, #tpu.memory_space<vmem>>, vector<1x64x288xf32>
    %13 = vector.shape_cast %12 : vector<1x64x288xf32> to vector<64x288xf32>
    %cst_12 = arith.constant dense<0.000000e+00> : vector<64x98xf32>
    %14 = tpu.matmul %13, %0, %cst_12 {dimension_numbers = #tpu.dot_dimension_numbers<[1], [0], [0], [1], [0, 0, 1, 1], [], []>} : vector<64x288xf32>, vector<288x98xf32>, vector<64x98xf32> -> vector<64x98xf32>
    %15 = arith.maximumf %11, %14 : vector<64x98xf32>
    %c0_13 = arith.constant 0 : index
    %c0_14 = arith.constant 0 : index
    %16 = vector.load %arg3[%c0_13, %c0_14] : memref<64x1xf32, #tpu.memory_space<vmem>>, vector<64x1xf32>
    %17 = vector.broadcast %16 : vector<64x1xf32> to vector<64x98xf32>
    %18 = arith.addf %15, %17 : vector<64x98xf32>
    %cst_15 = arith.constant 0.000000e+00 : f32
    %19 = vector.broadcast %cst_15 : f32 to vector<64x98xf32>
    %20 = arith.maximumf %18, %19 : vector<64x98xf32>
    %c0_16 = arith.constant 0 : index
    %c0_17 = arith.constant 0 : index
    %21 = vector.load %arg4[%c0_16, %c0_17] : memref<64x98xf32, #tpu.memory_space<vmem>>, vector<64x98xf32>
    tpu.vector_store %arg4[%c0_16, %c0_17], %20 {strides = array<i32>} : memref<64x98xf32, #tpu.memory_space<vmem>>, vector<64x98xf32>,
    return
  }
  func.func @transform_0(%arg0: i32) -> (i32, i32) {
    %c0_i32 = arith.constant 0 : i32
    %c0_i32_0 = arith.constant 0 : i32
    return %c0_i32, %arg0 : i32, i32
  }
  func.func @transform_1(%arg0: i32) -> (i32, i32, i32) {
    %c0_i32 = arith.constant 0 : i32
    %c0_i32_0 = arith.constant 0 : i32
    %c0_i32_1 = arith.constant 0 : i32
    %c0_i32_2 = arith.constant 0 : i32
    return %c0_i32, %c0_i32_0, %c0_i32_1 : i32, i32, i32
  }
  func.func @transform_2(%arg0: i32) -> (i32, i32) {
    %c0_i32 = arith.constant 0 : i32
    %c0_i32_0 = arith.constant 0 : i32
    %c0_i32_1 = arith.constant 0 : i32
    return %c0_i32, %c0_i32_0 : i32, i32
  }
  func.func @transform_3(%arg0: i32) -> (i32, i32) {
    %c0_i32 = arith.constant 0 : i32
    %c0_i32_0 = arith.constant 0 : i32
    return %c0_i32, %arg0 : i32, i32
  }
}

module attributes {stable_mosaic.version = 11 : i64} {
  func.func @_conv_pool_kernel(%arg0: i32, %arg1: memref<576x18xf32, #tpu.memory_space<vmem>>, %arg2: memref<4x128x576xf32, #tpu.memory_space<vmem>>, %arg3: memref<128x1xf32, #tpu.memory_space<vmem>>, %arg4: memref<128x18xf32, #tpu.memory_space<vmem>>) attributes {dimension_semantics = [#tpu.dimension_semantics<parallel>], iteration_bounds = array<i64: 1>, scalar_prefetch = 0 : i64, scratch_operands = 0 : i64, tpu.core_type = #tpu.core_type<tc>, window_params = [{transform_indices = @transform_0, window_bounds = array<i64: 576, 18>}, {pipeline_mode = #tpu.pipeline_mode<synchronous>, transform_indices = @transform_1, window_bounds = array<i64: 4, 128, 576>}, {pipeline_mode = #tpu.pipeline_mode<synchronous>, transform_indices = @transform_2, window_bounds = array<i64: 128, 1>}, {transform_indices = @transform_3, window_bounds = array<i64: 128, 18>}]} {
    %c0 = arith.constant 0 : index
    %c0_0 = arith.constant 0 : index
    %0 = vector.load %arg1[%c0, %c0_0] : memref<576x18xf32, #tpu.memory_space<vmem>>, vector<576x18xf32>
    %c0_1 = arith.constant 0 : index
    %c0_2 = arith.constant 0 : index
    %c0_3 = arith.constant 0 : index
    %1 = vector.load %arg2[%c0_1, %c0_2, %c0_3] : memref<4x128x576xf32, #tpu.memory_space<vmem>>, vector<1x128x576xf32>
    %2 = vector.shape_cast %1 : vector<1x128x576xf32> to vector<128x576xf32>
    %cst = arith.constant dense<0.000000e+00> : vector<128x18xf32>
    %3 = tpu.matmul %2, %0, %cst {dimension_numbers = #tpu.dot_dimension_numbers<[1], [0], [0], [1], [0, 0, 1, 1], [], []>} : vector<128x576xf32>, vector<576x18xf32>, vector<128x18xf32> -> vector<128x18xf32>
    %c1 = arith.constant 1 : index
    %c0_4 = arith.constant 0 : index
    %c0_5 = arith.constant 0 : index
    %4 = vector.load %arg2[%c1, %c0_4, %c0_5] : memref<4x128x576xf32, #tpu.memory_space<vmem>>, vector<1x128x576xf32>
    %5 = vector.shape_cast %4 : vector<1x128x576xf32> to vector<128x576xf32>
    %cst_6 = arith.constant dense<0.000000e+00> : vector<128x18xf32>
    %6 = tpu.matmul %5, %0, %cst_6 {dimension_numbers = #tpu.dot_dimension_numbers<[1], [0], [0], [1], [0, 0, 1, 1], [], []>} : vector<128x576xf32>, vector<576x18xf32>, vector<128x18xf32> -> vector<128x18xf32>
    %7 = arith.maximumf %3, %6 : vector<128x18xf32>
    %c2 = arith.constant 2 : index
    %c0_7 = arith.constant 0 : index
    %c0_8 = arith.constant 0 : index
    %8 = vector.load %arg2[%c2, %c0_7, %c0_8] : memref<4x128x576xf32, #tpu.memory_space<vmem>>, vector<1x128x576xf32>
    %9 = vector.shape_cast %8 : vector<1x128x576xf32> to vector<128x576xf32>
    %cst_9 = arith.constant dense<0.000000e+00> : vector<128x18xf32>
    %10 = tpu.matmul %9, %0, %cst_9 {dimension_numbers = #tpu.dot_dimension_numbers<[1], [0], [0], [1], [0, 0, 1, 1], [], []>} : vector<128x576xf32>, vector<576x18xf32>, vector<128x18xf32> -> vector<128x18xf32>
    %11 = arith.maximumf %7, %10 : vector<128x18xf32>
    %c3 = arith.constant 3 : index
    %c0_10 = arith.constant 0 : index
    %c0_11 = arith.constant 0 : index
    %12 = vector.load %arg2[%c3, %c0_10, %c0_11] : memref<4x128x576xf32, #tpu.memory_space<vmem>>, vector<1x128x576xf32>
    %13 = vector.shape_cast %12 : vector<1x128x576xf32> to vector<128x576xf32>
    %cst_12 = arith.constant dense<0.000000e+00> : vector<128x18xf32>
    %14 = tpu.matmul %13, %0, %cst_12 {dimension_numbers = #tpu.dot_dimension_numbers<[1], [0], [0], [1], [0, 0, 1, 1], [], []>} : vector<128x576xf32>, vector<576x18xf32>, vector<128x18xf32> -> vector<128x18xf32>
    %15 = arith.maximumf %11, %14 : vector<128x18xf32>
    %c0_13 = arith.constant 0 : index
    %c0_14 = arith.constant 0 : index
    %16 = vector.load %arg3[%c0_13, %c0_14] : memref<128x1xf32, #tpu.memory_space<vmem>>, vector<128x1xf32>
    %17 = vector.broadcast %16 : vector<128x1xf32> to vector<128x18xf32>
    %18 = arith.addf %15, %17 : vector<128x18xf32>
    %cst_15 = arith.constant 0.000000e+00 : f32
    %19 = vector.broadcast %cst_15 : f32 to vector<128x18xf32>
    %20 = arith.maximumf %18, %19 : vector<128x18xf32>
    %c0_16 = arith.constant 0 : index
    %c0_17 = arith.constant 0 : index
    %21 = vector.load %arg4[%c0_16, %c0_17] : memref<128x18xf32, #tpu.memory_space<vmem>>, vector<128x18xf32>
    tpu.vector_store %arg4[%c0_16, %c0_17], %20 {strides = array<i32>} : memref<128x18xf32, #tpu.memory_space<vmem>>, vector<128x18xf32>,
    return
  }
  func.func @transform_0(%arg0: i32) -> (i32, i32) {
    %c0_i32 = arith.constant 0 : i32
    %c0_i32_0 = arith.constant 0 : i32
    return %c0_i32, %arg0 : i32, i32
  }
  func.func @transform_1(%arg0: i32) -> (i32, i32, i32) {
    %c0_i32 = arith.constant 0 : i32
    %c0_i32_0 = arith.constant 0 : i32
    %c0_i32_1 = arith.constant 0 : i32
    %c0_i32_2 = arith.constant 0 : i32
    return %c0_i32, %c0_i32_0, %c0_i32_1 : i32, i32, i32
  }
  func.func @transform_2(%arg0: i32) -> (i32, i32) {
    %c0_i32 = arith.constant 0 : i32
    %c0_i32_0 = arith.constant 0 : i32
    %c0_i32_1 = arith.constant 0 : i32
    return %c0_i32, %c0_i32_0 : i32, i32
  }
  func.func @transform_3(%arg0: i32) -> (i32, i32) {
    %c0_i32 = arith.constant 0 : i32
    %c0_i32_0 = arith.constant 0 : i32
    return %c0_i32, %arg0 : i32, i32
  }
}

module attributes {stable_mosaic.version = 11 : i64} {
  func.func @_final_stage_kernel(%arg0: memref<1152x2xf32, #tpu.memory_space<vmem>>, %arg1: memref<4x256x1152xf32, #tpu.memory_space<vmem>>, %arg2: memref<256x1xf32, #tpu.memory_space<vmem>>, %arg3: memref<128x256xf32, #tpu.memory_space<vmem>>, %arg4: memref<128x1xf32, #tpu.memory_space<vmem>>, %arg5: memref<2x128xf32, #tpu.memory_space<vmem>>, %arg6: memref<2x1xf32, #tpu.memory_space<vmem>>, %arg7: memref<2x2xf32, #tpu.memory_space<vmem>>) attributes {dimension_semantics = [], scalar_prefetch = 0 : i64, scratch_operands = 0 : i64, tpu.core_type = #tpu.core_type<tc>} {
    %c0 = arith.constant 0 : index
    %c0_0 = arith.constant 0 : index
    %0 = vector.load %arg0[%c0, %c0_0] : memref<1152x2xf32, #tpu.memory_space<vmem>>, vector<1152x2xf32>
    %c0_1 = arith.constant 0 : index
    %c0_2 = arith.constant 0 : index
    %c0_3 = arith.constant 0 : index
    %1 = vector.load %arg1[%c0_1, %c0_2, %c0_3] : memref<4x256x1152xf32, #tpu.memory_space<vmem>>, vector<1x256x1152xf32>
    %2 = vector.shape_cast %1 : vector<1x256x1152xf32> to vector<256x1152xf32>
    %cst = arith.constant dense<0.000000e+00> : vector<256x2xf32>
    %3 = tpu.matmul %2, %0, %cst {dimension_numbers = #tpu.dot_dimension_numbers<[1], [0], [0], [1], [0, 0, 1, 1], [], []>} : vector<256x1152xf32>, vector<1152x2xf32>, vector<256x2xf32> -> vector<256x2xf32>
    %c1 = arith.constant 1 : index
    %c0_4 = arith.constant 0 : index
    %c0_5 = arith.constant 0 : index
    %4 = vector.load %arg1[%c1, %c0_4, %c0_5] : memref<4x256x1152xf32, #tpu.memory_space<vmem>>, vector<1x256x1152xf32>
    %5 = vector.shape_cast %4 : vector<1x256x1152xf32> to vector<256x1152xf32>
    %cst_6 = arith.constant dense<0.000000e+00> : vector<256x2xf32>
    %6 = tpu.matmul %5, %0, %cst_6 {dimension_numbers = #tpu.dot_dimension_numbers<[1], [0], [0], [1], [0, 0, 1, 1], [], []>} : vector<256x1152xf32>, vector<1152x2xf32>, vector<256x2xf32> -> vector<256x2xf32>
    %7 = arith.maximumf %3, %6 : vector<256x2xf32>
    %c2 = arith.constant 2 : index
    %c0_7 = arith.constant 0 : index
    %c0_8 = arith.constant 0 : index
    %8 = vector.load %arg1[%c2, %c0_7, %c0_8] : memref<4x256x1152xf32, #tpu.memory_space<vmem>>, vector<1x256x1152xf32>
    %9 = vector.shape_cast %8 : vector<1x256x1152xf32> to vector<256x1152xf32>
    %cst_9 = arith.constant dense<0.000000e+00> : vector<256x2xf32>
    %10 = tpu.matmul %9, %0, %cst_9 {dimension_numbers = #tpu.dot_dimension_numbers<[1], [0], [0], [1], [0, 0, 1, 1], [], []>} : vector<256x1152xf32>, vector<1152x2xf32>, vector<256x2xf32> -> vector<256x2xf32>
    %11 = arith.maximumf %7, %10 : vector<256x2xf32>
    %c3 = arith.constant 3 : index
    %c0_10 = arith.constant 0 : index
    %c0_11 = arith.constant 0 : index
    %12 = vector.load %arg1[%c3, %c0_10, %c0_11] : memref<4x256x1152xf32, #tpu.memory_space<vmem>>, vector<1x256x1152xf32>
    %13 = vector.shape_cast %12 : vector<1x256x1152xf32> to vector<256x1152xf32>
    %cst_12 = arith.constant dense<0.000000e+00> : vector<256x2xf32>
    %14 = tpu.matmul %13, %0, %cst_12 {dimension_numbers = #tpu.dot_dimension_numbers<[1], [0], [0], [1], [0, 0, 1, 1], [], []>} : vector<256x1152xf32>, vector<1152x2xf32>, vector<256x2xf32> -> vector<256x2xf32>
    %15 = arith.maximumf %11, %14 : vector<256x2xf32>
    %c0_13 = arith.constant 0 : index
    %c0_14 = arith.constant 0 : index
    %16 = vector.load %arg2[%c0_13, %c0_14] : memref<256x1xf32, #tpu.memory_space<vmem>>, vector<256x1xf32>
    %17 = vector.broadcast %16 : vector<256x1xf32> to vector<256x2xf32>
    %18 = arith.addf %15, %17 : vector<256x2xf32>
    %cst_15 = arith.constant 0.000000e+00 : f32
    %19 = vector.broadcast %cst_15 : f32 to vector<256x2xf32>
    %20 = arith.maximumf %18, %19 : vector<256x2xf32>
    %c0_16 = arith.constant 0 : index
    %c0_17 = arith.constant 0 : index
    %21 = vector.load %arg3[%c0_16, %c0_17] : memref<128x256xf32, #tpu.memory_space<vmem>>, vector<128x256xf32>
    %cst_18 = arith.constant dense<0.000000e+00> : vector<128x2xf32>
    %22 = tpu.matmul %21, %20, %cst_18 {dimension_numbers = #tpu.dot_dimension_numbers<[1], [0], [0], [1], [0, 0, 1, 1], [], []>} : vector<128x256xf32>, vector<256x2xf32>, vector<128x2xf32> -> vector<128x2xf32>
    %c0_19 = arith.constant 0 : index
    %c0_20 = arith.constant 0 : index
    %23 = vector.load %arg4[%c0_19, %c0_20] : memref<128x1xf32, #tpu.memory_space<vmem>>, vector<128x1xf32>
    %24 = vector.broadcast %23 : vector<128x1xf32> to vector<128x2xf32>
    %25 = arith.addf %22, %24 : vector<128x2xf32>
    %c0_21 = arith.constant 0 : index
    %c0_22 = arith.constant 0 : index
    %26 = vector.load %arg5[%c0_21, %c0_22] : memref<2x128xf32, #tpu.memory_space<vmem>>, vector<2x128xf32>
    %cst_23 = arith.constant dense<0.000000e+00> : vector<2x2xf32>
    %27 = tpu.matmul %26, %25, %cst_23 {dimension_numbers = #tpu.dot_dimension_numbers<[1], [0], [0], [1], [0, 0, 1, 1], [], []>} : vector<2x128xf32>, vector<128x2xf32>, vector<2x2xf32> -> vector<2x2xf32>
    %c0_24 = arith.constant 0 : index
    %c0_25 = arith.constant 0 : index
    %28 = vector.load %arg6[%c0_24, %c0_25] : memref<2x1xf32, #tpu.memory_space<vmem>>, vector<2x1xf32>
    %29 = vector.broadcast %28 : vector<2x1xf32> to vector<2x2xf32>
    %30 = arith.addf %27, %29 : vector<2x2xf32>
    %c0_26 = arith.constant 0 : index
    %c0_27 = arith.constant 0 : index
    %31 = vector.load %arg7[%c0_26, %c0_27] : memref<2x2xf32, #tpu.memory_space<vmem>>, vector<2x2xf32>
    tpu.vector_store %arg7[%c0_26, %c0_27], %30 {strides = array<i32>} : memref<2x2xf32, #tpu.memory_space<vmem>>, vector<2x2xf32>,
    return
  }
}

</mosaic_0001>

<llo_original>
// kernel: cnn_forward.5
$region0: #{cnn_forward.5}
  #allocation0 [shape = 'u32[]', space=smem, size = 0x4, offset = 0x4, fixed_abs, tag = 'smem constant byte address 0x4 - core index']
  #allocation1 [shape = 'u32[72,128]{1,0:T(1,128)}', space=vmem, size = 0x9000, scoped, tag = 'internal scratch']
  %s0 = inlined_call_operand.vmem [shape: f32[121,2048], index: 0, kind: input, shape index: {}]
  %s1 = inlined_call_operand.vmem [shape: f32[4,16,121], index: 1, kind: input, shape index: {}]
  %s2 = inlined_call_operand.vmem [shape: f32[16,1], index: 2, kind: input, shape index: {}]
  %s3 = inlined_call_operand.vmem [shape: f32[16,2048], index: 3, kind: output, shape index: {}]
  %s4 = sld [smem:[#allocation0]]
  $region87: #{cnn_forward.5} parent=0
    _
  %s6 = ssub.s32 1, %s4
  %s7 = scalar_select 0, %s6, %s4
  $region1: #{cnn_forward.5} parent=0
    #allocation2 [shape = 'u8[1048576]{0}', space=vmem, size = 0x100000, scoped, tag = 'input window, operand 0']
    #allocation3 [shape = 'u8[131072]{0}', space=vmem, size = 0x20000, scoped, tag = 'output window, operand 0']
    loop: start=0, step=1, limit=4
    $region2: #{cnn_forward.5} parent=1 // loop_pre_header
      _
    $region3: #{cnn_forward.5} parent=1 // loop_header
      %s9 = sphi 0, %s13
      %p10 = scmp.ge.s32.totalorder %s9, 4
      %s19 = sphi 0, %s21
      %s22 = sphi 0, %s19
      %s23 = sphi 0, %s22
      %s39 = sphi 0, %s23
      %s43 = sphi 0, %s43
      %s45 = sphi 0, %s43
      %s46 = sphi 0, %s45
      %s60 = sphi 0, %s46
      %s64 = sphi 0, %s64
      %s66 = sphi 0, %s64
      %s67 = sphi 0, %s66
      %s81 = sphi 0, %s67
      %s87 = sphi 0, %s89
      %s90 = sphi 0, %s87
      %s91 = sphi 0, %s90
      %s107 = sphi 0, %s91
    $region4: #{cnn_forward.5} parent=1 // loop_header_branch
      %12 = sbr.rel (%p10) target = $region8
    $region5: #{cnn_forward.5} parent=1 // loop_body
      %s14 = ssub.s32 %s9, 1
      %s15 = ssub.s32 %s9, 2
      %s16 = sadd.s32 %s9, 1
      %s17 = ssub.s32 %s9, %s16
      %p18 = scmp.eq.s32.totalorder %s17, 0
      %s20 = sadd.s32 %s19, 1
      %s21 = scalar_select %p18, %s19, %s20
      %p24 = pneg %p18
      %p25 = scmp.eq.s32.totalorder %s9, 1
      %p26 = por %p24, %p25
      %p27 = scmp.ne.s32.totalorder %s19, %s22
      %p28 = scmp.eq.s32.totalorder %s9, 0
      %p29 = por %p27, %p28
      %p30 = scmp.ne.s32.totalorder %s19, %s22
      %p31 = scmp.eq.s32.totalorder %s14, 1
      %p32 = por %p30, %p31
      %p33 = scmp.ne.s32.totalorder %s22, %s23
      %p34 = scmp.eq.s32.totalorder %s14, 0
      %p35 = por %p33, %p34
      %p36 = scmp.ne.s32.totalorder %s22, %s23
      %p37 = scmp.eq.s32.totalorder %s15, 1
      %p38 = por %p36, %p37
      %p40 = scmp.ne.s32.totalorder %s23, %s39
      %p41 = scmp.eq.s32.totalorder %s15, 0
      %p42 = por %p40, %p41
      %s44 = sadd.s32 %s43, 1
      %p47 = scmp.eq.s32.totalorder %s9, 1
      %p48 = scmp.ne.s32.totalorder %s43, %s45
      %p49 = scmp.eq.s32.totalorder %s9, 0
      %p50 = por %p48, %p49
      %p51 = scmp.ne.s32.totalorder %s43, %s45
      %p52 = scmp.eq.s32.totalorder %s14, 1
      %p53 = por %p51, %p52
      %p54 = scmp.ne.s32.totalorder %s45, %s46
      %p55 = scmp.eq.s32.totalorder %s14, 0
      %p56 = por %p54, %p55
      %p57 = scmp.ne.s32.totalorder %s45, %s46
      %p58 = scmp.eq.s32.totalorder %s15, 1
      %p59 = por %p57, %p58
      %p61 = scmp.ne.s32.totalorder %s46, %s60
      %p62 = scmp.eq.s32.totalorder %s15, 0
      %p63 = por %p61, %p62
      %s65 = sadd.s32 %s64, 1
      %p68 = scmp.eq.s32.totalorder %s9, 1
      %p69 = scmp.ne.s32.totalorder %s64, %s66
      %p70 = scmp.eq.s32.totalorder %s9, 0
      %p71 = por %p69, %p70
      %p72 = scmp.ne.s32.totalorder %s64, %s66
      %p73 = scmp.eq.s32.totalorder %s14, 1
      %p74 = por %p72, %p73
      %p75 = scmp.ne.s32.totalorder %s66, %s67
      %p76 = scmp.eq.s32.totalorder %s14, 0
      %p77 = por %p75, %p76
      %p78 = scmp.ne.s32.totalorder %s66, %s67
      %p79 = scmp.eq.s32.totalorder %s15, 1
      %p80 = por %p78, %p79
      %p82 = scmp.ne.s32.totalorder %s67, %s81
      %p83 = scmp.eq.s32.totalorder %s15, 0
      %p84 = por %p82, %p83
      %s85 = ssub.s32 %s9, %s16
      %p86 = scmp.eq.s32.totalorder %s85, 0
      %s88 = sadd.s32 %s87, 1
      %s89 = scalar_select %p86, %s87, %s88
      %p92 = pneg %p86
      %p93 = scmp.eq.s32.totalorder %s9, 1
      %p94 = por %p92, %p93
      %p95 = scmp.ne.s32.totalorder %s87, %s90
      %p96 = scmp.eq.s32.totalorder %s9, 0
      %p97 = por %p95, %p96
      %p98 = scmp.ne.s32.totalorder %s87, %s90
      %p99 = scmp.eq.s32.totalorder %s14, 1
      %p100 = por %p98, %p99
      %p101 = scmp.ne.s32.totalorder %s90, %s91
      %p102 = scmp.eq.s32.totalorder %s14, 0
      %p103 = por %p101, %p102
      %p104 = scmp.ne.s32.totalorder %s90, %s91
      %p105 = scmp.eq.s32.totalorder %s15, 1
      %p106 = por %p104, %p105
      %p108 = scmp.ne.s32.totalorder %s91, %s107
      %p109 = scmp.eq.s32.totalorder %s15, 0
      %p110 = por %p108, %p109
      %p111 = scmp.le.s32.totalorder 1, %s9
      %p112 = scmp.lt.s32.totalorder %s9, 3
      %p113 = pnand %p111, %p112
      %p114 = pneg %p113
      // Predicated region
      $region9: #{cnn_forward.5} parent=5 // pred_check
        _
      $region10: #{cnn_forward.5} parent=5 // pred_check_branch
        %116 = sbr.rel (%p113) target = $region12
      $region11: #{cnn_forward.5} parent=5 // pred_region
        %s117 = ssub.s32 %s9, 1
        // Predicated region
        $region13: #{cnn_forward.5} parent=11 // pred_check
          %p118 = pneg %p56
        $region14: #{cnn_forward.5} parent=11 // pred_check_branch
          %120 = sbr.rel (%p118) target = $region16
        $region15: #{cnn_forward.5} parent=11 // pred_region
          _
        $region16: #{cnn_forward.5} parent=11 // pred_fallthru
          _
        // Predicated region
        $region17: #{cnn_forward.5} parent=11 // pred_check
          %p121 = pneg %p77
        $region18: #{cnn_forward.5} parent=11 // pred_check_branch
          %123 = sbr.rel (%p121) target = $region20
        $region19: #{cnn_forward.5} parent=11 // pred_region
          _
        $region20: #{cnn_forward.5} parent=11 // pred_fallthru
          _
      $region12: #{cnn_forward.5} parent=5 // pred_fallthru
        _
      %p124 = scmp.lt.s32.totalorder %s9, 2
      // Predicated region
      $region21: #{cnn_forward.5} parent=5 // pred_check
        %p125 = pneg %p124
      $region22: #{cnn_forward.5} parent=5 // pred_check_branch
        %127 = sbr.rel (%p125) target = $region24
      $region23: #{cnn_forward.5} parent=5 // pred_region
        // Predicated region
        $region25: #{cnn_forward.5} parent=23 // pred_check
          %p128 = pneg %p29
        $region26: #{cnn_forward.5} parent=23 // pred_check_branch
          %130 = sbr.rel (%p128) target = $region28
        $region27: #{cnn_forward.5} parent=23 // pred_region
          %s131 = sand.u32 %s19, 1
          %s132 = sand.u32 %s19, 1
          %s133 = smul.addr %s132, 1024
          %s134 = scalar_lea.vmem [#allocation2], %s133
          %s135 = smul.u32 8, %s9
          %s136 = smul.addr %s135, 8
          %s137 = scalar_lea.vmem %s0, %s136
          // Predicated region
          $region29: #{cnn_forward.5} parent=27 // pred_check
            _
          $region30: #{cnn_forward.5} parent=27 // pred_check_branch
            %139 = sbr.rel (0) target = $region32
          $region31: #{cnn_forward.5} parent=27 // pred_region
            // Predicated region
            $region33: #{cnn_forward.5} parent=31 // pred_check
              _
            $region34: #{cnn_forward.5} parent=31 // pred_check_branch
              %141 = sbr.rel (0) target = $region36
            $region35: #{cnn_forward.5} parent=31 // pred_region
              loop: start=0, step=1, limit=1
              $region37: #{cnn_forward.5} parent=35 // loop_pre_header
                _
              $region38: #{cnn_forward.5} parent=35 // loop_header
                %s143 = sphi 0, %s147
                %p144 = scmp.ge.s32.totalorder %s143, 1
                %s148 = sphi %s137, %s137
                %s149 = sphi %s134, %s134
              $region39: #{cnn_forward.5} parent=35 // loop_header_branch
                %146 = sbr.rel (%p144) target = $region43
              $region40: #{cnn_forward.5} parent=35 // loop_body
                %v150 = vld [vmem:[%s148] sm:$0xff]
                %151 = vst [vmem:[%s149] sm:$0xff] %v150
                %v152 = vld [vmem:[%s148 + $0x8] sm:$0xff]
                %153 = vst [vmem:[%s149 + $0x8] sm:$0xff] %v152
                %v154 = vld [vmem:[%s148 + $0x10] sm:$0xff]
                %155 = vst [vmem:[%s149 + $0x10] sm:$0xff] %v154
                %v156 = vld [vmem:[%s148 + $0x18] sm:$0xff]
                %157 = vst [vmem:[%s149 + $0x18] sm:$0xff] %v156
                %v158 = vld [vmem:[%s148 + $0x20] sm:$0xff]
                %159 = vst [vmem:[%s149 + $0x20] sm:$0xff] %v158
                %v160 = vld [vmem:[%s148 + $0x28] sm:$0xff]
                %161 = vst [vmem:[%s149 + $0x28] sm:$0xff] %v160
                %v162 = vld [vmem:[%s148 + $0x30] sm:$0xff]
                %163 = vst [vmem:[%s149 + $0x30] sm:$0xff] %v162
                %v164 = vld [vmem:[%s148 + $0x38] sm:$0xff]
                %165 = vst [vmem:[%s149 + $0x38] sm:$0xff] %v164
                %v166 = vld [vmem:[%s148 + $0x80] sm:$0xff]
                %167 = vst [vmem:[%s149 + $0x40] sm:$0xff] %v166
                %v168 = vld [vmem:[%s148 + $0x88] sm:$0xff]
                %169 = vst [vmem:[%s149 + $0x48] sm:$0xff] %v168
                %v170 = vld [vmem:[%s148 + $0x90] sm:$0xff]
                %171 = vst [vmem:[%s149 + $0x50] sm:$0xff] %v170
                %v172 = vld [vmem:[%s148 + $0x98] sm:$0xff]
                %173 = vst [vmem:[%s149 + $0x58] sm:$0xff] %v172
                %v174 = vld [vmem:[%s148 + $0xa0] sm:$0xff]
                %175 = vst [vmem:[%s149 + $0x60] sm:$0xff] %v174
                %v176 = vld [vmem:[%s148 + $0xa8] sm:$0xff]
                %177 = vst [vmem:[%s149 + $0x68] sm:$0xff] %v176
                %v178 = vld [vmem:[%s148 + $0xb0] sm:$0xff]
                %179 = vst [vmem:[%s149 + $0x70] sm:$0xff] %v178
                %v180 = vld [vmem:[%s148 + $0xb8] sm:$0xff]
                %181 = vst [vmem:[%s149 + $0x78] sm:$0xff] %v180
                %v182 = vld [vmem:[%s148 + $0x100] sm:$0xff]
                %183 = vst [vmem:[%s149 + $0x80] sm:$0xff] %v182
                %v184 = vld [vmem:[%s148 + $0x108] sm:$0xff]
                %185 = vst [vmem:[%s149 + $0x88] sm:$0xff] %v184
                %v186 = vld [vmem:[%s148 + $0x110] sm:$0xff]
                %187 = vst [vmem:[%s149 + $0x90] sm:$0xff] %v186
                %v188 = vld [vmem:[%s148 + $0x118] sm:$0xff]
                %189 = vst [vmem:[%s149 + $0x98] sm:$0xff] %v188
                %v190 = vld [vmem:[%s148 + $0x120] sm:$0xff]
                %191 = vst [vmem:[%s149 + $0xa0] sm:$0xff] %v190
                %v192 = vld [vmem:[%s148 + $0x128] sm:$0xff]
                %193 = vst [vmem:[%s149 + $0xa8] sm:$0xff] %v192
                %v194 = vld [vmem:[%s148 + $0x130] sm:$0xff]
                %195 = vst [vmem:[%s149 + $0xb0] sm:$0xff] %v194
                %v196 = vld [vmem:[%s148 + $0x138] sm:$0xff]
                %197 = vst [vmem:[%s149 + $0xb8] sm:$0xff] %v196
                %v198 = vld [vmem:[%s148 + $0x180] sm:$0xff]
                %199 = vst [vmem:[%s149 + $0xc0] sm:$0xff] %v198
                %v200 = vld [vmem:[%s148 + $0x188] sm:$0xff]
                %201 = vst [vmem:[%s149 + $0xc8] sm:$0xff] %v200
                %v202 = vld [vmem:[%s148 + $0x190] sm:$0xff]
                %203 = vst [vmem:[%s149 + $0xd0] sm:$0xff] %v202
                %v204 = vld [vmem:[%s148 + $0x198] sm:$0xff]
                %205 = vst [vmem:[%s149 + $0xd8] sm:$0xff] %v204
                %v206 = vld [vmem:[%s148 + $0x1a0] sm:$0xff]
                %207 = vst [vmem:[%s149 + $0xe0] sm:$0xff] %v206
                %v208 = vld [vmem:[%s148 + $0x1a8] sm:$0xff]
                %209 = vst [vmem:[%s149 + $0xe8] sm:$0xff] %v208
                %v210 = vld [vmem:[%s148 + $0x1b0] sm:$0xff]
                %211 = vst [vmem:[%s149 + $0xf0] sm:$0xff] %v210
                %v212 = vld [vmem:[%s148 + $0x1b8] sm:$0xff]
                %213 = vst [vmem:[%s149 + $0xf8] sm:$0xff] %v212
                %v214 = vld [vmem:[%s148 + $0x200] sm:$0xff]
                %215 = vst [vmem:[%s149 + $0x100] sm:$0xff] %v214
                %v216 = vld [vmem:[%s148 + $0x208] sm:$0xff]
                %217 = vst [vmem:[%s149 + $0x108] sm:$0xff] %v216
                %v218 = vld [vmem:[%s148 + $0x210] sm:$0xff]
                %219 = vst [vmem:[%s149 + $0x110] sm:$0xff] %v218
                %v220 = vld [vmem:[%s148 + $0x218] sm:$0xff]
                %221 = vst [vmem:[%s149 + $0x118] sm:$0xff] %v220
                %v222 = vld [vmem:[%s148 + $0x220] sm:$0xff]
                %223 = vst [vmem:[%s149 + $0x120] sm:$0xff] %v222
                %v224 = vld [vmem:[%s148 + $0x228] sm:$0xff]
                %225 = vst [vmem:[%s149 + $0x128] sm:$0xff] %v224
                %v226 = vld [vmem:[%s148 + $0x230] sm:$0xff]
                %227 = vst [vmem:[%s149 + $0x130] sm:$0xff] %v226
                %v228 = vld [vmem:[%s148 + $0x238] sm:$0xff]
                %229 = vst [vmem:[%s149 + $0x138] sm:$0xff] %v228
                %v230 = vld [vmem:[%s148 + $0x280] sm:$0xff]
                %231 = vst [vmem:[%s149 + $0x140] sm:$0xff] %v230
                %v232 = vld [vmem:[%s148 + $0x288] sm:$0xff]
                %233 = vst [vmem:[%s149 + $0x148] sm:$0xff] %v232
                %v234 = vld [vmem:[%s148 + $0x290] sm:$0xff]
                %235 = vst [vmem:[%s149 + $0x150] sm:$0xff] %v234
                %v236 = vld [vmem:[%s148 + $0x298] sm:$0xff]
                %237 = vst [vmem:[%s149 + $0x158] sm:$0xff] %v236
                %v238 = vld [vmem:[%s148 + $0x2a0] sm:$0xff]
                %239 = vst [vmem:[%s149 + $0x160] sm:$0xff] %v238
                %v240 = vld [vmem:[%s148 + $0x2a8] sm:$0xff]
                %241 = vst [vmem:[%s149 + $0x168] sm:$0xff] %v240
                %v242 = vld [vmem:[%s148 + $0x2b0] sm:$0xff]
                %243 = vst [vmem:[%s149 + $0x170] sm:$0xff] %v242
                %v244 = vld [vmem:[%s148 + $0x2b8] sm:$0xff]
                %245 = vst [vmem:[%s149 + $0x178] sm:$0xff] %v244
                %v246 = vld [vmem:[%s148 + $0x300] sm:$0xff]
                %247 = vst [vmem:[%s149 + $0x180] sm:$0xff] %v246
                %v248 = vld [vmem:[%s148 + $0x308] sm:$0xff]
                %249 = vst [vmem:[%s149 + $0x188] sm:$0xff] %v248
                %v250 = vld [vmem:[%s148 + $0x310] sm:$0xff]
                %251 = vst [vmem:[%s149 + $0x190] sm:$0xff] %v250
                %v252 = vld [vmem:[%s148 + $0x318] sm:$0xff]
                %253 = vst [vmem:[%s149 + $0x198] sm:$0xff] %v252
                %v254 = vld [vmem:[%s148 + $0x320] sm:$0xff]
                %255 = vst [vmem:[%s149 + $0x1a0] sm:$0xff] %v254
                %v256 = vld [vmem:[%s148 + $0x328] sm:$0xff]
                %257 = vst [vmem:[%s149 + $0x1a8] sm:$0xff] %v256
                %v258 = vld [vmem:[%s148 + $0x330] sm:$0xff]
                %259 = vst [vmem:[%s149 + $0x1b0] sm:$0xff] %v258
                %v260 = vld [vmem:[%s148 + $0x338] sm:$0xff]
                %261 = vst [vmem:[%s149 + $0x1b8] sm:$0xff] %v260
                %v262 = vld [vmem:[%s148 + $0x380] sm:$0xff]
                %263 = vst [vmem:[%s149 + $0x1c0] sm:$0xff] %v262
                %v264 = vld [vmem:[%s148 + $0x388] sm:$0xff]
                %265 = vst [vmem:[%s149 + $0x1c8] sm:$0xff] %v264
                %v266 = vld [vmem:[%s148 + $0x390] sm:$0xff]
                %267 = vst [vmem:[%s149 + $0x1d0] sm:$0xff] %v266
                %v268 = vld [vmem:[%s148 + $0x398] sm:$0xff]
                %269 = vst [vmem:[%s149 + $0x1d8] sm:$0xff] %v268
                %v270 = vld [vmem:[%s148 + $0x3a0] sm:$0xff]
                %271 = vst [vmem:[%s149 + $0x1e0] sm:$0xff] %v270
                %v272 = vld [vmem:[%s148 + $0x3a8] sm:$0xff]
                %273 = vst [vmem:[%s149 + $0x1e8] sm:$0xff] %v272
                %v274 = vld [vmem:[%s148 + $0x3b0] sm:$0xff]
                %275 = vst [vmem:[%s149 + $0x1f0] sm:$0xff] %v274
                %v276 = vld [vmem:[%s148 + $0x3b8] sm:$0xff]
                %277 = vst [vmem:[%s149 + $0x1f8] sm:$0xff] %v276
                %v278 = vld [vmem:[%s148 + $0x400] sm:$0xff]
                %279 = vst [vmem:[%s149 + $0x200] sm:$0xff] %v278
                %v280 = vld [vmem:[%s148 + $0x408] sm:$0xff]
                %281 = vst [vmem:[%s149 + $0x208] sm:$0xff] %v280
                %v282 = vld [vmem:[%s148 + $0x410] sm:$0xff]
                %283 = vst [vmem:[%s149 + $0x210] sm:$0xff] %v282
                %v284 = vld [vmem:[%s148 + $0x418] sm:$0xff]
                %285 = vst [vmem:[%s149 + $0x218] sm:$0xff] %v284
                %v286 = vld [vmem:[%s148 + $0x420] sm:$0xff]
                %287 = vst [vmem:[%s149 + $0x220] sm:$0xff] %v286
                %v288 = vld [vmem:[%s148 + $0x428] sm:$0xff]
                %289 = vst [vmem:[%s149 + $0x228] sm:$0xff] %v288
                %v290 = vld [vmem:[%s148 + $0x430] sm:$0xff]
                %291 = vst [vmem:[%s149 + $0x230] sm:$0xff] %v290
                %v292 = vld [vmem:[%s148 + $0x438] sm:$0xff]
                %293 = vst [vmem:[%s149 + $0x238] sm:$0xff] %v292
                %v294 = vld [vmem:[%s148 + $0x480] sm:$0xff]
                %295 = vst [vmem:[%s149 + $0x240] sm:$0xff] %v294
                %v296 = vld [vmem:[%s148 + $0x488] sm:$0xff]
                %297 = vst [vmem:[%s149 + $0x248] sm:$0xff] %v296
                %v298 = vld [vmem:[%s148 + $0x490] sm:$0xff]
                %299 = vst [vmem:[%s149 + $0x250] sm:$0xff] %v298
                %v300 = vld [vmem:[%s148 + $0x498] sm:$0xff]
                %301 = vst [vmem:[%s149 + $0x258] sm:$0xff] %v300
                %v302 = vld [vmem:[%s148 + $0x4a0] sm:$0xff]
                %303 = vst [vmem:[%s149 + $0x260] sm:$0xff] %v302
                %v304 = vld [vmem:[%s148 + $0x4a8] sm:$0xff]
                %305 = vst [vmem:[%s149 + $0x268] sm:$0xff] %v304
                %v306 = vld [vmem:[%s148 + $0x4b0] sm:$0xff]
                %307 = vst [vmem:[%s149 + $0x270] sm:$0xff] %v306
                %v308 = vld [vmem:[%s148 + $0x4b8] sm:$0xff]
                %309 = vst [vmem:[%s149 + $0x278] sm:$0xff] %v308
                %v310 = vld [vmem:[%s148 + $0x500] sm:$0xff]
                %311 = vst [vmem:[%s149 + $0x280] sm:$0xff] %v310
                %v312 = vld [vmem:[%s148 + $0x508] sm:$0xff]
                %313 = vst [vmem:[%s149 + $0x288] sm:$0xff] %v312
                %v314 = vld [vmem:[%s148 + $0x510] sm:$0xff]
                %315 = vst [vmem:[%s149 + $0x290] sm:$0xff] %v314
                %v316 = vld [vmem:[%s148 + $0x518] sm:$0xff]
                %317 = vst [vmem:[%s149 + $0x298] sm:$0xff] %v316
                %v318 = vld [vmem:[%s148 + $0x520] sm:$0xff]
                %319 = vst [vmem:[%s149 + $0x2a0] sm:$0xff] %v318
                %v320 = vld [vmem:[%s148 + $0x528] sm:$0xff]
                %321 = vst [vmem:[%s149 + $0x2a8] sm:$0xff] %v320
                %v322 = vld [vmem:[%s148 + $0x530] sm:$0xff]
                %323 = vst [vmem:[%s149 + $0x2b0] sm:$0xff] %v322
                %v324 = vld [vmem:[%s148 + $0x538] sm:$0xff]
                %325 = vst [vmem:[%s149 + $0x2b8] sm:$0xff] %v324
                %v326 = vld [vmem:[%s148 + $0x580] sm:$0xff]
                %327 = vst [vmem:[%s149 + $0x2c0] sm:$0xff] %v326
                %v328 = vld [vmem:[%s148 + $0x588] sm:$0xff]
                %329 = vst [vmem:[%s149 + $0x2c8] sm:$0xff] %v328
                %v330 = vld [vmem:[%s148 + $0x590] sm:$0xff]
                %331 = vst [vmem:[%s149 + $0x2d0] sm:$0xff] %v330
                %v332 = vld [vmem:[%s148 + $0x598] sm:$0xff]
                %333 = vst [vmem:[%s149 + $0x2d8] sm:$0xff] %v332
                %v334 = vld [vmem:[%s148 + $0x5a0] sm:$0xff]
                %335 = vst [vmem:[%s149 + $0x2e0] sm:$0xff] %v334
                %v336 = vld [vmem:[%s148 + $0x5a8] sm:$0xff]
                %337 = vst [vmem:[%s149 + $0x2e8] sm:$0xff] %v336
                %v338 = vld [vmem:[%s148 + $0x5b0] sm:$0xff]
                %339 = vst [vmem:[%s149 + $0x2f0] sm:$0xff] %v338
                %v340 = vld [vmem:[%s148 + $0x5b8] sm:$0xff]
                %341 = vst [vmem:[%s149 + $0x2f8] sm:$0xff] %v340
                %v342 = vld [vmem:[%s148 + $0x600] sm:$0xff]
                %343 = vst [vmem:[%s149 + $0x300] sm:$0xff] %v342
                %v344 = vld [vmem:[%s148 + $0x608] sm:$0xff]
                %345 = vst [vmem:[%s149 + $0x308] sm:$0xff] %v344
                %v346 = vld [vmem:[%s148 + $0x610] sm:$0xff]
                %347 = vst [vmem:[%s149 + $0x310] sm:$0xff] %v346
                %v348 = vld [vmem:[%s148 + $0x618] sm:$0xff]
                %349 = vst [vmem:[%s149 + $0x318] sm:$0xff] %v348
                %v350 = vld [vmem:[%s148 + $0x620] sm:$0xff]
                %351 = vst [vmem:[%s149 + $0x320] sm:$0xff] %v350
                %v352 = vld [vmem:[%s148 + $0x628] sm:$0xff]
                %353 = vst [vmem:[%s149 + $0x328] sm:$0xff] %v352
                %v354 = vld [vmem:[%s148 + $0x630] sm:$0xff]
                %355 = vst [vmem:[%s149 + $0x330] sm:$0xff] %v354
                %v356 = vld [vmem:[%s148 + $0x638] sm:$0xff]
                %357 = vst [vmem:[%s149 + $0x338] sm:$0xff] %v356
                %v358 = vld [vmem:[%s148 + $0x680] sm:$0xff]
                %359 = vst [vmem:[%s149 + $0x340] sm:$0xff] %v358
                %v360 = vld [vmem:[%s148 + $0x688] sm:$0xff]
                %361 = vst [vmem:[%s149 + $0x348] sm:$0xff] %v360
                %v362 = vld [vmem:[%s148 + $0x690] sm:$0xff]
                %363 = vst [vmem:[%s149 + $0x350] sm:$0xff] %v362
                %v364 = vld [vmem:[%s148 + $0x698] sm:$0xff]
                %365 = vst [vmem:[%s149 + $0x358] sm:$0xff] %v364
                %v366 = vld [vmem:[%s148 + $0x6a0] sm:$0xff]
                %367 = vst [vmem:[%s149 + $0x360] sm:$0xff] %v366
                %v368 = vld [vmem:[%s148 + $0x6a8] sm:$0xff]
                %369 = vst [vmem:[%s149 + $0x368] sm:$0xff] %v368
                %v370 = vld [vmem:[%s148 + $0x6b0] sm:$0xff]
                %371 = vst [vmem:[%s149 + $0x370] sm:$0xff] %v370
                %v372 = vld [vmem:[%s148 + $0x6b8] sm:$0xff]
                %373 = vst [vmem:[%s149 + $0x378] sm:$0xff] %v372
                %v374 = vld [vmem:[%s148 + $0x700] sm:$0xff]
                %375 = vst [vmem:[%s149 + $0x380] sm:$0xff] %v374
                %v376 = vld [vmem:[%s148 + $0x708] sm:$0xff]
                %377 = vst [vmem:[%s149 + $0x388] sm:$0xff] %v376
                %v378 = vld [vmem:[%s148 + $0x710] sm:$0xff]
                %379 = vst [vmem:[%s149 + $0x390] sm:$0xff] %v378
                %v380 = vld [vmem:[%s148 + $0x718] sm:$0xff]
                %381 = vst [vmem:[%s149 + $0x398] sm:$0xff] %v380
                %v382 = vld [vmem:[%s148 + $0x720] sm:$0xff]
                %383 = vst [vmem:[%s149 + $0x3a0] sm:$0xff] %v382
                %v384 = vld [vmem:[%s148 + $0x728] sm:$0xff]
                %385 = vst [vmem:[%s149 + $0x3a8] sm:$0xff] %v384
                %v386 = vld [vmem:[%s148 + $0x730] sm:$0xff]
                %387 = vst [vmem:[%s149 + $0x3b0] sm:$0xff] %v386
                %v388 = vld [vmem:[%s148 + $0x738] sm:$0xff]
                %389 = vst [vmem:[%s149 + $0x3b8] sm:$0xff] %v388
                %v390 = vld [vmem:[%s148 + $0x780] sm:$0xff]
                %391 = vst [vmem:[%s149 + $0x3c0] sm:$0xff] %v390
                %v392 = vld [vmem:[%s148 + $0x788] sm:$0xff]
                %393 = vst [vmem:[%s149 + $0x3c8] sm:$0xff] %v392
                %v394 = vld [vmem:[%s148 + $0x790] sm:$0xff]
                %395 = vst [vmem:[%s149 + $0x3d0] sm:$0xff] %v394
                %v396 = vld [vmem:[%s148 + $0x798] sm:$0xff]
                %397 = vst [vmem:[%s149 + $0x3d8] sm:$0xff] %v396
                %v398 = vld [vmem:[%s148 + $0x7a0] sm:$0xff]
                %399 = vst [vmem:[%s149 + $0x3e0] sm:$0xff] %v398
                %v400 = vld [vmem:[%s148 + $0x7a8] sm:$0xff]
                %401 = vst [vmem:[%s149 + $0x3e8] sm:$0xff] %v400
                %v402 = vld [vmem:[%s148 + $0x7b0] sm:$0xff]
                %403 = vst [vmem:[%s149 + $0x3f0] sm:$0xff] %v402
                %v404 = vld [vmem:[%s148 + $0x7b8] sm:$0xff]
                %405 = vst [vmem:[%s149 + $0x3f8] sm:$0xff] %v404
              $region41: #{cnn_forward.5} parent=35 // loop_footer
                %s147 = sadd.s32 1, %s143
              $region42: #{cnn_forward.5} parent=35 // loop_footer_branch
                %142 = sbr.rel target = $region38
              $region43: #{cnn_forward.5} parent=35 // loop_exit
                _
            $region36: #{cnn_forward.5} parent=31 // pred_fallthru
              _
            // Predicated region
            $region44: #{cnn_forward.5} parent=31 // pred_check
              _
            $region45: #{cnn_forward.5} parent=31 // pred_check_branch
              %407 = sbr.rel target = $region47
            $region46: #{cnn_forward.5} parent=31 // pred_region
              _
            $region47: #{cnn_forward.5} parent=31 // pred_fallthru
              _
          $region32: #{cnn_forward.5} parent=27 // pred_fallthru
            _
          %408 = vnop
        $region28: #{cnn_forward.5} parent=23 // pred_fallthru
          _
      $region24: #{cnn_forward.5} parent=5 // pred_fallthru
        _
      %p409 = scmp.le.s32.totalorder 1, %s9
      %p410 = scmp.lt.s32.totalorder %s9, 3
      %p411 = pnand %p409, %p410
      %p412 = pneg %p411
      // Predicated region
      $region48: #{cnn_forward.5} parent=5 // pred_check
        _
      $region49: #{cnn_forward.5} parent=5 // pred_check_branch
        %414 = sbr.rel (%p411) target = $region51
      $region50: #{cnn_forward.5} parent=5 // pred_region
        %s415 = ssub.s32 %s9, 1
        %s416 = sand.u32 %s22, 1
        %s417 = sand.u32 %s22, 1
        %s418 = smul.addr %s417, 1024
        %s419 = scalar_lea.vmem [#allocation2], %s418
        // Predicated region
        $region52: #{cnn_forward.5} parent=50 // pred_check
          %p420 = pneg %p35
        $region53: #{cnn_forward.5} parent=50 // pred_check_branch
          %422 = sbr.rel (%p420) target = $region55
        $region54: #{cnn_forward.5} parent=50 // pred_region
          _
        $region55: #{cnn_forward.5} parent=50 // pred_fallthru
          _
        %s423 = sand.u32 %s22, 1
        %s424 = sand.u32 %s22, 1
        %s425 = smul.addr %s424, 1024
        %s426 = scalar_lea.vmem [#allocation2], %s425
        %p427 = pneg %p35
        %p428 = pneg %p32
        %p429 = pneg %p56
        %p430 = pneg %p53
        %p431 = pneg %p77
        %p432 = pneg %p74
        %p433 = pneg %p103
        %p434 = pneg %p100
        %s435 = sand.u32 %s90, 1
        %s436 = sand.u32 %s90, 1
        %s437 = smul.addr %s436, 128
        %s438 = scalar_lea.vmem [#allocation3], %s437
        %s439 = smul.u32 8, %s14
        %s440 = smul.u32 8, %s14
        %v441 = vld [vmem:[%s419] sm:$0xff]
        %v442 = vld [vmem:[%s419 + $0x8] sm:$0xff]
        %v443 = vld [vmem:[%s419 + $0x10] sm:$0xff]
        %v444 = vld [vmem:[%s419 + $0x18] sm:$0xff]
        %v445 = vld [vmem:[%s419 + $0x20] sm:$0xff]
        %v446 = vld [vmem:[%s419 + $0x28] sm:$0xff]
        %v447 = vld [vmem:[%s419 + $0x30] sm:$0xff]
        %v448 = vld [vmem:[%s419 + $0x38] sm:$0xff]
        %v449 = vld [vmem:[%s419 + $0x40] sm:$0xff]
        %v450 = vld [vmem:[%s419 + $0x48] sm:$0xff]
        %v451 = vld [vmem:[%s419 + $0x50] sm:$0xff]
        %v452 = vld [vmem:[%s419 + $0x58] sm:$0xff]
        %v453 = vld [vmem:[%s419 + $0x60] sm:$0xff]
        %v454 = vld [vmem:[%s419 + $0x68] sm:$0xff]
        %v455 = vld [vmem:[%s419 + $0x70] sm:$0xff]
        %v456 = vld [vmem:[%s419 + $0x78] sm:$0xff]
        %v457 = vld [vmem:[%s419 + $0x80] sm:$0xff]
        %v458 = vld [vmem:[%s419 + $0x88] sm:$0xff]
        %v459 = vld [vmem:[%s419 + $0x90] sm:$0xff]
        %v460 = vld [vmem:[%s419 + $0x98] sm:$0xff]
        %v461 = vld [vmem:[%s419 + $0xa0] sm:$0xff]
        %v462 = vld [vmem:[%s419 + $0xa8] sm:$0xff]
        %v463 = vld [vmem:[%s419 + $0xb0] sm:$0xff]
        %v464 = vld [vmem:[%s419 + $0xb8] sm:$0xff]
        %v465 = vld [vmem:[%s419 + $0xc0] sm:$0xff]
        %v466 = vld [vmem:[%s419 + $0xc8] sm:$0xff]
        %v467 = vld [vmem:[%s419 + $0xd0] sm:$0xff]
        %v468 = vld [vmem:[%s419 + $0xd8] sm:$0xff]
        %v469 = vld [vmem:[%s419 + $0xe0] sm:$0xff]
        %v470 = vld [vmem:[%s419 + $0xe8] sm:$0xff]
        %v471 = vld [vmem:[%s419 + $0xf0] sm:$0xff]
        %v472 = vld [vmem:[%s419 + $0xf8] sm:$0xff]
        %v473 = vld [vmem:[%s419 + $0x100] sm:$0xff]
        %v474 = vld [vmem:[%s419 + $0x108] sm:$0xff]
        %v475 = vld [vmem:[%s419 + $0x110] sm:$0xff]
        %v476 = vld [vmem:[%s419 + $0x118] sm:$0xff]
        %v477 = vld [vmem:[%s419 + $0x120] sm:$0xff]
        %v478 = vld [vmem:[%s419 + $0x128] sm:$0xff]
        %v479 = vld [vmem:[%s419 + $0x130] sm:$0xff]
        %v480 = vld [vmem:[%s419 + $0x138] sm:$0xff]
        %v481 = vld [vmem:[%s419 + $0x140] sm:$0xff]
        %v482 = vld [vmem:[%s419 + $0x148] sm:$0xff]
        %v483 = vld [vmem:[%s419 + $0x150] sm:$0xff]
        %v484 = vld [vmem:[%s419 + $0x158] sm:$0xff]
        %v485 = vld [vmem:[%s419 + $0x160] sm:$0xff]
        %v486 = vld [vmem:[%s419 + $0x168] sm:$0xff]
        %v487 = vld [vmem:[%s419 + $0x170] sm:$0xff]
        %v488 = vld [vmem:[%s419 + $0x178] sm:$0xff]
        %v489 = vld [vmem:[%s419 + $0x180] sm:$0xff]
        %v490 = vld [vmem:[%s419 + $0x188] sm:$0xff]
        %v491 = vld [vmem:[%s419 + $0x190] sm:$0xff]
        %v492 = vld [vmem:[%s419 + $0x198] sm:$0xff]
        %v493 = vld [vmem:[%s419 + $0x1a0] sm:$0xff]
        %v494 = vld [vmem:[%s419 + $0x1a8] sm:$0xff]
        %v495 = vld [vmem:[%s419 + $0x1b0] sm:$0xff]
        %v496 = vld [vmem:[%s419 + $0x1b8] sm:$0xff]
        %v497 = vld [vmem:[%s419 + $0x1c0] sm:$0xff]
        %v498 = vld [vmem:[%s419 + $0x1c8] sm:$0xff]
        %v499 = vld [vmem:[%s419 + $0x1d0] sm:$0xff]
        %v500 = vld [vmem:[%s419 + $0x1d8] sm:$0xff]
        %v501 = vld [vmem:[%s419 + $0x1e0] sm:$0xff]
        %v502 = vld [vmem:[%s419 + $0x1e8] sm:$0xff]
        %v503 = vld [vmem:[%s419 + $0x1f0] sm:$0xff]
        %v504 = vld [vmem:[%s419 + $0x1f8] sm:$0xff]
        %v505 = vld [vmem:[%s419 + $0x200] sm:$0xff]
        %v506 = vld [vmem:[%s419 + $0x208] sm:$0xff]
        %v507 = vld [vmem:[%s419 + $0x210] sm:$0xff]
        %v508 = vld [vmem:[%s419 + $0x218] sm:$0xff]
        %v509 = vld [vmem:[%s419 + $0x220] sm:$0xff]
        %v510 = vld [vmem:[%s419 + $0x228] sm:$0xff]
        %v511 = vld [vmem:[%s419 + $0x230] sm:$0xff]
        %v512 = vld [vmem:[%s419 + $0x238] sm:$0xff]
        %v513 = vld [vmem:[%s419 + $0x240] sm:$0xff]
        %v514 = vld [vmem:[%s419 + $0x248] sm:$0xff]
        %v515 = vld [vmem:[%s419 + $0x250] sm:$0xff]
        %v516 = vld [vmem:[%s419 + $0x258] sm:$0xff]
        %v517 = vld [vmem:[%s419 + $0x260] sm:$0xff]
        %v518 = vld [vmem:[%s419 + $0x268] sm:$0xff]
        %v519 = vld [vmem:[%s419 + $0x270] sm:$0xff]
        %v520 = vld [vmem:[%s419 + $0x278] sm:$0xff]
        %v521 = vld [vmem:[%s419 + $0x280] sm:$0xff]
        %v522 = vld [vmem:[%s419 + $0x288] sm:$0xff]
        %v523 = vld [vmem:[%s419 + $0x290] sm:$0xff]
        %v524 = vld [vmem:[%s419 + $0x298] sm:$0xff]
        %v525 = vld [vmem:[%s419 + $0x2a0] sm:$0xff]
        %v526 = vld [vmem:[%s419 + $0x2a8] sm:$0xff]
        %v527 = vld [vmem:[%s419 + $0x2b0] sm:$0xff]
        %v528 = vld [vmem:[%s419 + $0x2b8] sm:$0xff]
        %v529 = vld [vmem:[%s419 + $0x2c0] sm:$0xff]
        %v530 = vld [vmem:[%s419 + $0x2c8] sm:$0xff]
        %v531 = vld [vmem:[%s419 + $0x2d0] sm:$0xff]
        %v532 = vld [vmem:[%s419 + $0x2d8] sm:$0xff]
        %v533 = vld [vmem:[%s419 + $0x2e0] sm:$0xff]
        %v534 = vld [vmem:[%s419 + $0x2e8] sm:$0xff]
        %v535 = vld [vmem:[%s419 + $0x2f0] sm:$0xff]
        %v536 = vld [vmem:[%s419 + $0x2f8] sm:$0xff]
        %v537 = vld [vmem:[%s419 + $0x300] sm:$0xff]
        %v538 = vld [vmem:[%s419 + $0x308] sm:$0xff]
        %v539 = vld [vmem:[%s419 + $0x310] sm:$0xff]
        %v540 = vld [vmem:[%s419 + $0x318] sm:$0xff]
        %v541 = vld [vmem:[%s419 + $0x320] sm:$0xff]
        %v542 = vld [vmem:[%s419 + $0x328] sm:$0xff]
        %v543 = vld [vmem:[%s419 + $0x330] sm:$0xff]
        %v544 = vld [vmem:[%s419 + $0x338] sm:$0xff]
        %v545 = vld [vmem:[%s419 + $0x340] sm:$0xff]
        %v546 = vld [vmem:[%s419 + $0x348] sm:$0xff]
        %v547 = vld [vmem:[%s419 + $0x350] sm:$0xff]
        %v548 = vld [vmem:[%s419 + $0x358] sm:$0xff]
        %v549 = vld [vmem:[%s419 + $0x360] sm:$0xff]
        %v550 = vld [vmem:[%s419 + $0x368] sm:$0xff]
        %v551 = vld [vmem:[%s419 + $0x370] sm:$0xff]
        %v552 = vld [vmem:[%s419 + $0x378] sm:$0xff]
        %v553 = vld [vmem:[%s419 + $0x380] sm:$0xff]
        %v554 = vld [vmem:[%s419 + $0x388] sm:$0xff]
        %v555 = vld [vmem:[%s419 + $0x390] sm:$0xff]
        %v556 = vld [vmem:[%s419 + $0x398] sm:$0xff]
        %v557 = vld [vmem:[%s419 + $0x3a0] sm:$0xff]
        %v558 = vld [vmem:[%s419 + $0x3a8] sm:$0xff]
        %v559 = vld [vmem:[%s419 + $0x3b0] sm:$0xff]
        %v560 = vld [vmem:[%s419 + $0x3b8] sm:$0xff]
        %v561 = vld [vmem:[%s419 + $0x3c0] sm:$0x1]
        %v562 = vld [vmem:[%s419 + $0x3c8] sm:$0x1]
        %v563 = vld [vmem:[%s419 + $0x3d0] sm:$0x1]
        %v564 = vld [vmem:[%s419 + $0x3d8] sm:$0x1]
        %v565 = vld [vmem:[%s419 + $0x3e0] sm:$0x1]
        %v566 = vld [vmem:[%s419 + $0x3e8] sm:$0x1]
        %v567 = vld [vmem:[%s419 + $0x3f0] sm:$0x1]
        %v568 = vld [vmem:[%s419 + $0x3f8] sm:$0x1]
        %v569 = vld [vmem:[%s1] sm:$0xff]
        %v570 = vld [vmem:[%s1 + $0x8] sm:$0xff]
        %vm571 = vcmask 990208
        %v573 = vsel %vm571, %v569, 0
        %v576 = vsel %vm571, %v570, 0
        %vm578 = vcmask 1040384
        %v580 = vsel %vm578, %v561, 0
        %v583 = vsel %vm578, %v562, 0
        %v586 = vsel %vm578, %v563, 0
        %v589 = vsel %vm578, %v564, 0
        %v592 = vsel %vm578, %v565, 0
        %v595 = vsel %vm578, %v566, 0
        %v598 = vsel %vm578, %v567, 0
        %v601 = vsel %vm578, %v568, 0
        %603 = vmatpush.msra.mxu0 %v580
        %604 = vmatpush.msra.mxu0 %v553
        %605 = vmatpush.msra.mxu0 %v545
        %606 = vmatpush.msra.mxu0 %v537
        %607 = vmatpush.msra.mxu0 %v529
        %608 = vmatpush.msra.mxu0 %v521
        %609 = vmatpush.msra.mxu0 %v513
        %610 = vmatpush.msra.mxu0 %v505
        %611 = vmatpush.msra.mxu0 %v497
        %612 = vmatpush.msra.mxu0 %v489
        %613 = vmatpush.msra.mxu0 %v481
        %614 = vmatpush.msra.mxu0 %v473
        %615 = vmatpush.msra.mxu0 %v465
        %616 = vmatpush.msra.mxu0 %v457
        %617 = vmatpush.msra.mxu0 %v449
        %618 = vmatpush.msra.mxu0 %v441
        %619 = vmatmul.f32.gmra.mxu0 %v573
        %v620 = vpop.f32.mrf.mxu0
        %v621 = vadd.f32 0.0, %v620
        %622 = vmatmul.f32.gmra.mxu0 %v576
        %v623 = vpop.f32.mrf.mxu0
        %v624 = vadd.f32 0.0, %v623
        %625 = vdwg.mxu0
        %626 = vmatpush.msra.mxu0 %v583
        %627 = vmatpush.msra.mxu0 %v554
        %628 = vmatpush.msra.mxu0 %v546
        %629 = vmatpush.msra.mxu0 %v538
        %630 = vmatpush.msra.mxu0 %v530
        %631 = vmatpush.msra.mxu0 %v522
        %632 = vmatpush.msra.mxu0 %v514
        %633 = vmatpush.msra.mxu0 %v506
        %634 = vmatpush.msra.mxu0 %v498
        %635 = vmatpush.msra.mxu0 %v490
        %636 = vmatpush.msra.mxu0 %v482
        %637 = vmatpush.msra.mxu0 %v474
        %638 = vmatpush.msra.mxu0 %v466
        %639 = vmatpush.msra.mxu0 %v458
        %640 = vmatpush.msra.mxu0 %v450
        %641 = vmatpush.msra.mxu0 %v442
        %642 = vmatmul.f32.gmra.mxu0 %v573
        %v643 = vpop.f32.mrf.mxu0
        %v644 = vadd.f32 0.0, %v643
        %645 = vmatmul.f32.gmra.mxu0 %v576
        %v646 = vpop.f32.mrf.mxu0
        %v647 = vadd.f32 0.0, %v646
        %648 = vdwg.mxu0
        %649 = vmatpush.msra.mxu0 %v586
        %650 = vmatpush.msra.mxu0 %v555
        %651 = vmatpush.msra.mxu0 %v547
        %652 = vmatpush.msra.mxu0 %v539
        %653 = vmatpush.msra.mxu0 %v531
        %654 = vmatpush.msra.mxu0 %v523
        %655 = vmatpush.msra.mxu0 %v515
        %656 = vmatpush.msra.mxu0 %v507
        %657 = vmatpush.msra.mxu0 %v499
        %658 = vmatpush.msra.mxu0 %v491
        %659 = vmatpush.msra.mxu0 %v483
        %660 = vmatpush.msra.mxu0 %v475
        %661 = vmatpush.msra.mxu0 %v467
        %662 = vmatpush.msra.mxu0 %v459
        %663 = vmatpush.msra.mxu0 %v451
        %664 = vmatpush.msra.mxu0 %v443
        %665 = vmatmul.f32.gmra.mxu0 %v573
        %v666 = vpop.f32.mrf.mxu0
        %v667 = vadd.f32 0.0, %v666
        %668 = vmatmul.f32.gmra.mxu0 %v576
        %v669 = vpop.f32.mrf.mxu0
        %v670 = vadd.f32 0.0, %v669
        %671 = vdwg.mxu0
        %672 = vmatpush.msra.mxu0 %v589
        %673 = vmatpush.msra.mxu0 %v556
        %674 = vmatpush.msra.mxu0 %v548
        %675 = vmatpush.msra.mxu0 %v540
        %676 = vmatpush.msra.mxu0 %v532
        %677 = vmatpush.msra.mxu0 %v524
        %678 = vmatpush.msra.mxu0 %v516
        %679 = vmatpush.msra.mxu0 %v508
        %680 = vmatpush.msra.mxu0 %v500
        %681 = vmatpush.msra.mxu0 %v492
        %682 = vmatpush.msra.mxu0 %v484
        %683 = vmatpush.msra.mxu0 %v476
        %684 = vmatpush.msra.mxu0 %v468
        %685 = vmatpush.msra.mxu0 %v460
        %686 = vmatpush.msra.mxu0 %v452
        %687 = vmatpush.msra.mxu0 %v444
        %688 = vmatmul.f32.gmra.mxu0 %v573
        %v689 = vpop.f32.mrf.mxu0
        %v690 = vadd.f32 0.0, %v689
        %691 = vmatmul.f32.gmra.mxu0 %v576
        %v692 = vpop.f32.mrf.mxu0
        %v693 = vadd.f32 0.0, %v692
        %694 = vdwg.mxu0
        %695 = vmatpush.msra.mxu0 %v592
        %696 = vmatpush.msra.mxu0 %v557
        %697 = vmatpush.msra.mxu0 %v549
        %698 = vmatpush.msra.mxu0 %v541
        %699 = vmatpush.msra.mxu0 %v533
        %700 = vmatpush.msra.mxu0 %v525
        %701 = vmatpush.msra.mxu0 %v517
        %702 = vmatpush.msra.mxu0 %v509
        %703 = vmatpush.msra.mxu0 %v501
        %704 = vmatpush.msra.mxu0 %v493
        %705 = vmatpush.msra.mxu0 %v485
        %706 = vmatpush.msra.mxu0 %v477
        %707 = vmatpush.msra.mxu0 %v469
        %708 = vmatpush.msra.mxu0 %v461
        %709 = vmatpush.msra.mxu0 %v453
        %710 = vmatpush.msra.mxu0 %v445
        %711 = vmatmul.f32.gmra.mxu0 %v573
        %v712 = vpop.f32.mrf.mxu0
        %v713 = vadd.f32 0.0, %v712
        %714 = vmatmul.f32.gmra.mxu0 %v576
        %v715 = vpop.f32.mrf.mxu0
        %v716 = vadd.f32 0.0, %v715
        %717 = vdwg.mxu0
        %718 = vmatpush.msra.mxu0 %v595
        %719 = vmatpush.msra.mxu0 %v558
        %720 = vmatpush.msra.mxu0 %v550
        %721 = vmatpush.msra.mxu0 %v542
        %722 = vmatpush.msra.mxu0 %v534
        %723 = vmatpush.msra.mxu0 %v526
        %724 = vmatpush.msra.mxu0 %v518
        %725 = vmatpush.msra.mxu0 %v510
        %726 = vmatpush.msra.mxu0 %v502
        %727 = vmatpush.msra.mxu0 %v494
        %728 = vmatpush.msra.mxu0 %v486
        %729 = vmatpush.msra.mxu0 %v478
        %730 = vmatpush.msra.mxu0 %v470
        %731 = vmatpush.msra.mxu0 %v462
        %732 = vmatpush.msra.mxu0 %v454
        %733 = vmatpush.msra.mxu0 %v446
        %734 = vmatmul.f32.gmra.mxu0 %v573
        %v735 = vpop.f32.mrf.mxu0
        %v736 = vadd.f32 0.0, %v735
        %737 = vmatmul.f32.gmra.mxu0 %v576
        %v738 = vpop.f32.mrf.mxu0
        %v739 = vadd.f32 0.0, %v738
        %740 = vdwg.mxu0
        %741 = vmatpush.msra.mxu0 %v598
        %742 = vmatpush.msra.mxu0 %v559
        %743 = vmatpush.msra.mxu0 %v551
        %744 = vmatpush.msra.mxu0 %v543
        %745 = vmatpush.msra.mxu0 %v535
        %746 = vmatpush.msra.mxu0 %v527
        %747 = vmatpush.msra.mxu0 %v519
        %748 = vmatpush.msra.mxu0 %v511
        %749 = vmatpush.msra.mxu0 %v503
        %750 = vmatpush.msra.mxu0 %v495
        %751 = vmatpush.msra.mxu0 %v487
        %752 = vmatpush.msra.mxu0 %v479
        %753 = vmatpush.msra.mxu0 %v471
        %754 = vmatpush.msra.mxu0 %v463
        %755 = vmatpush.msra.mxu0 %v455
        %756 = vmatpush.msra.mxu0 %v447
        %757 = vmatmul.f32.gmra.mxu0 %v573
        %v758 = vpop.f32.mrf.mxu0
        %v759 = vadd.f32 0.0, %v758
        %760 = vmatmul.f32.gmra.mxu0 %v576
        %v761 = vpop.f32.mrf.mxu0
        %v762 = vadd.f32 0.0, %v761
        %763 = vdwg.mxu0
        %764 = vmatpush.msra.mxu0 %v601
        %765 = vmatpush.msra.mxu0 %v560
        %766 = vmatpush.msra.mxu0 %v552
        %767 = vmatpush.msra.mxu0 %v544
        %768 = vmatpush.msra.mxu0 %v536
        %769 = vmatpush.msra.mxu0 %v528
        %770 = vmatpush.msra.mxu0 %v520
        %771 = vmatpush.msra.mxu0 %v512
        %772 = vmatpush.msra.mxu0 %v504
        %773 = vmatpush.msra.mxu0 %v496
        %774 = vmatpush.msra.mxu0 %v488
        %775 = vmatpush.msra.mxu0 %v480
        %776 = vmatpush.msra.mxu0 %v472
        %777 = vmatpush.msra.mxu0 %v464
        %778 = vmatpush.msra.mxu0 %v456
        %779 = vmatpush.msra.mxu0 %v448
        %780 = vmatmul.f32.gmra.mxu0 %v573
        %v781 = vpop.f32.mrf.mxu0
        %v782 = vadd.f32 0.0, %v781
        %783 = vmatmul.f32.gmra.mxu0 %v576
        %v784 = vpop.f32.mrf.mxu0
        %v785 = vadd.f32 0.0, %v784
        %786 = vdwg.mxu0
        %s787 = scalar_lea.vmem %s1, 16
        %v788 = vld [vmem:[%s787] sm:$0xff]
        %v789 = vld [vmem:[%s787 + $0x8] sm:$0xff]
        %v791 = vsel %vm571, %v788, 0
        %v794 = vsel %vm571, %v789, 0
        %796 = vmatpush.msra.mxu0 %v580
        %797 = vmatpush.msra.mxu0 %v553
        %798 = vmatpush.msra.mxu0 %v545
        %799 = vmatpush.msra.mxu0 %v537
        %800 = vmatpush.msra.mxu0 %v529
        %801 = vmatpush.msra.mxu0 %v521
        %802 = vmatpush.msra.mxu0 %v513
        %803 = vmatpush.msra.mxu0 %v505
        %804 = vmatpush.msra.mxu0 %v497
        %805 = vmatpush.msra.mxu0 %v489
        %806 = vmatpush.msra.mxu0 %v481
        %807 = vmatpush.msra.mxu0 %v473
        %808 = vmatpush.msra.mxu0 %v465
        %809 = vmatpush.msra.mxu0 %v457
        %810 = vmatpush.msra.mxu0 %v449
        %811 = vmatpush.msra.mxu0 %v441
        %812 = vmatmul.f32.gmra.mxu0 %v791
        %v813 = vpop.f32.mrf.mxu0
        %v814 = vadd.f32 0.0, %v813
        %815 = vmatmul.f32.gmra.mxu0 %v794
        %v816 = vpop.f32.mrf.mxu0
        %v817 = vadd.f32 0.0, %v816
        %818 = vdwg.mxu0
        %819 = vmatpush.msra.mxu0 %v583
        %820 = vmatpush.msra.mxu0 %v554
        %821 = vmatpush.msra.mxu0 %v546
        %822 = vmatpush.msra.mxu0 %v538
        %823 = vmatpush.msra.mxu0 %v530
        %824 = vmatpush.msra.mxu0 %v522
        %825 = vmatpush.msra.mxu0 %v514
        %826 = vmatpush.msra.mxu0 %v506
        %827 = vmatpush.msra.mxu0 %v498
        %828 = vmatpush.msra.mxu0 %v490
        %829 = vmatpush.msra.mxu0 %v482
        %830 = vmatpush.msra.mxu0 %v474
        %831 = vmatpush.msra.mxu0 %v466
        %832 = vmatpush.msra.mxu0 %v458
        %833 = vmatpush.msra.mxu0 %v450
        %834 = vmatpush.msra.mxu0 %v442
        %835 = vmatmul.f32.gmra.mxu0 %v791
        %v836 = vpop.f32.mrf.mxu0
        %v837 = vadd.f32 0.0, %v836
        %838 = vmatmul.f32.gmra.mxu0 %v794
        %v839 = vpop.f32.mrf.mxu0
        %v840 = vadd.f32 0.0, %v839
        %841 = vdwg.mxu0
        %842 = vmatpush.msra.mxu0 %v586
        %843 = vmatpush.msra.mxu0 %v555
        %844 = vmatpush.msra.mxu0 %v547
        %845 = vmatpush.msra.mxu0 %v539
        %846 = vmatpush.msra.mxu0 %v531
        %847 = vmatpush.msra.mxu0 %v523
        %848 = vmatpush.msra.mxu0 %v515
        %849 = vmatpush.msra.mxu0 %v507
        %850 = vmatpush.msra.mxu0 %v499
        %851 = vmatpush.msra.mxu0 %v491
        %852 = vmatpush.msra.mxu0 %v483
        %853 = vmatpush.msra.mxu0 %v475
        %854 = vmatpush.msra.mxu0 %v467
        %855 = vmatpush.msra.mxu0 %v459
        %856 = vmatpush.msra.mxu0 %v451
        %857 = vmatpush.msra.mxu0 %v443
        %858 = vmatmul.f32.gmra.mxu0 %v791
        %v859 = vpop.f32.mrf.mxu0
        %v860 = vadd.f32 0.0, %v859
        %861 = vmatmul.f32.gmra.mxu0 %v794
        %v862 = vpop.f32.mrf.mxu0
        %v863 = vadd.f32 0.0, %v862
        %864 = vdwg.mxu0
        %865 = vmatpush.msra.mxu0 %v589
        %866 = vmatpush.msra.mxu0 %v556
        %867 = vmatpush.msra.mxu0 %v548
        %868 = vmatpush.msra.mxu0 %v540
        %869 = vmatpush.msra.mxu0 %v532
        %870 = vmatpush.msra.mxu0 %v524
        %871 = vmatpush.msra.mxu0 %v516
        %872 = vmatpush.msra.mxu0 %v508
        %873 = vmatpush.msra.mxu0 %v500
        %874 = vmatpush.msra.mxu0 %v492
        %875 = vmatpush.msra.mxu0 %v484
        %876 = vmatpush.msra.mxu0 %v476
        %877 = vmatpush.msra.mxu0 %v468
        %878 = vmatpush.msra.mxu0 %v460
        %879 = vmatpush.msra.mxu0 %v452
        %880 = vmatpush.msra.mxu0 %v444
        %881 = vmatmul.f32.gmra.mxu0 %v791
        %v882 = vpop.f32.mrf.mxu0
        %v883 = vadd.f32 0.0, %v882
        %884 = vmatmul.f32.gmra.mxu0 %v794
        %v885 = vpop.f32.mrf.mxu0
        %v886 = vadd.f32 0.0, %v885
        %887 = vdwg.mxu0
        %888 = vmatpush.msra.mxu0 %v592
        %889 = vmatpush.msra.mxu0 %v557
        %890 = vmatpush.msra.mxu0 %v549
        %891 = vmatpush.msra.mxu0 %v541
        %892 = vmatpush.msra.mxu0 %v533
        %893 = vmatpush.msra.mxu0 %v525
        %894 = vmatpush.msra.mxu0 %v517
        %895 = vmatpush.msra.mxu0 %v509
        %896 = vmatpush.msra.mxu0 %v501
        %897 = vmatpush.msra.mxu0 %v493
        %898 = vmatpush.msra.mxu0 %v485
        %899 = vmatpush.msra.mxu0 %v477
        %900 = vmatpush.msra.mxu0 %v469
        %901 = vmatpush.msra.mxu0 %v461
        %902 = vmatpush.msra.mxu0 %v453
        %903 = vmatpush.msra.mxu0 %v445
        %904 = vmatmul.f32.gmra.mxu0 %v791
        %v905 = vpop.f32.mrf.mxu0
        %v906 = vadd.f32 0.0, %v905
        %907 = vmatmul.f32.gmra.mxu0 %v794
        %v908 = vpop.f32.mrf.mxu0
        %v909 = vadd.f32 0.0, %v908
        %910 = vdwg.mxu0
        %911 = vmatpush.msra.mxu0 %v595
        %912 = vmatpush.msra.mxu0 %v558
        %913 = vmatpush.msra.mxu0 %v550
        %914 = vmatpush.msra.mxu0 %v542
        %915 = vmatpush.msra.mxu0 %v534
        %916 = vmatpush.msra.mxu0 %v526
        %917 = vmatpush.msra.mxu0 %v518
        %918 = vmatpush.msra.mxu0 %v510
        %919 = vmatpush.msra.mxu0 %v502
        %920 = vmatpush.msra.mxu0 %v494
        %921 = vmatpush.msra.mxu0 %v486
        %922 = vmatpush.msra.mxu0 %v478
        %923 = vmatpush.msra.mxu0 %v470
        %924 = vmatpush.msra.mxu0 %v462
        %925 = vmatpush.msra.mxu0 %v454
        %926 = vmatpush.msra.mxu0 %v446
        %927 = vmatmul.f32.gmra.mxu0 %v791
        %v928 = vpop.f32.mrf.mxu0
        %v929 = vadd.f32 0.0, %v928
        %930 = vmatmul.f32.gmra.mxu0 %v794
        %v931 = vpop.f32.mrf.mxu0
        %v932 = vadd.f32 0.0, %v931
        %933 = vdwg.mxu0
        %934 = vmatpush.msra.mxu0 %v598
        %935 = vmatpush.msra.mxu0 %v559
        %936 = vmatpush.msra.mxu0 %v551
        %937 = vmatpush.msra.mxu0 %v543
        %938 = vmatpush.msra.mxu0 %v535
        %939 = vmatpush.msra.mxu0 %v527
        %940 = vmatpush.msra.mxu0 %v519
        %941 = vmatpush.msra.mxu0 %v511
        %942 = vmatpush.msra.mxu0 %v503
        %943 = vmatpush.msra.mxu0 %v495
        %944 = vmatpush.msra.mxu0 %v487
        %945 = vmatpush.msra.mxu0 %v479
        %946 = vmatpush.msra.mxu0 %v471
        %947 = vmatpush.msra.mxu0 %v463
        %948 = vmatpush.msra.mxu0 %v455
        %949 = vmatpush.msra.mxu0 %v447
        %950 = vmatmul.f32.gmra.mxu0 %v791
        %v951 = vpop.f32.mrf.mxu0
        %v952 = vadd.f32 0.0, %v951
        %953 = vmatmul.f32.gmra.mxu0 %v794
        %v954 = vpop.f32.mrf.mxu0
        %v955 = vadd.f32 0.0, %v954
        %956 = vdwg.mxu0
        %957 = vmatpush.msra.mxu0 %v601
        %958 = vmatpush.msra.mxu0 %v560
        %959 = vmatpush.msra.mxu0 %v552
        %960 = vmatpush.msra.mxu0 %v544
        %961 = vmatpush.msra.mxu0 %v536
        %962 = vmatpush.msra.mxu0 %v528
        %963 = vmatpush.msra.mxu0 %v520
        %964 = vmatpush.msra.mxu0 %v512
        %965 = vmatpush.msra.mxu0 %v504
        %966 = vmatpush.msra.mxu0 %v496
        %967 = vmatpush.msra.mxu0 %v488
        %968 = vmatpush.msra.mxu0 %v480
        %969 = vmatpush.msra.mxu0 %v472
        %970 = vmatpush.msra.mxu0 %v464
        %971 = vmatpush.msra.mxu0 %v456
        %972 = vmatpush.msra.mxu0 %v448
        %973 = vmatmul.f32.gmra.mxu0 %v791
        %v974 = vpop.f32.mrf.mxu0
        %v975 = vadd.f32 0.0, %v974
        %976 = vmatmul.f32.gmra.mxu0 %v794
        %v977 = vpop.f32.mrf.mxu0
        %v978 = vadd.f32 0.0, %v977
        %979 = vdwg.mxu0
        %v980 = vmax.f32 %v621, %v814
        %v981 = vmax.f32 %v644, %v837
        %v982 = vmax.f32 %v667, %v860
        %v983 = vmax.f32 %v690, %v883
        %v984 = vmax.f32 %v713, %v906
        %v985 = vmax.f32 %v736, %v929
        %v986 = vmax.f32 %v759, %v952
        %v987 = vmax.f32 %v782, %v975
        %v988 = vmax.f32 %v624, %v817
        %v989 = vmax.f32 %v647, %v840
        %v990 = vmax.f32 %v670, %v863
        %v991 = vmax.f32 %v693, %v886
        %v992 = vmax.f32 %v716, %v909
        %v993 = vmax.f32 %v739, %v932
        %v994 = vmax.f32 %v762, %v955
        %v995 = vmax.f32 %v785, %v978
        %s996 = scalar_lea.vmem %s1, 32
        %v997 = vld [vmem:[%s996] sm:$0xff]
        %v998 = vld [vmem:[%s996 + $0x8] sm:$0xff]
        %v1000 = vsel %vm571, %v997, 0
        %v1003 = vsel %vm571, %v998, 0
        %1005 = vmatpush.msra.mxu0 %v580
        %1006 = vmatpush.msra.mxu0 %v553
        %1007 = vmatpush.msra.mxu0 %v545
        %1008 = vmatpush.msra.mxu0 %v537
        %1009 = vmatpush.msra.mxu0 %v529
        %1010 = vmatpush.msra.mxu0 %v521
        %1011 = vmatpush.msra.mxu0 %v513
        %1012 = vmatpush.msra.mxu0 %v505
        %1013 = vmatpush.msra.mxu0 %v497
        %1014 = vmatpush.msra.mxu0 %v489
        %1015 = vmatpush.msra.mxu0 %v481
        %1016 = vmatpush.msra.mxu0 %v473
        %1017 = vmatpush.msra.mxu0 %v465
        %1018 = vmatpush.msra.mxu0 %v457
        %1019 = vmatpush.msra.mxu0 %v449
        %1020 = vmatpush.msra.mxu0 %v441
        %1021 = vmatmul.f32.gmra.mxu0 %v1000
        %v1022 = vpop.f32.mrf.mxu0
        %v1023 = vadd.f32 0.0, %v1022
        %1024 = vmatmul.f32.gmra.mxu0 %v1003
        %v1025 = vpop.f32.mrf.mxu0
        %v1026 = vadd.f32 0.0, %v1025
        %1027 = vdwg.mxu0
        %1028 = vmatpush.msra.mxu0 %v583
        %1029 = vmatpush.msra.mxu0 %v554
        %1030 = vmatpush.msra.mxu0 %v546
        %1031 = vmatpush.msra.mxu0 %v538
        %1032 = vmatpush.msra.mxu0 %v530
        %1033 = vmatpush.msra.mxu0 %v522
        %1034 = vmatpush.msra.mxu0 %v514
        %1035 = vmatpush.msra.mxu0 %v506
        %1036 = vmatpush.msra.mxu0 %v498
        %1037 = vmatpush.msra.mxu0 %v490
        %1038 = vmatpush.msra.mxu0 %v482
        %1039 = vmatpush.msra.mxu0 %v474
        %1040 = vmatpush.msra.mxu0 %v466
        %1041 = vmatpush.msra.mxu0 %v458
        %1042 = vmatpush.msra.mxu0 %v450
        %1043 = vmatpush.msra.mxu0 %v442
        %1044 = vmatmul.f32.gmra.mxu0 %v1000
        %v1045 = vpop.f32.mrf.mxu0
        %v1046 = vadd.f32 0.0, %v1045
        %1047 = vmatmul.f32.gmra.mxu0 %v1003
        %v1048 = vpop.f32.mrf.mxu0
        %v1049 = vadd.f32 0.0, %v1048
        %1050 = vdwg.mxu0
        %1051 = vmatpush.msra.mxu0 %v586
        %1052 = vmatpush.msra.mxu0 %v555
        %1053 = vmatpush.msra.mxu0 %v547
        %1054 = vmatpush.msra.mxu0 %v539
        %1055 = vmatpush.msra.mxu0 %v531
        %1056 = vmatpush.msra.mxu0 %v523
        %1057 = vmatpush.msra.mxu0 %v515
        %1058 = vmatpush.msra.mxu0 %v507
        %1059 = vmatpush.msra.mxu0 %v499
        %1060 = vmatpush.msra.mxu0 %v491
        %1061 = vmatpush.msra.mxu0 %v483
        %1062 = vmatpush.msra.mxu0 %v475
        %1063 = vmatpush.msra.mxu0 %v467
        %1064 = vmatpush.msra.mxu0 %v459
        %1065 = vmatpush.msra.mxu0 %v451
        %1066 = vmatpush.msra.mxu0 %v443
        %1067 = vmatmul.f32.gmra.mxu0 %v1000
        %v1068 = vpop.f32.mrf.mxu0
        %v1069 = vadd.f32 0.0, %v1068
        %1070 = vmatmul.f32.gmra.mxu0 %v1003
        %v1071 = vpop.f32.mrf.mxu0
        %v1072 = vadd.f32 0.0, %v1071
        %1073 = vdwg.mxu0
        %1074 = vmatpush.msra.mxu0 %v589
        %1075 = vmatpush.msra.mxu0 %v556
        %1076 = vmatpush.msra.mxu0 %v548
        %1077 = vmatpush.msra.mxu0 %v540
        %1078 = vmatpush.msra.mxu0 %v532
        %1079 = vmatpush.msra.mxu0 %v524
        %1080 = vmatpush.msra.mxu0 %v516
        %1081 = vmatpush.msra.mxu0 %v508
        %1082 = vmatpush.msra.mxu0 %v500
        %1083 = vmatpush.msra.mxu0 %v492
        %1084 = vmatpush.msra.mxu0 %v484
        %1085 = vmatpush.msra.mxu0 %v476
        %1086 = vmatpush.msra.mxu0 %v468
        %1087 = vmatpush.msra.mxu0 %v460
        %1088 = vmatpush.msra.mxu0 %v452
        %1089 = vmatpush.msra.mxu0 %v444
        %1090 = vmatmul.f32.gmra.mxu0 %v1000
        %v1091 = vpop.f32.mrf.mxu0
        %v1092 = vadd.f32 0.0, %v1091
        %1093 = vmatmul.f32.gmra.mxu0 %v1003
        %v1094 = vpop.f32.mrf.mxu0
        %v1095 = vadd.f32 0.0, %v1094
        %1096 = vdwg.mxu0
        %1097 = vmatpush.msra.mxu0 %v592
        %1098 = vmatpush.msra.mxu0 %v557
        %1099 = vmatpush.msra.mxu0 %v549
        %1100 = vmatpush.msra.mxu0 %v541
        %1101 = vmatpush.msra.mxu0 %v533
        %1102 = vmatpush.msra.mxu0 %v525
        %1103 = vmatpush.msra.mxu0 %v517
        %1104 = vmatpush.msra.mxu0 %v509
        %1105 = vmatpush.msra.mxu0 %v501
        %1106 = vmatpush.msra.mxu0 %v493
        %1107 = vmatpush.msra.mxu0 %v485
        %1108 = vmatpush.msra.mxu0 %v477
        %1109 = vmatpush.msra.mxu0 %v469
        %1110 = vmatpush.msra.mxu0 %v461
        %1111 = vmatpush.msra.mxu0 %v453
        %1112 = vmatpush.msra.mxu0 %v445
        %1113 = vmatmul.f32.gmra.mxu0 %v1000
        %v1114 = vpop.f32.mrf.mxu0
        %v1115 = vadd.f32 0.0, %v1114
        %1116 = vmatmul.f32.gmra.mxu0 %v1003
        %v1117 = vpop.f32.mrf.mxu0
        %v1118 = vadd.f32 0.0, %v1117
        %1119 = vdwg.mxu0
        %1120 = vmatpush.msra.mxu0 %v595
        %1121 = vmatpush.msra.mxu0 %v558
        %1122 = vmatpush.msra.mxu0 %v550
        %1123 = vmatpush.msra.mxu0 %v542
        %1124 = vmatpush.msra.mxu0 %v534
        %1125 = vmatpush.msra.mxu0 %v526
        %1126 = vmatpush.msra.mxu0 %v518
        %1127 = vmatpush.msra.mxu0 %v510
        %1128 = vmatpush.msra.mxu0 %v502
        %1129 = vmatpush.msra.mxu0 %v494
        %1130 = vmatpush.msra.mxu0 %v486
        %1131 = vmatpush.msra.mxu0 %v478
        %1132 = vmatpush.msra.mxu0 %v470
        %1133 = vmatpush.msra.mxu0 %v462
        %1134 = vmatpush.msra.mxu0 %v454
        %1135 = vmatpush.msra.mxu0 %v446
        %1136 = vmatmul.f32.gmra.mxu0 %v1000
        %v1137 = vpop.f32.mrf.mxu0
        %v1138 = vadd.f32 0.0, %v1137
        %1139 = vmatmul.f32.gmra.mxu0 %v1003
        %v1140 = vpop.f32.mrf.mxu0
        %v1141 = vadd.f32 0.0, %v1140
        %1142 = vdwg.mxu0
        %1143 = vmatpush.msra.mxu0 %v598
        %1144 = vmatpush.msra.mxu0 %v559
        %1145 = vmatpush.msra.mxu0 %v551
        %1146 = vmatpush.msra.mxu0 %v543
        %1147 = vmatpush.msra.mxu0 %v535
        %1148 = vmatpush.msra.mxu0 %v527
        %1149 = vmatpush.msra.mxu0 %v519
        %1150 = vmatpush.msra.mxu0 %v511
        %1151 = vmatpush.msra.mxu0 %v503
        %1152 = vmatpush.msra.mxu0 %v495
        %1153 = vmatpush.msra.mxu0 %v487
        %1154 = vmatpush.msra.mxu0 %v479
        %1155 = vmatpush.msra.mxu0 %v471
        %1156 = vmatpush.msra.mxu0 %v463
        %1157 = vmatpush.msra.mxu0 %v455
        %1158 = vmatpush.msra.mxu0 %v447
        %1159 = vmatmul.f32.gmra.mxu0 %v1000
        %v1160 = vpop.f32.mrf.mxu0
        %v1161 = vadd.f32 0.0, %v1160
        %1162 = vmatmul.f32.gmra.mxu0 %v1003
        %v1163 = vpop.f32.mrf.mxu0
        %v1164 = vadd.f32 0.0, %v1163
        %1165 = vdwg.mxu0
        %1166 = vmatpush.msra.mxu0 %v601
        %1167 = vmatpush.msra.mxu0 %v560
        %1168 = vmatpush.msra.mxu0 %v552
        %1169 = vmatpush.msra.mxu0 %v544
        %1170 = vmatpush.msra.mxu0 %v536
        %1171 = vmatpush.msra.mxu0 %v528
        %1172 = vmatpush.msra.mxu0 %v520
        %1173 = vmatpush.msra.mxu0 %v512
        %1174 = vmatpush.msra.mxu0 %v504
        %1175 = vmatpush.msra.mxu0 %v496
        %1176 = vmatpush.msra.mxu0 %v488
        %1177 = vmatpush.msra.mxu0 %v480
        %1178 = vmatpush.msra.mxu0 %v472
        %1179 = vmatpush.msra.mxu0 %v464
        %1180 = vmatpush.msra.mxu0 %v456
        %1181 = vmatpush.msra.mxu0 %v448
        %1182 = vmatmul.f32.gmra.mxu0 %v1000
        %v1183 = vpop.f32.mrf.mxu0
        %v1184 = vadd.f32 0.0, %v1183
        %1185 = vmatmul.f32.gmra.mxu0 %v1003
        %v1186 = vpop.f32.mrf.mxu0
        %v1187 = vadd.f32 0.0, %v1186
        %1188 = vdwg.mxu0
        %v1189 = vmax.f32 %v980, %v1023
        %v1190 = vmax.f32 %v981, %v1046
        %v1191 = vmax.f32 %v982, %v1069
        %v1192 = vmax.f32 %v983, %v1092
        %v1193 = vmax.f32 %v984, %v1115
        %v1194 = vmax.f32 %v985, %v1138
        %v1195 = vmax.f32 %v986, %v1161
        %v1196 = vmax.f32 %v987, %v1184
        %v1197 = vmax.f32 %v988, %v1026
        %v1198 = vmax.f32 %v989, %v1049
        %v1199 = vmax.f32 %v990, %v1072
        %v1200 = vmax.f32 %v991, %v1095
        %v1201 = vmax.f32 %v992, %v1118
        %v1202 = vmax.f32 %v993, %v1141
        %v1203 = vmax.f32 %v994, %v1164
        %v1204 = vmax.f32 %v995, %v1187
        %s1205 = scalar_lea.vmem %s1, 48
        %v1206 = vld [vmem:[%s1205] sm:$0xff]
        %v1207 = vld [vmem:[%s1205 + $0x8] sm:$0xff]
        %v1209 = vsel %vm571, %v1206, 0
        %v1212 = vsel %vm571, %v1207, 0
        %1214 = vmatpush.msra.mxu0 %v580
        %1215 = vmatpush.msra.mxu0 %v553
        %1216 = vmatpush.msra.mxu0 %v545
        %1217 = vmatpush.msra.mxu0 %v537
        %1218 = vmatpush.msra.mxu0 %v529
        %1219 = vmatpush.msra.mxu0 %v521
        %1220 = vmatpush.msra.mxu0 %v513
        %1221 = vmatpush.msra.mxu0 %v505
        %1222 = vmatpush.msra.mxu0 %v497
        %1223 = vmatpush.msra.mxu0 %v489
        %1224 = vmatpush.msra.mxu0 %v481
        %1225 = vmatpush.msra.mxu0 %v473
        %1226 = vmatpush.msra.mxu0 %v465
        %1227 = vmatpush.msra.mxu0 %v457
        %1228 = vmatpush.msra.mxu0 %v449
        %1229 = vmatpush.msra.mxu0 %v441
        %1230 = vmatmul.f32.gmra.mxu0 %v1209
        %v1231 = vpop.f32.mrf.mxu0
        %v1232 = vadd.f32 0.0, %v1231
        %1233 = vmatmul.f32.gmra.mxu0 %v1212
        %v1234 = vpop.f32.mrf.mxu0
        %v1235 = vadd.f32 0.0, %v1234
        %1236 = vdwg.mxu0
        %1237 = vmatpush.msra.mxu0 %v583
        %1238 = vmatpush.msra.mxu0 %v554
        %1239 = vmatpush.msra.mxu0 %v546
        %1240 = vmatpush.msra.mxu0 %v538
        %1241 = vmatpush.msra.mxu0 %v530
        %1242 = vmatpush.msra.mxu0 %v522
        %1243 = vmatpush.msra.mxu0 %v514
        %1244 = vmatpush.msra.mxu0 %v506
        %1245 = vmatpush.msra.mxu0 %v498
        %1246 = vmatpush.msra.mxu0 %v490
        %1247 = vmatpush.msra.mxu0 %v482
        %1248 = vmatpush.msra.mxu0 %v474
        %1249 = vmatpush.msra.mxu0 %v466
        %1250 = vmatpush.msra.mxu0 %v458
        %1251 = vmatpush.msra.mxu0 %v450
        %1252 = vmatpush.msra.mxu0 %v442
        %1253 = vmatmul.f32.gmra.mxu0 %v1209
        %v1254 = vpop.f32.mrf.mxu0
        %v1255 = vadd.f32 0.0, %v1254
        %1256 = vmatmul.f32.gmra.mxu0 %v1212
        %v1257 = vpop.f32.mrf.mxu0
        %v1258 = vadd.f32 0.0, %v1257
        %1259 = vdwg.mxu0
        %1260 = vmatpush.msra.mxu0 %v586
        %1261 = vmatpush.msra.mxu0 %v555
        %1262 = vmatpush.msra.mxu0 %v547
        %1263 = vmatpush.msra.mxu0 %v539
        %1264 = vmatpush.msra.mxu0 %v531
        %1265 = vmatpush.msra.mxu0 %v523
        %1266 = vmatpush.msra.mxu0 %v515
        %1267 = vmatpush.msra.mxu0 %v507
        %1268 = vmatpush.msra.mxu0 %v499
        %1269 = vmatpush.msra.mxu0 %v491
        %1270 = vmatpush.msra.mxu0 %v483
        %1271 = vmatpush.msra.mxu0 %v475
        %1272 = vmatpush.msra.mxu0 %v467
        %1273 = vmatpush.msra.mxu0 %v459
        %1274 = vmatpush.msra.mxu0 %v451
        %1275 = vmatpush.msra.mxu0 %v443
        %1276 = vmatmul.f32.gmra.mxu0 %v1209
        %v1277 = vpop.f32.mrf.mxu0
        %v1278 = vadd.f32 0.0, %v1277
        %1279 = vmatmul.f32.gmra.mxu0 %v1212
        %v1280 = vpop.f32.mrf.mxu0
        %v1281 = vadd.f32 0.0, %v1280
        %1282 = vdwg.mxu0
        %1283 = vmatpush.msra.mxu0 %v589
        %1284 = vmatpush.msra.mxu0 %v556
        %1285 = vmatpush.msra.mxu0 %v548
        %1286 = vmatpush.msra.mxu0 %v540
        %1287 = vmatpush.msra.mxu0 %v532
        %1288 = vmatpush.msra.mxu0 %v524
        %1289 = vmatpush.msra.mxu0 %v516
        %1290 = vmatpush.msra.mxu0 %v508
        %1291 = vmatpush.msra.mxu0 %v500
        %1292 = vmatpush.msra.mxu0 %v492
        %1293 = vmatpush.msra.mxu0 %v484
        %1294 = vmatpush.msra.mxu0 %v476
        %1295 = vmatpush.msra.mxu0 %v468
        %1296 = vmatpush.msra.mxu0 %v460
        %1297 = vmatpush.msra.mxu0 %v452
        %1298 = vmatpush.msra.mxu0 %v444
        %1299 = vmatmul.f32.gmra.mxu0 %v1209
        %v1300 = vpop.f32.mrf.mxu0
        %v1301 = vadd.f32 0.0, %v1300
        %1302 = vmatmul.f32.gmra.mxu0 %v1212
        %v1303 = vpop.f32.mrf.mxu0
        %v1304 = vadd.f32 0.0, %v1303
        %1305 = vdwg.mxu0
        %1306 = vmatpush.msra.mxu0 %v592
        %1307 = vmatpush.msra.mxu0 %v557
        %1308 = vmatpush.msra.mxu0 %v549
        %1309 = vmatpush.msra.mxu0 %v541
        %1310 = vmatpush.msra.mxu0 %v533
        %1311 = vmatpush.msra.mxu0 %v525
        %1312 = vmatpush.msra.mxu0 %v517
        %1313 = vmatpush.msra.mxu0 %v509
        %1314 = vmatpush.msra.mxu0 %v501
        %1315 = vmatpush.msra.mxu0 %v493
        %1316 = vmatpush.msra.mxu0 %v485
        %1317 = vmatpush.msra.mxu0 %v477
        %1318 = vmatpush.msra.mxu0 %v469
        %1319 = vmatpush.msra.mxu0 %v461
        %1320 = vmatpush.msra.mxu0 %v453
        %1321 = vmatpush.msra.mxu0 %v445
        %1322 = vmatmul.f32.gmra.mxu0 %v1209
        %v1323 = vpop.f32.mrf.mxu0
        %v1324 = vadd.f32 0.0, %v1323
        %1325 = vmatmul.f32.gmra.mxu0 %v1212
        %v1326 = vpop.f32.mrf.mxu0
        %v1327 = vadd.f32 0.0, %v1326
        %1328 = vdwg.mxu0
        %1329 = vmatpush.msra.mxu0 %v595
        %1330 = vmatpush.msra.mxu0 %v558
        %1331 = vmatpush.msra.mxu0 %v550
        %1332 = vmatpush.msra.mxu0 %v542
        %1333 = vmatpush.msra.mxu0 %v534
        %1334 = vmatpush.msra.mxu0 %v526
        %1335 = vmatpush.msra.mxu0 %v518
        %1336 = vmatpush.msra.mxu0 %v510
        %1337 = vmatpush.msra.mxu0 %v502
        %1338 = vmatpush.msra.mxu0 %v494
        %1339 = vmatpush.msra.mxu0 %v486
        %1340 = vmatpush.msra.mxu0 %v478
        %1341 = vmatpush.msra.mxu0 %v470
        %1342 = vmatpush.msra.mxu0 %v462
        %1343 = vmatpush.msra.mxu0 %v454
        %1344 = vmatpush.msra.mxu0 %v446
        %1345 = vmatmul.f32.gmra.mxu0 %v1209
        %v1346 = vpop.f32.mrf.mxu0
        %v1347 = vadd.f32 0.0, %v1346
        %1348 = vmatmul.f32.gmra.mxu0 %v1212
        %v1349 = vpop.f32.mrf.mxu0
        %v1350 = vadd.f32 0.0, %v1349
        %1351 = vdwg.mxu0
        %1352 = vmatpush.msra.mxu0 %v598
        %1353 = vmatpush.msra.mxu0 %v559
        %1354 = vmatpush.msra.mxu0 %v551
        %1355 = vmatpush.msra.mxu0 %v543
        %1356 = vmatpush.msra.mxu0 %v535
        %1357 = vmatpush.msra.mxu0 %v527
        %1358 = vmatpush.msra.mxu0 %v519
        %1359 = vmatpush.msra.mxu0 %v511
        %1360 = vmatpush.msra.mxu0 %v503
        %1361 = vmatpush.msra.mxu0 %v495
        %1362 = vmatpush.msra.mxu0 %v487
        %1363 = vmatpush.msra.mxu0 %v479
        %1364 = vmatpush.msra.mxu0 %v471
        %1365 = vmatpush.msra.mxu0 %v463
        %1366 = vmatpush.msra.mxu0 %v455
        %1367 = vmatpush.msra.mxu0 %v447
        %1368 = vmatmul.f32.gmra.mxu0 %v1209
        %v1369 = vpop.f32.mrf.mxu0
        %v1370 = vadd.f32 0.0, %v1369
        %1371 = vmatmul.f32.gmra.mxu0 %v1212
        %v1372 = vpop.f32.mrf.mxu0
        %v1373 = vadd.f32 0.0, %v1372
        %1374 = vdwg.mxu0
        %1375 = vmatpush.msra.mxu0 %v601
        %1376 = vmatpush.msra.mxu0 %v560
        %1377 = vmatpush.msra.mxu0 %v552
        %1378 = vmatpush.msra.mxu0 %v544
        %1379 = vmatpush.msra.mxu0 %v536
        %1380 = vmatpush.msra.mxu0 %v528
        %1381 = vmatpush.msra.mxu0 %v520
        %1382 = vmatpush.msra.mxu0 %v512
        %1383 = vmatpush.msra.mxu0 %v504
        %1384 = vmatpush.msra.mxu0 %v496
        %1385 = vmatpush.msra.mxu0 %v488
        %1386 = vmatpush.msra.mxu0 %v480
        %1387 = vmatpush.msra.mxu0 %v472
        %1388 = vmatpush.msra.mxu0 %v464
        %1389 = vmatpush.msra.mxu0 %v456
        %1390 = vmatpush.msra.mxu0 %v448
        %1391 = vmatmul.f32.gmra.mxu0 %v1209
        %v1392 = vpop.f32.mrf.mxu0
        %v1393 = vadd.f32 0.0, %v1392
        %1394 = vmatmul.f32.gmra.mxu0 %v1212
        %v1395 = vpop.f32.mrf.mxu0
        %v1396 = vadd.f32 0.0, %v1395
        %1397 = vdwg.mxu0
        %v1398 = vmax.f32 %v1189, %v1232
        %v1399 = vmax.f32 %v1190, %v1255
        %v1400 = vmax.f32 %v1191, %v1278
        %v1401 = vmax.f32 %v1192, %v1301
        %v1402 = vmax.f32 %v1193, %v1324
        %v1403 = vmax.f32 %v1194, %v1347
        %v1404 = vmax.f32 %v1195, %v1370
        %v1405 = vmax.f32 %v1196, %v1393
        %v1406 = vmax.f32 %v1197, %v1235
        %v1407 = vmax.f32 %v1198, %v1258
        %v1408 = vmax.f32 %v1199, %v1281
        %v1409 = vmax.f32 %v1200, %v1304
        %v1410 = vmax.f32 %v1201, %v1327
        %v1411 = vmax.f32 %v1202, %v1350
        %v1412 = vmax.f32 %v1203, %v1373
        %v1413 = vmax.f32 %v1204, %v1396
        %v1414 = vld [vmem:[%s2] sm:$0xff]
        %v1415 = vld [vmem:[%s2 + $0x8] sm:$0xff]
        %1417 = vset.pattern.permute.xlu0 0
        %1418 = vperm.xlu0 %1417, %v1414
        %v1419 = vpop.permute.xlu0 %1418
        %1422 = vset.pattern.permute.xlu0 0
        %1423 = vperm.xlu0 %1422, %v1415
        %v1424 = vpop.permute.xlu0 %1423
        %v1426 = vadd.f32 %v1398, %v1419
        %v1427 = vadd.f32 %v1399, %v1419
        %v1428 = vadd.f32 %v1400, %v1419
        %v1429 = vadd.f32 %v1401, %v1419
        %v1430 = vadd.f32 %v1402, %v1419
        %v1431 = vadd.f32 %v1403, %v1419
        %v1432 = vadd.f32 %v1404, %v1419
        %v1433 = vadd.f32 %v1405, %v1419
        %v1434 = vadd.f32 %v1406, %v1424
        %v1435 = vadd.f32 %v1407, %v1424
        %v1436 = vadd.f32 %v1408, %v1424
        %v1437 = vadd.f32 %v1409, %v1424
        %v1438 = vadd.f32 %v1410, %v1424
        %v1439 = vadd.f32 %v1411, %v1424
        %v1440 = vadd.f32 %v1412, %v1424
        %v1441 = vadd.f32 %v1413, %v1424
        %v1442 = vmax.f32 %v1426, 0.0
        %v1443 = vmax.f32 %v1427, 0.0
        %v1444 = vmax.f32 %v1428, 0.0
        %v1445 = vmax.f32 %v1429, 0.0
        %v1446 = vmax.f32 %v1430, 0.0
        %v1447 = vmax.f32 %v1431, 0.0
        %v1448 = vmax.f32 %v1432, 0.0
        %v1449 = vmax.f32 %v1433, 0.0
        %v1450 = vmax.f32 %v1434, 0.0
        %v1451 = vmax.f32 %v1435, 0.0
        %v1452 = vmax.f32 %v1436, 0.0
        %v1453 = vmax.f32 %v1437, 0.0
        %v1454 = vmax.f32 %v1438, 0.0
        %v1455 = vmax.f32 %v1439, 0.0
        %v1456 = vmax.f32 %v1440, 0.0
        %v1457 = vmax.f32 %v1441, 0.0
        %1458 = vst [vmem:[%s438] sm:$0xff] %v1442
        %1459 = vst [vmem:[%s438 + $0x8] sm:$0xff] %v1443
        %1460 = vst [vmem:[%s438 + $0x10] sm:$0xff] %v1444
        %1461 = vst [vmem:[%s438 + $0x18] sm:$0xff] %v1445
        %1462 = vst [vmem:[%s438 + $0x20] sm:$0xff] %v1446
        %1463 = vst [vmem:[%s438 + $0x28] sm:$0xff] %v1447
        %1464 = vst [vmem:[%s438 + $0x30] sm:$0xff] %v1448
        %1465 = vst [vmem:[%s438 + $0x38] sm:$0xff] %v1449
        %1466 = vst [vmem:[%s438 + $0x40] sm:$0xff] %v1450
        %1467 = vst [vmem:[%s438 + $0x48] sm:$0xff] %v1451
        %1468 = vst [vmem:[%s438 + $0x50] sm:$0xff] %v1452
        %1469 = vst [vmem:[%s438 + $0x58] sm:$0xff] %v1453
        %1470 = vst [vmem:[%s438 + $0x60] sm:$0xff] %v1454
        %1471 = vst [vmem:[%s438 + $0x68] sm:$0xff] %v1455
        %1472 = vst [vmem:[%s438 + $0x70] sm:$0xff] %v1456
        %1473 = vst [vmem:[%s438 + $0x78] sm:$0xff] %v1457
        %s1474 = sand.u32 %s90, 1
        %s1475 = sand.u32 %s90, 1
        %s1476 = smul.addr %s1475, 128
        %s1477 = scalar_lea.vmem [#allocation3], %s1476
        // Predicated region
        $region56: #{cnn_forward.5} parent=50 // pred_check
          %p1478 = pneg %p100
        $region57: #{cnn_forward.5} parent=50 // pred_check_branch
          %1480 = sbr.rel (%p1478) target = $region59
        $region58: #{cnn_forward.5} parent=50 // pred_region
          %s1481 = smul.u32 8, %s14
          %s1482 = smul.addr %s1481, 8
          %s1483 = scalar_lea.vmem %s3, %s1482
          // Predicated region
          $region60: #{cnn_forward.5} parent=58 // pred_check
            _
          $region61: #{cnn_forward.5} parent=58 // pred_check_branch
            %1485 = sbr.rel (0) target = $region63
          $region62: #{cnn_forward.5} parent=58 // pred_region
            // Predicated region
            $region64: #{cnn_forward.5} parent=62 // pred_check
              _
            $region65: #{cnn_forward.5} parent=62 // pred_check_branch
              %1487 = sbr.rel (0) target = $region67
            $region66: #{cnn_forward.5} parent=62 // pred_region
              loop: start=0, step=1, limit=1
              $region68: #{cnn_forward.5} parent=66 // loop_pre_header
                _
              $region69: #{cnn_forward.5} parent=66 // loop_header
                %s1489 = sphi 0, %s1493
                %p1490 = scmp.ge.s32.totalorder %s1489, 1
                %s1494 = sphi %s1477, %s1477
                %s1495 = sphi %s1483, %s1483
              $region70: #{cnn_forward.5} parent=66 // loop_header_branch
                %1492 = sbr.rel (%p1490) target = $region74
              $region71: #{cnn_forward.5} parent=66 // loop_body
                %v1496 = vld [vmem:[%s1494] sm:$0xff]
                %1497 = vst [vmem:[%s1495] sm:$0xff] %v1496
                %v1498 = vld [vmem:[%s1494 + $0x8] sm:$0xff]
                %1499 = vst [vmem:[%s1495 + $0x8] sm:$0xff] %v1498
                %v1500 = vld [vmem:[%s1494 + $0x10] sm:$0xff]
                %1501 = vst [vmem:[%s1495 + $0x10] sm:$0xff] %v1500
                %v1502 = vld [vmem:[%s1494 + $0x18] sm:$0xff]
                %1503 = vst [vmem:[%s1495 + $0x18] sm:$0xff] %v1502
                %v1504 = vld [vmem:[%s1494 + $0x20] sm:$0xff]
                %1505 = vst [vmem:[%s1495 + $0x20] sm:$0xff] %v1504
                %v1506 = vld [vmem:[%s1494 + $0x28] sm:$0xff]
                %1507 = vst [vmem:[%s1495 + $0x28] sm:$0xff] %v1506
                %v1508 = vld [vmem:[%s1494 + $0x30] sm:$0xff]
                %1509 = vst [vmem:[%s1495 + $0x30] sm:$0xff] %v1508
                %v1510 = vld [vmem:[%s1494 + $0x38] sm:$0xff]
                %1511 = vst [vmem:[%s1495 + $0x38] sm:$0xff] %v1510
                %v1512 = vld [vmem:[%s1494 + $0x40] sm:$0xff]
                %1513 = vst [vmem:[%s1495 + $0x80] sm:$0xff] %v1512
                %v1514 = vld [vmem:[%s1494 + $0x48] sm:$0xff]
                %1515 = vst [vmem:[%s1495 + $0x88] sm:$0xff] %v1514
                %v1516 = vld [vmem:[%s1494 + $0x50] sm:$0xff]
                %1517 = vst [vmem:[%s1495 + $0x90] sm:$0xff] %v1516
                %v1518 = vld [vmem:[%s1494 + $0x58] sm:$0xff]
                %1519 = vst [vmem:[%s1495 + $0x98] sm:$0xff] %v1518
                %v1520 = vld [vmem:[%s1494 + $0x60] sm:$0xff]
                %1521 = vst [vmem:[%s1495 + $0xa0] sm:$0xff] %v1520
                %v1522 = vld [vmem:[%s1494 + $0x68] sm:$0xff]
                %1523 = vst [vmem:[%s1495 + $0xa8] sm:$0xff] %v1522
                %v1524 = vld [vmem:[%s1494 + $0x70] sm:$0xff]
                %1525 = vst [vmem:[%s1495 + $0xb0] sm:$0xff] %v1524
                %v1526 = vld [vmem:[%s1494 + $0x78] sm:$0xff]
                %1527 = vst [vmem:[%s1495 + $0xb8] sm:$0xff] %v1526
              $region72: #{cnn_forward.5} parent=66 // loop_footer
                %s1493 = sadd.s32 1, %s1489
              $region73: #{cnn_forward.5} parent=66 // loop_footer_branch
                %1488 = sbr.rel target = $region69
              $region74: #{cnn_forward.5} parent=66 // loop_exit
                _
            $region67: #{cnn_forward.5} parent=62 // pred_fallthru
              _
            // Predicated region
            $region75: #{cnn_forward.5} parent=62 // pred_check
              _
            $region76: #{cnn_forward.5} parent=62 // pred_check_branch
              %1529 = sbr.rel target = $region78
            $region77: #{cnn_forward.5} parent=62 // pred_region
              _
            $region78: #{cnn_forward.5} parent=62 // pred_fallthru
              _
          $region63: #{cnn_forward.5} parent=58 // pred_fallthru
            _
          %1530 = vnop
        $region59: #{cnn_forward.5} parent=50 // pred_fallthru
          _
      $region51: #{cnn_forward.5} parent=5 // pred_fallthru
        _
      %p1531 = scmp.le.s32.totalorder 2, %s9
      // Predicated region
      $region79: #{cnn_forward.5} parent=5 // pred_check
        %p1532 = pneg %p1531
      $region80: #{cnn_forward.5} parent=5 // pred_check_branch
        %1534 = sbr.rel (%p1532) target = $region82
      $region81: #{cnn_forward.5} parent=5 // pred_region
        %s1535 = ssub.s32 %s9, 2
        // Predicated region
        $region83: #{cnn_forward.5} parent=81 // pred_check
          %p1536 = pneg %p106
        $region84: #{cnn_forward.5} parent=81 // pred_check_branch
          %1538 = sbr.rel (%p1536) target = $region86
        $region85: #{cnn_forward.5} parent=81 // pred_region
          %s1539 = sand.u32 %s91, 1
          %s1540 = sand.u32 %s91, 1
          %s1541 = smul.addr %s1540, 128
          %s1542 = scalar_lea.vmem [#allocation3], %s1541
        $region86: #{cnn_forward.5} parent=81 // pred_fallthru
          _
      $region82: #{cnn_forward.5} parent=5 // pred_fallthru
        _
    $region6: #{cnn_forward.5} parent=1 // loop_footer
      %s13 = sadd.s32 1, %s9
    $region7: #{cnn_forward.5} parent=1 // loop_footer_branch
      %8 = sbr.rel target = $region3
    $region8: #{cnn_forward.5} parent=1 // loop_exit
      _

// kernel: cnn_forward.6
$region0: #{cnn_forward.6}
  #allocation0 [shape = 'u32[]', space=smem, size = 0x4, offset = 0x4, fixed_abs, tag = 'smem constant byte address 0x4 - core index']
  #allocation1 [shape = 'u32[72,128]{1,0:T(1,128)}', space=vmem, size = 0x9000, scoped, tag = 'internal scratch']
  %s0 = inlined_call_operand.vmem [shape: f32[144,450], index: 0, kind: input, shape index: {}]
  %s1 = inlined_call_operand.vmem [shape: f32[4,32,144], index: 1, kind: input, shape index: {}]
  %s2 = inlined_call_operand.vmem [shape: f32[32,1], index: 2, kind: input, shape index: {}]
  %s3 = inlined_call_operand.vmem [shape: f32[32,450], index: 3, kind: output, shape index: {}]
  %s4 = sld [smem:[#allocation0]]
  $region22: #{cnn_forward.6} parent=0
    _
  %s6 = ssub.s32 1, %s4
  %s7 = scalar_select 0, %s6, %s4
  // Predicated region
  $region2: #{cnn_forward.6} parent=0 // pred_check
    _
  $region3: #{cnn_forward.6} parent=0 // pred_check_branch
    %9 = sbr.rel (0) target = $region5
  $region4: #{cnn_forward.6} parent=0 // pred_region
    _
  $region5: #{cnn_forward.6} parent=0 // pred_fallthru
    _
  // Predicated region
  $region6: #{cnn_forward.6} parent=0 // pred_check
    _
  $region7: #{cnn_forward.6} parent=0 // pred_check_branch
    %11 = sbr.rel (0) target = $region9
  $region8: #{cnn_forward.6} parent=0 // pred_region
    _
  $region9: #{cnn_forward.6} parent=0 // pred_fallthru
    _
  // Predicated region
  $region10: #{cnn_forward.6} parent=0 // pred_check
    _
  $region11: #{cnn_forward.6} parent=0 // pred_check_branch
    %13 = sbr.rel (0) target = $region13
  $region12: #{cnn_forward.6} parent=0 // pred_region
    _
  $region13: #{cnn_forward.6} parent=0 // pred_fallthru
    _
  %v14 = vld [vmem:[%s0] sm:$0xff]
  %v15 = vld [vmem:[%s0 + $0x8] sm:$0xff]
  %v16 = vld [vmem:[%s0 + $0x10] sm:$0xff]
  %v17 = vld [vmem:[%s0 + $0x18] sm:$0xff]
  %v18 = vld [vmem:[%s0 + $0x20] sm:$0xff]
  %v19 = vld [vmem:[%s0 + $0x28] sm:$0xff]
  %v20 = vld [vmem:[%s0 + $0x30] sm:$0xff]
  %v21 = vld [vmem:[%s0 + $0x38] sm:$0xff]
  %v22 = vld [vmem:[%s0 + $0x40] sm:$0xff]
  %v23 = vld [vmem:[%s0 + $0x48] sm:$0xff]
  %v24 = vld [vmem:[%s0 + $0x50] sm:$0xff]
  %v25 = vld [vmem:[%s0 + $0x58] sm:$0xff]
  %v26 = vld [vmem:[%s0 + $0x60] sm:$0xff]
  %v27 = vld [vmem:[%s0 + $0x68] sm:$0xff]
  %v28 = vld [vmem:[%s0 + $0x70] sm:$0xff]
  %v29 = vld [vmem:[%s0 + $0x78] sm:$0xff]
  %v30 = vld [vmem:[%s0 + $0x80] sm:$0xff]
  %v31 = vld [vmem:[%s0 + $0x88] sm:$0xff]
  %v32 = vld [vmem:[%s0 + $0x90] sm:$0xff]
  %v33 = vld [vmem:[%s0 + $0x98] sm:$0xff]
  %v34 = vld [vmem:[%s0 + $0xa0] sm:$0xff]
  %v35 = vld [vmem:[%s0 + $0xa8] sm:$0xff]
  %v36 = vld [vmem:[%s0 + $0xb0] sm:$0xff]
  %v37 = vld [vmem:[%s0 + $0xb8] sm:$0xff]
  %v38 = vld [vmem:[%s0 + $0xc0] sm:$0xff]
  %v39 = vld [vmem:[%s0 + $0xc8] sm:$0xff]
  %v40 = vld [vmem:[%s0 + $0xd0] sm:$0xff]
  %v41 = vld [vmem:[%s0 + $0xd8] sm:$0xff]
  %v42 = vld [vmem:[%s0 + $0xe0] sm:$0xff]
  %v43 = vld [vmem:[%s0 + $0xe8] sm:$0xff]
  %v44 = vld [vmem:[%s0 + $0xf0] sm:$0xff]
  %v45 = vld [vmem:[%s0 + $0xf8] sm:$0xff]
  %v46 = vld [vmem:[%s0 + $0x100] sm:$0xff]
  %v47 = vld [vmem:[%s0 + $0x108] sm:$0xff]
  %v48 = vld [vmem:[%s0 + $0x110] sm:$0xff]
  %v49 = vld [vmem:[%s0 + $0x118] sm:$0xff]
  %v50 = vld [vmem:[%s0 + $0x120] sm:$0xff]
  %v51 = vld [vmem:[%s0 + $0x128] sm:$0xff]
  %v52 = vld [vmem:[%s0 + $0x130] sm:$0xff]
  %v53 = vld [vmem:[%s0 + $0x138] sm:$0xff]
  %v54 = vld [vmem:[%s0 + $0x140] sm:$0xff]
  %v55 = vld [vmem:[%s0 + $0x148] sm:$0xff]
  %v56 = vld [vmem:[%s0 + $0x150] sm:$0xff]
  %v57 = vld [vmem:[%s0 + $0x158] sm:$0xff]
  %v58 = vld [vmem:[%s0 + $0x160] sm:$0xff]
  %v59 = vld [vmem:[%s0 + $0x168] sm:$0xff]
  %v60 = vld [vmem:[%s0 + $0x170] sm:$0xff]
  %v61 = vld [vmem:[%s0 + $0x178] sm:$0xff]
  %v62 = vld [vmem:[%s0 + $0x180] sm:$0xff]
  %v63 = vld [vmem:[%s0 + $0x188] sm:$0xff]
  %v64 = vld [vmem:[%s0 + $0x190] sm:$0xff]
  %v65 = vld [vmem:[%s0 + $0x198] sm:$0xff]
  %v66 = vld [vmem:[%s0 + $0x1a0] sm:$0xff]
  %v67 = vld [vmem:[%s0 + $0x1a8] sm:$0xff]
  %v68 = vld [vmem:[%s0 + $0x1b0] sm:$0xff]
  %v69 = vld [vmem:[%s0 + $0x1b8] sm:$0xff]
  %v70 = vld [vmem:[%s0 + $0x1c0] sm:$0xff]
  %v71 = vld [vmem:[%s0 + $0x1c8] sm:$0xff]
  %v72 = vld [vmem:[%s0 + $0x1d0] sm:$0xff]
  %v73 = vld [vmem:[%s0 + $0x1d8] sm:$0xff]
  %v74 = vld [vmem:[%s0 + $0x1e0] sm:$0xff]
  %v75 = vld [vmem:[%s0 + $0x1e8] sm:$0xff]
  %v76 = vld [vmem:[%s0 + $0x1f0] sm:$0xff]
  %v77 = vld [vmem:[%s0 + $0x1f8] sm:$0xff]
  %v78 = vld [vmem:[%s0 + $0x200] sm:$0xff]
  %v79 = vld [vmem:[%s0 + $0x208] sm:$0xff]
  %v80 = vld [vmem:[%s0 + $0x210] sm:$0xff]
  %v81 = vld [vmem:[%s0 + $0x218] sm:$0xff]
  %v82 = vld [vmem:[%s0 + $0x220] sm:$0xff]
  %v83 = vld [vmem:[%s0 + $0x228] sm:$0xff]
  %v84 = vld [vmem:[%s0 + $0x230] sm:$0xff]
  %v85 = vld [vmem:[%s0 + $0x238] sm:$0xff]
  %v86 = vld [vmem:[%s1] sm:$0xff]
  %v87 = vld [vmem:[%s1 + $0x8] sm:$0xff]
  %v88 = vld [vmem:[%s1 + $0x10] sm:$0xff]
  %v89 = vld [vmem:[%s1 + $0x18] sm:$0xff]
  %v90 = vld [vmem:[%s1 + $0x20] sm:$0xff]
  %v91 = vld [vmem:[%s1 + $0x28] sm:$0xff]
  %v92 = vld [vmem:[%s1 + $0x30] sm:$0xff]
  %v93 = vld [vmem:[%s1 + $0x38] sm:$0xff]
  %vm94 = vcmask 130048
  %v96 = vsel %vm94, %v87, 0
  %v99 = vsel %vm94, %v89, 0
  %v102 = vsel %vm94, %v91, 0
  %v105 = vsel %vm94, %v93, 0
  %107 = vmatpush.msra.mxu0 %v74
  %108 = vmatpush.msra.mxu0 %v70
  %109 = vmatpush.msra.mxu0 %v66
  %110 = vmatpush.msra.mxu0 %v62
  %111 = vmatpush.msra.mxu0 %v58
  %112 = vmatpush.msra.mxu0 %v54
  %113 = vmatpush.msra.mxu0 %v50
  %114 = vmatpush.msra.mxu0 %v46
  %115 = vmatpush.msra.mxu0 %v42
  %116 = vmatpush.msra.mxu0 %v38
  %117 = vmatpush.msra.mxu0 %v34
  %118 = vmatpush.msra.mxu0 %v30
  %119 = vmatpush.msra.mxu0 %v26
  %120 = vmatpush.msra.mxu0 %v22
  %121 = vmatpush.msra.mxu0 %v18
  %122 = vmatpush.msra.mxu0 %v14
  %123 = vmatmul.f32.gmra.mxu0 %v86
  %v124 = vpop.f32.mrf.mxu0
  %v125 = vadd.f32 0.0, %v124
  %126 = vmatmul.f32.gmra.mxu0 %v88
  %v127 = vpop.f32.mrf.mxu0
  %v128 = vadd.f32 0.0, %v127
  %129 = vmatmul.f32.gmra.mxu0 %v90
  %v130 = vpop.f32.mrf.mxu0
  %v131 = vadd.f32 0.0, %v130
  %132 = vmatmul.f32.gmra.mxu0 %v92
  %v133 = vpop.f32.mrf.mxu0
  %v134 = vadd.f32 0.0, %v133
  %135 = vdwg.mxu0
  %136 = vmatpush.msra.mxu0 0.0
  %137 = vmatpush.msra.mxu0 0.0
  %138 = vmatpush.msra.mxu0 0.0
  %139 = vmatpush.msra.mxu0 0.0
  %140 = vmatpush.msra.mxu0 0.0
  %141 = vmatpush.msra.mxu0 0.0
  %142 = vmatpush.msra.mxu0 0.0
  %143 = vmatpush.msra.mxu0 0.0
  %144 = vmatpush.msra.mxu0 0.0
  %145 = vmatpush.msra.mxu0 0.0
  %146 = vmatpush.msra.mxu0 0.0
  %147 = vmatpush.msra.mxu0 0.0
  %148 = vmatpush.msra.mxu0 0.0
  %149 = vmatpush.msra.mxu0 0.0
  %150 = vmatpush.msra.mxu0 %v82
  %151 = vmatpush.msra.mxu0 %v78
  %152 = vmatmul.f32.gmra.mxu0 %v96
  %v153 = vpop.f32.mrf.mxu0
  %v154 = vadd.f32 %v125, %v153
  %155 = vmatmul.f32.gmra.mxu0 %v99
  %v156 = vpop.f32.mrf.mxu0
  %v157 = vadd.f32 %v128, %v156
  %158 = vmatmul.f32.gmra.mxu0 %v102
  %v159 = vpop.f32.mrf.mxu0
  %v160 = vadd.f32 %v131, %v159
  %161 = vmatmul.f32.gmra.mxu0 %v105
  %v162 = vpop.f32.mrf.mxu0
  %v163 = vadd.f32 %v134, %v162
  %164 = vdwg.mxu0
  %165 = vmatpush.msra.mxu0 %v75
  %166 = vmatpush.msra.mxu0 %v71
  %167 = vmatpush.msra.mxu0 %v67
  %168 = vmatpush.msra.mxu0 %v63
  %169 = vmatpush.msra.mxu0 %v59
  %170 = vmatpush.msra.mxu0 %v55
  %171 = vmatpush.msra.mxu0 %v51
  %172 = vmatpush.msra.mxu0 %v47
  %173 = vmatpush.msra.mxu0 %v43
  %174 = vmatpush.msra.mxu0 %v39
  %175 = vmatpush.msra.mxu0 %v35
  %176 = vmatpush.msra.mxu0 %v31
  %177 = vmatpush.msra.mxu0 %v27
  %178 = vmatpush.msra.mxu0 %v23
  %179 = vmatpush.msra.mxu0 %v19
  %180 = vmatpush.msra.mxu0 %v15
  %181 = vmatmul.f32.gmra.mxu0 %v86
  %v182 = vpop.f32.mrf.mxu0
  %v183 = vadd.f32 0.0, %v182
  %184 = vmatmul.f32.gmra.mxu0 %v88
  %v185 = vpop.f32.mrf.mxu0
  %v186 = vadd.f32 0.0, %v185
  %187 = vmatmul.f32.gmra.mxu0 %v90
  %v188 = vpop.f32.mrf.mxu0
  %v189 = vadd.f32 0.0, %v188
  %190 = vmatmul.f32.gmra.mxu0 %v92
  %v191 = vpop.f32.mrf.mxu0
  %v192 = vadd.f32 0.0, %v191
  %193 = vdwg.mxu0
  %194 = vmatpush.msra.mxu0 0.0
  %195 = vmatpush.msra.mxu0 0.0
  %196 = vmatpush.msra.mxu0 0.0
  %197 = vmatpush.msra.mxu0 0.0
  %198 = vmatpush.msra.mxu0 0.0
  %199 = vmatpush.msra.mxu0 0.0
  %200 = vmatpush.msra.mxu0 0.0
  %201 = vmatpush.msra.mxu0 0.0
  %202 = vmatpush.msra.mxu0 0.0
  %203 = vmatpush.msra.mxu0 0.0
  %204 = vmatpush.msra.mxu0 0.0
  %205 = vmatpush.msra.mxu0 0.0
  %206 = vmatpush.msra.mxu0 0.0
  %207 = vmatpush.msra.mxu0 0.0
  %208 = vmatpush.msra.mxu0 %v83
  %209 = vmatpush.msra.mxu0 %v79
  %210 = vmatmul.f32.gmra.mxu0 %v96
  %v211 = vpop.f32.mrf.mxu0
  %v212 = vadd.f32 %v183, %v211
  %213 = vmatmul.f32.gmra.mxu0 %v99
  %v214 = vpop.f32.mrf.mxu0
  %v215 = vadd.f32 %v186, %v214
  %216 = vmatmul.f32.gmra.mxu0 %v102
  %v217 = vpop.f32.mrf.mxu0
  %v218 = vadd.f32 %v189, %v217
  %219 = vmatmul.f32.gmra.mxu0 %v105
  %v220 = vpop.f32.mrf.mxu0
  %v221 = vadd.f32 %v192, %v220
  %222 = vdwg.mxu0
  %223 = vmatpush.msra.mxu0 %v76
  %224 = vmatpush.msra.mxu0 %v72
  %225 = vmatpush.msra.mxu0 %v68
  %226 = vmatpush.msra.mxu0 %v64
  %227 = vmatpush.msra.mxu0 %v60
  %228 = vmatpush.msra.mxu0 %v56
  %229 = vmatpush.msra.mxu0 %v52
  %230 = vmatpush.msra.mxu0 %v48
  %231 = vmatpush.msra.mxu0 %v44
  %232 = vmatpush.msra.mxu0 %v40
  %233 = vmatpush.msra.mxu0 %v36
  %234 = vmatpush.msra.mxu0 %v32
  %235 = vmatpush.msra.mxu0 %v28
  %236 = vmatpush.msra.mxu0 %v24
  %237 = vmatpush.msra.mxu0 %v20
  %238 = vmatpush.msra.mxu0 %v16
  %239 = vmatmul.f32.gmra.mxu0 %v86
  %v240 = vpop.f32.mrf.mxu0
  %v241 = vadd.f32 0.0, %v240
  %242 = vmatmul.f32.gmra.mxu0 %v88
  %v243 = vpop.f32.mrf.mxu0
  %v244 = vadd.f32 0.0, %v243
  %245 = vmatmul.f32.gmra.mxu0 %v90
  %v246 = vpop.f32.mrf.mxu0
  %v247 = vadd.f32 0.0, %v246
  %248 = vmatmul.f32.gmra.mxu0 %v92
  %v249 = vpop.f32.mrf.mxu0
  %v250 = vadd.f32 0.0, %v249
  %251 = vdwg.mxu0
  %252 = vmatpush.msra.mxu0 0.0
  %253 = vmatpush.msra.mxu0 0.0
  %254 = vmatpush.msra.mxu0 0.0
  %255 = vmatpush.msra.mxu0 0.0
  %256 = vmatpush.msra.mxu0 0.0
  %257 = vmatpush.msra.mxu0 0.0
  %258 = vmatpush.msra.mxu0 0.0
  %259 = vmatpush.msra.mxu0 0.0
  %260 = vmatpush.msra.mxu0 0.0
  %261 = vmatpush.msra.mxu0 0.0
  %262 = vmatpush.msra.mxu0 0.0
  %263 = vmatpush.msra.mxu0 0.0
  %264 = vmatpush.msra.mxu0 0.0
  %265 = vmatpush.msra.mxu0 0.0
  %266 = vmatpush.msra.mxu0 %v84
  %267 = vmatpush.msra.mxu0 %v80
  %268 = vmatmul.f32.gmra.mxu0 %v96
  %v269 = vpop.f32.mrf.mxu0
  %v270 = vadd.f32 %v241, %v269
  %271 = vmatmul.f32.gmra.mxu0 %v99
  %v272 = vpop.f32.mrf.mxu0
  %v273 = vadd.f32 %v244, %v272
  %274 = vmatmul.f32.gmra.mxu0 %v102
  %v275 = vpop.f32.mrf.mxu0
  %v276 = vadd.f32 %v247, %v275
  %277 = vmatmul.f32.gmra.mxu0 %v105
  %v278 = vpop.f32.mrf.mxu0
  %v279 = vadd.f32 %v250, %v278
  %280 = vdwg.mxu0
  %281 = vmatpush.msra.mxu0 %v77
  %282 = vmatpush.msra.mxu0 %v73
  %283 = vmatpush.msra.mxu0 %v69
  %284 = vmatpush.msra.mxu0 %v65
  %285 = vmatpush.msra.mxu0 %v61
  %286 = vmatpush.msra.mxu0 %v57
  %287 = vmatpush.msra.mxu0 %v53
  %288 = vmatpush.msra.mxu0 %v49
  %289 = vmatpush.msra.mxu0 %v45
  %290 = vmatpush.msra.mxu0 %v41
  %291 = vmatpush.msra.mxu0 %v37
  %292 = vmatpush.msra.mxu0 %v33
  %293 = vmatpush.msra.mxu0 %v29
  %294 = vmatpush.msra.mxu0 %v25
  %295 = vmatpush.msra.mxu0 %v21
  %296 = vmatpush.msra.mxu0 %v17
  %297 = vmatmul.f32.gmra.mxu0 %v86
  %v298 = vpop.f32.mrf.mxu0
  %v299 = vadd.f32 0.0, %v298
  %300 = vmatmul.f32.gmra.mxu0 %v88
  %v301 = vpop.f32.mrf.mxu0
  %v302 = vadd.f32 0.0, %v301
  %303 = vmatmul.f32.gmra.mxu0 %v90
  %v304 = vpop.f32.mrf.mxu0
  %v305 = vadd.f32 0.0, %v304
  %306 = vmatmul.f32.gmra.mxu0 %v92
  %v307 = vpop.f32.mrf.mxu0
  %v308 = vadd.f32 0.0, %v307
  %309 = vdwg.mxu0
  %310 = vmatpush.msra.mxu0 0.0
  %311 = vmatpush.msra.mxu0 0.0
  %312 = vmatpush.msra.mxu0 0.0
  %313 = vmatpush.msra.mxu0 0.0
  %314 = vmatpush.msra.mxu0 0.0
  %315 = vmatpush.msra.mxu0 0.0
  %316 = vmatpush.msra.mxu0 0.0
  %317 = vmatpush.msra.mxu0 0.0
  %318 = vmatpush.msra.mxu0 0.0
  %319 = vmatpush.msra.mxu0 0.0
  %320 = vmatpush.msra.mxu0 0.0
  %321 = vmatpush.msra.mxu0 0.0
  %322 = vmatpush.msra.mxu0 0.0
  %323 = vmatpush.msra.mxu0 0.0
  %324 = vmatpush.msra.mxu0 %v85
  %325 = vmatpush.msra.mxu0 %v81
  %326 = vmatmul.f32.gmra.mxu0 %v96
  %v327 = vpop.f32.mrf.mxu0
  %v328 = vadd.f32 %v299, %v327
  %329 = vmatmul.f32.gmra.mxu0 %v99
  %v330 = vpop.f32.mrf.mxu0
  %v331 = vadd.f32 %v302, %v330
  %332 = vmatmul.f32.gmra.mxu0 %v102
  %v333 = vpop.f32.mrf.mxu0
  %v334 = vadd.f32 %v305, %v333
  %335 = vmatmul.f32.gmra.mxu0 %v105
  %v336 = vpop.f32.mrf.mxu0
  %v337 = vadd.f32 %v308, %v336
  %338 = vdwg.mxu0
  %s339 = scalar_lea.vmem %s1, 64
  %v340 = vld [vmem:[%s339] sm:$0xff]
  %v341 = vld [vmem:[%s339 + $0x8] sm:$0xff]
  %v342 = vld [vmem:[%s339 + $0x10] sm:$0xff]
  %v343 = vld [vmem:[%s339 + $0x18] sm:$0xff]
  %v344 = vld [vmem:[%s339 + $0x20] sm:$0xff]
  %v345 = vld [vmem:[%s339 + $0x28] sm:$0xff]
  %v346 = vld [vmem:[%s339 + $0x30] sm:$0xff]
  %v347 = vld [vmem:[%s339 + $0x38] sm:$0xff]
  %v349 = vsel %vm94, %v341, 0
  %v352 = vsel %vm94, %v343, 0
  %v355 = vsel %vm94, %v345, 0
  %v358 = vsel %vm94, %v347, 0
  %360 = vmatpush.msra.mxu0 %v74
  %361 = vmatpush.msra.mxu0 %v70
  %362 = vmatpush.msra.mxu0 %v66
  %363 = vmatpush.msra.mxu0 %v62
  %364 = vmatpush.msra.mxu0 %v58
  %365 = vmatpush.msra.mxu0 %v54
  %366 = vmatpush.msra.mxu0 %v50
  %367 = vmatpush.msra.mxu0 %v46
  %368 = vmatpush.msra.mxu0 %v42
  %369 = vmatpush.msra.mxu0 %v38
  %370 = vmatpush.msra.mxu0 %v34
  %371 = vmatpush.msra.mxu0 %v30
  %372 = vmatpush.msra.mxu0 %v26
  %373 = vmatpush.msra.mxu0 %v22
  %374 = vmatpush.msra.mxu0 %v18
  %375 = vmatpush.msra.mxu0 %v14
  %376 = vmatmul.f32.gmra.mxu0 %v340
  %v377 = vpop.f32.mrf.mxu0
  %v378 = vadd.f32 0.0, %v377
  %379 = vmatmul.f32.gmra.mxu0 %v342
  %v380 = vpop.f32.mrf.mxu0
  %v381 = vadd.f32 0.0, %v380
  %382 = vmatmul.f32.gmra.mxu0 %v344
  %v383 = vpop.f32.mrf.mxu0
  %v384 = vadd.f32 0.0, %v383
  %385 = vmatmul.f32.gmra.mxu0 %v346
  %v386 = vpop.f32.mrf.mxu0
  %v387 = vadd.f32 0.0, %v386
  %388 = vdwg.mxu0
  %389 = vmatpush.msra.mxu0 0.0
  %390 = vmatpush.msra.mxu0 0.0
  %391 = vmatpush.msra.mxu0 0.0
  %392 = vmatpush.msra.mxu0 0.0
  %393 = vmatpush.msra.mxu0 0.0
  %394 = vmatpush.msra.mxu0 0.0
  %395 = vmatpush.msra.mxu0 0.0
  %396 = vmatpush.msra.mxu0 0.0
  %397 = vmatpush.msra.mxu0 0.0
  %398 = vmatpush.msra.mxu0 0.0
  %399 = vmatpush.msra.mxu0 0.0
  %400 = vmatpush.msra.mxu0 0.0
  %401 = vmatpush.msra.mxu0 0.0
  %402 = vmatpush.msra.mxu0 0.0
  %403 = vmatpush.msra.mxu0 %v82
  %404 = vmatpush.msra.mxu0 %v78
  %405 = vmatmul.f32.gmra.mxu0 %v349
  %v406 = vpop.f32.mrf.mxu0
  %v407 = vadd.f32 %v378, %v406
  %408 = vmatmul.f32.gmra.mxu0 %v352
  %v409 = vpop.f32.mrf.mxu0
  %v410 = vadd.f32 %v381, %v409
  %411 = vmatmul.f32.gmra.mxu0 %v355
  %v412 = vpop.f32.mrf.mxu0
  %v413 = vadd.f32 %v384, %v412
  %414 = vmatmul.f32.gmra.mxu0 %v358
  %v415 = vpop.f32.mrf.mxu0
  %v416 = vadd.f32 %v387, %v415
  %417 = vdwg.mxu0
  %418 = vmatpush.msra.mxu0 %v75
  %419 = vmatpush.msra.mxu0 %v71
  %420 = vmatpush.msra.mxu0 %v67
  %421 = vmatpush.msra.mxu0 %v63
  %422 = vmatpush.msra.mxu0 %v59
  %423 = vmatpush.msra.mxu0 %v55
  %424 = vmatpush.msra.mxu0 %v51
  %425 = vmatpush.msra.mxu0 %v47
  %426 = vmatpush.msra.mxu0 %v43
  %427 = vmatpush.msra.mxu0 %v39
  %428 = vmatpush.msra.mxu0 %v35
  %429 = vmatpush.msra.mxu0 %v31
  %430 = vmatpush.msra.mxu0 %v27
  %431 = vmatpush.msra.mxu0 %v23
  %432 = vmatpush.msra.mxu0 %v19
  %433 = vmatpush.msra.mxu0 %v15
  %434 = vmatmul.f32.gmra.mxu0 %v340
  %v435 = vpop.f32.mrf.mxu0
  %v436 = vadd.f32 0.0, %v435
  %437 = vmatmul.f32.gmra.mxu0 %v342
  %v438 = vpop.f32.mrf.mxu0
  %v439 = vadd.f32 0.0, %v438
  %440 = vmatmul.f32.gmra.mxu0 %v344
  %v441 = vpop.f32.mrf.mxu0
  %v442 = vadd.f32 0.0, %v441
  %443 = vmatmul.f32.gmra.mxu0 %v346
  %v444 = vpop.f32.mrf.mxu0
  %v445 = vadd.f32 0.0, %v444
  %446 = vdwg.mxu0
  %447 = vmatpush.msra.mxu0 0.0
  %448 = vmatpush.msra.mxu0 0.0
  %449 = vmatpush.msra.mxu0 0.0
  %450 = vmatpush.msra.mxu0 0.0
  %451 = vmatpush.msra.mxu0 0.0
  %452 = vmatpush.msra.mxu0 0.0
  %453 = vmatpush.msra.mxu0 0.0
  %454 = vmatpush.msra.mxu0 0.0
  %455 = vmatpush.msra.mxu0 0.0
  %456 = vmatpush.msra.mxu0 0.0
  %457 = vmatpush.msra.mxu0 0.0
  %458 = vmatpush.msra.mxu0 0.0
  %459 = vmatpush.msra.mxu0 0.0
  %460 = vmatpush.msra.mxu0 0.0
  %461 = vmatpush.msra.mxu0 %v83
  %462 = vmatpush.msra.mxu0 %v79
  %463 = vmatmul.f32.gmra.mxu0 %v349
  %v464 = vpop.f32.mrf.mxu0
  %v465 = vadd.f32 %v436, %v464
  %466 = vmatmul.f32.gmra.mxu0 %v352
  %v467 = vpop.f32.mrf.mxu0
  %v468 = vadd.f32 %v439, %v467
  %469 = vmatmul.f32.gmra.mxu0 %v355
  %v470 = vpop.f32.mrf.mxu0
  %v471 = vadd.f32 %v442, %v470
  %472 = vmatmul.f32.gmra.mxu0 %v358
  %v473 = vpop.f32.mrf.mxu0
  %v474 = vadd.f32 %v445, %v473
  %475 = vdwg.mxu0
  %476 = vmatpush.msra.mxu0 %v76
  %477 = vmatpush.msra.mxu0 %v72
  %478 = vmatpush.msra.mxu0 %v68
  %479 = vmatpush.msra.mxu0 %v64
  %480 = vmatpush.msra.mxu0 %v60
  %481 = vmatpush.msra.mxu0 %v56
  %482 = vmatpush.msra.mxu0 %v52
  %483 = vmatpush.msra.mxu0 %v48
  %484 = vmatpush.msra.mxu0 %v44
  %485 = vmatpush.msra.mxu0 %v40
  %486 = vmatpush.msra.mxu0 %v36
  %487 = vmatpush.msra.mxu0 %v32
  %488 = vmatpush.msra.mxu0 %v28
  %489 = vmatpush.msra.mxu0 %v24
  %490 = vmatpush.msra.mxu0 %v20
  %491 = vmatpush.msra.mxu0 %v16
  %492 = vmatmul.f32.gmra.mxu0 %v340
  %v493 = vpop.f32.mrf.mxu0
  %v494 = vadd.f32 0.0, %v493
  %495 = vmatmul.f32.gmra.mxu0 %v342
  %v496 = vpop.f32.mrf.mxu0
  %v497 = vadd.f32 0.0, %v496
  %498 = vmatmul.f32.gmra.mxu0 %v344
  %v499 = vpop.f32.mrf.mxu0
  %v500 = vadd.f32 0.0, %v499
  %501 = vmatmul.f32.gmra.mxu0 %v346
  %v502 = vpop.f32.mrf.mxu0
  %v503 = vadd.f32 0.0, %v502
  %504 = vdwg.mxu0
  %505 = vmatpush.msra.mxu0 0.0
  %506 = vmatpush.msra.mxu0 0.0
  %507 = vmatpush.msra.mxu0 0.0
  %508 = vmatpush.msra.mxu0 0.0
  %509 = vmatpush.msra.mxu0 0.0
  %510 = vmatpush.msra.mxu0 0.0
  %511 = vmatpush.msra.mxu0 0.0
  %512 = vmatpush.msra.mxu0 0.0
  %513 = vmatpush.msra.mxu0 0.0
  %514 = vmatpush.msra.mxu0 0.0
  %515 = vmatpush.msra.mxu0 0.0
  %516 = vmatpush.msra.mxu0 0.0
  %517 = vmatpush.msra.mxu0 0.0
  %518 = vmatpush.msra.mxu0 0.0
  %519 = vmatpush.msra.mxu0 %v84
  %520 = vmatpush.msra.mxu0 %v80
  %521 = vmatmul.f32.gmra.mxu0 %v349
  %v522 = vpop.f32.mrf.mxu0
  %v523 = vadd.f32 %v494, %v522
  %524 = vmatmul.f32.gmra.mxu0 %v352
  %v525 = vpop.f32.mrf.mxu0
  %v526 = vadd.f32 %v497, %v525
  %527 = vmatmul.f32.gmra.mxu0 %v355
  %v528 = vpop.f32.mrf.mxu0
  %v529 = vadd.f32 %v500, %v528
  %530 = vmatmul.f32.gmra.mxu0 %v358
  %v531 = vpop.f32.mrf.mxu0
  %v532 = vadd.f32 %v503, %v531
  %533 = vdwg.mxu0
  %534 = vmatpush.msra.mxu0 %v77
  %535 = vmatpush.msra.mxu0 %v73
  %536 = vmatpush.msra.mxu0 %v69
  %537 = vmatpush.msra.mxu0 %v65
  %538 = vmatpush.msra.mxu0 %v61
  %539 = vmatpush.msra.mxu0 %v57
  %540 = vmatpush.msra.mxu0 %v53
  %541 = vmatpush.msra.mxu0 %v49
  %542 = vmatpush.msra.mxu0 %v45
  %543 = vmatpush.msra.mxu0 %v41
  %544 = vmatpush.msra.mxu0 %v37
  %545 = vmatpush.msra.mxu0 %v33
  %546 = vmatpush.msra.mxu0 %v29
  %547 = vmatpush.msra.mxu0 %v25
  %548 = vmatpush.msra.mxu0 %v21
  %549 = vmatpush.msra.mxu0 %v17
  %550 = vmatmul.f32.gmra.mxu0 %v340
  %v551 = vpop.f32.mrf.mxu0
  %v552 = vadd.f32 0.0, %v551
  %553 = vmatmul.f32.gmra.mxu0 %v342
  %v554 = vpop.f32.mrf.mxu0
  %v555 = vadd.f32 0.0, %v554
  %556 = vmatmul.f32.gmra.mxu0 %v344
  %v557 = vpop.f32.mrf.mxu0
  %v558 = vadd.f32 0.0, %v557
  %559 = vmatmul.f32.gmra.mxu0 %v346
  %v560 = vpop.f32.mrf.mxu0
  %v561 = vadd.f32 0.0, %v560
  %562 = vdwg.mxu0
  %563 = vmatpush.msra.mxu0 0.0
  %564 = vmatpush.msra.mxu0 0.0
  %565 = vmatpush.msra.mxu0 0.0
  %566 = vmatpush.msra.mxu0 0.0
  %567 = vmatpush.msra.mxu0 0.0
  %568 = vmatpush.msra.mxu0 0.0
  %569 = vmatpush.msra.mxu0 0.0
  %570 = vmatpush.msra.mxu0 0.0
  %571 = vmatpush.msra.mxu0 0.0
  %572 = vmatpush.msra.mxu0 0.0
  %573 = vmatpush.msra.mxu0 0.0
  %574 = vmatpush.msra.mxu0 0.0
  %575 = vmatpush.msra.mxu0 0.0
  %576 = vmatpush.msra.mxu0 0.0
  %577 = vmatpush.msra.mxu0 %v85
  %578 = vmatpush.msra.mxu0 %v81
  %579 = vmatmul.f32.gmra.mxu0 %v349
  %v580 = vpop.f32.mrf.mxu0
  %v581 = vadd.f32 %v552, %v580
  %582 = vmatmul.f32.gmra.mxu0 %v352
  %v583 = vpop.f32.mrf.mxu0
  %v584 = vadd.f32 %v555, %v583
  %585 = vmatmul.f32.gmra.mxu0 %v355
  %v586 = vpop.f32.mrf.mxu0
  %v587 = vadd.f32 %v558, %v586
  %588 = vmatmul.f32.gmra.mxu0 %v358
  %v589 = vpop.f32.mrf.mxu0
  %v590 = vadd.f32 %v561, %v589
  %591 = vdwg.mxu0
  %v592 = vmax.f32 %v154, %v407
  %v593 = vmax.f32 %v212, %v465
  %v594 = vmax.f32 %v270, %v523
  %v595 = vmax.f32 %v328, %v581
  %v596 = vmax.f32 %v157, %v410
  %v597 = vmax.f32 %v215, %v468
  %v598 = vmax.f32 %v273, %v526
  %v599 = vmax.f32 %v331, %v584
  %v600 = vmax.f32 %v160, %v413
  %v601 = vmax.f32 %v218, %v471
  %v602 = vmax.f32 %v276, %v529
  %v603 = vmax.f32 %v334, %v587
  %v604 = vmax.f32 %v163, %v416
  %v605 = vmax.f32 %v221, %v474
  %v606 = vmax.f32 %v279, %v532
  %v607 = vmax.f32 %v337, %v590
  %s608 = scalar_lea.vmem %s1, 128
  %v609 = vld [vmem:[%s608] sm:$0xff]
  %v610 = vld [vmem:[%s608 + $0x8] sm:$0xff]
  %v611 = vld [vmem:[%s608 + $0x10] sm:$0xff]
  %v612 = vld [vmem:[%s608 + $0x18] sm:$0xff]
  %v613 = vld [vmem:[%s608 + $0x20] sm:$0xff]
  %v614 = vld [vmem:[%s608 + $0x28] sm:$0xff]
  %v615 = vld [vmem:[%s608 + $0x30] sm:$0xff]
  %v616 = vld [vmem:[%s608 + $0x38] sm:$0xff]
  %v618 = vsel %vm94, %v610, 0
  %v621 = vsel %vm94, %v612, 0
  %v624 = vsel %vm94, %v614, 0
  %v627 = vsel %vm94, %v616, 0
  %629 = vmatpush.msra.mxu0 %v74
  %630 = vmatpush.msra.mxu0 %v70
  %631 = vmatpush.msra.mxu0 %v66
  %632 = vmatpush.msra.mxu0 %v62
  %633 = vmatpush.msra.mxu0 %v58
  %634 = vmatpush.msra.mxu0 %v54
  %635 = vmatpush.msra.mxu0 %v50
  %636 = vmatpush.msra.mxu0 %v46
  %637 = vmatpush.msra.mxu0 %v42
  %638 = vmatpush.msra.mxu0 %v38
  %639 = vmatpush.msra.mxu0 %v34
  %640 = vmatpush.msra.mxu0 %v30
  %641 = vmatpush.msra.mxu0 %v26
  %642 = vmatpush.msra.mxu0 %v22
  %643 = vmatpush.msra.mxu0 %v18
  %644 = vmatpush.msra.mxu0 %v14
  %645 = vmatmul.f32.gmra.mxu0 %v609
  %v646 = vpop.f32.mrf.mxu0
  %v647 = vadd.f32 0.0, %v646
  %648 = vmatmul.f32.gmra.mxu0 %v611
  %v649 = vpop.f32.mrf.mxu0
  %v650 = vadd.f32 0.0, %v649
  %651 = vmatmul.f32.gmra.mxu0 %v613
  %v652 = vpop.f32.mrf.mxu0
  %v653 = vadd.f32 0.0, %v652
  %654 = vmatmul.f32.gmra.mxu0 %v615
  %v655 = vpop.f32.mrf.mxu0
  %v656 = vadd.f32 0.0, %v655
  %657 = vdwg.mxu0
  %658 = vmatpush.msra.mxu0 0.0
  %659 = vmatpush.msra.mxu0 0.0
  %660 = vmatpush.msra.mxu0 0.0
  %661 = vmatpush.msra.mxu0 0.0
  %662 = vmatpush.msra.mxu0 0.0
  %663 = vmatpush.msra.mxu0 0.0
  %664 = vmatpush.msra.mxu0 0.0
  %665 = vmatpush.msra.mxu0 0.0
  %666 = vmatpush.msra.mxu0 0.0
  %667 = vmatpush.msra.mxu0 0.0
  %668 = vmatpush.msra.mxu0 0.0
  %669 = vmatpush.msra.mxu0 0.0
  %670 = vmatpush.msra.mxu0 0.0
  %671 = vmatpush.msra.mxu0 0.0
  %672 = vmatpush.msra.mxu0 %v82
  %673 = vmatpush.msra.mxu0 %v78
  %674 = vmatmul.f32.gmra.mxu0 %v618
  %v675 = vpop.f32.mrf.mxu0
  %v676 = vadd.f32 %v647, %v675
  %677 = vmatmul.f32.gmra.mxu0 %v621
  %v678 = vpop.f32.mrf.mxu0
  %v679 = vadd.f32 %v650, %v678
  %680 = vmatmul.f32.gmra.mxu0 %v624
  %v681 = vpop.f32.mrf.mxu0
  %v682 = vadd.f32 %v653, %v681
  %683 = vmatmul.f32.gmra.mxu0 %v627
  %v684 = vpop.f32.mrf.mxu0
  %v685 = vadd.f32 %v656, %v684
  %686 = vdwg.mxu0
  %687 = vmatpush.msra.mxu0 %v75
  %688 = vmatpush.msra.mxu0 %v71
  %689 = vmatpush.msra.mxu0 %v67
  %690 = vmatpush.msra.mxu0 %v63
  %691 = vmatpush.msra.mxu0 %v59
  %692 = vmatpush.msra.mxu0 %v55
  %693 = vmatpush.msra.mxu0 %v51
  %694 = vmatpush.msra.mxu0 %v47
  %695 = vmatpush.msra.mxu0 %v43
  %696 = vmatpush.msra.mxu0 %v39
  %697 = vmatpush.msra.mxu0 %v35
  %698 = vmatpush.msra.mxu0 %v31
  %699 = vmatpush.msra.mxu0 %v27
  %700 = vmatpush.msra.mxu0 %v23
  %701 = vmatpush.msra.mxu0 %v19
  %702 = vmatpush.msra.mxu0 %v15
  %703 = vmatmul.f32.gmra.mxu0 %v609
  %v704 = vpop.f32.mrf.mxu0
  %v705 = vadd.f32 0.0, %v704
  %706 = vmatmul.f32.gmra.mxu0 %v611
  %v707 = vpop.f32.mrf.mxu0
  %v708 = vadd.f32 0.0, %v707
  %709 = vmatmul.f32.gmra.mxu0 %v613
  %v710 = vpop.f32.mrf.mxu0
  %v711 = vadd.f32 0.0, %v710
  %712 = vmatmul.f32.gmra.mxu0 %v615
  %v713 = vpop.f32.mrf.mxu0
  %v714 = vadd.f32 0.0, %v713
  %715 = vdwg.mxu0
  %716 = vmatpush.msra.mxu0 0.0
  %717 = vmatpush.msra.mxu0 0.0
  %718 = vmatpush.msra.mxu0 0.0
  %719 = vmatpush.msra.mxu0 0.0
  %720 = vmatpush.msra.mxu0 0.0
  %721 = vmatpush.msra.mxu0 0.0
  %722 = vmatpush.msra.mxu0 0.0
  %723 = vmatpush.msra.mxu0 0.0
  %724 = vmatpush.msra.mxu0 0.0
  %725 = vmatpush.msra.mxu0 0.0
  %726 = vmatpush.msra.mxu0 0.0
  %727 = vmatpush.msra.mxu0 0.0
  %728 = vmatpush.msra.mxu0 0.0
  %729 = vmatpush.msra.mxu0 0.0
  %730 = vmatpush.msra.mxu0 %v83
  %731 = vmatpush.msra.mxu0 %v79
  %732 = vmatmul.f32.gmra.mxu0 %v618
  %v733 = vpop.f32.mrf.mxu0
  %v734 = vadd.f32 %v705, %v733
  %735 = vmatmul.f32.gmra.mxu0 %v621
  %v736 = vpop.f32.mrf.mxu0
  %v737 = vadd.f32 %v708, %v736
  %738 = vmatmul.f32.gmra.mxu0 %v624
  %v739 = vpop.f32.mrf.mxu0
  %v740 = vadd.f32 %v711, %v739
  %741 = vmatmul.f32.gmra.mxu0 %v627
  %v742 = vpop.f32.mrf.mxu0
  %v743 = vadd.f32 %v714, %v742
  %744 = vdwg.mxu0
  %745 = vmatpush.msra.mxu0 %v76
  %746 = vmatpush.msra.mxu0 %v72
  %747 = vmatpush.msra.mxu0 %v68
  %748 = vmatpush.msra.mxu0 %v64
  %749 = vmatpush.msra.mxu0 %v60
  %750 = vmatpush.msra.mxu0 %v56
  %751 = vmatpush.msra.mxu0 %v52
  %752 = vmatpush.msra.mxu0 %v48
  %753 = vmatpush.msra.mxu0 %v44
  %754 = vmatpush.msra.mxu0 %v40
  %755 = vmatpush.msra.mxu0 %v36
  %756 = vmatpush.msra.mxu0 %v32
  %757 = vmatpush.msra.mxu0 %v28
  %758 = vmatpush.msra.mxu0 %v24
  %759 = vmatpush.msra.mxu0 %v20
  %760 = vmatpush.msra.mxu0 %v16
  %761 = vmatmul.f32.gmra.mxu0 %v609
  %v762 = vpop.f32.mrf.mxu0
  %v763 = vadd.f32 0.0, %v762
  %764 = vmatmul.f32.gmra.mxu0 %v611
  %v765 = vpop.f32.mrf.mxu0
  %v766 = vadd.f32 0.0, %v765
  %767 = vmatmul.f32.gmra.mxu0 %v613
  %v768 = vpop.f32.mrf.mxu0
  %v769 = vadd.f32 0.0, %v768
  %770 = vmatmul.f32.gmra.mxu0 %v615
  %v771 = vpop.f32.mrf.mxu0
  %v772 = vadd.f32 0.0, %v771
  %773 = vdwg.mxu0
  %774 = vmatpush.msra.mxu0 0.0
  %775 = vmatpush.msra.mxu0 0.0
  %776 = vmatpush.msra.mxu0 0.0
  %777 = vmatpush.msra.mxu0 0.0
  %778 = vmatpush.msra.mxu0 0.0
  %779 = vmatpush.msra.mxu0 0.0
  %780 = vmatpush.msra.mxu0 0.0
  %781 = vmatpush.msra.mxu0 0.0
  %782 = vmatpush.msra.mxu0 0.0
  %783 = vmatpush.msra.mxu0 0.0
  %784 = vmatpush.msra.mxu0 0.0
  %785 = vmatpush.msra.mxu0 0.0
  %786 = vmatpush.msra.mxu0 0.0
  %787 = vmatpush.msra.mxu0 0.0
  %788 = vmatpush.msra.mxu0 %v84
  %789 = vmatpush.msra.mxu0 %v80
  %790 = vmatmul.f32.gmra.mxu0 %v618
  %v791 = vpop.f32.mrf.mxu0
  %v792 = vadd.f32 %v763, %v791
  %793 = vmatmul.f32.gmra.mxu0 %v621
  %v794 = vpop.f32.mrf.mxu0
  %v795 = vadd.f32 %v766, %v794
  %796 = vmatmul.f32.gmra.mxu0 %v624
  %v797 = vpop.f32.mrf.mxu0
  %v798 = vadd.f32 %v769, %v797
  %799 = vmatmul.f32.gmra.mxu0 %v627
  %v800 = vpop.f32.mrf.mxu0
  %v801 = vadd.f32 %v772, %v800
  %802 = vdwg.mxu0
  %803 = vmatpush.msra.mxu0 %v77
  %804 = vmatpush.msra.mxu0 %v73
  %805 = vmatpush.msra.mxu0 %v69
  %806 = vmatpush.msra.mxu0 %v65
  %807 = vmatpush.msra.mxu0 %v61
  %808 = vmatpush.msra.mxu0 %v57
  %809 = vmatpush.msra.mxu0 %v53
  %810 = vmatpush.msra.mxu0 %v49
  %811 = vmatpush.msra.mxu0 %v45
  %812 = vmatpush.msra.mxu0 %v41
  %813 = vmatpush.msra.mxu0 %v37
  %814 = vmatpush.msra.mxu0 %v33
  %815 = vmatpush.msra.mxu0 %v29
  %816 = vmatpush.msra.mxu0 %v25
  %817 = vmatpush.msra.mxu0 %v21
  %818 = vmatpush.msra.mxu0 %v17
  %819 = vmatmul.f32.gmra.mxu0 %v609
  %v820 = vpop.f32.mrf.mxu0
  %v821 = vadd.f32 0.0, %v820
  %822 = vmatmul.f32.gmra.mxu0 %v611
  %v823 = vpop.f32.mrf.mxu0
  %v824 = vadd.f32 0.0, %v823
  %825 = vmatmul.f32.gmra.mxu0 %v613
  %v826 = vpop.f32.mrf.mxu0
  %v827 = vadd.f32 0.0, %v826
  %828 = vmatmul.f32.gmra.mxu0 %v615
  %v829 = vpop.f32.mrf.mxu0
  %v830 = vadd.f32 0.0, %v829
  %831 = vdwg.mxu0
  %832 = vmatpush.msra.mxu0 0.0
  %833 = vmatpush.msra.mxu0 0.0
  %834 = vmatpush.msra.mxu0 0.0
  %835 = vmatpush.msra.mxu0 0.0
  %836 = vmatpush.msra.mxu0 0.0
  %837 = vmatpush.msra.mxu0 0.0
  %838 = vmatpush.msra.mxu0 0.0
  %839 = vmatpush.msra.mxu0 0.0
  %840 = vmatpush.msra.mxu0 0.0
  %841 = vmatpush.msra.mxu0 0.0
  %842 = vmatpush.msra.mxu0 0.0
  %843 = vmatpush.msra.mxu0 0.0
  %844 = vmatpush.msra.mxu0 0.0
  %845 = vmatpush.msra.mxu0 0.0
  %846 = vmatpush.msra.mxu0 %v85
  %847 = vmatpush.msra.mxu0 %v81
  %848 = vmatmul.f32.gmra.mxu0 %v618
  %v849 = vpop.f32.mrf.mxu0
  %v850 = vadd.f32 %v821, %v849
  %851 = vmatmul.f32.gmra.mxu0 %v621
  %v852 = vpop.f32.mrf.mxu0
  %v853 = vadd.f32 %v824, %v852
  %854 = vmatmul.f32.gmra.mxu0 %v624
  %v855 = vpop.f32.mrf.mxu0
  %v856 = vadd.f32 %v827, %v855
  %857 = vmatmul.f32.gmra.mxu0 %v627
  %v858 = vpop.f32.mrf.mxu0
  %v859 = vadd.f32 %v830, %v858
  %860 = vdwg.mxu0
  %v861 = vmax.f32 %v592, %v676
  %v862 = vmax.f32 %v593, %v734
  %v863 = vmax.f32 %v594, %v792
  %v864 = vmax.f32 %v595, %v850
  %v865 = vmax.f32 %v596, %v679
  %v866 = vmax.f32 %v597, %v737
  %v867 = vmax.f32 %v598, %v795
  %v868 = vmax.f32 %v599, %v853
  %v869 = vmax.f32 %v600, %v682
  %v870 = vmax.f32 %v601, %v740
  %v871 = vmax.f32 %v602, %v798
  %v872 = vmax.f32 %v603, %v856
  %v873 = vmax.f32 %v604, %v685
  %v874 = vmax.f32 %v605, %v743
  %v875 = vmax.f32 %v606, %v801
  %v876 = vmax.f32 %v607, %v859
  %s877 = scalar_lea.vmem %s1, 192
  %v878 = vld [vmem:[%s877] sm:$0xff]
  %v879 = vld [vmem:[%s877 + $0x8] sm:$0xff]
  %v880 = vld [vmem:[%s877 + $0x10] sm:$0xff]
  %v881 = vld [vmem:[%s877 + $0x18] sm:$0xff]
  %v882 = vld [vmem:[%s877 + $0x20] sm:$0xff]
  %v883 = vld [vmem:[%s877 + $0x28] sm:$0xff]
  %v884 = vld [vmem:[%s877 + $0x30] sm:$0xff]
  %v885 = vld [vmem:[%s877 + $0x38] sm:$0xff]
  %v887 = vsel %vm94, %v879, 0
  %v890 = vsel %vm94, %v881, 0
  %v893 = vsel %vm94, %v883, 0
  %v896 = vsel %vm94, %v885, 0
  %898 = vmatpush.msra.mxu0 %v74
  %899 = vmatpush.msra.mxu0 %v70
  %900 = vmatpush.msra.mxu0 %v66
  %901 = vmatpush.msra.mxu0 %v62
  %902 = vmatpush.msra.mxu0 %v58
  %903 = vmatpush.msra.mxu0 %v54
  %904 = vmatpush.msra.mxu0 %v50
  %905 = vmatpush.msra.mxu0 %v46
  %906 = vmatpush.msra.mxu0 %v42
  %907 = vmatpush.msra.mxu0 %v38
  %908 = vmatpush.msra.mxu0 %v34
  %909 = vmatpush.msra.mxu0 %v30
  %910 = vmatpush.msra.mxu0 %v26
  %911 = vmatpush.msra.mxu0 %v22
  %912 = vmatpush.msra.mxu0 %v18
  %913 = vmatpush.msra.mxu0 %v14
  %914 = vmatmul.f32.gmra.mxu0 %v878
  %v915 = vpop.f32.mrf.mxu0
  %v916 = vadd.f32 0.0, %v915
  %917 = vmatmul.f32.gmra.mxu0 %v880
  %v918 = vpop.f32.mrf.mxu0
  %v919 = vadd.f32 0.0, %v918
  %920 = vmatmul.f32.gmra.mxu0 %v882
  %v921 = vpop.f32.mrf.mxu0
  %v922 = vadd.f32 0.0, %v921
  %923 = vmatmul.f32.gmra.mxu0 %v884
  %v924 = vpop.f32.mrf.mxu0
  %v925 = vadd.f32 0.0, %v924
  %926 = vdwg.mxu0
  %927 = vmatpush.msra.mxu0 0.0
  %928 = vmatpush.msra.mxu0 0.0
  %929 = vmatpush.msra.mxu0 0.0
  %930 = vmatpush.msra.mxu0 0.0
  %931 = vmatpush.msra.mxu0 0.0
  %932 = vmatpush.msra.mxu0 0.0
  %933 = vmatpush.msra.mxu0 0.0
  %934 = vmatpush.msra.mxu0 0.0
  %935 = vmatpush.msra.mxu0 0.0
  %936 = vmatpush.msra.mxu0 0.0
  %937 = vmatpush.msra.mxu0 0.0
  %938 = vmatpush.msra.mxu0 0.0
  %939 = vmatpush.msra.mxu0 0.0
  %940 = vmatpush.msra.mxu0 0.0
  %941 = vmatpush.msra.mxu0 %v82
  %942 = vmatpush.msra.mxu0 %v78
  %943 = vmatmul.f32.gmra.mxu0 %v887
  %v944 = vpop.f32.mrf.mxu0
  %v945 = vadd.f32 %v916, %v944
  %946 = vmatmul.f32.gmra.mxu0 %v890
  %v947 = vpop.f32.mrf.mxu0
  %v948 = vadd.f32 %v919, %v947
  %949 = vmatmul.f32.gmra.mxu0 %v893
  %v950 = vpop.f32.mrf.mxu0
  %v951 = vadd.f32 %v922, %v950
  %952 = vmatmul.f32.gmra.mxu0 %v896
  %v953 = vpop.f32.mrf.mxu0
  %v954 = vadd.f32 %v925, %v953
  %955 = vdwg.mxu0
  %956 = vmatpush.msra.mxu0 %v75
  %957 = vmatpush.msra.mxu0 %v71
  %958 = vmatpush.msra.mxu0 %v67
  %959 = vmatpush.msra.mxu0 %v63
  %960 = vmatpush.msra.mxu0 %v59
  %961 = vmatpush.msra.mxu0 %v55
  %962 = vmatpush.msra.mxu0 %v51
  %963 = vmatpush.msra.mxu0 %v47
  %964 = vmatpush.msra.mxu0 %v43
  %965 = vmatpush.msra.mxu0 %v39
  %966 = vmatpush.msra.mxu0 %v35
  %967 = vmatpush.msra.mxu0 %v31
  %968 = vmatpush.msra.mxu0 %v27
  %969 = vmatpush.msra.mxu0 %v23
  %970 = vmatpush.msra.mxu0 %v19
  %971 = vmatpush.msra.mxu0 %v15
  %972 = vmatmul.f32.gmra.mxu0 %v878
  %v973 = vpop.f32.mrf.mxu0
  %v974 = vadd.f32 0.0, %v973
  %975 = vmatmul.f32.gmra.mxu0 %v880
  %v976 = vpop.f32.mrf.mxu0
  %v977 = vadd.f32 0.0, %v976
  %978 = vmatmul.f32.gmra.mxu0 %v882
  %v979 = vpop.f32.mrf.mxu0
  %v980 = vadd.f32 0.0, %v979
  %981 = vmatmul.f32.gmra.mxu0 %v884
  %v982 = vpop.f32.mrf.mxu0
  %v983 = vadd.f32 0.0, %v982
  %984 = vdwg.mxu0
  %985 = vmatpush.msra.mxu0 0.0
  %986 = vmatpush.msra.mxu0 0.0
  %987 = vmatpush.msra.mxu0 0.0
  %988 = vmatpush.msra.mxu0 0.0
  %989 = vmatpush.msra.mxu0 0.0
  %990 = vmatpush.msra.mxu0 0.0
  %991 = vmatpush.msra.mxu0 0.0
  %992 = vmatpush.msra.mxu0 0.0
  %993 = vmatpush.msra.mxu0 0.0
  %994 = vmatpush.msra.mxu0 0.0
  %995 = vmatpush.msra.mxu0 0.0
  %996 = vmatpush.msra.mxu0 0.0
  %997 = vmatpush.msra.mxu0 0.0
  %998 = vmatpush.msra.mxu0 0.0
  %999 = vmatpush.msra.mxu0 %v83
  %1000 = vmatpush.msra.mxu0 %v79
  %1001 = vmatmul.f32.gmra.mxu0 %v887
  %v1002 = vpop.f32.mrf.mxu0
  %v1003 = vadd.f32 %v974, %v1002
  %1004 = vmatmul.f32.gmra.mxu0 %v890
  %v1005 = vpop.f32.mrf.mxu0
  %v1006 = vadd.f32 %v977, %v1005
  %1007 = vmatmul.f32.gmra.mxu0 %v893
  %v1008 = vpop.f32.mrf.mxu0
  %v1009 = vadd.f32 %v980, %v1008
  %1010 = vmatmul.f32.gmra.mxu0 %v896
  %v1011 = vpop.f32.mrf.mxu0
  %v1012 = vadd.f32 %v983, %v1011
  %1013 = vdwg.mxu0
  %1014 = vmatpush.msra.mxu0 %v76
  %1015 = vmatpush.msra.mxu0 %v72
  %1016 = vmatpush.msra.mxu0 %v68
  %1017 = vmatpush.msra.mxu0 %v64
  %1018 = vmatpush.msra.mxu0 %v60
  %1019 = vmatpush.msra.mxu0 %v56
  %1020 = vmatpush.msra.mxu0 %v52
  %1021 = vmatpush.msra.mxu0 %v48
  %1022 = vmatpush.msra.mxu0 %v44
  %1023 = vmatpush.msra.mxu0 %v40
  %1024 = vmatpush.msra.mxu0 %v36
  %1025 = vmatpush.msra.mxu0 %v32
  %1026 = vmatpush.msra.mxu0 %v28
  %1027 = vmatpush.msra.mxu0 %v24
  %1028 = vmatpush.msra.mxu0 %v20
  %1029 = vmatpush.msra.mxu0 %v16
  %1030 = vmatmul.f32.gmra.mxu0 %v878
  %v1031 = vpop.f32.mrf.mxu0
  %v1032 = vadd.f32 0.0, %v1031
  %1033 = vmatmul.f32.gmra.mxu0 %v880
  %v1034 = vpop.f32.mrf.mxu0
  %v1035 = vadd.f32 0.0, %v1034
  %1036 = vmatmul.f32.gmra.mxu0 %v882
  %v1037 = vpop.f32.mrf.mxu0
  %v1038 = vadd.f32 0.0, %v1037
  %1039 = vmatmul.f32.gmra.mxu0 %v884
  %v1040 = vpop.f32.mrf.mxu0
  %v1041 = vadd.f32 0.0, %v1040
  %1042 = vdwg.mxu0
  %1043 = vmatpush.msra.mxu0 0.0
  %1044 = vmatpush.msra.mxu0 0.0
  %1045 = vmatpush.msra.mxu0 0.0
  %1046 = vmatpush.msra.mxu0 0.0
  %1047 = vmatpush.msra.mxu0 0.0
  %1048 = vmatpush.msra.mxu0 0.0
  %1049 = vmatpush.msra.mxu0 0.0
  %1050 = vmatpush.msra.mxu0 0.0
  %1051 = vmatpush.msra.mxu0 0.0
  %1052 = vmatpush.msra.mxu0 0.0
  %1053 = vmatpush.msra.mxu0 0.0
  %1054 = vmatpush.msra.mxu0 0.0
  %1055 = vmatpush.msra.mxu0 0.0
  %1056 = vmatpush.msra.mxu0 0.0
  %1057 = vmatpush.msra.mxu0 %v84
  %1058 = vmatpush.msra.mxu0 %v80
  %1059 = vmatmul.f32.gmra.mxu0 %v887
  %v1060 = vpop.f32.mrf.mxu0
  %v1061 = vadd.f32 %v1032, %v1060
  %1062 = vmatmul.f32.gmra.mxu0 %v890
  %v1063 = vpop.f32.mrf.mxu0
  %v1064 = vadd.f32 %v1035, %v1063
  %1065 = vmatmul.f32.gmra.mxu0 %v893
  %v1066 = vpop.f32.mrf.mxu0
  %v1067 = vadd.f32 %v1038, %v1066
  %1068 = vmatmul.f32.gmra.mxu0 %v896
  %v1069 = vpop.f32.mrf.mxu0
  %v1070 = vadd.f32 %v1041, %v1069
  %1071 = vdwg.mxu0
  %1072 = vmatpush.msra.mxu0 %v77
  %1073 = vmatpush.msra.mxu0 %v73
  %1074 = vmatpush.msra.mxu0 %v69
  %1075 = vmatpush.msra.mxu0 %v65
  %1076 = vmatpush.msra.mxu0 %v61
  %1077 = vmatpush.msra.mxu0 %v57
  %1078 = vmatpush.msra.mxu0 %v53
  %1079 = vmatpush.msra.mxu0 %v49
  %1080 = vmatpush.msra.mxu0 %v45
  %1081 = vmatpush.msra.mxu0 %v41
  %1082 = vmatpush.msra.mxu0 %v37
  %1083 = vmatpush.msra.mxu0 %v33
  %1084 = vmatpush.msra.mxu0 %v29
  %1085 = vmatpush.msra.mxu0 %v25
  %1086 = vmatpush.msra.mxu0 %v21
  %1087 = vmatpush.msra.mxu0 %v17
  %1088 = vmatmul.f32.gmra.mxu0 %v878
  %v1089 = vpop.f32.mrf.mxu0
  %v1090 = vadd.f32 0.0, %v1089
  %1091 = vmatmul.f32.gmra.mxu0 %v880
  %v1092 = vpop.f32.mrf.mxu0
  %v1093 = vadd.f32 0.0, %v1092
  %1094 = vmatmul.f32.gmra.mxu0 %v882
  %v1095 = vpop.f32.mrf.mxu0
  %v1096 = vadd.f32 0.0, %v1095
  %1097 = vmatmul.f32.gmra.mxu0 %v884
  %v1098 = vpop.f32.mrf.mxu0
  %v1099 = vadd.f32 0.0, %v1098
  %1100 = vdwg.mxu0
  %1101 = vmatpush.msra.mxu0 0.0
  %1102 = vmatpush.msra.mxu0 0.0
  %1103 = vmatpush.msra.mxu0 0.0
  %1104 = vmatpush.msra.mxu0 0.0
  %1105 = vmatpush.msra.mxu0 0.0
  %1106 = vmatpush.msra.mxu0 0.0
  %1107 = vmatpush.msra.mxu0 0.0
  %1108 = vmatpush.msra.mxu0 0.0
  %1109 = vmatpush.msra.mxu0 0.0
  %1110 = vmatpush.msra.mxu0 0.0
  %1111 = vmatpush.msra.mxu0 0.0
  %1112 = vmatpush.msra.mxu0 0.0
  %1113 = vmatpush.msra.mxu0 0.0
  %1114 = vmatpush.msra.mxu0 0.0
  %1115 = vmatpush.msra.mxu0 %v85
  %1116 = vmatpush.msra.mxu0 %v81
  %1117 = vmatmul.f32.gmra.mxu0 %v887
  %v1118 = vpop.f32.mrf.mxu0
  %v1119 = vadd.f32 %v1090, %v1118
  %1120 = vmatmul.f32.gmra.mxu0 %v890
  %v1121 = vpop.f32.mrf.mxu0
  %v1122 = vadd.f32 %v1093, %v1121
  %1123 = vmatmul.f32.gmra.mxu0 %v893
  %v1124 = vpop.f32.mrf.mxu0
  %v1125 = vadd.f32 %v1096, %v1124
  %1126 = vmatmul.f32.gmra.mxu0 %v896
  %v1127 = vpop.f32.mrf.mxu0
  %v1128 = vadd.f32 %v1099, %v1127
  %1129 = vdwg.mxu0
  %v1130 = vmax.f32 %v861, %v945
  %v1131 = vmax.f32 %v862, %v1003
  %v1132 = vmax.f32 %v863, %v1061
  %v1133 = vmax.f32 %v864, %v1119
  %v1134 = vmax.f32 %v865, %v948
  %v1135 = vmax.f32 %v866, %v1006
  %v1136 = vmax.f32 %v867, %v1064
  %v1137 = vmax.f32 %v868, %v1122
  %v1138 = vmax.f32 %v869, %v951
  %v1139 = vmax.f32 %v870, %v1009
  %v1140 = vmax.f32 %v871, %v1067
  %v1141 = vmax.f32 %v872, %v1125
  %v1142 = vmax.f32 %v873, %v954
  %v1143 = vmax.f32 %v874, %v1012
  %v1144 = vmax.f32 %v875, %v1070
  %v1145 = vmax.f32 %v876, %v1128
  %v1146 = vld [vmem:[%s2] sm:$0xff]
  %v1147 = vld [vmem:[%s2 + $0x8] sm:$0xff]
  %v1148 = vld [vmem:[%s2 + $0x10] sm:$0xff]
  %v1149 = vld [vmem:[%s2 + $0x18] sm:$0xff]
  %1151 = vset.pattern.permute.xlu0 0
  %1152 = vperm.xlu0 %1151, %v1146
  %v1153 = vpop.permute.xlu0 %1152
  %1156 = vset.pattern.permute.xlu0 0
  %1157 = vperm.xlu0 %1156, %v1147
  %v1158 = vpop.permute.xlu0 %1157
  %1161 = vset.pattern.permute.xlu0 0
  %1162 = vperm.xlu0 %1161, %v1148
  %v1163 = vpop.permute.xlu0 %1162
  %1166 = vset.pattern.permute.xlu0 0
  %1167 = vperm.xlu0 %1166, %v1149
  %v1168 = vpop.permute.xlu0 %1167
  %v1170 = vadd.f32 %v1130, %v1153
  %v1171 = vadd.f32 %v1131, %v1153
  %v1172 = vadd.f32 %v1132, %v1153
  %v1173 = vadd.f32 %v1133, %v1153
  %v1174 = vadd.f32 %v1134, %v1158
  %v1175 = vadd.f32 %v1135, %v1158
  %v1176 = vadd.f32 %v1136, %v1158
  %v1177 = vadd.f32 %v1137, %v1158
  %v1178 = vadd.f32 %v1138, %v1163
  %v1179 = vadd.f32 %v1139, %v1163
  %v1180 = vadd.f32 %v1140, %v1163
  %v1181 = vadd.f32 %v1141, %v1163
  %v1182 = vadd.f32 %v1142, %v1168
  %v1183 = vadd.f32 %v1143, %v1168
  %v1184 = vadd.f32 %v1144, %v1168
  %v1185 = vadd.f32 %v1145, %v1168
  %v1186 = vmax.f32 %v1170, 0.0
  %v1187 = vmax.f32 %v1171, 0.0
  %v1188 = vmax.f32 %v1172, 0.0
  %v1189 = vmax.f32 %v1173, 0.0
  %v1190 = vmax.f32 %v1174, 0.0
  %v1191 = vmax.f32 %v1175, 0.0
  %v1192 = vmax.f32 %v1176, 0.0
  %v1193 = vmax.f32 %v1177, 0.0
  %v1194 = vmax.f32 %v1178, 0.0
  %v1195 = vmax.f32 %v1179, 0.0
  %v1196 = vmax.f32 %v1180, 0.0
  %v1197 = vmax.f32 %v1181, 0.0
  %v1198 = vmax.f32 %v1182, 0.0
  %v1199 = vmax.f32 %v1183, 0.0
  %v1200 = vmax.f32 %v1184, 0.0
  %v1201 = vmax.f32 %v1185, 0.0
  %1202 = vst [vmem:[%s3] sm:$0xff] %v1186
  %1203 = vst [vmem:[%s3 + $0x8] sm:$0xff] %v1187
  %1204 = vst [vmem:[%s3 + $0x10] sm:$0xff] %v1188
  %vm1205 = vcmask 539648
  %1206 = vst.msk [vmem:[%s3 + $0x18] sm:$0xff] %vm1205, %v1189
  %1207 = vst [vmem:[%s3 + $0x20] sm:$0xff] %v1190
  %1208 = vst [vmem:[%s3 + $0x28] sm:$0xff] %v1191
  %1209 = vst [vmem:[%s3 + $0x30] sm:$0xff] %v1192
  %1210 = vst.msk [vmem:[%s3 + $0x38] sm:$0xff] %vm1205, %v1193
  %1211 = vst [vmem:[%s3 + $0x40] sm:$0xff] %v1194
  %1212 = vst [vmem:[%s3 + $0x48] sm:$0xff] %v1195
  %1213 = vst [vmem:[%s3 + $0x50] sm:$0xff] %v1196
  %1214 = vst.msk [vmem:[%s3 + $0x58] sm:$0xff] %vm1205, %v1197
  %1215 = vst [vmem:[%s3 + $0x60] sm:$0xff] %v1198
  %1216 = vst [vmem:[%s3 + $0x68] sm:$0xff] %v1199
  %1217 = vst [vmem:[%s3 + $0x70] sm:$0xff] %v1200
  %1218 = vst.msk [vmem:[%s3 + $0x78] sm:$0xff] %vm1205, %v1201
  // Predicated region
  $region14: #{cnn_forward.6} parent=0 // pred_check
    _
  $region15: #{cnn_forward.6} parent=0 // pred_check_branch
    %1220 = sbr.rel (0) target = $region17
  $region16: #{cnn_forward.6} parent=0 // pred_region
    _
  $region17: #{cnn_forward.6} parent=0 // pred_fallthru
    _
  // Predicated region
  $region18: #{cnn_forward.6} parent=0 // pred_check
    _
  $region19: #{cnn_forward.6} parent=0 // pred_check_branch
    %1222 = sbr.rel (0) target = $region21
  $region20: #{cnn_forward.6} parent=0 // pred_region
    _
  $region21: #{cnn_forward.6} parent=0 // pred_fallthru
    _

// kernel: cnn_forward.7
$region0: #{cnn_forward.7}
  #allocation0 [shape = 'u32[]', space=smem, size = 0x4, offset = 0x4, fixed_abs, tag = 'smem constant byte address 0x4 - core index']
  #allocation1 [shape = 'u32[72,128]{1,0:T(1,128)}', space=vmem, size = 0x9000, scoped, tag = 'internal scratch']
  %s0 = inlined_call_operand.vmem [shape: f32[288,98], index: 0, kind: input, shape index: {}]
  %s1 = inlined_call_operand.vmem [shape: f32[4,64,288], index: 1, kind: input, shape index: {}]
  %s2 = inlined_call_operand.vmem [shape: f32[64,1], index: 2, kind: input, shape index: {}]
  %s3 = inlined_call_operand.vmem [shape: f32[64,98], index: 3, kind: output, shape index: {}]
  %s4 = sld [smem:[#allocation0]]
  $region22: #{cnn_forward.7} parent=0
    _
  %s6 = ssub.s32 1, %s4
  %s7 = scalar_select 0, %s6, %s4
  // Predicated region
  $region2: #{cnn_forward.7} parent=0 // pred_check
    _
  $region3: #{cnn_forward.7} parent=0 // pred_check_branch
    %9 = sbr.rel (0) target = $region5
  $region4: #{cnn_forward.7} parent=0 // pred_region
    _
  $region5: #{cnn_forward.7} parent=0 // pred_fallthru
    _
  // Predicated region
  $region6: #{cnn_forward.7} parent=0 // pred_check
    _
  $region7: #{cnn_forward.7} parent=0 // pred_check_branch
    %11 = sbr.rel (0) target = $region9
  $region8: #{cnn_forward.7} parent=0 // pred_region
    _
  $region9: #{cnn_forward.7} parent=0 // pred_fallthru
    _
  // Predicated region
  $region10: #{cnn_forward.7} parent=0 // pred_check
    _
  $region11: #{cnn_forward.7} parent=0 // pred_check_branch
    %13 = sbr.rel (0) target = $region13
  $region12: #{cnn_forward.7} parent=0 // pred_region
    _
  $region13: #{cnn_forward.7} parent=0 // pred_fallthru
    _
  %v14 = vld [vmem:[%s0] sm:$0xff]
  %v15 = vld [vmem:[%s0 + $0x8] sm:$0xff]
  %v16 = vld [vmem:[%s0 + $0x10] sm:$0xff]
  %v17 = vld [vmem:[%s0 + $0x18] sm:$0xff]
  %v18 = vld [vmem:[%s0 + $0x20] sm:$0xff]
  %v19 = vld [vmem:[%s0 + $0x28] sm:$0xff]
  %v20 = vld [vmem:[%s0 + $0x30] sm:$0xff]
  %v21 = vld [vmem:[%s0 + $0x38] sm:$0xff]
  %v22 = vld [vmem:[%s0 + $0x40] sm:$0xff]
  %v23 = vld [vmem:[%s0 + $0x48] sm:$0xff]
  %v24 = vld [vmem:[%s0 + $0x50] sm:$0xff]
  %v25 = vld [vmem:[%s0 + $0x58] sm:$0xff]
  %v26 = vld [vmem:[%s0 + $0x60] sm:$0xff]
  %v27 = vld [vmem:[%s0 + $0x68] sm:$0xff]
  %v28 = vld [vmem:[%s0 + $0x70] sm:$0xff]
  %v29 = vld [vmem:[%s0 + $0x78] sm:$0xff]
  %v30 = vld [vmem:[%s0 + $0x80] sm:$0xff]
  %v31 = vld [vmem:[%s0 + $0x88] sm:$0xff]
  %v32 = vld [vmem:[%s0 + $0x90] sm:$0xff]
  %v33 = vld [vmem:[%s0 + $0x98] sm:$0xff]
  %v34 = vld [vmem:[%s0 + $0xa0] sm:$0xff]
  %v35 = vld [vmem:[%s0 + $0xa8] sm:$0xff]
  %v36 = vld [vmem:[%s0 + $0xb0] sm:$0xff]
  %v37 = vld [vmem:[%s0 + $0xb8] sm:$0xff]
  %v38 = vld [vmem:[%s0 + $0xc0] sm:$0xff]
  %v39 = vld [vmem:[%s0 + $0xc8] sm:$0xff]
  %v40 = vld [vmem:[%s0 + $0xd0] sm:$0xff]
  %v41 = vld [vmem:[%s0 + $0xd8] sm:$0xff]
  %v42 = vld [vmem:[%s0 + $0xe0] sm:$0xff]
  %v43 = vld [vmem:[%s0 + $0xe8] sm:$0xff]
  %v44 = vld [vmem:[%s0 + $0xf0] sm:$0xff]
  %v45 = vld [vmem:[%s0 + $0xf8] sm:$0xff]
  %v46 = vld [vmem:[%s0 + $0x100] sm:$0xff]
  %v47 = vld [vmem:[%s0 + $0x108] sm:$0xff]
  %v48 = vld [vmem:[%s0 + $0x110] sm:$0xff]
  %v49 = vld [vmem:[%s0 + $0x118] sm:$0xff]
  %v50 = vld [vmem:[%s1] sm:$0xff]
  %v51 = vld [vmem:[%s1 + $0x8] sm:$0xff]
  %v52 = vld [vmem:[%s1 + $0x10] sm:$0xff]
  %v53 = vld [vmem:[%s1 + $0x18] sm:$0xff]
  %v54 = vld [vmem:[%s1 + $0x20] sm:$0xff]
  %v55 = vld [vmem:[%s1 + $0x28] sm:$0xff]
  %v56 = vld [vmem:[%s1 + $0x30] sm:$0xff]
  %v57 = vld [vmem:[%s1 + $0x38] sm:$0xff]
  %v58 = vld [vmem:[%s1 + $0x40] sm:$0xff]
  %v59 = vld [vmem:[%s1 + $0x48] sm:$0xff]
  %v60 = vld [vmem:[%s1 + $0x50] sm:$0xff]
  %v61 = vld [vmem:[%s1 + $0x58] sm:$0xff]
  %v62 = vld [vmem:[%s1 + $0x60] sm:$0xff]
  %v63 = vld [vmem:[%s1 + $0x68] sm:$0xff]
  %v64 = vld [vmem:[%s1 + $0x70] sm:$0xff]
  %v65 = vld [vmem:[%s1 + $0x78] sm:$0xff]
  %v66 = vld [vmem:[%s1 + $0x80] sm:$0xff]
  %v67 = vld [vmem:[%s1 + $0x88] sm:$0xff]
  %v68 = vld [vmem:[%s1 + $0x90] sm:$0xff]
  %v69 = vld [vmem:[%s1 + $0x98] sm:$0xff]
  %v70 = vld [vmem:[%s1 + $0xa0] sm:$0xff]
  %v71 = vld [vmem:[%s1 + $0xa8] sm:$0xff]
  %v72 = vld [vmem:[%s1 + $0xb0] sm:$0xff]
  %v73 = vld [vmem:[%s1 + $0xb8] sm:$0xff]
  %vm74 = vcmask 261120
  %v76 = vsel %vm74, %v52, 0
  %v79 = vsel %vm74, %v55, 0
  %v82 = vsel %vm74, %v58, 0
  %v85 = vsel %vm74, %v61, 0
  %v88 = vsel %vm74, %v64, 0
  %v91 = vsel %vm74, %v67, 0
  %v94 = vsel %vm74, %v70, 0
  %v97 = vsel %vm74, %v73, 0
  %99 = vmatpush.msra.mxu0 %v29
  %100 = vmatpush.msra.mxu0 %v28
  %101 = vmatpush.msra.mxu0 %v27
  %102 = vmatpush.msra.mxu0 %v26
  %103 = vmatpush.msra.mxu0 %v25
  %104 = vmatpush.msra.mxu0 %v24
  %105 = vmatpush.msra.mxu0 %v23
  %106 = vmatpush.msra.mxu0 %v22
  %107 = vmatpush.msra.mxu0 %v21
  %108 = vmatpush.msra.mxu0 %v20
  %109 = vmatpush.msra.mxu0 %v19
  %110 = vmatpush.msra.mxu0 %v18
  %111 = vmatpush.msra.mxu0 %v17
  %112 = vmatpush.msra.mxu0 %v16
  %113 = vmatpush.msra.mxu0 %v15
  %114 = vmatpush.msra.mxu0 %v14
  %115 = vmatmul.f32.gmra.mxu0 %v50
  %v116 = vpop.f32.mrf.mxu0
  %v117 = vadd.f32 0.0, %v116
  %118 = vmatmul.f32.gmra.mxu0 %v53
  %v119 = vpop.f32.mrf.mxu0
  %v120 = vadd.f32 0.0, %v119
  %121 = vmatmul.f32.gmra.mxu0 %v56
  %v122 = vpop.f32.mrf.mxu0
  %v123 = vadd.f32 0.0, %v122
  %124 = vmatmul.f32.gmra.mxu0 %v59
  %v125 = vpop.f32.mrf.mxu0
  %v126 = vadd.f32 0.0, %v125
  %127 = vmatmul.f32.gmra.mxu0 %v62
  %v128 = vpop.f32.mrf.mxu0
  %v129 = vadd.f32 0.0, %v128
  %130 = vmatmul.f32.gmra.mxu0 %v65
  %v131 = vpop.f32.mrf.mxu0
  %v132 = vadd.f32 0.0, %v131
  %133 = vmatmul.f32.gmra.mxu0 %v68
  %v134 = vpop.f32.mrf.mxu0
  %v135 = vadd.f32 0.0, %v134
  %136 = vmatmul.f32.gmra.mxu0 %v71
  %v137 = vpop.f32.mrf.mxu0
  %v138 = vadd.f32 0.0, %v137
  %139 = vdwg.mxu0
  %140 = vmatpush.msra.mxu0 %v45
  %141 = vmatpush.msra.mxu0 %v44
  %142 = vmatpush.msra.mxu0 %v43
  %143 = vmatpush.msra.mxu0 %v42
  %144 = vmatpush.msra.mxu0 %v41
  %145 = vmatpush.msra.mxu0 %v40
  %146 = vmatpush.msra.mxu0 %v39
  %147 = vmatpush.msra.mxu0 %v38
  %148 = vmatpush.msra.mxu0 %v37
  %149 = vmatpush.msra.mxu0 %v36
  %150 = vmatpush.msra.mxu0 %v35
  %151 = vmatpush.msra.mxu0 %v34
  %152 = vmatpush.msra.mxu0 %v33
  %153 = vmatpush.msra.mxu0 %v32
  %154 = vmatpush.msra.mxu0 %v31
  %155 = vmatpush.msra.mxu0 %v30
  %156 = vmatmul.f32.gmra.mxu0 %v51
  %v157 = vpop.f32.mrf.mxu0
  %v158 = vadd.f32 %v117, %v157
  %159 = vmatmul.f32.gmra.mxu0 %v54
  %v160 = vpop.f32.mrf.mxu0
  %v161 = vadd.f32 %v120, %v160
  %162 = vmatmul.f32.gmra.mxu0 %v57
  %v163 = vpop.f32.mrf.mxu0
  %v164 = vadd.f32 %v123, %v163
  %165 = vmatmul.f32.gmra.mxu0 %v60
  %v166 = vpop.f32.mrf.mxu0
  %v167 = vadd.f32 %v126, %v166
  %168 = vmatmul.f32.gmra.mxu0 %v63
  %v169 = vpop.f32.mrf.mxu0
  %v170 = vadd.f32 %v129, %v169
  %171 = vmatmul.f32.gmra.mxu0 %v66
  %v172 = vpop.f32.mrf.mxu0
  %v173 = vadd.f32 %v132, %v172
  %174 = vmatmul.f32.gmra.mxu0 %v69
  %v175 = vpop.f32.mrf.mxu0
  %v176 = vadd.f32 %v135, %v175
  %177 = vmatmul.f32.gmra.mxu0 %v72
  %v178 = vpop.f32.mrf.mxu0
  %v179 = vadd.f32 %v138, %v178
  %180 = vdwg.mxu0
  %181 = vmatpush.msra.mxu0 0.0
  %182 = vmatpush.msra.mxu0 0.0
  %183 = vmatpush.msra.mxu0 0.0
  %184 = vmatpush.msra.mxu0 0.0
  %185 = vmatpush.msra.mxu0 0.0
  %186 = vmatpush.msra.mxu0 0.0
  %187 = vmatpush.msra.mxu0 0.0
  %188 = vmatpush.msra.mxu0 0.0
  %189 = vmatpush.msra.mxu0 0.0
  %190 = vmatpush.msra.mxu0 0.0
  %191 = vmatpush.msra.mxu0 0.0
  %192 = vmatpush.msra.mxu0 0.0
  %193 = vmatpush.msra.mxu0 %v49
  %194 = vmatpush.msra.mxu0 %v48
  %195 = vmatpush.msra.mxu0 %v47
  %196 = vmatpush.msra.mxu0 %v46
  %197 = vmatmul.f32.gmra.mxu0 %v76
  %v198 = vpop.f32.mrf.mxu0
  %v199 = vadd.f32 %v158, %v198
  %200 = vmatmul.f32.gmra.mxu0 %v79
  %v201 = vpop.f32.mrf.mxu0
  %v202 = vadd.f32 %v161, %v201
  %203 = vmatmul.f32.gmra.mxu0 %v82
  %v204 = vpop.f32.mrf.mxu0
  %v205 = vadd.f32 %v164, %v204
  %206 = vmatmul.f32.gmra.mxu0 %v85
  %v207 = vpop.f32.mrf.mxu0
  %v208 = vadd.f32 %v167, %v207
  %209 = vmatmul.f32.gmra.mxu0 %v88
  %v210 = vpop.f32.mrf.mxu0
  %v211 = vadd.f32 %v170, %v210
  %212 = vmatmul.f32.gmra.mxu0 %v91
  %v213 = vpop.f32.mrf.mxu0
  %v214 = vadd.f32 %v173, %v213
  %215 = vmatmul.f32.gmra.mxu0 %v94
  %v216 = vpop.f32.mrf.mxu0
  %v217 = vadd.f32 %v176, %v216
  %218 = vmatmul.f32.gmra.mxu0 %v97
  %v219 = vpop.f32.mrf.mxu0
  %v220 = vadd.f32 %v179, %v219
  %221 = vdwg.mxu0
  %s222 = scalar_lea.vmem %s1, 192
  %v223 = vld [vmem:[%s222] sm:$0xff]
  %v224 = vld [vmem:[%s222 + $0x8] sm:$0xff]
  %v225 = vld [vmem:[%s222 + $0x10] sm:$0xff]
  %v226 = vld [vmem:[%s222 + $0x18] sm:$0xff]
  %v227 = vld [vmem:[%s222 + $0x20] sm:$0xff]
  %v228 = vld [vmem:[%s222 + $0x28] sm:$0xff]
  %v229 = vld [vmem:[%s222 + $0x30] sm:$0xff]
  %v230 = vld [vmem:[%s222 + $0x38] sm:$0xff]
  %v231 = vld [vmem:[%s222 + $0x40] sm:$0xff]
  %v232 = vld [vmem:[%s222 + $0x48] sm:$0xff]
  %v233 = vld [vmem:[%s222 + $0x50] sm:$0xff]
  %v234 = vld [vmem:[%s222 + $0x58] sm:$0xff]
  %v235 = vld [vmem:[%s222 + $0x60] sm:$0xff]
  %v236 = vld [vmem:[%s222 + $0x68] sm:$0xff]
  %v237 = vld [vmem:[%s222 + $0x70] sm:$0xff]
  %v238 = vld [vmem:[%s222 + $0x78] sm:$0xff]
  %v239 = vld [vmem:[%s222 + $0x80] sm:$0xff]
  %v240 = vld [vmem:[%s222 + $0x88] sm:$0xff]
  %v241 = vld [vmem:[%s222 + $0x90] sm:$0xff]
  %v242 = vld [vmem:[%s222 + $0x98] sm:$0xff]
  %v243 = vld [vmem:[%s222 + $0xa0] sm:$0xff]
  %v244 = vld [vmem:[%s222 + $0xa8] sm:$0xff]
  %v245 = vld [vmem:[%s222 + $0xb0] sm:$0xff]
  %v246 = vld [vmem:[%s222 + $0xb8] sm:$0xff]
  %v248 = vsel %vm74, %v225, 0
  %v251 = vsel %vm74, %v228, 0
  %v254 = vsel %vm74, %v231, 0
  %v257 = vsel %vm74, %v234, 0
  %v260 = vsel %vm74, %v237, 0
  %v263 = vsel %vm74, %v240, 0
  %v266 = vsel %vm74, %v243, 0
  %v269 = vsel %vm74, %v246, 0
  %271 = vmatpush.msra.mxu0 %v29
  %272 = vmatpush.msra.mxu0 %v28
  %273 = vmatpush.msra.mxu0 %v27
  %274 = vmatpush.msra.mxu0 %v26
  %275 = vmatpush.msra.mxu0 %v25
  %276 = vmatpush.msra.mxu0 %v24
  %277 = vmatpush.msra.mxu0 %v23
  %278 = vmatpush.msra.mxu0 %v22
  %279 = vmatpush.msra.mxu0 %v21
  %280 = vmatpush.msra.mxu0 %v20
  %281 = vmatpush.msra.mxu0 %v19
  %282 = vmatpush.msra.mxu0 %v18
  %283 = vmatpush.msra.mxu0 %v17
  %284 = vmatpush.msra.mxu0 %v16
  %285 = vmatpush.msra.mxu0 %v15
  %286 = vmatpush.msra.mxu0 %v14
  %287 = vmatmul.f32.gmra.mxu0 %v223
  %v288 = vpop.f32.mrf.mxu0
  %v289 = vadd.f32 0.0, %v288
  %290 = vmatmul.f32.gmra.mxu0 %v226
  %v291 = vpop.f32.mrf.mxu0
  %v292 = vadd.f32 0.0, %v291
  %293 = vmatmul.f32.gmra.mxu0 %v229
  %v294 = vpop.f32.mrf.mxu0
  %v295 = vadd.f32 0.0, %v294
  %296 = vmatmul.f32.gmra.mxu0 %v232
  %v297 = vpop.f32.mrf.mxu0
  %v298 = vadd.f32 0.0, %v297
  %299 = vmatmul.f32.gmra.mxu0 %v235
  %v300 = vpop.f32.mrf.mxu0
  %v301 = vadd.f32 0.0, %v300
  %302 = vmatmul.f32.gmra.mxu0 %v238
  %v303 = vpop.f32.mrf.mxu0
  %v304 = vadd.f32 0.0, %v303
  %305 = vmatmul.f32.gmra.mxu0 %v241
  %v306 = vpop.f32.mrf.mxu0
  %v307 = vadd.f32 0.0, %v306
  %308 = vmatmul.f32.gmra.mxu0 %v244
  %v309 = vpop.f32.mrf.mxu0
  %v310 = vadd.f32 0.0, %v309
  %311 = vdwg.mxu0
  %312 = vmatpush.msra.mxu0 %v45
  %313 = vmatpush.msra.mxu0 %v44
  %314 = vmatpush.msra.mxu0 %v43
  %315 = vmatpush.msra.mxu0 %v42
  %316 = vmatpush.msra.mxu0 %v41
  %317 = vmatpush.msra.mxu0 %v40
  %318 = vmatpush.msra.mxu0 %v39
  %319 = vmatpush.msra.mxu0 %v38
  %320 = vmatpush.msra.mxu0 %v37
  %321 = vmatpush.msra.mxu0 %v36
  %322 = vmatpush.msra.mxu0 %v35
  %323 = vmatpush.msra.mxu0 %v34
  %324 = vmatpush.msra.mxu0 %v33
  %325 = vmatpush.msra.mxu0 %v32
  %326 = vmatpush.msra.mxu0 %v31
  %327 = vmatpush.msra.mxu0 %v30
  %328 = vmatmul.f32.gmra.mxu0 %v224
  %v329 = vpop.f32.mrf.mxu0
  %v330 = vadd.f32 %v289, %v329
  %331 = vmatmul.f32.gmra.mxu0 %v227
  %v332 = vpop.f32.mrf.mxu0
  %v333 = vadd.f32 %v292, %v332
  %334 = vmatmul.f32.gmra.mxu0 %v230
  %v335 = vpop.f32.mrf.mxu0
  %v336 = vadd.f32 %v295, %v335
  %337 = vmatmul.f32.gmra.mxu0 %v233
  %v338 = vpop.f32.mrf.mxu0
  %v339 = vadd.f32 %v298, %v338
  %340 = vmatmul.f32.gmra.mxu0 %v236
  %v341 = vpop.f32.mrf.mxu0
  %v342 = vadd.f32 %v301, %v341
  %343 = vmatmul.f32.gmra.mxu0 %v239
  %v344 = vpop.f32.mrf.mxu0
  %v345 = vadd.f32 %v304, %v344
  %346 = vmatmul.f32.gmra.mxu0 %v242
  %v347 = vpop.f32.mrf.mxu0
  %v348 = vadd.f32 %v307, %v347
  %349 = vmatmul.f32.gmra.mxu0 %v245
  %v350 = vpop.f32.mrf.mxu0
  %v351 = vadd.f32 %v310, %v350
  %352 = vdwg.mxu0
  %353 = vmatpush.msra.mxu0 0.0
  %354 = vmatpush.msra.mxu0 0.0
  %355 = vmatpush.msra.mxu0 0.0
  %356 = vmatpush.msra.mxu0 0.0
  %357 = vmatpush.msra.mxu0 0.0
  %358 = vmatpush.msra.mxu0 0.0
  %359 = vmatpush.msra.mxu0 0.0
  %360 = vmatpush.msra.mxu0 0.0
  %361 = vmatpush.msra.mxu0 0.0
  %362 = vmatpush.msra.mxu0 0.0
  %363 = vmatpush.msra.mxu0 0.0
  %364 = vmatpush.msra.mxu0 0.0
  %365 = vmatpush.msra.mxu0 %v49
  %366 = vmatpush.msra.mxu0 %v48
  %367 = vmatpush.msra.mxu0 %v47
  %368 = vmatpush.msra.mxu0 %v46
  %369 = vmatmul.f32.gmra.mxu0 %v248
  %v370 = vpop.f32.mrf.mxu0
  %v371 = vadd.f32 %v330, %v370
  %372 = vmatmul.f32.gmra.mxu0 %v251
  %v373 = vpop.f32.mrf.mxu0
  %v374 = vadd.f32 %v333, %v373
  %375 = vmatmul.f32.gmra.mxu0 %v254
  %v376 = vpop.f32.mrf.mxu0
  %v377 = vadd.f32 %v336, %v376
  %378 = vmatmul.f32.gmra.mxu0 %v257
  %v379 = vpop.f32.mrf.mxu0
  %v380 = vadd.f32 %v339, %v379
  %381 = vmatmul.f32.gmra.mxu0 %v260
  %v382 = vpop.f32.mrf.mxu0
  %v383 = vadd.f32 %v342, %v382
  %384 = vmatmul.f32.gmra.mxu0 %v263
  %v385 = vpop.f32.mrf.mxu0
  %v386 = vadd.f32 %v345, %v385
  %387 = vmatmul.f32.gmra.mxu0 %v266
  %v388 = vpop.f32.mrf.mxu0
  %v389 = vadd.f32 %v348, %v388
  %390 = vmatmul.f32.gmra.mxu0 %v269
  %v391 = vpop.f32.mrf.mxu0
  %v392 = vadd.f32 %v351, %v391
  %393 = vdwg.mxu0
  %v394 = vmax.f32 %v199, %v371
  %v395 = vmax.f32 %v202, %v374
  %v396 = vmax.f32 %v205, %v377
  %v397 = vmax.f32 %v208, %v380
  %v398 = vmax.f32 %v211, %v383
  %v399 = vmax.f32 %v214, %v386
  %v400 = vmax.f32 %v217, %v389
  %v401 = vmax.f32 %v220, %v392
  %s402 = scalar_lea.vmem %s1, 384
  %v403 = vld [vmem:[%s402] sm:$0xff]
  %v404 = vld [vmem:[%s402 + $0x8] sm:$0xff]
  %v405 = vld [vmem:[%s402 + $0x10] sm:$0xff]
  %v406 = vld [vmem:[%s402 + $0x18] sm:$0xff]
  %v407 = vld [vmem:[%s402 + $0x20] sm:$0xff]
  %v408 = vld [vmem:[%s402 + $0x28] sm:$0xff]
  %v409 = vld [vmem:[%s402 + $0x30] sm:$0xff]
  %v410 = vld [vmem:[%s402 + $0x38] sm:$0xff]
  %v411 = vld [vmem:[%s402 + $0x40] sm:$0xff]
  %v412 = vld [vmem:[%s402 + $0x48] sm:$0xff]
  %v413 = vld [vmem:[%s402 + $0x50] sm:$0xff]
  %v414 = vld [vmem:[%s402 + $0x58] sm:$0xff]
  %v415 = vld [vmem:[%s402 + $0x60] sm:$0xff]
  %v416 = vld [vmem:[%s402 + $0x68] sm:$0xff]
  %v417 = vld [vmem:[%s402 + $0x70] sm:$0xff]
  %v418 = vld [vmem:[%s402 + $0x78] sm:$0xff]
  %v419 = vld [vmem:[%s402 + $0x80] sm:$0xff]
  %v420 = vld [vmem:[%s402 + $0x88] sm:$0xff]
  %v421 = vld [vmem:[%s402 + $0x90] sm:$0xff]
  %v422 = vld [vmem:[%s402 + $0x98] sm:$0xff]
  %v423 = vld [vmem:[%s402 + $0xa0] sm:$0xff]
  %v424 = vld [vmem:[%s402 + $0xa8] sm:$0xff]
  %v425 = vld [vmem:[%s402 + $0xb0] sm:$0xff]
  %v426 = vld [vmem:[%s402 + $0xb8] sm:$0xff]
  %v428 = vsel %vm74, %v405, 0
  %v431 = vsel %vm74, %v408, 0
  %v434 = vsel %vm74, %v411, 0
  %v437 = vsel %vm74, %v414, 0
  %v440 = vsel %vm74, %v417, 0
  %v443 = vsel %vm74, %v420, 0
  %v446 = vsel %vm74, %v423, 0
  %v449 = vsel %vm74, %v426, 0
  %451 = vmatpush.msra.mxu0 %v29
  %452 = vmatpush.msra.mxu0 %v28
  %453 = vmatpush.msra.mxu0 %v27
  %454 = vmatpush.msra.mxu0 %v26
  %455 = vmatpush.msra.mxu0 %v25
  %456 = vmatpush.msra.mxu0 %v24
  %457 = vmatpush.msra.mxu0 %v23
  %458 = vmatpush.msra.mxu0 %v22
  %459 = vmatpush.msra.mxu0 %v21
  %460 = vmatpush.msra.mxu0 %v20
  %461 = vmatpush.msra.mxu0 %v19
  %462 = vmatpush.msra.mxu0 %v18
  %463 = vmatpush.msra.mxu0 %v17
  %464 = vmatpush.msra.mxu0 %v16
  %465 = vmatpush.msra.mxu0 %v15
  %466 = vmatpush.msra.mxu0 %v14
  %467 = vmatmul.f32.gmra.mxu0 %v403
  %v468 = vpop.f32.mrf.mxu0
  %v469 = vadd.f32 0.0, %v468
  %470 = vmatmul.f32.gmra.mxu0 %v406
  %v471 = vpop.f32.mrf.mxu0
  %v472 = vadd.f32 0.0, %v471
  %473 = vmatmul.f32.gmra.mxu0 %v409
  %v474 = vpop.f32.mrf.mxu0
  %v475 = vadd.f32 0.0, %v474
  %476 = vmatmul.f32.gmra.mxu0 %v412
  %v477 = vpop.f32.mrf.mxu0
  %v478 = vadd.f32 0.0, %v477
  %479 = vmatmul.f32.gmra.mxu0 %v415
  %v480 = vpop.f32.mrf.mxu0
  %v481 = vadd.f32 0.0, %v480
  %482 = vmatmul.f32.gmra.mxu0 %v418
  %v483 = vpop.f32.mrf.mxu0
  %v484 = vadd.f32 0.0, %v483
  %485 = vmatmul.f32.gmra.mxu0 %v421
  %v486 = vpop.f32.mrf.mxu0
  %v487 = vadd.f32 0.0, %v486
  %488 = vmatmul.f32.gmra.mxu0 %v424
  %v489 = vpop.f32.mrf.mxu0
  %v490 = vadd.f32 0.0, %v489
  %491 = vdwg.mxu0
  %492 = vmatpush.msra.mxu0 %v45
  %493 = vmatpush.msra.mxu0 %v44
  %494 = vmatpush.msra.mxu0 %v43
  %495 = vmatpush.msra.mxu0 %v42
  %496 = vmatpush.msra.mxu0 %v41
  %497 = vmatpush.msra.mxu0 %v40
  %498 = vmatpush.msra.mxu0 %v39
  %499 = vmatpush.msra.mxu0 %v38
  %500 = vmatpush.msra.mxu0 %v37
  %501 = vmatpush.msra.mxu0 %v36
  %502 = vmatpush.msra.mxu0 %v35
  %503 = vmatpush.msra.mxu0 %v34
  %504 = vmatpush.msra.mxu0 %v33
  %505 = vmatpush.msra.mxu0 %v32
  %506 = vmatpush.msra.mxu0 %v31
  %507 = vmatpush.msra.mxu0 %v30
  %508 = vmatmul.f32.gmra.mxu0 %v404
  %v509 = vpop.f32.mrf.mxu0
  %v510 = vadd.f32 %v469, %v509
  %511 = vmatmul.f32.gmra.mxu0 %v407
  %v512 = vpop.f32.mrf.mxu0
  %v513 = vadd.f32 %v472, %v512
  %514 = vmatmul.f32.gmra.mxu0 %v410
  %v515 = vpop.f32.mrf.mxu0
  %v516 = vadd.f32 %v475, %v515
  %517 = vmatmul.f32.gmra.mxu0 %v413
  %v518 = vpop.f32.mrf.mxu0
  %v519 = vadd.f32 %v478, %v518
  %520 = vmatmul.f32.gmra.mxu0 %v416
  %v521 = vpop.f32.mrf.mxu0
  %v522 = vadd.f32 %v481, %v521
  %523 = vmatmul.f32.gmra.mxu0 %v419
  %v524 = vpop.f32.mrf.mxu0
  %v525 = vadd.f32 %v484, %v524
  %526 = vmatmul.f32.gmra.mxu0 %v422
  %v527 = vpop.f32.mrf.mxu0
  %v528 = vadd.f32 %v487, %v527
  %529 = vmatmul.f32.gmra.mxu0 %v425
  %v530 = vpop.f32.mrf.mxu0
  %v531 = vadd.f32 %v490, %v530
  %532 = vdwg.mxu0
  %533 = vmatpush.msra.mxu0 0.0
  %534 = vmatpush.msra.mxu0 0.0
  %535 = vmatpush.msra.mxu0 0.0
  %536 = vmatpush.msra.mxu0 0.0
  %537 = vmatpush.msra.mxu0 0.0
  %538 = vmatpush.msra.mxu0 0.0
  %539 = vmatpush.msra.mxu0 0.0
  %540 = vmatpush.msra.mxu0 0.0
  %541 = vmatpush.msra.mxu0 0.0
  %542 = vmatpush.msra.mxu0 0.0
  %543 = vmatpush.msra.mxu0 0.0
  %544 = vmatpush.msra.mxu0 0.0
  %545 = vmatpush.msra.mxu0 %v49
  %546 = vmatpush.msra.mxu0 %v48
  %547 = vmatpush.msra.mxu0 %v47
  %548 = vmatpush.msra.mxu0 %v46
  %549 = vmatmul.f32.gmra.mxu0 %v428
  %v550 = vpop.f32.mrf.mxu0
  %v551 = vadd.f32 %v510, %v550
  %552 = vmatmul.f32.gmra.mxu0 %v431
  %v553 = vpop.f32.mrf.mxu0
  %v554 = vadd.f32 %v513, %v553
  %555 = vmatmul.f32.gmra.mxu0 %v434
  %v556 = vpop.f32.mrf.mxu0
  %v557 = vadd.f32 %v516, %v556
  %558 = vmatmul.f32.gmra.mxu0 %v437
  %v559 = vpop.f32.mrf.mxu0
  %v560 = vadd.f32 %v519, %v559
  %561 = vmatmul.f32.gmra.mxu0 %v440
  %v562 = vpop.f32.mrf.mxu0
  %v563 = vadd.f32 %v522, %v562
  %564 = vmatmul.f32.gmra.mxu0 %v443
  %v565 = vpop.f32.mrf.mxu0
  %v566 = vadd.f32 %v525, %v565
  %567 = vmatmul.f32.gmra.mxu0 %v446
  %v568 = vpop.f32.mrf.mxu0
  %v569 = vadd.f32 %v528, %v568
  %570 = vmatmul.f32.gmra.mxu0 %v449
  %v571 = vpop.f32.mrf.mxu0
  %v572 = vadd.f32 %v531, %v571
  %573 = vdwg.mxu0
  %v574 = vmax.f32 %v394, %v551
  %v575 = vmax.f32 %v395, %v554
  %v576 = vmax.f32 %v396, %v557
  %v577 = vmax.f32 %v397, %v560
  %v578 = vmax.f32 %v398, %v563
  %v579 = vmax.f32 %v399, %v566
  %v580 = vmax.f32 %v400, %v569
  %v581 = vmax.f32 %v401, %v572
  %s582 = scalar_lea.vmem %s1, 576
  %v583 = vld [vmem:[%s582] sm:$0xff]
  %v584 = vld [vmem:[%s582 + $0x8] sm:$0xff]
  %v585 = vld [vmem:[%s582 + $0x10] sm:$0xff]
  %v586 = vld [vmem:[%s582 + $0x18] sm:$0xff]
  %v587 = vld [vmem:[%s582 + $0x20] sm:$0xff]
  %v588 = vld [vmem:[%s582 + $0x28] sm:$0xff]
  %v589 = vld [vmem:[%s582 + $0x30] sm:$0xff]
  %v590 = vld [vmem:[%s582 + $0x38] sm:$0xff]
  %v591 = vld [vmem:[%s582 + $0x40] sm:$0xff]
  %v592 = vld [vmem:[%s582 + $0x48] sm:$0xff]
  %v593 = vld [vmem:[%s582 + $0x50] sm:$0xff]
  %v594 = vld [vmem:[%s582 + $0x58] sm:$0xff]
  %v595 = vld [vmem:[%s582 + $0x60] sm:$0xff]
  %v596 = vld [vmem:[%s582 + $0x68] sm:$0xff]
  %v597 = vld [vmem:[%s582 + $0x70] sm:$0xff]
  %v598 = vld [vmem:[%s582 + $0x78] sm:$0xff]
  %v599 = vld [vmem:[%s582 + $0x80] sm:$0xff]
  %v600 = vld [vmem:[%s582 + $0x88] sm:$0xff]
  %v601 = vld [vmem:[%s582 + $0x90] sm:$0xff]
  %v602 = vld [vmem:[%s582 + $0x98] sm:$0xff]
  %v603 = vld [vmem:[%s582 + $0xa0] sm:$0xff]
  %v604 = vld [vmem:[%s582 + $0xa8] sm:$0xff]
  %v605 = vld [vmem:[%s582 + $0xb0] sm:$0xff]
  %v606 = vld [vmem:[%s582 + $0xb8] sm:$0xff]
  %v608 = vsel %vm74, %v585, 0
  %v611 = vsel %vm74, %v588, 0
  %v614 = vsel %vm74, %v591, 0
  %v617 = vsel %vm74, %v594, 0
  %v620 = vsel %vm74, %v597, 0
  %v623 = vsel %vm74, %v600, 0
  %v626 = vsel %vm74, %v603, 0
  %v629 = vsel %vm74, %v606, 0
  %631 = vmatpush.msra.mxu0 %v29
  %632 = vmatpush.msra.mxu0 %v28
  %633 = vmatpush.msra.mxu0 %v27
  %634 = vmatpush.msra.mxu0 %v26
  %635 = vmatpush.msra.mxu0 %v25
  %636 = vmatpush.msra.mxu0 %v24
  %637 = vmatpush.msra.mxu0 %v23
  %638 = vmatpush.msra.mxu0 %v22
  %639 = vmatpush.msra.mxu0 %v21
  %640 = vmatpush.msra.mxu0 %v20
  %641 = vmatpush.msra.mxu0 %v19
  %642 = vmatpush.msra.mxu0 %v18
  %643 = vmatpush.msra.mxu0 %v17
  %644 = vmatpush.msra.mxu0 %v16
  %645 = vmatpush.msra.mxu0 %v15
  %646 = vmatpush.msra.mxu0 %v14
  %647 = vmatmul.f32.gmra.mxu0 %v583
  %v648 = vpop.f32.mrf.mxu0
  %v649 = vadd.f32 0.0, %v648
  %650 = vmatmul.f32.gmra.mxu0 %v586
  %v651 = vpop.f32.mrf.mxu0
  %v652 = vadd.f32 0.0, %v651
  %653 = vmatmul.f32.gmra.mxu0 %v589
  %v654 = vpop.f32.mrf.mxu0
  %v655 = vadd.f32 0.0, %v654
  %656 = vmatmul.f32.gmra.mxu0 %v592
  %v657 = vpop.f32.mrf.mxu0
  %v658 = vadd.f32 0.0, %v657
  %659 = vmatmul.f32.gmra.mxu0 %v595
  %v660 = vpop.f32.mrf.mxu0
  %v661 = vadd.f32 0.0, %v660
  %662 = vmatmul.f32.gmra.mxu0 %v598
  %v663 = vpop.f32.mrf.mxu0
  %v664 = vadd.f32 0.0, %v663
  %665 = vmatmul.f32.gmra.mxu0 %v601
  %v666 = vpop.f32.mrf.mxu0
  %v667 = vadd.f32 0.0, %v666
  %668 = vmatmul.f32.gmra.mxu0 %v604
  %v669 = vpop.f32.mrf.mxu0
  %v670 = vadd.f32 0.0, %v669
  %671 = vdwg.mxu0
  %672 = vmatpush.msra.mxu0 %v45
  %673 = vmatpush.msra.mxu0 %v44
  %674 = vmatpush.msra.mxu0 %v43
  %675 = vmatpush.msra.mxu0 %v42
  %676 = vmatpush.msra.mxu0 %v41
  %677 = vmatpush.msra.mxu0 %v40
  %678 = vmatpush.msra.mxu0 %v39
  %679 = vmatpush.msra.mxu0 %v38
  %680 = vmatpush.msra.mxu0 %v37
  %681 = vmatpush.msra.mxu0 %v36
  %682 = vmatpush.msra.mxu0 %v35
  %683 = vmatpush.msra.mxu0 %v34
  %684 = vmatpush.msra.mxu0 %v33
  %685 = vmatpush.msra.mxu0 %v32
  %686 = vmatpush.msra.mxu0 %v31
  %687 = vmatpush.msra.mxu0 %v30
  %688 = vmatmul.f32.gmra.mxu0 %v584
  %v689 = vpop.f32.mrf.mxu0
  %v690 = vadd.f32 %v649, %v689
  %691 = vmatmul.f32.gmra.mxu0 %v587
  %v692 = vpop.f32.mrf.mxu0
  %v693 = vadd.f32 %v652, %v692
  %694 = vmatmul.f32.gmra.mxu0 %v590
  %v695 = vpop.f32.mrf.mxu0
  %v696 = vadd.f32 %v655, %v695
  %697 = vmatmul.f32.gmra.mxu0 %v593
  %v698 = vpop.f32.mrf.mxu0
  %v699 = vadd.f32 %v658, %v698
  %700 = vmatmul.f32.gmra.mxu0 %v596
  %v701 = vpop.f32.mrf.mxu0
  %v702 = vadd.f32 %v661, %v701
  %703 = vmatmul.f32.gmra.mxu0 %v599
  %v704 = vpop.f32.mrf.mxu0
  %v705 = vadd.f32 %v664, %v704
  %706 = vmatmul.f32.gmra.mxu0 %v602
  %v707 = vpop.f32.mrf.mxu0
  %v708 = vadd.f32 %v667, %v707
  %709 = vmatmul.f32.gmra.mxu0 %v605
  %v710 = vpop.f32.mrf.mxu0
  %v711 = vadd.f32 %v670, %v710
  %712 = vdwg.mxu0
  %713 = vmatpush.msra.mxu0 0.0
  %714 = vmatpush.msra.mxu0 0.0
  %715 = vmatpush.msra.mxu0 0.0
  %716 = vmatpush.msra.mxu0 0.0
  %717 = vmatpush.msra.mxu0 0.0
  %718 = vmatpush.msra.mxu0 0.0
  %719 = vmatpush.msra.mxu0 0.0
  %720 = vmatpush.msra.mxu0 0.0
  %721 = vmatpush.msra.mxu0 0.0
  %722 = vmatpush.msra.mxu0 0.0
  %723 = vmatpush.msra.mxu0 0.0
  %724 = vmatpush.msra.mxu0 0.0
  %725 = vmatpush.msra.mxu0 %v49
  %726 = vmatpush.msra.mxu0 %v48
  %727 = vmatpush.msra.mxu0 %v47
  %728 = vmatpush.msra.mxu0 %v46
  %729 = vmatmul.f32.gmra.mxu0 %v608
  %v730 = vpop.f32.mrf.mxu0
  %v731 = vadd.f32 %v690, %v730
  %732 = vmatmul.f32.gmra.mxu0 %v611
  %v733 = vpop.f32.mrf.mxu0
  %v734 = vadd.f32 %v693, %v733
  %735 = vmatmul.f32.gmra.mxu0 %v614
  %v736 = vpop.f32.mrf.mxu0
  %v737 = vadd.f32 %v696, %v736
  %738 = vmatmul.f32.gmra.mxu0 %v617
  %v739 = vpop.f32.mrf.mxu0
  %v740 = vadd.f32 %v699, %v739
  %741 = vmatmul.f32.gmra.mxu0 %v620
  %v742 = vpop.f32.mrf.mxu0
  %v743 = vadd.f32 %v702, %v742
  %744 = vmatmul.f32.gmra.mxu0 %v623
  %v745 = vpop.f32.mrf.mxu0
  %v746 = vadd.f32 %v705, %v745
  %747 = vmatmul.f32.gmra.mxu0 %v626
  %v748 = vpop.f32.mrf.mxu0
  %v749 = vadd.f32 %v708, %v748
  %750 = vmatmul.f32.gmra.mxu0 %v629
  %v751 = vpop.f32.mrf.mxu0
  %v752 = vadd.f32 %v711, %v751
  %753 = vdwg.mxu0
  %v754 = vmax.f32 %v574, %v731
  %v755 = vmax.f32 %v575, %v734
  %v756 = vmax.f32 %v576, %v737
  %v757 = vmax.f32 %v577, %v740
  %v758 = vmax.f32 %v578, %v743
  %v759 = vmax.f32 %v579, %v746
  %v760 = vmax.f32 %v580, %v749
  %v761 = vmax.f32 %v581, %v752
  %v762 = vld [vmem:[%s2] sm:$0xff]
  %v763 = vld [vmem:[%s2 + $0x8] sm:$0xff]
  %v764 = vld [vmem:[%s2 + $0x10] sm:$0xff]
  %v765 = vld [vmem:[%s2 + $0x18] sm:$0xff]
  %v766 = vld [vmem:[%s2 + $0x20] sm:$0xff]
  %v767 = vld [vmem:[%s2 + $0x28] sm:$0xff]
  %v768 = vld [vmem:[%s2 + $0x30] sm:$0xff]
  %v769 = vld [vmem:[%s2 + $0x38] sm:$0xff]
  %771 = vset.pattern.permute.xlu0 0
  %772 = vperm.xlu0 %771, %v762
  %v773 = vpop.permute.xlu0 %772
  %776 = vset.pattern.permute.xlu0 0
  %777 = vperm.xlu0 %776, %v763
  %v778 = vpop.permute.xlu0 %777
  %781 = vset.pattern.permute.xlu0 0
  %782 = vperm.xlu0 %781, %v764
  %v783 = vpop.permute.xlu0 %782
  %786 = vset.pattern.permute.xlu0 0
  %787 = vperm.xlu0 %786, %v765
  %v788 = vpop.permute.xlu0 %787
  %791 = vset.pattern.permute.xlu0 0
  %792 = vperm.xlu0 %791, %v766
  %v793 = vpop.permute.xlu0 %792
  %796 = vset.pattern.permute.xlu0 0
  %797 = vperm.xlu0 %796, %v767
  %v798 = vpop.permute.xlu0 %797
  %801 = vset.pattern.permute.xlu0 0
  %802 = vperm.xlu0 %801, %v768
  %v803 = vpop.permute.xlu0 %802
  %806 = vset.pattern.permute.xlu0 0
  %807 = vperm.xlu0 %806, %v769
  %v808 = vpop.permute.xlu0 %807
  %v810 = vadd.f32 %v754, %v773
  %v811 = vadd.f32 %v755, %v778
  %v812 = vadd.f32 %v756, %v783
  %v813 = vadd.f32 %v757, %v788
  %v814 = vadd.f32 %v758, %v793
  %v815 = vadd.f32 %v759, %v798
  %v816 = vadd.f32 %v760, %v803
  %v817 = vadd.f32 %v761, %v808
  %v818 = vmax.f32 %v810, 0.0
  %v819 = vmax.f32 %v811, 0.0
  %v820 = vmax.f32 %v812, 0.0
  %v821 = vmax.f32 %v813, 0.0
  %v822 = vmax.f32 %v814, 0.0
  %v823 = vmax.f32 %v815, 0.0
  %v824 = vmax.f32 %v816, 0.0
  %v825 = vmax.f32 %v817, 0.0
  %vm826 = vcmask 801792
  %827 = vst.msk [vmem:[%s3] sm:$0xff] %vm826, %v818
  %828 = vst.msk [vmem:[%s3 + $0x8] sm:$0xff] %vm826, %v819
  %829 = vst.msk [vmem:[%s3 + $0x10] sm:$0xff] %vm826, %v820
  %830 = vst.msk [vmem:[%s3 + $0x18] sm:$0xff] %vm826, %v821
  %831 = vst.msk [vmem:[%s3 + $0x20] sm:$0xff] %vm826, %v822
  %832 = vst.msk [vmem:[%s3 + $0x28] sm:$0xff] %vm826, %v823
  %833 = vst.msk [vmem:[%s3 + $0x30] sm:$0xff] %vm826, %v824
  %834 = vst.msk [vmem:[%s3 + $0x38] sm:$0xff] %vm826, %v825
  // Predicated region
  $region14: #{cnn_forward.7} parent=0 // pred_check
    _
  $region15: #{cnn_forward.7} parent=0 // pred_check_branch
    %836 = sbr.rel (0) target = $region17
  $region16: #{cnn_forward.7} parent=0 // pred_region
    _
  $region17: #{cnn_forward.7} parent=0 // pred_fallthru
    _
  // Predicated region
  $region18: #{cnn_forward.7} parent=0 // pred_check
    _
  $region19: #{cnn_forward.7} parent=0 // pred_check_branch
    %838 = sbr.rel (0) target = $region21
  $region20: #{cnn_forward.7} parent=0 // pred_region
    _
  $region21: #{cnn_forward.7} parent=0 // pred_fallthru
    _

// kernel: cnn_forward.8
$region0: #{cnn_forward.8}
  #allocation0 [shape = 'u32[]', space=smem, size = 0x4, offset = 0x4, fixed_abs, tag = 'smem constant byte address 0x4 - core index']
  #allocation1 [shape = 'u32[72,128]{1,0:T(1,128)}', space=vmem, size = 0x9000, scoped, tag = 'internal scratch']
  %s0 = inlined_call_operand.vmem [shape: f32[576,18], index: 0, kind: input, shape index: {}]
  %s1 = inlined_call_operand.vmem [shape: f32[4,128,576], index: 1, kind: input, shape index: {}]
  %s2 = inlined_call_operand.vmem [shape: f32[128,1], index: 2, kind: input, shape index: {}]
  %s3 = inlined_call_operand.vmem [shape: f32[128,18], index: 3, kind: output, shape index: {}]
  %s4 = sld [smem:[#allocation0]]
  $region22: #{cnn_forward.8} parent=0
    _
  %s6 = ssub.s32 1, %s4
  %s7 = scalar_select 0, %s6, %s4
  // Predicated region
  $region2: #{cnn_forward.8} parent=0 // pred_check
    _
  $region3: #{cnn_forward.8} parent=0 // pred_check_branch
    %9 = sbr.rel (0) target = $region5
  $region4: #{cnn_forward.8} parent=0 // pred_region
    _
  $region5: #{cnn_forward.8} parent=0 // pred_fallthru
    _
  // Predicated region
  $region6: #{cnn_forward.8} parent=0 // pred_check
    _
  $region7: #{cnn_forward.8} parent=0 // pred_check_branch
    %11 = sbr.rel (0) target = $region9
  $region8: #{cnn_forward.8} parent=0 // pred_region
    _
  $region9: #{cnn_forward.8} parent=0 // pred_fallthru
    _
  // Predicated region
  $region10: #{cnn_forward.8} parent=0 // pred_check
    _
  $region11: #{cnn_forward.8} parent=0 // pred_check_branch
    %13 = sbr.rel (0) target = $region13
  $region12: #{cnn_forward.8} parent=0 // pred_region
    _
  $region13: #{cnn_forward.8} parent=0 // pred_fallthru
    _
  %v14 = vld [vmem:[%s0] sm:$0xff]
  %v15 = vld [vmem:[%s0 + $0x8] sm:$0xff]
  %v16 = vld [vmem:[%s0 + $0x10] sm:$0xff]
  %v17 = vld [vmem:[%s0 + $0x18] sm:$0xff]
  %v18 = vld [vmem:[%s0 + $0x20] sm:$0xff]
  %v19 = vld [vmem:[%s0 + $0x28] sm:$0xff]
  %v20 = vld [vmem:[%s0 + $0x30] sm:$0xff]
  %v21 = vld [vmem:[%s0 + $0x38] sm:$0xff]
  %v22 = vld [vmem:[%s0 + $0x40] sm:$0xff]
  %v23 = vld [vmem:[%s0 + $0x48] sm:$0xff]
  %v24 = vld [vmem:[%s0 + $0x50] sm:$0xff]
  %v25 = vld [vmem:[%s0 + $0x58] sm:$0xff]
  %v26 = vld [vmem:[%s0 + $0x60] sm:$0xff]
  %v27 = vld [vmem:[%s0 + $0x68] sm:$0xff]
  %v28 = vld [vmem:[%s0 + $0x70] sm:$0xff]
  %v29 = vld [vmem:[%s0 + $0x78] sm:$0xff]
  %v30 = vld [vmem:[%s0 + $0x80] sm:$0xff]
  %v31 = vld [vmem:[%s0 + $0x88] sm:$0xff]
  %v32 = vld [vmem:[%s0 + $0x90] sm:$0xff]
  %v33 = vld [vmem:[%s0 + $0x98] sm:$0xff]
  %v34 = vld [vmem:[%s0 + $0xa0] sm:$0xff]
  %v35 = vld [vmem:[%s0 + $0xa8] sm:$0xff]
  %v36 = vld [vmem:[%s0 + $0xb0] sm:$0xff]
  %v37 = vld [vmem:[%s0 + $0xb8] sm:$0xff]
  %v38 = vld [vmem:[%s0 + $0xc0] sm:$0xff]
  %v39 = vld [vmem:[%s0 + $0xc8] sm:$0xff]
  %v40 = vld [vmem:[%s0 + $0xd0] sm:$0xff]
  %v41 = vld [vmem:[%s0 + $0xd8] sm:$0xff]
  %v42 = vld [vmem:[%s0 + $0xe0] sm:$0xff]
  %v43 = vld [vmem:[%s0 + $0xe8] sm:$0xff]
  %v44 = vld [vmem:[%s0 + $0xf0] sm:$0xff]
  %v45 = vld [vmem:[%s0 + $0xf8] sm:$0xff]
  %v46 = vld [vmem:[%s0 + $0x100] sm:$0xff]
  %v47 = vld [vmem:[%s0 + $0x108] sm:$0xff]
  %v48 = vld [vmem:[%s0 + $0x110] sm:$0xff]
  %v49 = vld [vmem:[%s0 + $0x118] sm:$0xff]
  %v50 = vld [vmem:[%s0 + $0x120] sm:$0xff]
  %v51 = vld [vmem:[%s0 + $0x128] sm:$0xff]
  %v52 = vld [vmem:[%s0 + $0x130] sm:$0xff]
  %v53 = vld [vmem:[%s0 + $0x138] sm:$0xff]
  %v54 = vld [vmem:[%s0 + $0x140] sm:$0xff]
  %v55 = vld [vmem:[%s0 + $0x148] sm:$0xff]
  %v56 = vld [vmem:[%s0 + $0x150] sm:$0xff]
  %v57 = vld [vmem:[%s0 + $0x158] sm:$0xff]
  %v58 = vld [vmem:[%s0 + $0x160] sm:$0xff]
  %v59 = vld [vmem:[%s0 + $0x168] sm:$0xff]
  %v60 = vld [vmem:[%s0 + $0x170] sm:$0xff]
  %v61 = vld [vmem:[%s0 + $0x178] sm:$0xff]
  %v62 = vld [vmem:[%s0 + $0x180] sm:$0xff]
  %v63 = vld [vmem:[%s0 + $0x188] sm:$0xff]
  %v64 = vld [vmem:[%s0 + $0x190] sm:$0xff]
  %v65 = vld [vmem:[%s0 + $0x198] sm:$0xff]
  %v66 = vld [vmem:[%s0 + $0x1a0] sm:$0xff]
  %v67 = vld [vmem:[%s0 + $0x1a8] sm:$0xff]
  %v68 = vld [vmem:[%s0 + $0x1b0] sm:$0xff]
  %v69 = vld [vmem:[%s0 + $0x1b8] sm:$0xff]
  %v70 = vld [vmem:[%s0 + $0x1c0] sm:$0xff]
  %v71 = vld [vmem:[%s0 + $0x1c8] sm:$0xff]
  %v72 = vld [vmem:[%s0 + $0x1d0] sm:$0xff]
  %v73 = vld [vmem:[%s0 + $0x1d8] sm:$0xff]
  %v74 = vld [vmem:[%s0 + $0x1e0] sm:$0xff]
  %v75 = vld [vmem:[%s0 + $0x1e8] sm:$0xff]
  %v76 = vld [vmem:[%s0 + $0x1f0] sm:$0xff]
  %v77 = vld [vmem:[%s0 + $0x1f8] sm:$0xff]
  %v78 = vld [vmem:[%s0 + $0x200] sm:$0xff]
  %v79 = vld [vmem:[%s0 + $0x208] sm:$0xff]
  %v80 = vld [vmem:[%s0 + $0x210] sm:$0xff]
  %v81 = vld [vmem:[%s0 + $0x218] sm:$0xff]
  %v82 = vld [vmem:[%s0 + $0x220] sm:$0xff]
  %v83 = vld [vmem:[%s0 + $0x228] sm:$0xff]
  %v84 = vld [vmem:[%s0 + $0x230] sm:$0xff]
  %v85 = vld [vmem:[%s0 + $0x238] sm:$0xff]
  %v86 = vld [vmem:[%s1] sm:$0xff]
  %v87 = vld [vmem:[%s1 + $0x8] sm:$0xff]
  %v88 = vld [vmem:[%s1 + $0x10] sm:$0xff]
  %v89 = vld [vmem:[%s1 + $0x18] sm:$0xff]
  %v90 = vld [vmem:[%s1 + $0x20] sm:$0xff]
  %v91 = vld [vmem:[%s1 + $0x28] sm:$0xff]
  %v92 = vld [vmem:[%s1 + $0x30] sm:$0xff]
  %v93 = vld [vmem:[%s1 + $0x38] sm:$0xff]
  %v94 = vld [vmem:[%s1 + $0x40] sm:$0xff]
  %v95 = vld [vmem:[%s1 + $0x48] sm:$0xff]
  %v96 = vld [vmem:[%s1 + $0x50] sm:$0xff]
  %v97 = vld [vmem:[%s1 + $0x58] sm:$0xff]
  %v98 = vld [vmem:[%s1 + $0x60] sm:$0xff]
  %v99 = vld [vmem:[%s1 + $0x68] sm:$0xff]
  %v100 = vld [vmem:[%s1 + $0x70] sm:$0xff]
  %v101 = vld [vmem:[%s1 + $0x78] sm:$0xff]
  %v102 = vld [vmem:[%s1 + $0x80] sm:$0xff]
  %v103 = vld [vmem:[%s1 + $0x88] sm:$0xff]
  %v104 = vld [vmem:[%s1 + $0x90] sm:$0xff]
  %v105 = vld [vmem:[%s1 + $0x98] sm:$0xff]
  %v106 = vld [vmem:[%s1 + $0xa0] sm:$0xff]
  %v107 = vld [vmem:[%s1 + $0xa8] sm:$0xff]
  %v108 = vld [vmem:[%s1 + $0xb0] sm:$0xff]
  %v109 = vld [vmem:[%s1 + $0xb8] sm:$0xff]
  %v110 = vld [vmem:[%s1 + $0xc0] sm:$0xff]
  %v111 = vld [vmem:[%s1 + $0xc8] sm:$0xff]
  %v112 = vld [vmem:[%s1 + $0xd0] sm:$0xff]
  %v113 = vld [vmem:[%s1 + $0xd8] sm:$0xff]
  %v114 = vld [vmem:[%s1 + $0xe0] sm:$0xff]
  %v115 = vld [vmem:[%s1 + $0xe8] sm:$0xff]
  %v116 = vld [vmem:[%s1 + $0xf0] sm:$0xff]
  %v117 = vld [vmem:[%s1 + $0xf8] sm:$0xff]
  %v118 = vld [vmem:[%s1 + $0x100] sm:$0xff]
  %v119 = vld [vmem:[%s1 + $0x108] sm:$0xff]
  %v120 = vld [vmem:[%s1 + $0x110] sm:$0xff]
  %v121 = vld [vmem:[%s1 + $0x118] sm:$0xff]
  %v122 = vld [vmem:[%s1 + $0x120] sm:$0xff]
  %v123 = vld [vmem:[%s1 + $0x128] sm:$0xff]
  %v124 = vld [vmem:[%s1 + $0x130] sm:$0xff]
  %v125 = vld [vmem:[%s1 + $0x138] sm:$0xff]
  %v126 = vld [vmem:[%s1 + $0x140] sm:$0xff]
  %v127 = vld [vmem:[%s1 + $0x148] sm:$0xff]
  %v128 = vld [vmem:[%s1 + $0x150] sm:$0xff]
  %v129 = vld [vmem:[%s1 + $0x158] sm:$0xff]
  %v130 = vld [vmem:[%s1 + $0x160] sm:$0xff]
  %v131 = vld [vmem:[%s1 + $0x168] sm:$0xff]
  %v132 = vld [vmem:[%s1 + $0x170] sm:$0xff]
  %v133 = vld [vmem:[%s1 + $0x178] sm:$0xff]
  %v134 = vld [vmem:[%s1 + $0x180] sm:$0xff]
  %v135 = vld [vmem:[%s1 + $0x188] sm:$0xff]
  %v136 = vld [vmem:[%s1 + $0x190] sm:$0xff]
  %v137 = vld [vmem:[%s1 + $0x198] sm:$0xff]
  %v138 = vld [vmem:[%s1 + $0x1a0] sm:$0xff]
  %v139 = vld [vmem:[%s1 + $0x1a8] sm:$0xff]
  %v140 = vld [vmem:[%s1 + $0x1b0] sm:$0xff]
  %v141 = vld [vmem:[%s1 + $0x1b8] sm:$0xff]
  %v142 = vld [vmem:[%s1 + $0x1c0] sm:$0xff]
  %v143 = vld [vmem:[%s1 + $0x1c8] sm:$0xff]
  %v144 = vld [vmem:[%s1 + $0x1d0] sm:$0xff]
  %v145 = vld [vmem:[%s1 + $0x1d8] sm:$0xff]
  %v146 = vld [vmem:[%s1 + $0x1e0] sm:$0xff]
  %v147 = vld [vmem:[%s1 + $0x1e8] sm:$0xff]
  %v148 = vld [vmem:[%s1 + $0x1f0] sm:$0xff]
  %v149 = vld [vmem:[%s1 + $0x1f8] sm:$0xff]
  %v150 = vld [vmem:[%s1 + $0x200] sm:$0xff]
  %v151 = vld [vmem:[%s1 + $0x208] sm:$0xff]
  %v152 = vld [vmem:[%s1 + $0x210] sm:$0xff]
  %v153 = vld [vmem:[%s1 + $0x218] sm:$0xff]
  %v154 = vld [vmem:[%s1 + $0x220] sm:$0xff]
  %v155 = vld [vmem:[%s1 + $0x228] sm:$0xff]
  %v156 = vld [vmem:[%s1 + $0x230] sm:$0xff]
  %v157 = vld [vmem:[%s1 + $0x238] sm:$0xff]
  %v158 = vld [vmem:[%s1 + $0x240] sm:$0xff]
  %v159 = vld [vmem:[%s1 + $0x248] sm:$0xff]
  %v160 = vld [vmem:[%s1 + $0x250] sm:$0xff]
  %v161 = vld [vmem:[%s1 + $0x258] sm:$0xff]
  %v162 = vld [vmem:[%s1 + $0x260] sm:$0xff]
  %v163 = vld [vmem:[%s1 + $0x268] sm:$0xff]
  %v164 = vld [vmem:[%s1 + $0x270] sm:$0xff]
  %v165 = vld [vmem:[%s1 + $0x278] sm:$0xff]
  %vm166 = vcmask 523264
  %v168 = vsel %vm166, %v90, 0
  %v171 = vsel %vm166, %v95, 0
  %v174 = vsel %vm166, %v100, 0
  %v177 = vsel %vm166, %v105, 0
  %v180 = vsel %vm166, %v110, 0
  %v183 = vsel %vm166, %v115, 0
  %v186 = vsel %vm166, %v120, 0
  %v189 = vsel %vm166, %v125, 0
  %v192 = vsel %vm166, %v130, 0
  %v195 = vsel %vm166, %v135, 0
  %v198 = vsel %vm166, %v140, 0
  %v201 = vsel %vm166, %v145, 0
  %v204 = vsel %vm166, %v150, 0
  %v207 = vsel %vm166, %v155, 0
  %v210 = vsel %vm166, %v160, 0
  %v213 = vsel %vm166, %v165, 0
  %215 = vmatpush.msra.mxu0 %v29
  %216 = vmatpush.msra.mxu0 %v28
  %217 = vmatpush.msra.mxu0 %v27
  %218 = vmatpush.msra.mxu0 %v26
  %219 = vmatpush.msra.mxu0 %v25
  %220 = vmatpush.msra.mxu0 %v24
  %221 = vmatpush.msra.mxu0 %v23
  %222 = vmatpush.msra.mxu0 %v22
  %223 = vmatpush.msra.mxu0 %v21
  %224 = vmatpush.msra.mxu0 %v20
  %225 = vmatpush.msra.mxu0 %v19
  %226 = vmatpush.msra.mxu0 %v18
  %227 = vmatpush.msra.mxu0 %v17
  %228 = vmatpush.msra.mxu0 %v16
  %229 = vmatpush.msra.mxu0 %v15
  %230 = vmatpush.msra.mxu0 %v14
  %231 = vmatmul.f32.gmra.mxu0 %v86
  %v232 = vpop.f32.mrf.mxu0
  %v233 = vadd.f32 0.0, %v232
  %234 = vmatmul.f32.gmra.mxu0 %v91
  %v235 = vpop.f32.mrf.mxu0
  %v236 = vadd.f32 0.0, %v235
  %237 = vmatmul.f32.gmra.mxu0 %v96
  %v238 = vpop.f32.mrf.mxu0
  %v239 = vadd.f32 0.0, %v238
  %240 = vmatmul.f32.gmra.mxu0 %v101
  %v241 = vpop.f32.mrf.mxu0
  %v242 = vadd.f32 0.0, %v241
  %243 = vmatmul.f32.gmra.mxu0 %v106
  %v244 = vpop.f32.mrf.mxu0
  %v245 = vadd.f32 0.0, %v244
  %246 = vmatmul.f32.gmra.mxu0 %v111
  %v247 = vpop.f32.mrf.mxu0
  %v248 = vadd.f32 0.0, %v247
  %249 = vmatmul.f32.gmra.mxu0 %v116
  %v250 = vpop.f32.mrf.mxu0
  %v251 = vadd.f32 0.0, %v250
  %252 = vmatmul.f32.gmra.mxu0 %v121
  %v253 = vpop.f32.mrf.mxu0
  %v254 = vadd.f32 0.0, %v253
  %255 = vmatmul.f32.gmra.mxu0 %v126
  %v256 = vpop.f32.mrf.mxu0
  %v257 = vadd.f32 0.0, %v256
  %258 = vmatmul.f32.gmra.mxu0 %v131
  %v259 = vpop.f32.mrf.mxu0
  %v260 = vadd.f32 0.0, %v259
  %261 = vmatmul.f32.gmra.mxu0 %v136
  %v262 = vpop.f32.mrf.mxu0
  %v263 = vadd.f32 0.0, %v262
  %264 = vmatmul.f32.gmra.mxu0 %v141
  %v265 = vpop.f32.mrf.mxu0
  %v266 = vadd.f32 0.0, %v265
  %267 = vmatmul.f32.gmra.mxu0 %v146
  %v268 = vpop.f32.mrf.mxu0
  %v269 = vadd.f32 0.0, %v268
  %270 = vmatmul.f32.gmra.mxu0 %v151
  %v271 = vpop.f32.mrf.mxu0
  %v272 = vadd.f32 0.0, %v271
  %273 = vmatmul.f32.gmra.mxu0 %v156
  %v274 = vpop.f32.mrf.mxu0
  %v275 = vadd.f32 0.0, %v274
  %276 = vmatmul.f32.gmra.mxu0 %v161
  %v277 = vpop.f32.mrf.mxu0
  %v278 = vadd.f32 0.0, %v277
  %279 = vdwg.mxu0
  %280 = vmatpush.msra.mxu0 %v45
  %281 = vmatpush.msra.mxu0 %v44
  %282 = vmatpush.msra.mxu0 %v43
  %283 = vmatpush.msra.mxu0 %v42
  %284 = vmatpush.msra.mxu0 %v41
  %285 = vmatpush.msra.mxu0 %v40
  %286 = vmatpush.msra.mxu0 %v39
  %287 = vmatpush.msra.mxu0 %v38
  %288 = vmatpush.msra.mxu0 %v37
  %289 = vmatpush.msra.mxu0 %v36
  %290 = vmatpush.msra.mxu0 %v35
  %291 = vmatpush.msra.mxu0 %v34
  %292 = vmatpush.msra.mxu0 %v33
  %293 = vmatpush.msra.mxu0 %v32
  %294 = vmatpush.msra.mxu0 %v31
  %295 = vmatpush.msra.mxu0 %v30
  %296 = vmatmul.f32.gmra.mxu0 %v87
  %v297 = vpop.f32.mrf.mxu0
  %v298 = vadd.f32 %v233, %v297
  %299 = vmatmul.f32.gmra.mxu0 %v92
  %v300 = vpop.f32.mrf.mxu0
  %v301 = vadd.f32 %v236, %v300
  %302 = vmatmul.f32.gmra.mxu0 %v97
  %v303 = vpop.f32.mrf.mxu0
  %v304 = vadd.f32 %v239, %v303
  %305 = vmatmul.f32.gmra.mxu0 %v102
  %v306 = vpop.f32.mrf.mxu0
  %v307 = vadd.f32 %v242, %v306
  %308 = vmatmul.f32.gmra.mxu0 %v107
  %v309 = vpop.f32.mrf.mxu0
  %v310 = vadd.f32 %v245, %v309
  %311 = vmatmul.f32.gmra.mxu0 %v112
  %v312 = vpop.f32.mrf.mxu0
  %v313 = vadd.f32 %v248, %v312
  %314 = vmatmul.f32.gmra.mxu0 %v117
  %v315 = vpop.f32.mrf.mxu0
  %v316 = vadd.f32 %v251, %v315
  %317 = vmatmul.f32.gmra.mxu0 %v122
  %v318 = vpop.f32.mrf.mxu0
  %v319 = vadd.f32 %v254, %v318
  %320 = vmatmul.f32.gmra.mxu0 %v127
  %v321 = vpop.f32.mrf.mxu0
  %v322 = vadd.f32 %v257, %v321
  %323 = vmatmul.f32.gmra.mxu0 %v132
  %v324 = vpop.f32.mrf.mxu0
  %v325 = vadd.f32 %v260, %v324
  %326 = vmatmul.f32.gmra.mxu0 %v137
  %v327 = vpop.f32.mrf.mxu0
  %v328 = vadd.f32 %v263, %v327
  %329 = vmatmul.f32.gmra.mxu0 %v142
  %v330 = vpop.f32.mrf.mxu0
  %v331 = vadd.f32 %v266, %v330
  %332 = vmatmul.f32.gmra.mxu0 %v147
  %v333 = vpop.f32.mrf.mxu0
  %v334 = vadd.f32 %v269, %v333
  %335 = vmatmul.f32.gmra.mxu0 %v152
  %v336 = vpop.f32.mrf.mxu0
  %v337 = vadd.f32 %v272, %v336
  %338 = vmatmul.f32.gmra.mxu0 %v157
  %v339 = vpop.f32.mrf.mxu0
  %v340 = vadd.f32 %v275, %v339
  %341 = vmatmul.f32.gmra.mxu0 %v162
  %v342 = vpop.f32.mrf.mxu0
  %v343 = vadd.f32 %v278, %v342
  %344 = vdwg.mxu0
  %345 = vmatpush.msra.mxu0 %v61
  %346 = vmatpush.msra.mxu0 %v60
  %347 = vmatpush.msra.mxu0 %v59
  %348 = vmatpush.msra.mxu0 %v58
  %349 = vmatpush.msra.mxu0 %v57
  %350 = vmatpush.msra.mxu0 %v56
  %351 = vmatpush.msra.mxu0 %v55
  %352 = vmatpush.msra.mxu0 %v54
  %353 = vmatpush.msra.mxu0 %v53
  %354 = vmatpush.msra.mxu0 %v52
  %355 = vmatpush.msra.mxu0 %v51
  %356 = vmatpush.msra.mxu0 %v50
  %357 = vmatpush.msra.mxu0 %v49
  %358 = vmatpush.msra.mxu0 %v48
  %359 = vmatpush.msra.mxu0 %v47
  %360 = vmatpush.msra.mxu0 %v46
  %361 = vmatmul.f32.gmra.mxu0 %v88
  %v362 = vpop.f32.mrf.mxu0
  %v363 = vadd.f32 %v298, %v362
  %364 = vmatmul.f32.gmra.mxu0 %v93
  %v365 = vpop.f32.mrf.mxu0
  %v366 = vadd.f32 %v301, %v365
  %367 = vmatmul.f32.gmra.mxu0 %v98
  %v368 = vpop.f32.mrf.mxu0
  %v369 = vadd.f32 %v304, %v368
  %370 = vmatmul.f32.gmra.mxu0 %v103
  %v371 = vpop.f32.mrf.mxu0
  %v372 = vadd.f32 %v307, %v371
  %373 = vmatmul.f32.gmra.mxu0 %v108
  %v374 = vpop.f32.mrf.mxu0
  %v375 = vadd.f32 %v310, %v374
  %376 = vmatmul.f32.gmra.mxu0 %v113
  %v377 = vpop.f32.mrf.mxu0
  %v378 = vadd.f32 %v313, %v377
  %379 = vmatmul.f32.gmra.mxu0 %v118
  %v380 = vpop.f32.mrf.mxu0
  %v381 = vadd.f32 %v316, %v380
  %382 = vmatmul.f32.gmra.mxu0 %v123
  %v383 = vpop.f32.mrf.mxu0
  %v384 = vadd.f32 %v319, %v383
  %385 = vmatmul.f32.gmra.mxu0 %v128
  %v386 = vpop.f32.mrf.mxu0
  %v387 = vadd.f32 %v322, %v386
  %388 = vmatmul.f32.gmra.mxu0 %v133
  %v389 = vpop.f32.mrf.mxu0
  %v390 = vadd.f32 %v325, %v389
  %391 = vmatmul.f32.gmra.mxu0 %v138
  %v392 = vpop.f32.mrf.mxu0
  %v393 = vadd.f32 %v328, %v392
  %394 = vmatmul.f32.gmra.mxu0 %v143
  %v395 = vpop.f32.mrf.mxu0
  %v396 = vadd.f32 %v331, %v395
  %397 = vmatmul.f32.gmra.mxu0 %v148
  %v398 = vpop.f32.mrf.mxu0
  %v399 = vadd.f32 %v334, %v398
  %400 = vmatmul.f32.gmra.mxu0 %v153
  %v401 = vpop.f32.mrf.mxu0
  %v402 = vadd.f32 %v337, %v401
  %403 = vmatmul.f32.gmra.mxu0 %v158
  %v404 = vpop.f32.mrf.mxu0
  %v405 = vadd.f32 %v340, %v404
  %406 = vmatmul.f32.gmra.mxu0 %v163
  %v407 = vpop.f32.mrf.mxu0
  %v408 = vadd.f32 %v343, %v407
  %409 = vdwg.mxu0
  %410 = vmatpush.msra.mxu0 %v77
  %411 = vmatpush.msra.mxu0 %v76
  %412 = vmatpush.msra.mxu0 %v75
  %413 = vmatpush.msra.mxu0 %v74
  %414 = vmatpush.msra.mxu0 %v73
  %415 = vmatpush.msra.mxu0 %v72
  %416 = vmatpush.msra.mxu0 %v71
  %417 = vmatpush.msra.mxu0 %v70
  %418 = vmatpush.msra.mxu0 %v69
  %419 = vmatpush.msra.mxu0 %v68
  %420 = vmatpush.msra.mxu0 %v67
  %421 = vmatpush.msra.mxu0 %v66
  %422 = vmatpush.msra.mxu0 %v65
  %423 = vmatpush.msra.mxu0 %v64
  %424 = vmatpush.msra.mxu0 %v63
  %425 = vmatpush.msra.mxu0 %v62
  %426 = vmatmul.f32.gmra.mxu0 %v89
  %v427 = vpop.f32.mrf.mxu0
  %v428 = vadd.f32 %v363, %v427
  %429 = vmatmul.f32.gmra.mxu0 %v94
  %v430 = vpop.f32.mrf.mxu0
  %v431 = vadd.f32 %v366, %v430
  %432 = vmatmul.f32.gmra.mxu0 %v99
  %v433 = vpop.f32.mrf.mxu0
  %v434 = vadd.f32 %v369, %v433
  %435 = vmatmul.f32.gmra.mxu0 %v104
  %v436 = vpop.f32.mrf.mxu0
  %v437 = vadd.f32 %v372, %v436
  %438 = vmatmul.f32.gmra.mxu0 %v109
  %v439 = vpop.f32.mrf.mxu0
  %v440 = vadd.f32 %v375, %v439
  %441 = vmatmul.f32.gmra.mxu0 %v114
  %v442 = vpop.f32.mrf.mxu0
  %v443 = vadd.f32 %v378, %v442
  %444 = vmatmul.f32.gmra.mxu0 %v119
  %v445 = vpop.f32.mrf.mxu0
  %v446 = vadd.f32 %v381, %v445
  %447 = vmatmul.f32.gmra.mxu0 %v124
  %v448 = vpop.f32.mrf.mxu0
  %v449 = vadd.f32 %v384, %v448
  %450 = vmatmul.f32.gmra.mxu0 %v129
  %v451 = vpop.f32.mrf.mxu0
  %v452 = vadd.f32 %v387, %v451
  %453 = vmatmul.f32.gmra.mxu0 %v134
  %v454 = vpop.f32.mrf.mxu0
  %v455 = vadd.f32 %v390, %v454
  %456 = vmatmul.f32.gmra.mxu0 %v139
  %v457 = vpop.f32.mrf.mxu0
  %v458 = vadd.f32 %v393, %v457
  %459 = vmatmul.f32.gmra.mxu0 %v144
  %v460 = vpop.f32.mrf.mxu0
  %v461 = vadd.f32 %v396, %v460
  %462 = vmatmul.f32.gmra.mxu0 %v149
  %v463 = vpop.f32.mrf.mxu0
  %v464 = vadd.f32 %v399, %v463
  %465 = vmatmul.f32.gmra.mxu0 %v154
  %v466 = vpop.f32.mrf.mxu0
  %v467 = vadd.f32 %v402, %v466
  %468 = vmatmul.f32.gmra.mxu0 %v159
  %v469 = vpop.f32.mrf.mxu0
  %v470 = vadd.f32 %v405, %v469
  %471 = vmatmul.f32.gmra.mxu0 %v164
  %v472 = vpop.f32.mrf.mxu0
  %v473 = vadd.f32 %v408, %v472
  %474 = vdwg.mxu0
  %475 = vmatpush.msra.mxu0 0.0
  %476 = vmatpush.msra.mxu0 0.0
  %477 = vmatpush.msra.mxu0 0.0
  %478 = vmatpush.msra.mxu0 0.0
  %479 = vmatpush.msra.mxu0 0.0
  %480 = vmatpush.msra.mxu0 0.0
  %481 = vmatpush.msra.mxu0 0.0
  %482 = vmatpush.msra.mxu0 0.0
  %483 = vmatpush.msra.mxu0 %v85
  %484 = vmatpush.msra.mxu0 %v84
  %485 = vmatpush.msra.mxu0 %v83
  %486 = vmatpush.msra.mxu0 %v82
  %487 = vmatpush.msra.mxu0 %v81
  %488 = vmatpush.msra.mxu0 %v80
  %489 = vmatpush.msra.mxu0 %v79
  %490 = vmatpush.msra.mxu0 %v78
  %491 = vmatmul.f32.gmra.mxu0 %v168
  %v492 = vpop.f32.mrf.mxu0
  %v493 = vadd.f32 %v428, %v492
  %494 = vmatmul.f32.gmra.mxu0 %v171
  %v495 = vpop.f32.mrf.mxu0
  %v496 = vadd.f32 %v431, %v495
  %497 = vmatmul.f32.gmra.mxu0 %v174
  %v498 = vpop.f32.mrf.mxu0
  %v499 = vadd.f32 %v434, %v498
  %500 = vmatmul.f32.gmra.mxu0 %v177
  %v501 = vpop.f32.mrf.mxu0
  %v502 = vadd.f32 %v437, %v501
  %503 = vmatmul.f32.gmra.mxu0 %v180
  %v504 = vpop.f32.mrf.mxu0
  %v505 = vadd.f32 %v440, %v504
  %506 = vmatmul.f32.gmra.mxu0 %v183
  %v507 = vpop.f32.mrf.mxu0
  %v508 = vadd.f32 %v443, %v507
  %509 = vmatmul.f32.gmra.mxu0 %v186
  %v510 = vpop.f32.mrf.mxu0
  %v511 = vadd.f32 %v446, %v510
  %512 = vmatmul.f32.gmra.mxu0 %v189
  %v513 = vpop.f32.mrf.mxu0
  %v514 = vadd.f32 %v449, %v513
  %515 = vmatmul.f32.gmra.mxu0 %v192
  %v516 = vpop.f32.mrf.mxu0
  %v517 = vadd.f32 %v452, %v516
  %518 = vmatmul.f32.gmra.mxu0 %v195
  %v519 = vpop.f32.mrf.mxu0
  %v520 = vadd.f32 %v455, %v519
  %521 = vmatmul.f32.gmra.mxu0 %v198
  %v522 = vpop.f32.mrf.mxu0
  %v523 = vadd.f32 %v458, %v522
  %524 = vmatmul.f32.gmra.mxu0 %v201
  %v525 = vpop.f32.mrf.mxu0
  %v526 = vadd.f32 %v461, %v525
  %527 = vmatmul.f32.gmra.mxu0 %v204
  %v528 = vpop.f32.mrf.mxu0
  %v529 = vadd.f32 %v464, %v528
  %530 = vmatmul.f32.gmra.mxu0 %v207
  %v531 = vpop.f32.mrf.mxu0
  %v532 = vadd.f32 %v467, %v531
  %533 = vmatmul.f32.gmra.mxu0 %v210
  %v534 = vpop.f32.mrf.mxu0
  %v535 = vadd.f32 %v470, %v534
  %536 = vmatmul.f32.gmra.mxu0 %v213
  %v537 = vpop.f32.mrf.mxu0
  %v538 = vadd.f32 %v473, %v537
  %539 = vdwg.mxu0
  %s540 = scalar_lea.vmem %s1, 640
  %v541 = vld [vmem:[%s540] sm:$0xff]
  %v542 = vld [vmem:[%s540 + $0x8] sm:$0xff]
  %v543 = vld [vmem:[%s540 + $0x10] sm:$0xff]
  %v544 = vld [vmem:[%s540 + $0x18] sm:$0xff]
  %v545 = vld [vmem:[%s540 + $0x20] sm:$0xff]
  %v546 = vld [vmem:[%s540 + $0x28] sm:$0xff]
  %v547 = vld [vmem:[%s540 + $0x30] sm:$0xff]
  %v548 = vld [vmem:[%s540 + $0x38] sm:$0xff]
  %v549 = vld [vmem:[%s540 + $0x40] sm:$0xff]
  %v550 = vld [vmem:[%s540 + $0x48] sm:$0xff]
  %v551 = vld [vmem:[%s540 + $0x50] sm:$0xff]
  %v552 = vld [vmem:[%s540 + $0x58] sm:$0xff]
  %v553 = vld [vmem:[%s540 + $0x60] sm:$0xff]
  %v554 = vld [vmem:[%s540 + $0x68] sm:$0xff]
  %v555 = vld [vmem:[%s540 + $0x70] sm:$0xff]
  %v556 = vld [vmem:[%s540 + $0x78] sm:$0xff]
  %v557 = vld [vmem:[%s540 + $0x80] sm:$0xff]
  %v558 = vld [vmem:[%s540 + $0x88] sm:$0xff]
  %v559 = vld [vmem:[%s540 + $0x90] sm:$0xff]
  %v560 = vld [vmem:[%s540 + $0x98] sm:$0xff]
  %v561 = vld [vmem:[%s540 + $0xa0] sm:$0xff]
  %v562 = vld [vmem:[%s540 + $0xa8] sm:$0xff]
  %v563 = vld [vmem:[%s540 + $0xb0] sm:$0xff]
  %v564 = vld [vmem:[%s540 + $0xb8] sm:$0xff]
  %v565 = vld [vmem:[%s540 + $0xc0] sm:$0xff]
  %v566 = vld [vmem:[%s540 + $0xc8] sm:$0xff]
  %v567 = vld [vmem:[%s540 + $0xd0] sm:$0xff]
  %v568 = vld [vmem:[%s540 + $0xd8] sm:$0xff]
  %v569 = vld [vmem:[%s540 + $0xe0] sm:$0xff]
  %v570 = vld [vmem:[%s540 + $0xe8] sm:$0xff]
  %v571 = vld [vmem:[%s540 + $0xf0] sm:$0xff]
  %v572 = vld [vmem:[%s540 + $0xf8] sm:$0xff]
  %v573 = vld [vmem:[%s540 + $0x100] sm:$0xff]
  %v574 = vld [vmem:[%s540 + $0x108] sm:$0xff]
  %v575 = vld [vmem:[%s540 + $0x110] sm:$0xff]
  %v576 = vld [vmem:[%s540 + $0x118] sm:$0xff]
  %v577 = vld [vmem:[%s540 + $0x120] sm:$0xff]
  %v578 = vld [vmem:[%s540 + $0x128] sm:$0xff]
  %v579 = vld [vmem:[%s540 + $0x130] sm:$0xff]
  %v580 = vld [vmem:[%s540 + $0x138] sm:$0xff]
  %v581 = vld [vmem:[%s540 + $0x140] sm:$0xff]
  %v582 = vld [vmem:[%s540 + $0x148] sm:$0xff]
  %v583 = vld [vmem:[%s540 + $0x150] sm:$0xff]
  %v584 = vld [vmem:[%s540 + $0x158] sm:$0xff]
  %v585 = vld [vmem:[%s540 + $0x160] sm:$0xff]
  %v586 = vld [vmem:[%s540 + $0x168] sm:$0xff]
  %v587 = vld [vmem:[%s540 + $0x170] sm:$0xff]
  %v588 = vld [vmem:[%s540 + $0x178] sm:$0xff]
  %v589 = vld [vmem:[%s540 + $0x180] sm:$0xff]
  %v590 = vld [vmem:[%s540 + $0x188] sm:$0xff]
  %v591 = vld [vmem:[%s540 + $0x190] sm:$0xff]
  %v592 = vld [vmem:[%s540 + $0x198] sm:$0xff]
  %v593 = vld [vmem:[%s540 + $0x1a0] sm:$0xff]
  %v594 = vld [vmem:[%s540 + $0x1a8] sm:$0xff]
  %v595 = vld [vmem:[%s540 + $0x1b0] sm:$0xff]
  %v596 = vld [vmem:[%s540 + $0x1b8] sm:$0xff]
  %v597 = vld [vmem:[%s540 + $0x1c0] sm:$0xff]
  %v598 = vld [vmem:[%s540 + $0x1c8] sm:$0xff]
  %v599 = vld [vmem:[%s540 + $0x1d0] sm:$0xff]
  %v600 = vld [vmem:[%s540 + $0x1d8] sm:$0xff]
  %v601 = vld [vmem:[%s540 + $0x1e0] sm:$0xff]
  %v602 = vld [vmem:[%s540 + $0x1e8] sm:$0xff]
  %v603 = vld [vmem:[%s540 + $0x1f0] sm:$0xff]
  %v604 = vld [vmem:[%s540 + $0x1f8] sm:$0xff]
  %v605 = vld [vmem:[%s540 + $0x200] sm:$0xff]
  %v606 = vld [vmem:[%s540 + $0x208] sm:$0xff]
  %v607 = vld [vmem:[%s540 + $0x210] sm:$0xff]
  %v608 = vld [vmem:[%s540 + $0x218] sm:$0xff]
  %v609 = vld [vmem:[%s540 + $0x220] sm:$0xff]
  %v610 = vld [vmem:[%s540 + $0x228] sm:$0xff]
  %v611 = vld [vmem:[%s540 + $0x230] sm:$0xff]
  %v612 = vld [vmem:[%s540 + $0x238] sm:$0xff]
  %v613 = vld [vmem:[%s540 + $0x240] sm:$0xff]
  %v614 = vld [vmem:[%s540 + $0x248] sm:$0xff]
  %v615 = vld [vmem:[%s540 + $0x250] sm:$0xff]
  %v616 = vld [vmem:[%s540 + $0x258] sm:$0xff]
  %v617 = vld [vmem:[%s540 + $0x260] sm:$0xff]
  %v618 = vld [vmem:[%s540 + $0x268] sm:$0xff]
  %v619 = vld [vmem:[%s540 + $0x270] sm:$0xff]
  %v620 = vld [vmem:[%s540 + $0x278] sm:$0xff]
  %v622 = vsel %vm166, %v545, 0
  %v625 = vsel %vm166, %v550, 0
  %v628 = vsel %vm166, %v555, 0
  %v631 = vsel %vm166, %v560, 0
  %v634 = vsel %vm166, %v565, 0
  %v637 = vsel %vm166, %v570, 0
  %v640 = vsel %vm166, %v575, 0
  %v643 = vsel %vm166, %v580, 0
  %v646 = vsel %vm166, %v585, 0
  %v649 = vsel %vm166, %v590, 0
  %v652 = vsel %vm166, %v595, 0
  %v655 = vsel %vm166, %v600, 0
  %v658 = vsel %vm166, %v605, 0
  %v661 = vsel %vm166, %v610, 0
  %v664 = vsel %vm166, %v615, 0
  %v667 = vsel %vm166, %v620, 0
  %669 = vmatpush.msra.mxu0 %v29
  %670 = vmatpush.msra.mxu0 %v28
  %671 = vmatpush.msra.mxu0 %v27
  %672 = vmatpush.msra.mxu0 %v26
  %673 = vmatpush.msra.mxu0 %v25
  %674 = vmatpush.msra.mxu0 %v24
  %675 = vmatpush.msra.mxu0 %v23
  %676 = vmatpush.msra.mxu0 %v22
  %677 = vmatpush.msra.mxu0 %v21
  %678 = vmatpush.msra.mxu0 %v20
  %679 = vmatpush.msra.mxu0 %v19
  %680 = vmatpush.msra.mxu0 %v18
  %681 = vmatpush.msra.mxu0 %v17
  %682 = vmatpush.msra.mxu0 %v16
  %683 = vmatpush.msra.mxu0 %v15
  %684 = vmatpush.msra.mxu0 %v14
  %685 = vmatmul.f32.gmra.mxu0 %v541
  %v686 = vpop.f32.mrf.mxu0
  %v687 = vadd.f32 0.0, %v686
  %688 = vmatmul.f32.gmra.mxu0 %v546
  %v689 = vpop.f32.mrf.mxu0
  %v690 = vadd.f32 0.0, %v689
  %691 = vmatmul.f32.gmra.mxu0 %v551
  %v692 = vpop.f32.mrf.mxu0
  %v693 = vadd.f32 0.0, %v692
  %694 = vmatmul.f32.gmra.mxu0 %v556
  %v695 = vpop.f32.mrf.mxu0
  %v696 = vadd.f32 0.0, %v695
  %697 = vmatmul.f32.gmra.mxu0 %v561
  %v698 = vpop.f32.mrf.mxu0
  %v699 = vadd.f32 0.0, %v698
  %700 = vmatmul.f32.gmra.mxu0 %v566
  %v701 = vpop.f32.mrf.mxu0
  %v702 = vadd.f32 0.0, %v701
  %703 = vmatmul.f32.gmra.mxu0 %v571
  %v704 = vpop.f32.mrf.mxu0
  %v705 = vadd.f32 0.0, %v704
  %706 = vmatmul.f32.gmra.mxu0 %v576
  %v707 = vpop.f32.mrf.mxu0
  %v708 = vadd.f32 0.0, %v707
  %709 = vmatmul.f32.gmra.mxu0 %v581
  %v710 = vpop.f32.mrf.mxu0
  %v711 = vadd.f32 0.0, %v710
  %712 = vmatmul.f32.gmra.mxu0 %v586
  %v713 = vpop.f32.mrf.mxu0
  %v714 = vadd.f32 0.0, %v713
  %715 = vmatmul.f32.gmra.mxu0 %v591
  %v716 = vpop.f32.mrf.mxu0
  %v717 = vadd.f32 0.0, %v716
  %718 = vmatmul.f32.gmra.mxu0 %v596
  %v719 = vpop.f32.mrf.mxu0
  %v720 = vadd.f32 0.0, %v719
  %721 = vmatmul.f32.gmra.mxu0 %v601
  %v722 = vpop.f32.mrf.mxu0
  %v723 = vadd.f32 0.0, %v722
  %724 = vmatmul.f32.gmra.mxu0 %v606
  %v725 = vpop.f32.mrf.mxu0
  %v726 = vadd.f32 0.0, %v725
  %727 = vmatmul.f32.gmra.mxu0 %v611
  %v728 = vpop.f32.mrf.mxu0
  %v729 = vadd.f32 0.0, %v728
  %730 = vmatmul.f32.gmra.mxu0 %v616
  %v731 = vpop.f32.mrf.mxu0
  %v732 = vadd.f32 0.0, %v731
  %733 = vdwg.mxu0
  %734 = vmatpush.msra.mxu0 %v45
  %735 = vmatpush.msra.mxu0 %v44
  %736 = vmatpush.msra.mxu0 %v43
  %737 = vmatpush.msra.mxu0 %v42
  %738 = vmatpush.msra.mxu0 %v41
  %739 = vmatpush.msra.mxu0 %v40
  %740 = vmatpush.msra.mxu0 %v39
  %741 = vmatpush.msra.mxu0 %v38
  %742 = vmatpush.msra.mxu0 %v37
  %743 = vmatpush.msra.mxu0 %v36
  %744 = vmatpush.msra.mxu0 %v35
  %745 = vmatpush.msra.mxu0 %v34
  %746 = vmatpush.msra.mxu0 %v33
  %747 = vmatpush.msra.mxu0 %v32
  %748 = vmatpush.msra.mxu0 %v31
  %749 = vmatpush.msra.mxu0 %v30
  %750 = vmatmul.f32.gmra.mxu0 %v542
  %v751 = vpop.f32.mrf.mxu0
  %v752 = vadd.f32 %v687, %v751
  %753 = vmatmul.f32.gmra.mxu0 %v547
  %v754 = vpop.f32.mrf.mxu0
  %v755 = vadd.f32 %v690, %v754
  %756 = vmatmul.f32.gmra.mxu0 %v552
  %v757 = vpop.f32.mrf.mxu0
  %v758 = vadd.f32 %v693, %v757
  %759 = vmatmul.f32.gmra.mxu0 %v557
  %v760 = vpop.f32.mrf.mxu0
  %v761 = vadd.f32 %v696, %v760
  %762 = vmatmul.f32.gmra.mxu0 %v562
  %v763 = vpop.f32.mrf.mxu0
  %v764 = vadd.f32 %v699, %v763
  %765 = vmatmul.f32.gmra.mxu0 %v567
  %v766 = vpop.f32.mrf.mxu0
  %v767 = vadd.f32 %v702, %v766
  %768 = vmatmul.f32.gmra.mxu0 %v572
  %v769 = vpop.f32.mrf.mxu0
  %v770 = vadd.f32 %v705, %v769
  %771 = vmatmul.f32.gmra.mxu0 %v577
  %v772 = vpop.f32.mrf.mxu0
  %v773 = vadd.f32 %v708, %v772
  %774 = vmatmul.f32.gmra.mxu0 %v582
  %v775 = vpop.f32.mrf.mxu0
  %v776 = vadd.f32 %v711, %v775
  %777 = vmatmul.f32.gmra.mxu0 %v587
  %v778 = vpop.f32.mrf.mxu0
  %v779 = vadd.f32 %v714, %v778
  %780 = vmatmul.f32.gmra.mxu0 %v592
  %v781 = vpop.f32.mrf.mxu0
  %v782 = vadd.f32 %v717, %v781
  %783 = vmatmul.f32.gmra.mxu0 %v597
  %v784 = vpop.f32.mrf.mxu0
  %v785 = vadd.f32 %v720, %v784
  %786 = vmatmul.f32.gmra.mxu0 %v602
  %v787 = vpop.f32.mrf.mxu0
  %v788 = vadd.f32 %v723, %v787
  %789 = vmatmul.f32.gmra.mxu0 %v607
  %v790 = vpop.f32.mrf.mxu0
  %v791 = vadd.f32 %v726, %v790
  %792 = vmatmul.f32.gmra.mxu0 %v612
  %v793 = vpop.f32.mrf.mxu0
  %v794 = vadd.f32 %v729, %v793
  %795 = vmatmul.f32.gmra.mxu0 %v617
  %v796 = vpop.f32.mrf.mxu0
  %v797 = vadd.f32 %v732, %v796
  %798 = vdwg.mxu0
  %799 = vmatpush.msra.mxu0 %v61
  %800 = vmatpush.msra.mxu0 %v60
  %801 = vmatpush.msra.mxu0 %v59
  %802 = vmatpush.msra.mxu0 %v58
  %803 = vmatpush.msra.mxu0 %v57
  %804 = vmatpush.msra.mxu0 %v56
  %805 = vmatpush.msra.mxu0 %v55
  %806 = vmatpush.msra.mxu0 %v54
  %807 = vmatpush.msra.mxu0 %v53
  %808 = vmatpush.msra.mxu0 %v52
  %809 = vmatpush.msra.mxu0 %v51
  %810 = vmatpush.msra.mxu0 %v50
  %811 = vmatpush.msra.mxu0 %v49
  %812 = vmatpush.msra.mxu0 %v48
  %813 = vmatpush.msra.mxu0 %v47
  %814 = vmatpush.msra.mxu0 %v46
  %815 = vmatmul.f32.gmra.mxu0 %v543
  %v816 = vpop.f32.mrf.mxu0
  %v817 = vadd.f32 %v752, %v816
  %818 = vmatmul.f32.gmra.mxu0 %v548
  %v819 = vpop.f32.mrf.mxu0
  %v820 = vadd.f32 %v755, %v819
  %821 = vmatmul.f32.gmra.mxu0 %v553
  %v822 = vpop.f32.mrf.mxu0
  %v823 = vadd.f32 %v758, %v822
  %824 = vmatmul.f32.gmra.mxu0 %v558
  %v825 = vpop.f32.mrf.mxu0
  %v826 = vadd.f32 %v761, %v825
  %827 = vmatmul.f32.gmra.mxu0 %v563
  %v828 = vpop.f32.mrf.mxu0
  %v829 = vadd.f32 %v764, %v828
  %830 = vmatmul.f32.gmra.mxu0 %v568
  %v831 = vpop.f32.mrf.mxu0
  %v832 = vadd.f32 %v767, %v831
  %833 = vmatmul.f32.gmra.mxu0 %v573
  %v834 = vpop.f32.mrf.mxu0
  %v835 = vadd.f32 %v770, %v834
  %836 = vmatmul.f32.gmra.mxu0 %v578
  %v837 = vpop.f32.mrf.mxu0
  %v838 = vadd.f32 %v773, %v837
  %839 = vmatmul.f32.gmra.mxu0 %v583
  %v840 = vpop.f32.mrf.mxu0
  %v841 = vadd.f32 %v776, %v840
  %842 = vmatmul.f32.gmra.mxu0 %v588
  %v843 = vpop.f32.mrf.mxu0
  %v844 = vadd.f32 %v779, %v843
  %845 = vmatmul.f32.gmra.mxu0 %v593
  %v846 = vpop.f32.mrf.mxu0
  %v847 = vadd.f32 %v782, %v846
  %848 = vmatmul.f32.gmra.mxu0 %v598
  %v849 = vpop.f32.mrf.mxu0
  %v850 = vadd.f32 %v785, %v849
  %851 = vmatmul.f32.gmra.mxu0 %v603
  %v852 = vpop.f32.mrf.mxu0
  %v853 = vadd.f32 %v788, %v852
  %854 = vmatmul.f32.gmra.mxu0 %v608
  %v855 = vpop.f32.mrf.mxu0
  %v856 = vadd.f32 %v791, %v855
  %857 = vmatmul.f32.gmra.mxu0 %v613
  %v858 = vpop.f32.mrf.mxu0
  %v859 = vadd.f32 %v794, %v858
  %860 = vmatmul.f32.gmra.mxu0 %v618
  %v861 = vpop.f32.mrf.mxu0
  %v862 = vadd.f32 %v797, %v861
  %863 = vdwg.mxu0
  %864 = vmatpush.msra.mxu0 %v77
  %865 = vmatpush.msra.mxu0 %v76
  %866 = vmatpush.msra.mxu0 %v75
  %867 = vmatpush.msra.mxu0 %v74
  %868 = vmatpush.msra.mxu0 %v73
  %869 = vmatpush.msra.mxu0 %v72
  %870 = vmatpush.msra.mxu0 %v71
  %871 = vmatpush.msra.mxu0 %v70
  %872 = vmatpush.msra.mxu0 %v69
  %873 = vmatpush.msra.mxu0 %v68
  %874 = vmatpush.msra.mxu0 %v67
  %875 = vmatpush.msra.mxu0 %v66
  %876 = vmatpush.msra.mxu0 %v65
  %877 = vmatpush.msra.mxu0 %v64
  %878 = vmatpush.msra.mxu0 %v63
  %879 = vmatpush.msra.mxu0 %v62
  %880 = vmatmul.f32.gmra.mxu0 %v544
  %v881 = vpop.f32.mrf.mxu0
  %v882 = vadd.f32 %v817, %v881
  %883 = vmatmul.f32.gmra.mxu0 %v549
  %v884 = vpop.f32.mrf.mxu0
  %v885 = vadd.f32 %v820, %v884
  %886 = vmatmul.f32.gmra.mxu0 %v554
  %v887 = vpop.f32.mrf.mxu0
  %v888 = vadd.f32 %v823, %v887
  %889 = vmatmul.f32.gmra.mxu0 %v559
  %v890 = vpop.f32.mrf.mxu0
  %v891 = vadd.f32 %v826, %v890
  %892 = vmatmul.f32.gmra.mxu0 %v564
  %v893 = vpop.f32.mrf.mxu0
  %v894 = vadd.f32 %v829, %v893
  %895 = vmatmul.f32.gmra.mxu0 %v569
  %v896 = vpop.f32.mrf.mxu0
  %v897 = vadd.f32 %v832, %v896
  %898 = vmatmul.f32.gmra.mxu0 %v574
  %v899 = vpop.f32.mrf.mxu0
  %v900 = vadd.f32 %v835, %v899
  %901 = vmatmul.f32.gmra.mxu0 %v579
  %v902 = vpop.f32.mrf.mxu0
  %v903 = vadd.f32 %v838, %v902
  %904 = vmatmul.f32.gmra.mxu0 %v584
  %v905 = vpop.f32.mrf.mxu0
  %v906 = vadd.f32 %v841, %v905
  %907 = vmatmul.f32.gmra.mxu0 %v589
  %v908 = vpop.f32.mrf.mxu0
  %v909 = vadd.f32 %v844, %v908
  %910 = vmatmul.f32.gmra.mxu0 %v594
  %v911 = vpop.f32.mrf.mxu0
  %v912 = vadd.f32 %v847, %v911
  %913 = vmatmul.f32.gmra.mxu0 %v599
  %v914 = vpop.f32.mrf.mxu0
  %v915 = vadd.f32 %v850, %v914
  %916 = vmatmul.f32.gmra.mxu0 %v604
  %v917 = vpop.f32.mrf.mxu0
  %v918 = vadd.f32 %v853, %v917
  %919 = vmatmul.f32.gmra.mxu0 %v609
  %v920 = vpop.f32.mrf.mxu0
  %v921 = vadd.f32 %v856, %v920
  %922 = vmatmul.f32.gmra.mxu0 %v614
  %v923 = vpop.f32.mrf.mxu0
  %v924 = vadd.f32 %v859, %v923
  %925 = vmatmul.f32.gmra.mxu0 %v619
  %v926 = vpop.f32.mrf.mxu0
  %v927 = vadd.f32 %v862, %v926
  %928 = vdwg.mxu0
  %929 = vmatpush.msra.mxu0 0.0
  %930 = vmatpush.msra.mxu0 0.0
  %931 = vmatpush.msra.mxu0 0.0
  %932 = vmatpush.msra.mxu0 0.0
  %933 = vmatpush.msra.mxu0 0.0
  %934 = vmatpush.msra.mxu0 0.0
  %935 = vmatpush.msra.mxu0 0.0
  %936 = vmatpush.msra.mxu0 0.0
  %937 = vmatpush.msra.mxu0 %v85
  %938 = vmatpush.msra.mxu0 %v84
  %939 = vmatpush.msra.mxu0 %v83
  %940 = vmatpush.msra.mxu0 %v82
  %941 = vmatpush.msra.mxu0 %v81
  %942 = vmatpush.msra.mxu0 %v80
  %943 = vmatpush.msra.mxu0 %v79
  %944 = vmatpush.msra.mxu0 %v78
  %945 = vmatmul.f32.gmra.mxu0 %v622
  %v946 = vpop.f32.mrf.mxu0
  %v947 = vadd.f32 %v882, %v946
  %948 = vmatmul.f32.gmra.mxu0 %v625
  %v949 = vpop.f32.mrf.mxu0
  %v950 = vadd.f32 %v885, %v949
  %951 = vmatmul.f32.gmra.mxu0 %v628
  %v952 = vpop.f32.mrf.mxu0
  %v953 = vadd.f32 %v888, %v952
  %954 = vmatmul.f32.gmra.mxu0 %v631
  %v955 = vpop.f32.mrf.mxu0
  %v956 = vadd.f32 %v891, %v955
  %957 = vmatmul.f32.gmra.mxu0 %v634
  %v958 = vpop.f32.mrf.mxu0
  %v959 = vadd.f32 %v894, %v958
  %960 = vmatmul.f32.gmra.mxu0 %v637
  %v961 = vpop.f32.mrf.mxu0
  %v962 = vadd.f32 %v897, %v961
  %963 = vmatmul.f32.gmra.mxu0 %v640
  %v964 = vpop.f32.mrf.mxu0
  %v965 = vadd.f32 %v900, %v964
  %966 = vmatmul.f32.gmra.mxu0 %v643
  %v967 = vpop.f32.mrf.mxu0
  %v968 = vadd.f32 %v903, %v967
  %969 = vmatmul.f32.gmra.mxu0 %v646
  %v970 = vpop.f32.mrf.mxu0
  %v971 = vadd.f32 %v906, %v970
  %972 = vmatmul.f32.gmra.mxu0 %v649
  %v973 = vpop.f32.mrf.mxu0
  %v974 = vadd.f32 %v909, %v973
  %975 = vmatmul.f32.gmra.mxu0 %v652
  %v976 = vpop.f32.mrf.mxu0
  %v977 = vadd.f32 %v912, %v976
  %978 = vmatmul.f32.gmra.mxu0 %v655
  %v979 = vpop.f32.mrf.mxu0
  %v980 = vadd.f32 %v915, %v979
  %981 = vmatmul.f32.gmra.mxu0 %v658
  %v982 = vpop.f32.mrf.mxu0
  %v983 = vadd.f32 %v918, %v982
  %984 = vmatmul.f32.gmra.mxu0 %v661
  %v985 = vpop.f32.mrf.mxu0
  %v986 = vadd.f32 %v921, %v985
  %987 = vmatmul.f32.gmra.mxu0 %v664
  %v988 = vpop.f32.mrf.mxu0
  %v989 = vadd.f32 %v924, %v988
  %990 = vmatmul.f32.gmra.mxu0 %v667
  %v991 = vpop.f32.mrf.mxu0
  %v992 = vadd.f32 %v927, %v991
  %993 = vdwg.mxu0
  %v994 = vmax.f32 %v493, %v947
  %v995 = vmax.f32 %v496, %v950
  %v996 = vmax.f32 %v499, %v953
  %v997 = vmax.f32 %v502, %v956
  %v998 = vmax.f32 %v505, %v959
  %v999 = vmax.f32 %v508, %v962
  %v1000 = vmax.f32 %v511, %v965
  %v1001 = vmax.f32 %v514, %v968
  %v1002 = vmax.f32 %v517, %v971
  %v1003 = vmax.f32 %v520, %v974
  %v1004 = vmax.f32 %v523, %v977
  %v1005 = vmax.f32 %v526, %v980
  %v1006 = vmax.f32 %v529, %v983
  %v1007 = vmax.f32 %v532, %v986
  %v1008 = vmax.f32 %v535, %v989
  %v1009 = vmax.f32 %v538, %v992
  %s1010 = scalar_lea.vmem %s1, 1280
  %v1011 = vld [vmem:[%s1010] sm:$0xff]
  %v1012 = vld [vmem:[%s1010 + $0x8] sm:$0xff]
  %v1013 = vld [vmem:[%s1010 + $0x10] sm:$0xff]
  %v1014 = vld [vmem:[%s1010 + $0x18] sm:$0xff]
  %v1015 = vld [vmem:[%s1010 + $0x20] sm:$0xff]
  %v1016 = vld [vmem:[%s1010 + $0x28] sm:$0xff]
  %v1017 = vld [vmem:[%s1010 + $0x30] sm:$0xff]
  %v1018 = vld [vmem:[%s1010 + $0x38] sm:$0xff]
  %v1019 = vld [vmem:[%s1010 + $0x40] sm:$0xff]
  %v1020 = vld [vmem:[%s1010 + $0x48] sm:$0xff]
  %v1021 = vld [vmem:[%s1010 + $0x50] sm:$0xff]
  %v1022 = vld [vmem:[%s1010 + $0x58] sm:$0xff]
  %v1023 = vld [vmem:[%s1010 + $0x60] sm:$0xff]
  %v1024 = vld [vmem:[%s1010 + $0x68] sm:$0xff]
  %v1025 = vld [vmem:[%s1010 + $0x70] sm:$0xff]
  %v1026 = vld [vmem:[%s1010 + $0x78] sm:$0xff]
  %v1027 = vld [vmem:[%s1010 + $0x80] sm:$0xff]
  %v1028 = vld [vmem:[%s1010 + $0x88] sm:$0xff]
  %v1029 = vld [vmem:[%s1010 + $0x90] sm:$0xff]
  %v1030 = vld [vmem:[%s1010 + $0x98] sm:$0xff]
  %v1031 = vld [vmem:[%s1010 + $0xa0] sm:$0xff]
  %v1032 = vld [vmem:[%s1010 + $0xa8] sm:$0xff]
  %v1033 = vld [vmem:[%s1010 + $0xb0] sm:$0xff]
  %v1034 = vld [vmem:[%s1010 + $0xb8] sm:$0xff]
  %v1035 = vld [vmem:[%s1010 + $0xc0] sm:$0xff]
  %v1036 = vld [vmem:[%s1010 + $0xc8] sm:$0xff]
  %v1037 = vld [vmem:[%s1010 + $0xd0] sm:$0xff]
  %v1038 = vld [vmem:[%s1010 + $0xd8] sm:$0xff]
  %v1039 = vld [vmem:[%s1010 + $0xe0] sm:$0xff]
  %v1040 = vld [vmem:[%s1010 + $0xe8] sm:$0xff]
  %v1041 = vld [vmem:[%s1010 + $0xf0] sm:$0xff]
  %v1042 = vld [vmem:[%s1010 + $0xf8] sm:$0xff]
  %v1043 = vld [vmem:[%s1010 + $0x100] sm:$0xff]
  %v1044 = vld [vmem:[%s1010 + $0x108] sm:$0xff]
  %v1045 = vld [vmem:[%s1010 + $0x110] sm:$0xff]
  %v1046 = vld [vmem:[%s1010 + $0x118] sm:$0xff]
  %v1047 = vld [vmem:[%s1010 + $0x120] sm:$0xff]
  %v1048 = vld [vmem:[%s1010 + $0x128] sm:$0xff]
  %v1049 = vld [vmem:[%s1010 + $0x130] sm:$0xff]
  %v1050 = vld [vmem:[%s1010 + $0x138] sm:$0xff]
  %v1051 = vld [vmem:[%s1010 + $0x140] sm:$0xff]
  %v1052 = vld [vmem:[%s1010 + $0x148] sm:$0xff]
  %v1053 = vld [vmem:[%s1010 + $0x150] sm:$0xff]
  %v1054 = vld [vmem:[%s1010 + $0x158] sm:$0xff]
  %v1055 = vld [vmem:[%s1010 + $0x160] sm:$0xff]
  %v1056 = vld [vmem:[%s1010 + $0x168] sm:$0xff]
  %v1057 = vld [vmem:[%s1010 + $0x170] sm:$0xff]
  %v1058 = vld [vmem:[%s1010 + $0x178] sm:$0xff]
  %v1059 = vld [vmem:[%s1010 + $0x180] sm:$0xff]
  %v1060 = vld [vmem:[%s1010 + $0x188] sm:$0xff]
  %v1061 = vld [vmem:[%s1010 + $0x190] sm:$0xff]
  %v1062 = vld [vmem:[%s1010 + $0x198] sm:$0xff]
  %v1063 = vld [vmem:[%s1010 + $0x1a0] sm:$0xff]
  %v1064 = vld [vmem:[%s1010 + $0x1a8] sm:$0xff]
  %v1065 = vld [vmem:[%s1010 + $0x1b0] sm:$0xff]
  %v1066 = vld [vmem:[%s1010 + $0x1b8] sm:$0xff]
  %v1067 = vld [vmem:[%s1010 + $0x1c0] sm:$0xff]
  %v1068 = vld [vmem:[%s1010 + $0x1c8] sm:$0xff]
  %v1069 = vld [vmem:[%s1010 + $0x1d0] sm:$0xff]
  %v1070 = vld [vmem:[%s1010 + $0x1d8] sm:$0xff]
  %v1071 = vld [vmem:[%s1010 + $0x1e0] sm:$0xff]
  %v1072 = vld [vmem:[%s1010 + $0x1e8] sm:$0xff]
  %v1073 = vld [vmem:[%s1010 + $0x1f0] sm:$0xff]
  %v1074 = vld [vmem:[%s1010 + $0x1f8] sm:$0xff]
  %v1075 = vld [vmem:[%s1010 + $0x200] sm:$0xff]
  %v1076 = vld [vmem:[%s1010 + $0x208] sm:$0xff]
  %v1077 = vld [vmem:[%s1010 + $0x210] sm:$0xff]
  %v1078 = vld [vmem:[%s1010 + $0x218] sm:$0xff]
  %v1079 = vld [vmem:[%s1010 + $0x220] sm:$0xff]
  %v1080 = vld [vmem:[%s1010 + $0x228] sm:$0xff]
  %v1081 = vld [vmem:[%s1010 + $0x230] sm:$0xff]
  %v1082 = vld [vmem:[%s1010 + $0x238] sm:$0xff]
  %v1083 = vld [vmem:[%s1010 + $0x240] sm:$0xff]
  %v1084 = vld [vmem:[%s1010 + $0x248] sm:$0xff]
  %v1085 = vld [vmem:[%s1010 + $0x250] sm:$0xff]
  %v1086 = vld [vmem:[%s1010 + $0x258] sm:$0xff]
  %v1087 = vld [vmem:[%s1010 + $0x260] sm:$0xff]
  %v1088 = vld [vmem:[%s1010 + $0x268] sm:$0xff]
  %v1089 = vld [vmem:[%s1010 + $0x270] sm:$0xff]
  %v1090 = vld [vmem:[%s1010 + $0x278] sm:$0xff]
  %v1092 = vsel %vm166, %v1015, 0
  %v1095 = vsel %vm166, %v1020, 0
  %v1098 = vsel %vm166, %v1025, 0
  %v1101 = vsel %vm166, %v1030, 0
  %v1104 = vsel %vm166, %v1035, 0
  %v1107 = vsel %vm166, %v1040, 0
  %v1110 = vsel %vm166, %v1045, 0
  %v1113 = vsel %vm166, %v1050, 0
  %v1116 = vsel %vm166, %v1055, 0
  %v1119 = vsel %vm166, %v1060, 0
  %v1122 = vsel %vm166, %v1065, 0
  %v1125 = vsel %vm166, %v1070, 0
  %v1128 = vsel %vm166, %v1075, 0
  %v1131 = vsel %vm166, %v1080, 0
  %v1134 = vsel %vm166, %v1085, 0
  %v1137 = vsel %vm166, %v1090, 0
  %1139 = vmatpush.msra.mxu0 %v29
  %1140 = vmatpush.msra.mxu0 %v28
  %1141 = vmatpush.msra.mxu0 %v27
  %1142 = vmatpush.msra.mxu0 %v26
  %1143 = vmatpush.msra.mxu0 %v25
  %1144 = vmatpush.msra.mxu0 %v24
  %1145 = vmatpush.msra.mxu0 %v23
  %1146 = vmatpush.msra.mxu0 %v22
  %1147 = vmatpush.msra.mxu0 %v21
  %1148 = vmatpush.msra.mxu0 %v20
  %1149 = vmatpush.msra.mxu0 %v19
  %1150 = vmatpush.msra.mxu0 %v18
  %1151 = vmatpush.msra.mxu0 %v17
  %1152 = vmatpush.msra.mxu0 %v16
  %1153 = vmatpush.msra.mxu0 %v15
  %1154 = vmatpush.msra.mxu0 %v14
  %1155 = vmatmul.f32.gmra.mxu0 %v1011
  %v1156 = vpop.f32.mrf.mxu0
  %v1157 = vadd.f32 0.0, %v1156
  %1158 = vmatmul.f32.gmra.mxu0 %v1016
  %v1159 = vpop.f32.mrf.mxu0
  %v1160 = vadd.f32 0.0, %v1159
  %1161 = vmatmul.f32.gmra.mxu0 %v1021
  %v1162 = vpop.f32.mrf.mxu0
  %v1163 = vadd.f32 0.0, %v1162
  %1164 = vmatmul.f32.gmra.mxu0 %v1026
  %v1165 = vpop.f32.mrf.mxu0
  %v1166 = vadd.f32 0.0, %v1165
  %1167 = vmatmul.f32.gmra.mxu0 %v1031
  %v1168 = vpop.f32.mrf.mxu0
  %v1169 = vadd.f32 0.0, %v1168
  %1170 = vmatmul.f32.gmra.mxu0 %v1036
  %v1171 = vpop.f32.mrf.mxu0
  %v1172 = vadd.f32 0.0, %v1171
  %1173 = vmatmul.f32.gmra.mxu0 %v1041
  %v1174 = vpop.f32.mrf.mxu0
  %v1175 = vadd.f32 0.0, %v1174
  %1176 = vmatmul.f32.gmra.mxu0 %v1046
  %v1177 = vpop.f32.mrf.mxu0
  %v1178 = vadd.f32 0.0, %v1177
  %1179 = vmatmul.f32.gmra.mxu0 %v1051
  %v1180 = vpop.f32.mrf.mxu0
  %v1181 = vadd.f32 0.0, %v1180
  %1182 = vmatmul.f32.gmra.mxu0 %v1056
  %v1183 = vpop.f32.mrf.mxu0
  %v1184 = vadd.f32 0.0, %v1183
  %1185 = vmatmul.f32.gmra.mxu0 %v1061
  %v1186 = vpop.f32.mrf.mxu0
  %v1187 = vadd.f32 0.0, %v1186
  %1188 = vmatmul.f32.gmra.mxu0 %v1066
  %v1189 = vpop.f32.mrf.mxu0
  %v1190 = vadd.f32 0.0, %v1189
  %1191 = vmatmul.f32.gmra.mxu0 %v1071
  %v1192 = vpop.f32.mrf.mxu0
  %v1193 = vadd.f32 0.0, %v1192
  %1194 = vmatmul.f32.gmra.mxu0 %v1076
  %v1195 = vpop.f32.mrf.mxu0
  %v1196 = vadd.f32 0.0, %v1195
  %1197 = vmatmul.f32.gmra.mxu0 %v1081
  %v1198 = vpop.f32.mrf.mxu0
  %v1199 = vadd.f32 0.0, %v1198
  %1200 = vmatmul.f32.gmra.mxu0 %v1086
  %v1201 = vpop.f32.mrf.mxu0
  %v1202 = vadd.f32 0.0, %v1201
  %1203 = vdwg.mxu0
  %1204 = vmatpush.msra.mxu0 %v45
  %1205 = vmatpush.msra.mxu0 %v44
  %1206 = vmatpush.msra.mxu0 %v43
  %1207 = vmatpush.msra.mxu0 %v42
  %1208 = vmatpush.msra.mxu0 %v41
  %1209 = vmatpush.msra.mxu0 %v40
  %1210 = vmatpush.msra.mxu0 %v39
  %1211 = vmatpush.msra.mxu0 %v38
  %1212 = vmatpush.msra.mxu0 %v37
  %1213 = vmatpush.msra.mxu0 %v36
  %1214 = vmatpush.msra.mxu0 %v35
  %1215 = vmatpush.msra.mxu0 %v34
  %1216 = vmatpush.msra.mxu0 %v33
  %1217 = vmatpush.msra.mxu0 %v32
  %1218 = vmatpush.msra.mxu0 %v31
  %1219 = vmatpush.msra.mxu0 %v30
  %1220 = vmatmul.f32.gmra.mxu0 %v1012
  %v1221 = vpop.f32.mrf.mxu0
  %v1222 = vadd.f32 %v1157, %v1221
  %1223 = vmatmul.f32.gmra.mxu0 %v1017
  %v1224 = vpop.f32.mrf.mxu0
  %v1225 = vadd.f32 %v1160, %v1224
  %1226 = vmatmul.f32.gmra.mxu0 %v1022
  %v1227 = vpop.f32.mrf.mxu0
  %v1228 = vadd.f32 %v1163, %v1227
  %1229 = vmatmul.f32.gmra.mxu0 %v1027
  %v1230 = vpop.f32.mrf.mxu0
  %v1231 = vadd.f32 %v1166, %v1230
  %1232 = vmatmul.f32.gmra.mxu0 %v1032
  %v1233 = vpop.f32.mrf.mxu0
  %v1234 = vadd.f32 %v1169, %v1233
  %1235 = vmatmul.f32.gmra.mxu0 %v1037
  %v1236 = vpop.f32.mrf.mxu0
  %v1237 = vadd.f32 %v1172, %v1236
  %1238 = vmatmul.f32.gmra.mxu0 %v1042
  %v1239 = vpop.f32.mrf.mxu0
  %v1240 = vadd.f32 %v1175, %v1239
  %1241 = vmatmul.f32.gmra.mxu0 %v1047
  %v1242 = vpop.f32.mrf.mxu0
  %v1243 = vadd.f32 %v1178, %v1242
  %1244 = vmatmul.f32.gmra.mxu0 %v1052
  %v1245 = vpop.f32.mrf.mxu0
  %v1246 = vadd.f32 %v1181, %v1245
  %1247 = vmatmul.f32.gmra.mxu0 %v1057
  %v1248 = vpop.f32.mrf.mxu0
  %v1249 = vadd.f32 %v1184, %v1248
  %1250 = vmatmul.f32.gmra.mxu0 %v1062
  %v1251 = vpop.f32.mrf.mxu0
  %v1252 = vadd.f32 %v1187, %v1251
  %1253 = vmatmul.f32.gmra.mxu0 %v1067
  %v1254 = vpop.f32.mrf.mxu0
  %v1255 = vadd.f32 %v1190, %v1254
  %1256 = vmatmul.f32.gmra.mxu0 %v1072
  %v1257 = vpop.f32.mrf.mxu0
  %v1258 = vadd.f32 %v1193, %v1257
  %1259 = vmatmul.f32.gmra.mxu0 %v1077
  %v1260 = vpop.f32.mrf.mxu0
  %v1261 = vadd.f32 %v1196, %v1260
  %1262 = vmatmul.f32.gmra.mxu0 %v1082
  %v1263 = vpop.f32.mrf.mxu0
  %v1264 = vadd.f32 %v1199, %v1263
  %1265 = vmatmul.f32.gmra.mxu0 %v1087
  %v1266 = vpop.f32.mrf.mxu0
  %v1267 = vadd.f32 %v1202, %v1266
  %1268 = vdwg.mxu0
  %1269 = vmatpush.msra.mxu0 %v61
  %1270 = vmatpush.msra.mxu0 %v60
  %1271 = vmatpush.msra.mxu0 %v59
  %1272 = vmatpush.msra.mxu0 %v58
  %1273 = vmatpush.msra.mxu0 %v57
  %1274 = vmatpush.msra.mxu0 %v56
  %1275 = vmatpush.msra.mxu0 %v55
  %1276 = vmatpush.msra.mxu0 %v54
  %1277 = vmatpush.msra.mxu0 %v53
  %1278 = vmatpush.msra.mxu0 %v52
  %1279 = vmatpush.msra.mxu0 %v51
  %1280 = vmatpush.msra.mxu0 %v50
  %1281 = vmatpush.msra.mxu0 %v49
  %1282 = vmatpush.msra.mxu0 %v48
  %1283 = vmatpush.msra.mxu0 %v47
  %1284 = vmatpush.msra.mxu0 %v46
  %1285 = vmatmul.f32.gmra.mxu0 %v1013
  %v1286 = vpop.f32.mrf.mxu0
  %v1287 = vadd.f32 %v1222, %v1286
  %1288 = vmatmul.f32.gmra.mxu0 %v1018
  %v1289 = vpop.f32.mrf.mxu0
  %v1290 = vadd.f32 %v1225, %v1289
  %1291 = vmatmul.f32.gmra.mxu0 %v1023
  %v1292 = vpop.f32.mrf.mxu0
  %v1293 = vadd.f32 %v1228, %v1292
  %1294 = vmatmul.f32.gmra.mxu0 %v1028
  %v1295 = vpop.f32.mrf.mxu0
  %v1296 = vadd.f32 %v1231, %v1295
  %1297 = vmatmul.f32.gmra.mxu0 %v1033
  %v1298 = vpop.f32.mrf.mxu0
  %v1299 = vadd.f32 %v1234, %v1298
  %1300 = vmatmul.f32.gmra.mxu0 %v1038
  %v1301 = vpop.f32.mrf.mxu0
  %v1302 = vadd.f32 %v1237, %v1301
  %1303 = vmatmul.f32.gmra.mxu0 %v1043
  %v1304 = vpop.f32.mrf.mxu0
  %v1305 = vadd.f32 %v1240, %v1304
  %1306 = vmatmul.f32.gmra.mxu0 %v1048
  %v1307 = vpop.f32.mrf.mxu0
  %v1308 = vadd.f32 %v1243, %v1307
  %1309 = vmatmul.f32.gmra.mxu0 %v1053
  %v1310 = vpop.f32.mrf.mxu0
  %v1311 = vadd.f32 %v1246, %v1310
  %1312 = vmatmul.f32.gmra.mxu0 %v1058
  %v1313 = vpop.f32.mrf.mxu0
  %v1314 = vadd.f32 %v1249, %v1313
  %1315 = vmatmul.f32.gmra.mxu0 %v1063
  %v1316 = vpop.f32.mrf.mxu0
  %v1317 = vadd.f32 %v1252, %v1316
  %1318 = vmatmul.f32.gmra.mxu0 %v1068
  %v1319 = vpop.f32.mrf.mxu0
  %v1320 = vadd.f32 %v1255, %v1319
  %1321 = vmatmul.f32.gmra.mxu0 %v1073
  %v1322 = vpop.f32.mrf.mxu0
  %v1323 = vadd.f32 %v1258, %v1322
  %1324 = vmatmul.f32.gmra.mxu0 %v1078
  %v1325 = vpop.f32.mrf.mxu0
  %v1326 = vadd.f32 %v1261, %v1325
  %1327 = vmatmul.f32.gmra.mxu0 %v1083
  %v1328 = vpop.f32.mrf.mxu0
  %v1329 = vadd.f32 %v1264, %v1328
  %1330 = vmatmul.f32.gmra.mxu0 %v1088
  %v1331 = vpop.f32.mrf.mxu0
  %v1332 = vadd.f32 %v1267, %v1331
  %1333 = vdwg.mxu0
  %1334 = vmatpush.msra.mxu0 %v77
  %1335 = vmatpush.msra.mxu0 %v76
  %1336 = vmatpush.msra.mxu0 %v75
  %1337 = vmatpush.msra.mxu0 %v74
  %1338 = vmatpush.msra.mxu0 %v73
  %1339 = vmatpush.msra.mxu0 %v72
  %1340 = vmatpush.msra.mxu0 %v71
  %1341 = vmatpush.msra.mxu0 %v70
  %1342 = vmatpush.msra.mxu0 %v69
  %1343 = vmatpush.msra.mxu0 %v68
  %1344 = vmatpush.msra.mxu0 %v67
  %1345 = vmatpush.msra.mxu0 %v66
  %1346 = vmatpush.msra.mxu0 %v65
  %1347 = vmatpush.msra.mxu0 %v64
  %1348 = vmatpush.msra.mxu0 %v63
  %1349 = vmatpush.msra.mxu0 %v62
  %1350 = vmatmul.f32.gmra.mxu0 %v1014
  %v1351 = vpop.f32.mrf.mxu0
  %v1352 = vadd.f32 %v1287, %v1351
  %1353 = vmatmul.f32.gmra.mxu0 %v1019
  %v1354 = vpop.f32.mrf.mxu0
  %v1355 = vadd.f32 %v1290, %v1354
  %1356 = vmatmul.f32.gmra.mxu0 %v1024
  %v1357 = vpop.f32.mrf.mxu0
  %v1358 = vadd.f32 %v1293, %v1357
  %1359 = vmatmul.f32.gmra.mxu0 %v1029
  %v1360 = vpop.f32.mrf.mxu0
  %v1361 = vadd.f32 %v1296, %v1360
  %1362 = vmatmul.f32.gmra.mxu0 %v1034
  %v1363 = vpop.f32.mrf.mxu0
  %v1364 = vadd.f32 %v1299, %v1363
  %1365 = vmatmul.f32.gmra.mxu0 %v1039
  %v1366 = vpop.f32.mrf.mxu0
  %v1367 = vadd.f32 %v1302, %v1366
  %1368 = vmatmul.f32.gmra.mxu0 %v1044
  %v1369 = vpop.f32.mrf.mxu0
  %v1370 = vadd.f32 %v1305, %v1369
  %1371 = vmatmul.f32.gmra.mxu0 %v1049
  %v1372 = vpop.f32.mrf.mxu0
  %v1373 = vadd.f32 %v1308, %v1372
  %1374 = vmatmul.f32.gmra.mxu0 %v1054
  %v1375 = vpop.f32.mrf.mxu0
  %v1376 = vadd.f32 %v1311, %v1375
  %1377 = vmatmul.f32.gmra.mxu0 %v1059
  %v1378 = vpop.f32.mrf.mxu0
  %v1379 = vadd.f32 %v1314, %v1378
  %1380 = vmatmul.f32.gmra.mxu0 %v1064
  %v1381 = vpop.f32.mrf.mxu0
  %v1382 = vadd.f32 %v1317, %v1381
  %1383 = vmatmul.f32.gmra.mxu0 %v1069
  %v1384 = vpop.f32.mrf.mxu0
  %v1385 = vadd.f32 %v1320, %v1384
  %1386 = vmatmul.f32.gmra.mxu0 %v1074
  %v1387 = vpop.f32.mrf.mxu0
  %v1388 = vadd.f32 %v1323, %v1387
  %1389 = vmatmul.f32.gmra.mxu0 %v1079
  %v1390 = vpop.f32.mrf.mxu0
  %v1391 = vadd.f32 %v1326, %v1390
  %1392 = vmatmul.f32.gmra.mxu0 %v1084
  %v1393 = vpop.f32.mrf.mxu0
  %v1394 = vadd.f32 %v1329, %v1393
  %1395 = vmatmul.f32.gmra.mxu0 %v1089
  %v1396 = vpop.f32.mrf.mxu0
  %v1397 = vadd.f32 %v1332, %v1396
  %1398 = vdwg.mxu0
  %1399 = vmatpush.msra.mxu0 0.0
  %1400 = vmatpush.msra.mxu0 0.0
  %1401 = vmatpush.msra.mxu0 0.0
  %1402 = vmatpush.msra.mxu0 0.0
  %1403 = vmatpush.msra.mxu0 0.0
  %1404 = vmatpush.msra.mxu0 0.0
  %1405 = vmatpush.msra.mxu0 0.0
  %1406 = vmatpush.msra.mxu0 0.0
  %1407 = vmatpush.msra.mxu0 %v85
  %1408 = vmatpush.msra.mxu0 %v84
  %1409 = vmatpush.msra.mxu0 %v83
  %1410 = vmatpush.msra.mxu0 %v82
  %1411 = vmatpush.msra.mxu0 %v81
  %1412 = vmatpush.msra.mxu0 %v80
  %1413 = vmatpush.msra.mxu0 %v79
  %1414 = vmatpush.msra.mxu0 %v78
  %1415 = vmatmul.f32.gmra.mxu0 %v1092
  %v1416 = vpop.f32.mrf.mxu0
  %v1417 = vadd.f32 %v1352, %v1416
  %1418 = vmatmul.f32.gmra.mxu0 %v1095
  %v1419 = vpop.f32.mrf.mxu0
  %v1420 = vadd.f32 %v1355, %v1419
  %1421 = vmatmul.f32.gmra.mxu0 %v1098
  %v1422 = vpop.f32.mrf.mxu0
  %v1423 = vadd.f32 %v1358, %v1422
  %1424 = vmatmul.f32.gmra.mxu0 %v1101
  %v1425 = vpop.f32.mrf.mxu0
  %v1426 = vadd.f32 %v1361, %v1425
  %1427 = vmatmul.f32.gmra.mxu0 %v1104
  %v1428 = vpop.f32.mrf.mxu0
  %v1429 = vadd.f32 %v1364, %v1428
  %1430 = vmatmul.f32.gmra.mxu0 %v1107
  %v1431 = vpop.f32.mrf.mxu0
  %v1432 = vadd.f32 %v1367, %v1431
  %1433 = vmatmul.f32.gmra.mxu0 %v1110
  %v1434 = vpop.f32.mrf.mxu0
  %v1435 = vadd.f32 %v1370, %v1434
  %1436 = vmatmul.f32.gmra.mxu0 %v1113
  %v1437 = vpop.f32.mrf.mxu0
  %v1438 = vadd.f32 %v1373, %v1437
  %1439 = vmatmul.f32.gmra.mxu0 %v1116
  %v1440 = vpop.f32.mrf.mxu0
  %v1441 = vadd.f32 %v1376, %v1440
  %1442 = vmatmul.f32.gmra.mxu0 %v1119
  %v1443 = vpop.f32.mrf.mxu0
  %v1444 = vadd.f32 %v1379, %v1443
  %1445 = vmatmul.f32.gmra.mxu0 %v1122
  %v1446 = vpop.f32.mrf.mxu0
  %v1447 = vadd.f32 %v1382, %v1446
  %1448 = vmatmul.f32.gmra.mxu0 %v1125
  %v1449 = vpop.f32.mrf.mxu0
  %v1450 = vadd.f32 %v1385, %v1449
  %1451 = vmatmul.f32.gmra.mxu0 %v1128
  %v1452 = vpop.f32.mrf.mxu0
  %v1453 = vadd.f32 %v1388, %v1452
  %1454 = vmatmul.f32.gmra.mxu0 %v1131
  %v1455 = vpop.f32.mrf.mxu0
  %v1456 = vadd.f32 %v1391, %v1455
  %1457 = vmatmul.f32.gmra.mxu0 %v1134
  %v1458 = vpop.f32.mrf.mxu0
  %v1459 = vadd.f32 %v1394, %v1458
  %1460 = vmatmul.f32.gmra.mxu0 %v1137
  %v1461 = vpop.f32.mrf.mxu0
  %v1462 = vadd.f32 %v1397, %v1461
  %1463 = vdwg.mxu0
  %v1464 = vmax.f32 %v994, %v1417
  %v1465 = vmax.f32 %v995, %v1420
  %v1466 = vmax.f32 %v996, %v1423
  %v1467 = vmax.f32 %v997, %v1426
  %v1468 = vmax.f32 %v998, %v1429
  %v1469 = vmax.f32 %v999, %v1432
  %v1470 = vmax.f32 %v1000, %v1435
  %v1471 = vmax.f32 %v1001, %v1438
  %v1472 = vmax.f32 %v1002, %v1441
  %v1473 = vmax.f32 %v1003, %v1444
  %v1474 = vmax.f32 %v1004, %v1447
  %v1475 = vmax.f32 %v1005, %v1450
  %v1476 = vmax.f32 %v1006, %v1453
  %v1477 = vmax.f32 %v1007, %v1456
  %v1478 = vmax.f32 %v1008, %v1459
  %v1479 = vmax.f32 %v1009, %v1462
  %s1480 = scalar_lea.vmem %s1, 1920
  %v1481 = vld [vmem:[%s1480] sm:$0xff]
  %v1482 = vld [vmem:[%s1480 + $0x8] sm:$0xff]
  %v1483 = vld [vmem:[%s1480 + $0x10] sm:$0xff]
  %v1484 = vld [vmem:[%s1480 + $0x18] sm:$0xff]
  %v1485 = vld [vmem:[%s1480 + $0x20] sm:$0xff]
  %v1486 = vld [vmem:[%s1480 + $0x28] sm:$0xff]
  %v1487 = vld [vmem:[%s1480 + $0x30] sm:$0xff]
  %v1488 = vld [vmem:[%s1480 + $0x38] sm:$0xff]
  %v1489 = vld [vmem:[%s1480 + $0x40] sm:$0xff]
  %v1490 = vld [vmem:[%s1480 + $0x48] sm:$0xff]
  %v1491 = vld [vmem:[%s1480 + $0x50] sm:$0xff]
  %v1492 = vld [vmem:[%s1480 + $0x58] sm:$0xff]
  %v1493 = vld [vmem:[%s1480 + $0x60] sm:$0xff]
  %v1494 = vld [vmem:[%s1480 + $0x68] sm:$0xff]
  %v1495 = vld [vmem:[%s1480 + $0x70] sm:$0xff]
  %v1496 = vld [vmem:[%s1480 + $0x78] sm:$0xff]
  %v1497 = vld [vmem:[%s1480 + $0x80] sm:$0xff]
  %v1498 = vld [vmem:[%s1480 + $0x88] sm:$0xff]
  %v1499 = vld [vmem:[%s1480 + $0x90] sm:$0xff]
  %v1500 = vld [vmem:[%s1480 + $0x98] sm:$0xff]
  %v1501 = vld [vmem:[%s1480 + $0xa0] sm:$0xff]
  %v1502 = vld [vmem:[%s1480 + $0xa8] sm:$0xff]
  %v1503 = vld [vmem:[%s1480 + $0xb0] sm:$0xff]
  %v1504 = vld [vmem:[%s1480 + $0xb8] sm:$0xff]
  %v1505 = vld [vmem:[%s1480 + $0xc0] sm:$0xff]
  %v1506 = vld [vmem:[%s1480 + $0xc8] sm:$0xff]
  %v1507 = vld [vmem:[%s1480 + $0xd0] sm:$0xff]
  %v1508 = vld [vmem:[%s1480 + $0xd8] sm:$0xff]
  %v1509 = vld [vmem:[%s1480 + $0xe0] sm:$0xff]
  %v1510 = vld [vmem:[%s1480 + $0xe8] sm:$0xff]
  %v1511 = vld [vmem:[%s1480 + $0xf0] sm:$0xff]
  %v1512 = vld [vmem:[%s1480 + $0xf8] sm:$0xff]
  %v1513 = vld [vmem:[%s1480 + $0x100] sm:$0xff]
  %v1514 = vld [vmem:[%s1480 + $0x108] sm:$0xff]
  %v1515 = vld [vmem:[%s1480 + $0x110] sm:$0xff]
  %v1516 = vld [vmem:[%s1480 + $0x118] sm:$0xff]
  %v1517 = vld [vmem:[%s1480 + $0x120] sm:$0xff]
  %v1518 = vld [vmem:[%s1480 + $0x128] sm:$0xff]
  %v1519 = vld [vmem:[%s1480 + $0x130] sm:$0xff]
  %v1520 = vld [vmem:[%s1480 + $0x138] sm:$0xff]
  %v1521 = vld [vmem:[%s1480 + $0x140] sm:$0xff]
  %v1522 = vld [vmem:[%s1480 + $0x148] sm:$0xff]
  %v1523 = vld [vmem:[%s1480 + $0x150] sm:$0xff]
  %v1524 = vld [vmem:[%s1480 + $0x158] sm:$0xff]
  %v1525 = vld [vmem:[%s1480 + $0x160] sm:$0xff]
  %v1526 = vld [vmem:[%s1480 + $0x168] sm:$0xff]
  %v1527 = vld [vmem:[%s1480 + $0x170] sm:$0xff]
  %v1528 = vld [vmem:[%s1480 + $0x178] sm:$0xff]
  %v1529 = vld [vmem:[%s1480 + $0x180] sm:$0xff]
  %v1530 = vld [vmem:[%s1480 + $0x188] sm:$0xff]
  %v1531 = vld [vmem:[%s1480 + $0x190] sm:$0xff]
  %v1532 = vld [vmem:[%s1480 + $0x198] sm:$0xff]
  %v1533 = vld [vmem:[%s1480 + $0x1a0] sm:$0xff]
  %v1534 = vld [vmem:[%s1480 + $0x1a8] sm:$0xff]
  %v1535 = vld [vmem:[%s1480 + $0x1b0] sm:$0xff]
  %v1536 = vld [vmem:[%s1480 + $0x1b8] sm:$0xff]
  %v1537 = vld [vmem:[%s1480 + $0x1c0] sm:$0xff]
  %v1538 = vld [vmem:[%s1480 + $0x1c8] sm:$0xff]
  %v1539 = vld [vmem:[%s1480 + $0x1d0] sm:$0xff]
  %v1540 = vld [vmem:[%s1480 + $0x1d8] sm:$0xff]
  %v1541 = vld [vmem:[%s1480 + $0x1e0] sm:$0xff]
  %v1542 = vld [vmem:[%s1480 + $0x1e8] sm:$0xff]
  %v1543 = vld [vmem:[%s1480 + $0x1f0] sm:$0xff]
  %v1544 = vld [vmem:[%s1480 + $0x1f8] sm:$0xff]
  %v1545 = vld [vmem:[%s1480 + $0x200] sm:$0xff]
  %v1546 = vld [vmem:[%s1480 + $0x208] sm:$0xff]
  %v1547 = vld [vmem:[%s1480 + $0x210] sm:$0xff]
  %v1548 = vld [vmem:[%s1480 + $0x218] sm:$0xff]
  %v1549 = vld [vmem:[%s1480 + $0x220] sm:$0xff]
  %v1550 = vld [vmem:[%s1480 + $0x228] sm:$0xff]
  %v1551 = vld [vmem:[%s1480 + $0x230] sm:$0xff]
  %v1552 = vld [vmem:[%s1480 + $0x238] sm:$0xff]
  %v1553 = vld [vmem:[%s1480 + $0x240] sm:$0xff]
  %v1554 = vld [vmem:[%s1480 + $0x248] sm:$0xff]
  %v1555 = vld [vmem:[%s1480 + $0x250] sm:$0xff]
  %v1556 = vld [vmem:[%s1480 + $0x258] sm:$0xff]
  %v1557 = vld [vmem:[%s1480 + $0x260] sm:$0xff]
  %v1558 = vld [vmem:[%s1480 + $0x268] sm:$0xff]
  %v1559 = vld [vmem:[%s1480 + $0x270] sm:$0xff]
  %v1560 = vld [vmem:[%s1480 + $0x278] sm:$0xff]
  %v1562 = vsel %vm166, %v1485, 0
  %v1565 = vsel %vm166, %v1490, 0
  %v1568 = vsel %vm166, %v1495, 0
  %v1571 = vsel %vm166, %v1500, 0
  %v1574 = vsel %vm166, %v1505, 0
  %v1577 = vsel %vm166, %v1510, 0
  %v1580 = vsel %vm166, %v1515, 0
  %v1583 = vsel %vm166, %v1520, 0
  %v1586 = vsel %vm166, %v1525, 0
  %v1589 = vsel %vm166, %v1530, 0
  %v1592 = vsel %vm166, %v1535, 0
  %v1595 = vsel %vm166, %v1540, 0
  %v1598 = vsel %vm166, %v1545, 0
  %v1601 = vsel %vm166, %v1550, 0
  %v1604 = vsel %vm166, %v1555, 0
  %v1607 = vsel %vm166, %v1560, 0
  %1609 = vmatpush.msra.mxu0 %v29
  %1610 = vmatpush.msra.mxu0 %v28
  %1611 = vmatpush.msra.mxu0 %v27
  %1612 = vmatpush.msra.mxu0 %v26
  %1613 = vmatpush.msra.mxu0 %v25
  %1614 = vmatpush.msra.mxu0 %v24
  %1615 = vmatpush.msra.mxu0 %v23
  %1616 = vmatpush.msra.mxu0 %v22
  %1617 = vmatpush.msra.mxu0 %v21
  %1618 = vmatpush.msra.mxu0 %v20
  %1619 = vmatpush.msra.mxu0 %v19
  %1620 = vmatpush.msra.mxu0 %v18
  %1621 = vmatpush.msra.mxu0 %v17
  %1622 = vmatpush.msra.mxu0 %v16
  %1623 = vmatpush.msra.mxu0 %v15
  %1624 = vmatpush.msra.mxu0 %v14
  %1625 = vmatmul.f32.gmra.mxu0 %v1481
  %v1626 = vpop.f32.mrf.mxu0
  %v1627 = vadd.f32 0.0, %v1626
  %1628 = vmatmul.f32.gmra.mxu0 %v1486
  %v1629 = vpop.f32.mrf.mxu0
  %v1630 = vadd.f32 0.0, %v1629
  %1631 = vmatmul.f32.gmra.mxu0 %v1491
  %v1632 = vpop.f32.mrf.mxu0
  %v1633 = vadd.f32 0.0, %v1632
  %1634 = vmatmul.f32.gmra.mxu0 %v1496
  %v1635 = vpop.f32.mrf.mxu0
  %v1636 = vadd.f32 0.0, %v1635
  %1637 = vmatmul.f32.gmra.mxu0 %v1501
  %v1638 = vpop.f32.mrf.mxu0
  %v1639 = vadd.f32 0.0, %v1638
  %1640 = vmatmul.f32.gmra.mxu0 %v1506
  %v1641 = vpop.f32.mrf.mxu0
  %v1642 = vadd.f32 0.0, %v1641
  %1643 = vmatmul.f32.gmra.mxu0 %v1511
  %v1644 = vpop.f32.mrf.mxu0
  %v1645 = vadd.f32 0.0, %v1644
  %1646 = vmatmul.f32.gmra.mxu0 %v1516
  %v1647 = vpop.f32.mrf.mxu0
  %v1648 = vadd.f32 0.0, %v1647
  %1649 = vmatmul.f32.gmra.mxu0 %v1521
  %v1650 = vpop.f32.mrf.mxu0
  %v1651 = vadd.f32 0.0, %v1650
  %1652 = vmatmul.f32.gmra.mxu0 %v1526
  %v1653 = vpop.f32.mrf.mxu0
  %v1654 = vadd.f32 0.0, %v1653
  %1655 = vmatmul.f32.gmra.mxu0 %v1531
  %v1656 = vpop.f32.mrf.mxu0
  %v1657 = vadd.f32 0.0, %v1656
  %1658 = vmatmul.f32.gmra.mxu0 %v1536
  %v1659 = vpop.f32.mrf.mxu0
  %v1660 = vadd.f32 0.0, %v1659
  %1661 = vmatmul.f32.gmra.mxu0 %v1541
  %v1662 = vpop.f32.mrf.mxu0
  %v1663 = vadd.f32 0.0, %v1662
  %1664 = vmatmul.f32.gmra.mxu0 %v1546
  %v1665 = vpop.f32.mrf.mxu0
  %v1666 = vadd.f32 0.0, %v1665
  %1667 = vmatmul.f32.gmra.mxu0 %v1551
  %v1668 = vpop.f32.mrf.mxu0
  %v1669 = vadd.f32 0.0, %v1668
  %1670 = vmatmul.f32.gmra.mxu0 %v1556
  %v1671 = vpop.f32.mrf.mxu0
  %v1672 = vadd.f32 0.0, %v1671
  %1673 = vdwg.mxu0
  %1674 = vmatpush.msra.mxu0 %v45
  %1675 = vmatpush.msra.mxu0 %v44
  %1676 = vmatpush.msra.mxu0 %v43
  %1677 = vmatpush.msra.mxu0 %v42
  %1678 = vmatpush.msra.mxu0 %v41
  %1679 = vmatpush.msra.mxu0 %v40
  %1680 = vmatpush.msra.mxu0 %v39
  %1681 = vmatpush.msra.mxu0 %v38
  %1682 = vmatpush.msra.mxu0 %v37
  %1683 = vmatpush.msra.mxu0 %v36
  %1684 = vmatpush.msra.mxu0 %v35
  %1685 = vmatpush.msra.mxu0 %v34
  %1686 = vmatpush.msra.mxu0 %v33
  %1687 = vmatpush.msra.mxu0 %v32
  %1688 = vmatpush.msra.mxu0 %v31
  %1689 = vmatpush.msra.mxu0 %v30
  %1690 = vmatmul.f32.gmra.mxu0 %v1482
  %v1691 = vpop.f32.mrf.mxu0
  %v1692 = vadd.f32 %v1627, %v1691
  %1693 = vmatmul.f32.gmra.mxu0 %v1487
  %v1694 = vpop.f32.mrf.mxu0
  %v1695 = vadd.f32 %v1630, %v1694
  %1696 = vmatmul.f32.gmra.mxu0 %v1492
  %v1697 = vpop.f32.mrf.mxu0
  %v1698 = vadd.f32 %v1633, %v1697
  %1699 = vmatmul.f32.gmra.mxu0 %v1497
  %v1700 = vpop.f32.mrf.mxu0
  %v1701 = vadd.f32 %v1636, %v1700
  %1702 = vmatmul.f32.gmra.mxu0 %v1502
  %v1703 = vpop.f32.mrf.mxu0
  %v1704 = vadd.f32 %v1639, %v1703
  %1705 = vmatmul.f32.gmra.mxu0 %v1507
  %v1706 = vpop.f32.mrf.mxu0
  %v1707 = vadd.f32 %v1642, %v1706
  %1708 = vmatmul.f32.gmra.mxu0 %v1512
  %v1709 = vpop.f32.mrf.mxu0
  %v1710 = vadd.f32 %v1645, %v1709
  %1711 = vmatmul.f32.gmra.mxu0 %v1517
  %v1712 = vpop.f32.mrf.mxu0
  %v1713 = vadd.f32 %v1648, %v1712
  %1714 = vmatmul.f32.gmra.mxu0 %v1522
  %v1715 = vpop.f32.mrf.mxu0
  %v1716 = vadd.f32 %v1651, %v1715
  %1717 = vmatmul.f32.gmra.mxu0 %v1527
  %v1718 = vpop.f32.mrf.mxu0
  %v1719 = vadd.f32 %v1654, %v1718
  %1720 = vmatmul.f32.gmra.mxu0 %v1532
  %v1721 = vpop.f32.mrf.mxu0
  %v1722 = vadd.f32 %v1657, %v1721
  %1723 = vmatmul.f32.gmra.mxu0 %v1537
  %v1724 = vpop.f32.mrf.mxu0
  %v1725 = vadd.f32 %v1660, %v1724
  %1726 = vmatmul.f32.gmra.mxu0 %v1542
  %v1727 = vpop.f32.mrf.mxu0
  %v1728 = vadd.f32 %v1663, %v1727
  %1729 = vmatmul.f32.gmra.mxu0 %v1547
  %v1730 = vpop.f32.mrf.mxu0
  %v1731 = vadd.f32 %v1666, %v1730
  %1732 = vmatmul.f32.gmra.mxu0 %v1552
  %v1733 = vpop.f32.mrf.mxu0
  %v1734 = vadd.f32 %v1669, %v1733
  %1735 = vmatmul.f32.gmra.mxu0 %v1557
  %v1736 = vpop.f32.mrf.mxu0
  %v1737 = vadd.f32 %v1672, %v1736
  %1738 = vdwg.mxu0
  %1739 = vmatpush.msra.mxu0 %v61
  %1740 = vmatpush.msra.mxu0 %v60
  %1741 = vmatpush.msra.mxu0 %v59
  %1742 = vmatpush.msra.mxu0 %v58
  %1743 = vmatpush.msra.mxu0 %v57
  %1744 = vmatpush.msra.mxu0 %v56
  %1745 = vmatpush.msra.mxu0 %v55
  %1746 = vmatpush.msra.mxu0 %v54
  %1747 = vmatpush.msra.mxu0 %v53
  %1748 = vmatpush.msra.mxu0 %v52
  %1749 = vmatpush.msra.mxu0 %v51
  %1750 = vmatpush.msra.mxu0 %v50
  %1751 = vmatpush.msra.mxu0 %v49
  %1752 = vmatpush.msra.mxu0 %v48
  %1753 = vmatpush.msra.mxu0 %v47
  %1754 = vmatpush.msra.mxu0 %v46
  %1755 = vmatmul.f32.gmra.mxu0 %v1483
  %v1756 = vpop.f32.mrf.mxu0
  %v1757 = vadd.f32 %v1692, %v1756
  %1758 = vmatmul.f32.gmra.mxu0 %v1488
  %v1759 = vpop.f32.mrf.mxu0
  %v1760 = vadd.f32 %v1695, %v1759
  %1761 = vmatmul.f32.gmra.mxu0 %v1493
  %v1762 = vpop.f32.mrf.mxu0
  %v1763 = vadd.f32 %v1698, %v1762
  %1764 = vmatmul.f32.gmra.mxu0 %v1498
  %v1765 = vpop.f32.mrf.mxu0
  %v1766 = vadd.f32 %v1701, %v1765
  %1767 = vmatmul.f32.gmra.mxu0 %v1503
  %v1768 = vpop.f32.mrf.mxu0
  %v1769 = vadd.f32 %v1704, %v1768
  %1770 = vmatmul.f32.gmra.mxu0 %v1508
  %v1771 = vpop.f32.mrf.mxu0
  %v1772 = vadd.f32 %v1707, %v1771
  %1773 = vmatmul.f32.gmra.mxu0 %v1513
  %v1774 = vpop.f32.mrf.mxu0
  %v1775 = vadd.f32 %v1710, %v1774
  %1776 = vmatmul.f32.gmra.mxu0 %v1518
  %v1777 = vpop.f32.mrf.mxu0
  %v1778 = vadd.f32 %v1713, %v1777
  %1779 = vmatmul.f32.gmra.mxu0 %v1523
  %v1780 = vpop.f32.mrf.mxu0
  %v1781 = vadd.f32 %v1716, %v1780
  %1782 = vmatmul.f32.gmra.mxu0 %v1528
  %v1783 = vpop.f32.mrf.mxu0
  %v1784 = vadd.f32 %v1719, %v1783
  %1785 = vmatmul.f32.gmra.mxu0 %v1533
  %v1786 = vpop.f32.mrf.mxu0
  %v1787 = vadd.f32 %v1722, %v1786
  %1788 = vmatmul.f32.gmra.mxu0 %v1538
  %v1789 = vpop.f32.mrf.mxu0
  %v1790 = vadd.f32 %v1725, %v1789
  %1791 = vmatmul.f32.gmra.mxu0 %v1543
  %v1792 = vpop.f32.mrf.mxu0
  %v1793 = vadd.f32 %v1728, %v1792
  %1794 = vmatmul.f32.gmra.mxu0 %v1548
  %v1795 = vpop.f32.mrf.mxu0
  %v1796 = vadd.f32 %v1731, %v1795
  %1797 = vmatmul.f32.gmra.mxu0 %v1553
  %v1798 = vpop.f32.mrf.mxu0
  %v1799 = vadd.f32 %v1734, %v1798
  %1800 = vmatmul.f32.gmra.mxu0 %v1558
  %v1801 = vpop.f32.mrf.mxu0
  %v1802 = vadd.f32 %v1737, %v1801
  %1803 = vdwg.mxu0
  %1804 = vmatpush.msra.mxu0 %v77
  %1805 = vmatpush.msra.mxu0 %v76
  %1806 = vmatpush.msra.mxu0 %v75
  %1807 = vmatpush.msra.mxu0 %v74
  %1808 = vmatpush.msra.mxu0 %v73
  %1809 = vmatpush.msra.mxu0 %v72
  %1810 = vmatpush.msra.mxu0 %v71
  %1811 = vmatpush.msra.mxu0 %v70
  %1812 = vmatpush.msra.mxu0 %v69
  %1813 = vmatpush.msra.mxu0 %v68
  %1814 = vmatpush.msra.mxu0 %v67
  %1815 = vmatpush.msra.mxu0 %v66
  %1816 = vmatpush.msra.mxu0 %v65
  %1817 = vmatpush.msra.mxu0 %v64
  %1818 = vmatpush.msra.mxu0 %v63
  %1819 = vmatpush.msra.mxu0 %v62
  %1820 = vmatmul.f32.gmra.mxu0 %v1484
  %v1821 = vpop.f32.mrf.mxu0
  %v1822 = vadd.f32 %v1757, %v1821
  %1823 = vmatmul.f32.gmra.mxu0 %v1489
  %v1824 = vpop.f32.mrf.mxu0
  %v1825 = vadd.f32 %v1760, %v1824
  %1826 = vmatmul.f32.gmra.mxu0 %v1494
  %v1827 = vpop.f32.mrf.mxu0
  %v1828 = vadd.f32 %v1763, %v1827
  %1829 = vmatmul.f32.gmra.mxu0 %v1499
  %v1830 = vpop.f32.mrf.mxu0
  %v1831 = vadd.f32 %v1766, %v1830
  %1832 = vmatmul.f32.gmra.mxu0 %v1504
  %v1833 = vpop.f32.mrf.mxu0
  %v1834 = vadd.f32 %v1769, %v1833
  %1835 = vmatmul.f32.gmra.mxu0 %v1509
  %v1836 = vpop.f32.mrf.mxu0
  %v1837 = vadd.f32 %v1772, %v1836
  %1838 = vmatmul.f32.gmra.mxu0 %v1514
  %v1839 = vpop.f32.mrf.mxu0
  %v1840 = vadd.f32 %v1775, %v1839
  %1841 = vmatmul.f32.gmra.mxu0 %v1519
  %v1842 = vpop.f32.mrf.mxu0
  %v1843 = vadd.f32 %v1778, %v1842
  %1844 = vmatmul.f32.gmra.mxu0 %v1524
  %v1845 = vpop.f32.mrf.mxu0
  %v1846 = vadd.f32 %v1781, %v1845
  %1847 = vmatmul.f32.gmra.mxu0 %v1529
  %v1848 = vpop.f32.mrf.mxu0
  %v1849 = vadd.f32 %v1784, %v1848
  %1850 = vmatmul.f32.gmra.mxu0 %v1534
  %v1851 = vpop.f32.mrf.mxu0
  %v1852 = vadd.f32 %v1787, %v1851
  %1853 = vmatmul.f32.gmra.mxu0 %v1539
  %v1854 = vpop.f32.mrf.mxu0
  %v1855 = vadd.f32 %v1790, %v1854
  %1856 = vmatmul.f32.gmra.mxu0 %v1544
  %v1857 = vpop.f32.mrf.mxu0
  %v1858 = vadd.f32 %v1793, %v1857
  %1859 = vmatmul.f32.gmra.mxu0 %v1549
  %v1860 = vpop.f32.mrf.mxu0
  %v1861 = vadd.f32 %v1796, %v1860
  %1862 = vmatmul.f32.gmra.mxu0 %v1554
  %v1863 = vpop.f32.mrf.mxu0
  %v1864 = vadd.f32 %v1799, %v1863
  %1865 = vmatmul.f32.gmra.mxu0 %v1559
  %v1866 = vpop.f32.mrf.mxu0
  %v1867 = vadd.f32 %v1802, %v1866
  %1868 = vdwg.mxu0
  %1869 = vmatpush.msra.mxu0 0.0
  %1870 = vmatpush.msra.mxu0 0.0
  %1871 = vmatpush.msra.mxu0 0.0
  %1872 = vmatpush.msra.mxu0 0.0
  %1873 = vmatpush.msra.mxu0 0.0
  %1874 = vmatpush.msra.mxu0 0.0
  %1875 = vmatpush.msra.mxu0 0.0
  %1876 = vmatpush.msra.mxu0 0.0
  %1877 = vmatpush.msra.mxu0 %v85
  %1878 = vmatpush.msra.mxu0 %v84
  %1879 = vmatpush.msra.mxu0 %v83
  %1880 = vmatpush.msra.mxu0 %v82
  %1881 = vmatpush.msra.mxu0 %v81
  %1882 = vmatpush.msra.mxu0 %v80
  %1883 = vmatpush.msra.mxu0 %v79
  %1884 = vmatpush.msra.mxu0 %v78
  %1885 = vmatmul.f32.gmra.mxu0 %v1562
  %v1886 = vpop.f32.mrf.mxu0
  %v1887 = vadd.f32 %v1822, %v1886
  %1888 = vmatmul.f32.gmra.mxu0 %v1565
  %v1889 = vpop.f32.mrf.mxu0
  %v1890 = vadd.f32 %v1825, %v1889
  %1891 = vmatmul.f32.gmra.mxu0 %v1568
  %v1892 = vpop.f32.mrf.mxu0
  %v1893 = vadd.f32 %v1828, %v1892
  %1894 = vmatmul.f32.gmra.mxu0 %v1571
  %v1895 = vpop.f32.mrf.mxu0
  %v1896 = vadd.f32 %v1831, %v1895
  %1897 = vmatmul.f32.gmra.mxu0 %v1574
  %v1898 = vpop.f32.mrf.mxu0
  %v1899 = vadd.f32 %v1834, %v1898
  %1900 = vmatmul.f32.gmra.mxu0 %v1577
  %v1901 = vpop.f32.mrf.mxu0
  %v1902 = vadd.f32 %v1837, %v1901
  %1903 = vmatmul.f32.gmra.mxu0 %v1580
  %v1904 = vpop.f32.mrf.mxu0
  %v1905 = vadd.f32 %v1840, %v1904
  %1906 = vmatmul.f32.gmra.mxu0 %v1583
  %v1907 = vpop.f32.mrf.mxu0
  %v1908 = vadd.f32 %v1843, %v1907
  %1909 = vmatmul.f32.gmra.mxu0 %v1586
  %v1910 = vpop.f32.mrf.mxu0
  %v1911 = vadd.f32 %v1846, %v1910
  %1912 = vmatmul.f32.gmra.mxu0 %v1589
  %v1913 = vpop.f32.mrf.mxu0
  %v1914 = vadd.f32 %v1849, %v1913
  %1915 = vmatmul.f32.gmra.mxu0 %v1592
  %v1916 = vpop.f32.mrf.mxu0
  %v1917 = vadd.f32 %v1852, %v1916
  %1918 = vmatmul.f32.gmra.mxu0 %v1595
  %v1919 = vpop.f32.mrf.mxu0
  %v1920 = vadd.f32 %v1855, %v1919
  %1921 = vmatmul.f32.gmra.mxu0 %v1598
  %v1922 = vpop.f32.mrf.mxu0
  %v1923 = vadd.f32 %v1858, %v1922
  %1924 = vmatmul.f32.gmra.mxu0 %v1601
  %v1925 = vpop.f32.mrf.mxu0
  %v1926 = vadd.f32 %v1861, %v1925
  %1927 = vmatmul.f32.gmra.mxu0 %v1604
  %v1928 = vpop.f32.mrf.mxu0
  %v1929 = vadd.f32 %v1864, %v1928
  %1930 = vmatmul.f32.gmra.mxu0 %v1607
  %v1931 = vpop.f32.mrf.mxu0
  %v1932 = vadd.f32 %v1867, %v1931
  %1933 = vdwg.mxu0
  %v1934 = vmax.f32 %v1464, %v1887
  %v1935 = vmax.f32 %v1465, %v1890
  %v1936 = vmax.f32 %v1466, %v1893
  %v1937 = vmax.f32 %v1467, %v1896
  %v1938 = vmax.f32 %v1468, %v1899
  %v1939 = vmax.f32 %v1469, %v1902
  %v1940 = vmax.f32 %v1470, %v1905
  %v1941 = vmax.f32 %v1471, %v1908
  %v1942 = vmax.f32 %v1472, %v1911
  %v1943 = vmax.f32 %v1473, %v1914
  %v1944 = vmax.f32 %v1474, %v1917
  %v1945 = vmax.f32 %v1475, %v1920
  %v1946 = vmax.f32 %v1476, %v1923
  %v1947 = vmax.f32 %v1477, %v1926
  %v1948 = vmax.f32 %v1478, %v1929
  %v1949 = vmax.f32 %v1479, %v1932
  %v1950 = vld [vmem:[%s2] sm:$0xff]
  %v1951 = vld [vmem:[%s2 + $0x8] sm:$0xff]
  %v1952 = vld [vmem:[%s2 + $0x10] sm:$0xff]
  %v1953 = vld [vmem:[%s2 + $0x18] sm:$0xff]
  %v1954 = vld [vmem:[%s2 + $0x20] sm:$0xff]
  %v1955 = vld [vmem:[%s2 + $0x28] sm:$0xff]
  %v1956 = vld [vmem:[%s2 + $0x30] sm:$0xff]
  %v1957 = vld [vmem:[%s2 + $0x38] sm:$0xff]
  %v1958 = vld [vmem:[%s2 + $0x40] sm:$0xff]
  %v1959 = vld [vmem:[%s2 + $0x48] sm:$0xff]
  %v1960 = vld [vmem:[%s2 + $0x50] sm:$0xff]
  %v1961 = vld [vmem:[%s2 + $0x58] sm:$0xff]
  %v1962 = vld [vmem:[%s2 + $0x60] sm:$0xff]
  %v1963 = vld [vmem:[%s2 + $0x68] sm:$0xff]
  %v1964 = vld [vmem:[%s2 + $0x70] sm:$0xff]
  %v1965 = vld [vmem:[%s2 + $0x78] sm:$0xff]
  %1967 = vset.pattern.permute.xlu0 0
  %1968 = vperm.xlu0 %1967, %v1950
  %v1969 = vpop.permute.xlu0 %1968
  %1972 = vset.pattern.permute.xlu0 0
  %1973 = vperm.xlu0 %1972, %v1951
  %v1974 = vpop.permute.xlu0 %1973
  %1977 = vset.pattern.permute.xlu0 0
  %1978 = vperm.xlu0 %1977, %v1952
  %v1979 = vpop.permute.xlu0 %1978
  %1982 = vset.pattern.permute.xlu0 0
  %1983 = vperm.xlu0 %1982, %v1953
  %v1984 = vpop.permute.xlu0 %1983
  %1987 = vset.pattern.permute.xlu0 0
  %1988 = vperm.xlu0 %1987, %v1954
  %v1989 = vpop.permute.xlu0 %1988
  %1992 = vset.pattern.permute.xlu0 0
  %1993 = vperm.xlu0 %1992, %v1955
  %v1994 = vpop.permute.xlu0 %1993
  %1997 = vset.pattern.permute.xlu0 0
  %1998 = vperm.xlu0 %1997, %v1956
  %v1999 = vpop.permute.xlu0 %1998
  %2002 = vset.pattern.permute.xlu0 0
  %2003 = vperm.xlu0 %2002, %v1957
  %v2004 = vpop.permute.xlu0 %2003
  %2007 = vset.pattern.permute.xlu0 0
  %2008 = vperm.xlu0 %2007, %v1958
  %v2009 = vpop.permute.xlu0 %2008
  %2012 = vset.pattern.permute.xlu0 0
  %2013 = vperm.xlu0 %2012, %v1959
  %v2014 = vpop.permute.xlu0 %2013
  %2017 = vset.pattern.permute.xlu0 0
  %2018 = vperm.xlu0 %2017, %v1960
  %v2019 = vpop.permute.xlu0 %2018
  %2022 = vset.pattern.permute.xlu0 0
  %2023 = vperm.xlu0 %2022, %v1961
  %v2024 = vpop.permute.xlu0 %2023
  %2027 = vset.pattern.permute.xlu0 0
  %2028 = vperm.xlu0 %2027, %v1962
  %v2029 = vpop.permute.xlu0 %2028
  %2032 = vset.pattern.permute.xlu0 0
  %2033 = vperm.xlu0 %2032, %v1963
  %v2034 = vpop.permute.xlu0 %2033
  %2037 = vset.pattern.permute.xlu0 0
  %2038 = vperm.xlu0 %2037, %v1964
  %v2039 = vpop.permute.xlu0 %2038
  %2042 = vset.pattern.permute.xlu0 0
  %2043 = vperm.xlu0 %2042, %v1965
  %v2044 = vpop.permute.xlu0 %2043
  %v2046 = vadd.f32 %v1934, %v1969
  %v2047 = vadd.f32 %v1935, %v1974
  %v2048 = vadd.f32 %v1936, %v1979
  %v2049 = vadd.f32 %v1937, %v1984
  %v2050 = vadd.f32 %v1938, %v1989
  %v2051 = vadd.f32 %v1939, %v1994
  %v2052 = vadd.f32 %v1940, %v1999
  %v2053 = vadd.f32 %v1941, %v2004
  %v2054 = vadd.f32 %v1942, %v2009
  %v2055 = vadd.f32 %v1943, %v2014
  %v2056 = vadd.f32 %v1944, %v2019
  %v2057 = vadd.f32 %v1945, %v2024
  %v2058 = vadd.f32 %v1946, %v2029
  %v2059 = vadd.f32 %v1947, %v2034
  %v2060 = vadd.f32 %v1948, %v2039
  %v2061 = vadd.f32 %v1949, %v2044
  %v2062 = vmax.f32 %v2046, 0.0
  %v2063 = vmax.f32 %v2047, 0.0
  %v2064 = vmax.f32 %v2048, 0.0
  %v2065 = vmax.f32 %v2049, 0.0
  %v2066 = vmax.f32 %v2050, 0.0
  %v2067 = vmax.f32 %v2051, 0.0
  %v2068 = vmax.f32 %v2052, 0.0
  %v2069 = vmax.f32 %v2053, 0.0
  %v2070 = vmax.f32 %v2054, 0.0
  %v2071 = vmax.f32 %v2055, 0.0
  %v2072 = vmax.f32 %v2056, 0.0
  %v2073 = vmax.f32 %v2057, 0.0
  %v2074 = vmax.f32 %v2058, 0.0
  %v2075 = vmax.f32 %v2059, 0.0
  %v2076 = vmax.f32 %v2060, 0.0
  %v2077 = vmax.f32 %v2061, 0.0
  %vm2078 = vcmask 146432
  %2079 = vst.msk [vmem:[%s3] sm:$0xff] %vm2078, %v2062
  %2080 = vst.msk [vmem:[%s3 + $0x8] sm:$0xff] %vm2078, %v2063
  %2081 = vst.msk [vmem:[%s3 + $0x10] sm:$0xff] %vm2078, %v2064
  %2082 = vst.msk [vmem:[%s3 + $0x18] sm:$0xff] %vm2078, %v2065
  %2083 = vst.msk [vmem:[%s3 + $0x20] sm:$0xff] %vm2078, %v2066
  %2084 = vst.msk [vmem:[%s3 + $0x28] sm:$0xff] %vm2078, %v2067
  %2085 = vst.msk [vmem:[%s3 + $0x30] sm:$0xff] %vm2078, %v2068
  %2086 = vst.msk [vmem:[%s3 + $0x38] sm:$0xff] %vm2078, %v2069
  %2087 = vst.msk [vmem:[%s3 + $0x40] sm:$0xff] %vm2078, %v2070
  %2088 = vst.msk [vmem:[%s3 + $0x48] sm:$0xff] %vm2078, %v2071
  %2089 = vst.msk [vmem:[%s3 + $0x50] sm:$0xff] %vm2078, %v2072
  %2090 = vst.msk [vmem:[%s3 + $0x58] sm:$0xff] %vm2078, %v2073
  %2091 = vst.msk [vmem:[%s3 + $0x60] sm:$0xff] %vm2078, %v2074
  %2092 = vst.msk [vmem:[%s3 + $0x68] sm:$0xff] %vm2078, %v2075
  %2093 = vst.msk [vmem:[%s3 + $0x70] sm:$0xff] %vm2078, %v2076
  %2094 = vst.msk [vmem:[%s3 + $0x78] sm:$0xff] %vm2078, %v2077
  // Predicated region
  $region14: #{cnn_forward.8} parent=0 // pred_check
    _
  $region15: #{cnn_forward.8} parent=0 // pred_check_branch
    %2096 = sbr.rel (0) target = $region17
  $region16: #{cnn_forward.8} parent=0 // pred_region
    _
  $region17: #{cnn_forward.8} parent=0 // pred_fallthru
    _
  // Predicated region
  $region18: #{cnn_forward.8} parent=0 // pred_check
    _
  $region19: #{cnn_forward.8} parent=0 // pred_check_branch
    %2098 = sbr.rel (0) target = $region21
  $region20: #{cnn_forward.8} parent=0 // pred_region
    _
  $region21: #{cnn_forward.8} parent=0 // pred_fallthru
    _

// kernel: cnn_forward.9
$region0: #{cnn_forward.9}
  #allocation0 [shape = 'u32[]', space=smem, size = 0x4, offset = 0x4, fixed_abs, tag = 'smem constant byte address 0x4 - core index']
  #allocation1 [shape = 'u32[72,128]{1,0:T(1,128)}', space=vmem, size = 0x9000, scoped, tag = 'internal scratch']
  %s0 = inlined_call_operand.vmem [shape: f32[1152,2], index: 0, kind: input, shape index: {}]
  %s1 = inlined_call_operand.vmem [shape: f32[4,256,1152], index: 1, kind: input, shape index: {}]
  %s2 = inlined_call_operand.vmem [shape: f32[256,1], index: 2, kind: input, shape index: {}]
  %s3 = inlined_call_operand.vmem [shape: f32[128,256], index: 3, kind: input, shape index: {}]
  %s4 = inlined_call_operand.vmem [shape: f32[128,1], index: 4, kind: input, shape index: {}]
  %s5 = inlined_call_operand.vmem [shape: f32[2,128], index: 5, kind: input, shape index: {}]
  %s6 = inlined_call_operand.vmem [shape: f32[2,1], index: 6, kind: input, shape index: {}]
  %s7 = inlined_call_operand.vmem [shape: f32[2,2], index: 7, kind: output, shape index: {}]
  %s8 = sld [smem:[#allocation0]]
  $region38: #{cnn_forward.9} parent=0
    _
  %s10 = ssub.s32 1, %s8
  %s11 = scalar_select 0, %s10, %s8
  // Predicated region
  $region2: #{cnn_forward.9} parent=0 // pred_check
    _
  $region3: #{cnn_forward.9} parent=0 // pred_check_branch
    %13 = sbr.rel (0) target = $region5
  $region4: #{cnn_forward.9} parent=0 // pred_region
    _
  $region5: #{cnn_forward.9} parent=0 // pred_fallthru
    _
  // Predicated region
  $region6: #{cnn_forward.9} parent=0 // pred_check
    _
  $region7: #{cnn_forward.9} parent=0 // pred_check_branch
    %15 = sbr.rel (0) target = $region9
  $region8: #{cnn_forward.9} parent=0 // pred_region
    _
  $region9: #{cnn_forward.9} parent=0 // pred_fallthru
    _
  // Predicated region
  $region10: #{cnn_forward.9} parent=0 // pred_check
    _
  $region11: #{cnn_forward.9} parent=0 // pred_check_branch
    %17 = sbr.rel (0) target = $region13
  $region12: #{cnn_forward.9} parent=0 // pred_region
    _
  $region13: #{cnn_forward.9} parent=0 // pred_fallthru
    _
  // Predicated region
  $region14: #{cnn_forward.9} parent=0 // pred_check
    _
  $region15: #{cnn_forward.9} parent=0 // pred_check_branch
    %19 = sbr.rel (0) target = $region17
  $region16: #{cnn_forward.9} parent=0 // pred_region
    _
  $region17: #{cnn_forward.9} parent=0 // pred_fallthru
    _
  // Predicated region
  $region18: #{cnn_forward.9} parent=0 // pred_check
    _
  $region19: #{cnn_forward.9} parent=0 // pred_check_branch
    %21 = sbr.rel (0) target = $region21
  $region20: #{cnn_forward.9} parent=0 // pred_region
    _
  $region21: #{cnn_forward.9} parent=0 // pred_fallthru
    _
  // Predicated region
  $region22: #{cnn_forward.9} parent=0 // pred_check
    _
  $region23: #{cnn_forward.9} parent=0 // pred_check_branch
    %23 = sbr.rel (0) target = $region25
  $region24: #{cnn_forward.9} parent=0 // pred_region
    _
  $region25: #{cnn_forward.9} parent=0 // pred_fallthru
    _
  // Predicated region
  $region26: #{cnn_forward.9} parent=0 // pred_check
    _
  $region27: #{cnn_forward.9} parent=0 // pred_check_branch
    %25 = sbr.rel (0) target = $region29
  $region28: #{cnn_forward.9} parent=0 // pred_region
    _
  $region29: #{cnn_forward.9} parent=0 // pred_fallthru
    _
  %v26 = vld [vmem:[%s0] sm:$0xff]
  %v27 = vld [vmem:[%s0 + $0x8] sm:$0xff]
  %v28 = vld [vmem:[%s0 + $0x10] sm:$0xff]
  %v29 = vld [vmem:[%s0 + $0x18] sm:$0xff]
  %v30 = vld [vmem:[%s0 + $0x20] sm:$0xff]
  %v31 = vld [vmem:[%s0 + $0x28] sm:$0xff]
  %v32 = vld [vmem:[%s0 + $0x30] sm:$0xff]
  %v33 = vld [vmem:[%s0 + $0x38] sm:$0xff]
  %v34 = vld [vmem:[%s0 + $0x40] sm:$0xff]
  %v35 = vld [vmem:[%s0 + $0x48] sm:$0xff]
  %v36 = vld [vmem:[%s0 + $0x50] sm:$0xff]
  %v37 = vld [vmem:[%s0 + $0x58] sm:$0xff]
  %v38 = vld [vmem:[%s0 + $0x60] sm:$0xff]
  %v39 = vld [vmem:[%s0 + $0x68] sm:$0xff]
  %v40 = vld [vmem:[%s0 + $0x70] sm:$0xff]
  %v41 = vld [vmem:[%s0 + $0x78] sm:$0xff]
  %v42 = vld [vmem:[%s0 + $0x80] sm:$0xff]
  %v43 = vld [vmem:[%s0 + $0x88] sm:$0xff]
  %v44 = vld [vmem:[%s0 + $0x90] sm:$0xff]
  %v45 = vld [vmem:[%s0 + $0x98] sm:$0xff]
  %v46 = vld [vmem:[%s0 + $0xa0] sm:$0xff]
  %v47 = vld [vmem:[%s0 + $0xa8] sm:$0xff]
  %v48 = vld [vmem:[%s0 + $0xb0] sm:$0xff]
  %v49 = vld [vmem:[%s0 + $0xb8] sm:$0xff]
  %v50 = vld [vmem:[%s0 + $0xc0] sm:$0xff]
  %v51 = vld [vmem:[%s0 + $0xc8] sm:$0xff]
  %v52 = vld [vmem:[%s0 + $0xd0] sm:$0xff]
  %v53 = vld [vmem:[%s0 + $0xd8] sm:$0xff]
  %v54 = vld [vmem:[%s0 + $0xe0] sm:$0xff]
  %v55 = vld [vmem:[%s0 + $0xe8] sm:$0xff]
  %v56 = vld [vmem:[%s0 + $0xf0] sm:$0xff]
  %v57 = vld [vmem:[%s0 + $0xf8] sm:$0xff]
  %v58 = vld [vmem:[%s0 + $0x100] sm:$0xff]
  %v59 = vld [vmem:[%s0 + $0x108] sm:$0xff]
  %v60 = vld [vmem:[%s0 + $0x110] sm:$0xff]
  %v61 = vld [vmem:[%s0 + $0x118] sm:$0xff]
  %v62 = vld [vmem:[%s0 + $0x120] sm:$0xff]
  %v63 = vld [vmem:[%s0 + $0x128] sm:$0xff]
  %v64 = vld [vmem:[%s0 + $0x130] sm:$0xff]
  %v65 = vld [vmem:[%s0 + $0x138] sm:$0xff]
  %v66 = vld [vmem:[%s0 + $0x140] sm:$0xff]
  %v67 = vld [vmem:[%s0 + $0x148] sm:$0xff]
  %v68 = vld [vmem:[%s0 + $0x150] sm:$0xff]
  %v69 = vld [vmem:[%s0 + $0x158] sm:$0xff]
  %v70 = vld [vmem:[%s0 + $0x160] sm:$0xff]
  %v71 = vld [vmem:[%s0 + $0x168] sm:$0xff]
  %v72 = vld [vmem:[%s0 + $0x170] sm:$0xff]
  %v73 = vld [vmem:[%s0 + $0x178] sm:$0xff]
  %v74 = vld [vmem:[%s0 + $0x180] sm:$0xff]
  %v75 = vld [vmem:[%s0 + $0x188] sm:$0xff]
  %v76 = vld [vmem:[%s0 + $0x190] sm:$0xff]
  %v77 = vld [vmem:[%s0 + $0x198] sm:$0xff]
  %v78 = vld [vmem:[%s0 + $0x1a0] sm:$0xff]
  %v79 = vld [vmem:[%s0 + $0x1a8] sm:$0xff]
  %v80 = vld [vmem:[%s0 + $0x1b0] sm:$0xff]
  %v81 = vld [vmem:[%s0 + $0x1b8] sm:$0xff]
  %v82 = vld [vmem:[%s0 + $0x1c0] sm:$0xff]
  %v83 = vld [vmem:[%s0 + $0x1c8] sm:$0xff]
  %v84 = vld [vmem:[%s0 + $0x1d0] sm:$0xff]
  %v85 = vld [vmem:[%s0 + $0x1d8] sm:$0xff]
  %v86 = vld [vmem:[%s0 + $0x1e0] sm:$0xff]
  %v87 = vld [vmem:[%s0 + $0x1e8] sm:$0xff]
  %v88 = vld [vmem:[%s0 + $0x1f0] sm:$0xff]
  %v89 = vld [vmem:[%s0 + $0x1f8] sm:$0xff]
  %v90 = vld [vmem:[%s0 + $0x200] sm:$0xff]
  %v91 = vld [vmem:[%s0 + $0x208] sm:$0xff]
  %v92 = vld [vmem:[%s0 + $0x210] sm:$0xff]
  %v93 = vld [vmem:[%s0 + $0x218] sm:$0xff]
  %v94 = vld [vmem:[%s0 + $0x220] sm:$0xff]
  %v95 = vld [vmem:[%s0 + $0x228] sm:$0xff]
  %v96 = vld [vmem:[%s0 + $0x230] sm:$0xff]
  %v97 = vld [vmem:[%s0 + $0x238] sm:$0xff]
  %v98 = vld [vmem:[%s0 + $0x240] sm:$0xff]
  %v99 = vld [vmem:[%s0 + $0x248] sm:$0xff]
  %v100 = vld [vmem:[%s0 + $0x250] sm:$0xff]
  %v101 = vld [vmem:[%s0 + $0x258] sm:$0xff]
  %v102 = vld [vmem:[%s0 + $0x260] sm:$0xff]
  %v103 = vld [vmem:[%s0 + $0x268] sm:$0xff]
  %v104 = vld [vmem:[%s0 + $0x270] sm:$0xff]
  %v105 = vld [vmem:[%s0 + $0x278] sm:$0xff]
  %v106 = vld [vmem:[%s0 + $0x280] sm:$0xff]
  %v107 = vld [vmem:[%s0 + $0x288] sm:$0xff]
  %v108 = vld [vmem:[%s0 + $0x290] sm:$0xff]
  %v109 = vld [vmem:[%s0 + $0x298] sm:$0xff]
  %v110 = vld [vmem:[%s0 + $0x2a0] sm:$0xff]
  %v111 = vld [vmem:[%s0 + $0x2a8] sm:$0xff]
  %v112 = vld [vmem:[%s0 + $0x2b0] sm:$0xff]
  %v113 = vld [vmem:[%s0 + $0x2b8] sm:$0xff]
  %v114 = vld [vmem:[%s0 + $0x2c0] sm:$0xff]
  %v115 = vld [vmem:[%s0 + $0x2c8] sm:$0xff]
  %v116 = vld [vmem:[%s0 + $0x2d0] sm:$0xff]
  %v117 = vld [vmem:[%s0 + $0x2d8] sm:$0xff]
  %v118 = vld [vmem:[%s0 + $0x2e0] sm:$0xff]
  %v119 = vld [vmem:[%s0 + $0x2e8] sm:$0xff]
  %v120 = vld [vmem:[%s0 + $0x2f0] sm:$0xff]
  %v121 = vld [vmem:[%s0 + $0x2f8] sm:$0xff]
  %v122 = vld [vmem:[%s0 + $0x300] sm:$0xff]
  %v123 = vld [vmem:[%s0 + $0x308] sm:$0xff]
  %v124 = vld [vmem:[%s0 + $0x310] sm:$0xff]
  %v125 = vld [vmem:[%s0 + $0x318] sm:$0xff]
  %v126 = vld [vmem:[%s0 + $0x320] sm:$0xff]
  %v127 = vld [vmem:[%s0 + $0x328] sm:$0xff]
  %v128 = vld [vmem:[%s0 + $0x330] sm:$0xff]
  %v129 = vld [vmem:[%s0 + $0x338] sm:$0xff]
  %v130 = vld [vmem:[%s0 + $0x340] sm:$0xff]
  %v131 = vld [vmem:[%s0 + $0x348] sm:$0xff]
  %v132 = vld [vmem:[%s0 + $0x350] sm:$0xff]
  %v133 = vld [vmem:[%s0 + $0x358] sm:$0xff]
  %v134 = vld [vmem:[%s0 + $0x360] sm:$0xff]
  %v135 = vld [vmem:[%s0 + $0x368] sm:$0xff]
  %v136 = vld [vmem:[%s0 + $0x370] sm:$0xff]
  %v137 = vld [vmem:[%s0 + $0x378] sm:$0xff]
  %v138 = vld [vmem:[%s0 + $0x380] sm:$0xff]
  %v139 = vld [vmem:[%s0 + $0x388] sm:$0xff]
  %v140 = vld [vmem:[%s0 + $0x390] sm:$0xff]
  %v141 = vld [vmem:[%s0 + $0x398] sm:$0xff]
  %v142 = vld [vmem:[%s0 + $0x3a0] sm:$0xff]
  %v143 = vld [vmem:[%s0 + $0x3a8] sm:$0xff]
  %v144 = vld [vmem:[%s0 + $0x3b0] sm:$0xff]
  %v145 = vld [vmem:[%s0 + $0x3b8] sm:$0xff]
  %v146 = vld [vmem:[%s0 + $0x3c0] sm:$0xff]
  %v147 = vld [vmem:[%s0 + $0x3c8] sm:$0xff]
  %v148 = vld [vmem:[%s0 + $0x3d0] sm:$0xff]
  %v149 = vld [vmem:[%s0 + $0x3d8] sm:$0xff]
  %v150 = vld [vmem:[%s0 + $0x3e0] sm:$0xff]
  %v151 = vld [vmem:[%s0 + $0x3e8] sm:$0xff]
  %v152 = vld [vmem:[%s0 + $0x3f0] sm:$0xff]
  %v153 = vld [vmem:[%s0 + $0x3f8] sm:$0xff]
  %v154 = vld [vmem:[%s0 + $0x400] sm:$0xff]
  %v155 = vld [vmem:[%s0 + $0x408] sm:$0xff]
  %v156 = vld [vmem:[%s0 + $0x410] sm:$0xff]
  %v157 = vld [vmem:[%s0 + $0x418] sm:$0xff]
  %v158 = vld [vmem:[%s0 + $0x420] sm:$0xff]
  %v159 = vld [vmem:[%s0 + $0x428] sm:$0xff]
  %v160 = vld [vmem:[%s0 + $0x430] sm:$0xff]
  %v161 = vld [vmem:[%s0 + $0x438] sm:$0xff]
  %v162 = vld [vmem:[%s0 + $0x440] sm:$0xff]
  %v163 = vld [vmem:[%s0 + $0x448] sm:$0xff]
  %v164 = vld [vmem:[%s0 + $0x450] sm:$0xff]
  %v165 = vld [vmem:[%s0 + $0x458] sm:$0xff]
  %v166 = vld [vmem:[%s0 + $0x460] sm:$0xff]
  %v167 = vld [vmem:[%s0 + $0x468] sm:$0xff]
  %v168 = vld [vmem:[%s0 + $0x470] sm:$0xff]
  %v169 = vld [vmem:[%s0 + $0x478] sm:$0xff]
  %v170 = vld [vmem:[%s1] sm:$0xff]
  %v171 = vld [vmem:[%s1 + $0x8] sm:$0xff]
  %v172 = vld [vmem:[%s1 + $0x10] sm:$0xff]
  %v173 = vld [vmem:[%s1 + $0x18] sm:$0xff]
  %v174 = vld [vmem:[%s1 + $0x20] sm:$0xff]
  %v175 = vld [vmem:[%s1 + $0x28] sm:$0xff]
  %v176 = vld [vmem:[%s1 + $0x30] sm:$0xff]
  %v177 = vld [vmem:[%s1 + $0x38] sm:$0xff]
  %v178 = vld [vmem:[%s1 + $0x40] sm:$0xff]
  %v179 = vld [vmem:[%s1 + $0x48] sm:$0xff]
  %v180 = vld [vmem:[%s1 + $0x50] sm:$0xff]
  %v181 = vld [vmem:[%s1 + $0x58] sm:$0xff]
  %v182 = vld [vmem:[%s1 + $0x60] sm:$0xff]
  %v183 = vld [vmem:[%s1 + $0x68] sm:$0xff]
  %v184 = vld [vmem:[%s1 + $0x70] sm:$0xff]
  %v185 = vld [vmem:[%s1 + $0x78] sm:$0xff]
  %v186 = vld [vmem:[%s1 + $0x80] sm:$0xff]
  %v187 = vld [vmem:[%s1 + $0x88] sm:$0xff]
  %v188 = vld [vmem:[%s1 + $0x90] sm:$0xff]
  %v189 = vld [vmem:[%s1 + $0x98] sm:$0xff]
  %v190 = vld [vmem:[%s1 + $0xa0] sm:$0xff]
  %v191 = vld [vmem:[%s1 + $0xa8] sm:$0xff]
  %v192 = vld [vmem:[%s1 + $0xb0] sm:$0xff]
  %v193 = vld [vmem:[%s1 + $0xb8] sm:$0xff]
  %v194 = vld [vmem:[%s1 + $0xc0] sm:$0xff]
  %v195 = vld [vmem:[%s1 + $0xc8] sm:$0xff]
  %v196 = vld [vmem:[%s1 + $0xd0] sm:$0xff]
  %v197 = vld [vmem:[%s1 + $0xd8] sm:$0xff]
  %v198 = vld [vmem:[%s1 + $0xe0] sm:$0xff]
  %v199 = vld [vmem:[%s1 + $0xe8] sm:$0xff]
  %v200 = vld [vmem:[%s1 + $0xf0] sm:$0xff]
  %v201 = vld [vmem:[%s1 + $0xf8] sm:$0xff]
  %v202 = vld [vmem:[%s1 + $0x100] sm:$0xff]
  %v203 = vld [vmem:[%s1 + $0x108] sm:$0xff]
  %v204 = vld [vmem:[%s1 + $0x110] sm:$0xff]
  %v205 = vld [vmem:[%s1 + $0x118] sm:$0xff]
  %v206 = vld [vmem:[%s1 + $0x120] sm:$0xff]
  %v207 = vld [vmem:[%s1 + $0x128] sm:$0xff]
  %v208 = vld [vmem:[%s1 + $0x130] sm:$0xff]
  %v209 = vld [vmem:[%s1 + $0x138] sm:$0xff]
  %v210 = vld [vmem:[%s1 + $0x140] sm:$0xff]
  %v211 = vld [vmem:[%s1 + $0x148] sm:$0xff]
  %v212 = vld [vmem:[%s1 + $0x150] sm:$0xff]
  %v213 = vld [vmem:[%s1 + $0x158] sm:$0xff]
  %v214 = vld [vmem:[%s1 + $0x160] sm:$0xff]
  %v215 = vld [vmem:[%s1 + $0x168] sm:$0xff]
  %v216 = vld [vmem:[%s1 + $0x170] sm:$0xff]
  %v217 = vld [vmem:[%s1 + $0x178] sm:$0xff]
  %v218 = vld [vmem:[%s1 + $0x180] sm:$0xff]
  %v219 = vld [vmem:[%s1 + $0x188] sm:$0xff]
  %v220 = vld [vmem:[%s1 + $0x190] sm:$0xff]
  %v221 = vld [vmem:[%s1 + $0x198] sm:$0xff]
  %v222 = vld [vmem:[%s1 + $0x1a0] sm:$0xff]
  %v223 = vld [vmem:[%s1 + $0x1a8] sm:$0xff]
  %v224 = vld [vmem:[%s1 + $0x1b0] sm:$0xff]
  %v225 = vld [vmem:[%s1 + $0x1b8] sm:$0xff]
  %v226 = vld [vmem:[%s1 + $0x1c0] sm:$0xff]
  %v227 = vld [vmem:[%s1 + $0x1c8] sm:$0xff]
  %v228 = vld [vmem:[%s1 + $0x1d0] sm:$0xff]
  %v229 = vld [vmem:[%s1 + $0x1d8] sm:$0xff]
  %v230 = vld [vmem:[%s1 + $0x1e0] sm:$0xff]
  %v231 = vld [vmem:[%s1 + $0x1e8] sm:$0xff]
  %v232 = vld [vmem:[%s1 + $0x1f0] sm:$0xff]
  %v233 = vld [vmem:[%s1 + $0x1f8] sm:$0xff]
  %v234 = vld [vmem:[%s1 + $0x200] sm:$0xff]
  %v235 = vld [vmem:[%s1 + $0x208] sm:$0xff]
  %v236 = vld [vmem:[%s1 + $0x210] sm:$0xff]
  %v237 = vld [vmem:[%s1 + $0x218] sm:$0xff]
  %v238 = vld [vmem:[%s1 + $0x220] sm:$0xff]
  %v239 = vld [vmem:[%s1 + $0x228] sm:$0xff]
  %v240 = vld [vmem:[%s1 + $0x230] sm:$0xff]
  %v241 = vld [vmem:[%s1 + $0x238] sm:$0xff]
  %v242 = vld [vmem:[%s1 + $0x240] sm:$0xff]
  %v243 = vld [vmem:[%s1 + $0x248] sm:$0xff]
  %v244 = vld [vmem:[%s1 + $0x250] sm:$0xff]
  %v245 = vld [vmem:[%s1 + $0x258] sm:$0xff]
  %v246 = vld [vmem:[%s1 + $0x260] sm:$0xff]
  %v247 = vld [vmem:[%s1 + $0x268] sm:$0xff]
  %v248 = vld [vmem:[%s1 + $0x270] sm:$0xff]
  %v249 = vld [vmem:[%s1 + $0x278] sm:$0xff]
  %v250 = vld [vmem:[%s1 + $0x280] sm:$0xff]
  %v251 = vld [vmem:[%s1 + $0x288] sm:$0xff]
  %v252 = vld [vmem:[%s1 + $0x290] sm:$0xff]
  %v253 = vld [vmem:[%s1 + $0x298] sm:$0xff]
  %v254 = vld [vmem:[%s1 + $0x2a0] sm:$0xff]
  %v255 = vld [vmem:[%s1 + $0x2a8] sm:$0xff]
  %v256 = vld [vmem:[%s1 + $0x2b0] sm:$0xff]
  %v257 = vld [vmem:[%s1 + $0x2b8] sm:$0xff]
  %v258 = vld [vmem:[%s1 + $0x2c0] sm:$0xff]
  %v259 = vld [vmem:[%s1 + $0x2c8] sm:$0xff]
  %v260 = vld [vmem:[%s1 + $0x2d0] sm:$0xff]
  %v261 = vld [vmem:[%s1 + $0x2d8] sm:$0xff]
  %v262 = vld [vmem:[%s1 + $0x2e0] sm:$0xff]
  %v263 = vld [vmem:[%s1 + $0x2e8] sm:$0xff]
  %v264 = vld [vmem:[%s1 + $0x2f0] sm:$0xff]
  %v265 = vld [vmem:[%s1 + $0x2f8] sm:$0xff]
  %v266 = vld [vmem:[%s1 + $0x300] sm:$0xff]
  %v267 = vld [vmem:[%s1 + $0x308] sm:$0xff]
  %v268 = vld [vmem:[%s1 + $0x310] sm:$0xff]
  %v269 = vld [vmem:[%s1 + $0x318] sm:$0xff]
  %v270 = vld [vmem:[%s1 + $0x320] sm:$0xff]
  %v271 = vld [vmem:[%s1 + $0x328] sm:$0xff]
  %v272 = vld [vmem:[%s1 + $0x330] sm:$0xff]
  %v273 = vld [vmem:[%s1 + $0x338] sm:$0xff]
  %v274 = vld [vmem:[%s1 + $0x340] sm:$0xff]
  %v275 = vld [vmem:[%s1 + $0x348] sm:$0xff]
  %v276 = vld [vmem:[%s1 + $0x350] sm:$0xff]
  %v277 = vld [vmem:[%s1 + $0x358] sm:$0xff]
  %v278 = vld [vmem:[%s1 + $0x360] sm:$0xff]
  %v279 = vld [vmem:[%s1 + $0x368] sm:$0xff]
  %v280 = vld [vmem:[%s1 + $0x370] sm:$0xff]
  %v281 = vld [vmem:[%s1 + $0x378] sm:$0xff]
  %v282 = vld [vmem:[%s1 + $0x380] sm:$0xff]
  %v283 = vld [vmem:[%s1 + $0x388] sm:$0xff]
  %v284 = vld [vmem:[%s1 + $0x390] sm:$0xff]
  %v285 = vld [vmem:[%s1 + $0x398] sm:$0xff]
  %v286 = vld [vmem:[%s1 + $0x3a0] sm:$0xff]
  %v287 = vld [vmem:[%s1 + $0x3a8] sm:$0xff]
  %v288 = vld [vmem:[%s1 + $0x3b0] sm:$0xff]
  %v289 = vld [vmem:[%s1 + $0x3b8] sm:$0xff]
  %v290 = vld [vmem:[%s1 + $0x3c0] sm:$0xff]
  %v291 = vld [vmem:[%s1 + $0x3c8] sm:$0xff]
  %v292 = vld [vmem:[%s1 + $0x3d0] sm:$0xff]
  %v293 = vld [vmem:[%s1 + $0x3d8] sm:$0xff]
  %v294 = vld [vmem:[%s1 + $0x3e0] sm:$0xff]
  %v295 = vld [vmem:[%s1 + $0x3e8] sm:$0xff]
  %v296 = vld [vmem:[%s1 + $0x3f0] sm:$0xff]
  %v297 = vld [vmem:[%s1 + $0x3f8] sm:$0xff]
  %v298 = vld [vmem:[%s1 + $0x400] sm:$0xff]
  %v299 = vld [vmem:[%s1 + $0x408] sm:$0xff]
  %v300 = vld [vmem:[%s1 + $0x410] sm:$0xff]
  %v301 = vld [vmem:[%s1 + $0x418] sm:$0xff]
  %v302 = vld [vmem:[%s1 + $0x420] sm:$0xff]
  %v303 = vld [vmem:[%s1 + $0x428] sm:$0xff]
  %v304 = vld [vmem:[%s1 + $0x430] sm:$0xff]
  %v305 = vld [vmem:[%s1 + $0x438] sm:$0xff]
  %v306 = vld [vmem:[%s1 + $0x440] sm:$0xff]
  %v307 = vld [vmem:[%s1 + $0x448] sm:$0xff]
  %v308 = vld [vmem:[%s1 + $0x450] sm:$0xff]
  %v309 = vld [vmem:[%s1 + $0x458] sm:$0xff]
  %v310 = vld [vmem:[%s1 + $0x460] sm:$0xff]
  %v311 = vld [vmem:[%s1 + $0x468] sm:$0xff]
  %v312 = vld [vmem:[%s1 + $0x470] sm:$0xff]
  %v313 = vld [vmem:[%s1 + $0x478] sm:$0xff]
  %v314 = vld [vmem:[%s1 + $0x480] sm:$0xff]
  %v315 = vld [vmem:[%s1 + $0x488] sm:$0xff]
  %v316 = vld [vmem:[%s1 + $0x490] sm:$0xff]
  %v317 = vld [vmem:[%s1 + $0x498] sm:$0xff]
  %v318 = vld [vmem:[%s1 + $0x4a0] sm:$0xff]
  %v319 = vld [vmem:[%s1 + $0x4a8] sm:$0xff]
  %v320 = vld [vmem:[%s1 + $0x4b0] sm:$0xff]
  %v321 = vld [vmem:[%s1 + $0x4b8] sm:$0xff]
  %v322 = vld [vmem:[%s1 + $0x4c0] sm:$0xff]
  %v323 = vld [vmem:[%s1 + $0x4c8] sm:$0xff]
  %v324 = vld [vmem:[%s1 + $0x4d0] sm:$0xff]
  %v325 = vld [vmem:[%s1 + $0x4d8] sm:$0xff]
  %v326 = vld [vmem:[%s1 + $0x4e0] sm:$0xff]
  %v327 = vld [vmem:[%s1 + $0x4e8] sm:$0xff]
  %v328 = vld [vmem:[%s1 + $0x4f0] sm:$0xff]
  %v329 = vld [vmem:[%s1 + $0x4f8] sm:$0xff]
  %v330 = vld [vmem:[%s1 + $0x500] sm:$0xff]
  %v331 = vld [vmem:[%s1 + $0x508] sm:$0xff]
  %v332 = vld [vmem:[%s1 + $0x510] sm:$0xff]
  %v333 = vld [vmem:[%s1 + $0x518] sm:$0xff]
  %v334 = vld [vmem:[%s1 + $0x520] sm:$0xff]
  %v335 = vld [vmem:[%s1 + $0x528] sm:$0xff]
  %v336 = vld [vmem:[%s1 + $0x530] sm:$0xff]
  %v337 = vld [vmem:[%s1 + $0x538] sm:$0xff]
  %v338 = vld [vmem:[%s1 + $0x540] sm:$0xff]
  %v339 = vld [vmem:[%s1 + $0x548] sm:$0xff]
  %v340 = vld [vmem:[%s1 + $0x550] sm:$0xff]
  %v341 = vld [vmem:[%s1 + $0x558] sm:$0xff]
  %v342 = vld [vmem:[%s1 + $0x560] sm:$0xff]
  %v343 = vld [vmem:[%s1 + $0x568] sm:$0xff]
  %v344 = vld [vmem:[%s1 + $0x570] sm:$0xff]
  %v345 = vld [vmem:[%s1 + $0x578] sm:$0xff]
  %v346 = vld [vmem:[%s1 + $0x580] sm:$0xff]
  %v347 = vld [vmem:[%s1 + $0x588] sm:$0xff]
  %v348 = vld [vmem:[%s1 + $0x590] sm:$0xff]
  %v349 = vld [vmem:[%s1 + $0x598] sm:$0xff]
  %v350 = vld [vmem:[%s1 + $0x5a0] sm:$0xff]
  %v351 = vld [vmem:[%s1 + $0x5a8] sm:$0xff]
  %v352 = vld [vmem:[%s1 + $0x5b0] sm:$0xff]
  %v353 = vld [vmem:[%s1 + $0x5b8] sm:$0xff]
  %v354 = vld [vmem:[%s1 + $0x5c0] sm:$0xff]
  %v355 = vld [vmem:[%s1 + $0x5c8] sm:$0xff]
  %v356 = vld [vmem:[%s1 + $0x5d0] sm:$0xff]
  %v357 = vld [vmem:[%s1 + $0x5d8] sm:$0xff]
  %v358 = vld [vmem:[%s1 + $0x5e0] sm:$0xff]
  %v359 = vld [vmem:[%s1 + $0x5e8] sm:$0xff]
  %v360 = vld [vmem:[%s1 + $0x5f0] sm:$0xff]
  %v361 = vld [vmem:[%s1 + $0x5f8] sm:$0xff]
  %v362 = vld [vmem:[%s1 + $0x600] sm:$0xff]
  %v363 = vld [vmem:[%s1 + $0x608] sm:$0xff]
  %v364 = vld [vmem:[%s1 + $0x610] sm:$0xff]
  %v365 = vld [vmem:[%s1 + $0x618] sm:$0xff]
  %v366 = vld [vmem:[%s1 + $0x620] sm:$0xff]
  %v367 = vld [vmem:[%s1 + $0x628] sm:$0xff]
  %v368 = vld [vmem:[%s1 + $0x630] sm:$0xff]
  %v369 = vld [vmem:[%s1 + $0x638] sm:$0xff]
  %v370 = vld [vmem:[%s1 + $0x640] sm:$0xff]
  %v371 = vld [vmem:[%s1 + $0x648] sm:$0xff]
  %v372 = vld [vmem:[%s1 + $0x650] sm:$0xff]
  %v373 = vld [vmem:[%s1 + $0x658] sm:$0xff]
  %v374 = vld [vmem:[%s1 + $0x660] sm:$0xff]
  %v375 = vld [vmem:[%s1 + $0x668] sm:$0xff]
  %v376 = vld [vmem:[%s1 + $0x670] sm:$0xff]
  %v377 = vld [vmem:[%s1 + $0x678] sm:$0xff]
  %v378 = vld [vmem:[%s1 + $0x680] sm:$0xff]
  %v379 = vld [vmem:[%s1 + $0x688] sm:$0xff]
  %v380 = vld [vmem:[%s1 + $0x690] sm:$0xff]
  %v381 = vld [vmem:[%s1 + $0x698] sm:$0xff]
  %v382 = vld [vmem:[%s1 + $0x6a0] sm:$0xff]
  %v383 = vld [vmem:[%s1 + $0x6a8] sm:$0xff]
  %v384 = vld [vmem:[%s1 + $0x6b0] sm:$0xff]
  %v385 = vld [vmem:[%s1 + $0x6b8] sm:$0xff]
  %v386 = vld [vmem:[%s1 + $0x6c0] sm:$0xff]
  %v387 = vld [vmem:[%s1 + $0x6c8] sm:$0xff]
  %v388 = vld [vmem:[%s1 + $0x6d0] sm:$0xff]
  %v389 = vld [vmem:[%s1 + $0x6d8] sm:$0xff]
  %v390 = vld [vmem:[%s1 + $0x6e0] sm:$0xff]
  %v391 = vld [vmem:[%s1 + $0x6e8] sm:$0xff]
  %v392 = vld [vmem:[%s1 + $0x6f0] sm:$0xff]
  %v393 = vld [vmem:[%s1 + $0x6f8] sm:$0xff]
  %v394 = vld [vmem:[%s1 + $0x700] sm:$0xff]
  %v395 = vld [vmem:[%s1 + $0x708] sm:$0xff]
  %v396 = vld [vmem:[%s1 + $0x710] sm:$0xff]
  %v397 = vld [vmem:[%s1 + $0x718] sm:$0xff]
  %v398 = vld [vmem:[%s1 + $0x720] sm:$0xff]
  %v399 = vld [vmem:[%s1 + $0x728] sm:$0xff]
  %v400 = vld [vmem:[%s1 + $0x730] sm:$0xff]
  %v401 = vld [vmem:[%s1 + $0x738] sm:$0xff]
  %v402 = vld [vmem:[%s1 + $0x740] sm:$0xff]
  %v403 = vld [vmem:[%s1 + $0x748] sm:$0xff]
  %v404 = vld [vmem:[%s1 + $0x750] sm:$0xff]
  %v405 = vld [vmem:[%s1 + $0x758] sm:$0xff]
  %v406 = vld [vmem:[%s1 + $0x760] sm:$0xff]
  %v407 = vld [vmem:[%s1 + $0x768] sm:$0xff]
  %v408 = vld [vmem:[%s1 + $0x770] sm:$0xff]
  %v409 = vld [vmem:[%s1 + $0x778] sm:$0xff]
  %v410 = vld [vmem:[%s1 + $0x780] sm:$0xff]
  %v411 = vld [vmem:[%s1 + $0x788] sm:$0xff]
  %v412 = vld [vmem:[%s1 + $0x790] sm:$0xff]
  %v413 = vld [vmem:[%s1 + $0x798] sm:$0xff]
  %v414 = vld [vmem:[%s1 + $0x7a0] sm:$0xff]
  %v415 = vld [vmem:[%s1 + $0x7a8] sm:$0xff]
  %v416 = vld [vmem:[%s1 + $0x7b0] sm:$0xff]
  %v417 = vld [vmem:[%s1 + $0x7b8] sm:$0xff]
  %v418 = vld [vmem:[%s1 + $0x7c0] sm:$0xff]
  %v419 = vld [vmem:[%s1 + $0x7c8] sm:$0xff]
  %v420 = vld [vmem:[%s1 + $0x7d0] sm:$0xff]
  %v421 = vld [vmem:[%s1 + $0x7d8] sm:$0xff]
  %v422 = vld [vmem:[%s1 + $0x7e0] sm:$0xff]
  %v423 = vld [vmem:[%s1 + $0x7e8] sm:$0xff]
  %v424 = vld [vmem:[%s1 + $0x7f0] sm:$0xff]
  %v425 = vld [vmem:[%s1 + $0x7f8] sm:$0xff]
  %v426 = vld [vmem:[%s1 + $0x800] sm:$0xff]
  %v427 = vld [vmem:[%s1 + $0x808] sm:$0xff]
  %v428 = vld [vmem:[%s1 + $0x810] sm:$0xff]
  %v429 = vld [vmem:[%s1 + $0x818] sm:$0xff]
  %v430 = vld [vmem:[%s1 + $0x820] sm:$0xff]
  %v431 = vld [vmem:[%s1 + $0x828] sm:$0xff]
  %v432 = vld [vmem:[%s1 + $0x830] sm:$0xff]
  %v433 = vld [vmem:[%s1 + $0x838] sm:$0xff]
  %v434 = vld [vmem:[%s1 + $0x840] sm:$0xff]
  %v435 = vld [vmem:[%s1 + $0x848] sm:$0xff]
  %v436 = vld [vmem:[%s1 + $0x850] sm:$0xff]
  %v437 = vld [vmem:[%s1 + $0x858] sm:$0xff]
  %v438 = vld [vmem:[%s1 + $0x860] sm:$0xff]
  %v439 = vld [vmem:[%s1 + $0x868] sm:$0xff]
  %v440 = vld [vmem:[%s1 + $0x870] sm:$0xff]
  %v441 = vld [vmem:[%s1 + $0x878] sm:$0xff]
  %v442 = vld [vmem:[%s1 + $0x880] sm:$0xff]
  %v443 = vld [vmem:[%s1 + $0x888] sm:$0xff]
  %v444 = vld [vmem:[%s1 + $0x890] sm:$0xff]
  %v445 = vld [vmem:[%s1 + $0x898] sm:$0xff]
  %v446 = vld [vmem:[%s1 + $0x8a0] sm:$0xff]
  %v447 = vld [vmem:[%s1 + $0x8a8] sm:$0xff]
  %v448 = vld [vmem:[%s1 + $0x8b0] sm:$0xff]
  %v449 = vld [vmem:[%s1 + $0x8b8] sm:$0xff]
  %v450 = vld [vmem:[%s1 + $0x8c0] sm:$0xff]
  %v451 = vld [vmem:[%s1 + $0x8c8] sm:$0xff]
  %v452 = vld [vmem:[%s1 + $0x8d0] sm:$0xff]
  %v453 = vld [vmem:[%s1 + $0x8d8] sm:$0xff]
  %v454 = vld [vmem:[%s1 + $0x8e0] sm:$0xff]
  %v455 = vld [vmem:[%s1 + $0x8e8] sm:$0xff]
  %v456 = vld [vmem:[%s1 + $0x8f0] sm:$0xff]
  %v457 = vld [vmem:[%s1 + $0x8f8] sm:$0xff]
  %458 = vmatpush.msra.mxu0 %v41
  %459 = vmatpush.msra.mxu0 %v40
  %460 = vmatpush.msra.mxu0 %v39
  %461 = vmatpush.msra.mxu0 %v38
  %462 = vmatpush.msra.mxu0 %v37
  %463 = vmatpush.msra.mxu0 %v36
  %464 = vmatpush.msra.mxu0 %v35
  %465 = vmatpush.msra.mxu0 %v34
  %466 = vmatpush.msra.mxu0 %v33
  %467 = vmatpush.msra.mxu0 %v32
  %468 = vmatpush.msra.mxu0 %v31
  %469 = vmatpush.msra.mxu0 %v30
  %470 = vmatpush.msra.mxu0 %v29
  %471 = vmatpush.msra.mxu0 %v28
  %472 = vmatpush.msra.mxu0 %v27
  %473 = vmatpush.msra.mxu0 %v26
  %474 = vmatmul.f32.gmra.mxu0 %v170
  %v475 = vpop.f32.mrf.mxu0
  %v476 = vadd.f32 0.0, %v475
  %477 = vmatmul.f32.gmra.mxu0 %v179
  %v478 = vpop.f32.mrf.mxu0
  %v479 = vadd.f32 0.0, %v478
  %480 = vmatmul.f32.gmra.mxu0 %v188
  %v481 = vpop.f32.mrf.mxu0
  %v482 = vadd.f32 0.0, %v481
  %483 = vmatmul.f32.gmra.mxu0 %v197
  %v484 = vpop.f32.mrf.mxu0
  %v485 = vadd.f32 0.0, %v484
  %486 = vmatmul.f32.gmra.mxu0 %v206
  %v487 = vpop.f32.mrf.mxu0
  %v488 = vadd.f32 0.0, %v487
  %489 = vmatmul.f32.gmra.mxu0 %v215
  %v490 = vpop.f32.mrf.mxu0
  %v491 = vadd.f32 0.0, %v490
  %492 = vmatmul.f32.gmra.mxu0 %v224
  %v493 = vpop.f32.mrf.mxu0
  %v494 = vadd.f32 0.0, %v493
  %495 = vmatmul.f32.gmra.mxu0 %v233
  %v496 = vpop.f32.mrf.mxu0
  %v497 = vadd.f32 0.0, %v496
  %498 = vmatmul.f32.gmra.mxu0 %v242
  %v499 = vpop.f32.mrf.mxu0
  %v500 = vadd.f32 0.0, %v499
  %501 = vmatmul.f32.gmra.mxu0 %v251
  %v502 = vpop.f32.mrf.mxu0
  %v503 = vadd.f32 0.0, %v502
  %504 = vmatmul.f32.gmra.mxu0 %v260
  %v505 = vpop.f32.mrf.mxu0
  %v506 = vadd.f32 0.0, %v505
  %507 = vmatmul.f32.gmra.mxu0 %v269
  %v508 = vpop.f32.mrf.mxu0
  %v509 = vadd.f32 0.0, %v508
  %510 = vmatmul.f32.gmra.mxu0 %v278
  %v511 = vpop.f32.mrf.mxu0
  %v512 = vadd.f32 0.0, %v511
  %513 = vmatmul.f32.gmra.mxu0 %v287
  %v514 = vpop.f32.mrf.mxu0
  %v515 = vadd.f32 0.0, %v514
  %516 = vmatmul.f32.gmra.mxu0 %v296
  %v517 = vpop.f32.mrf.mxu0
  %v518 = vadd.f32 0.0, %v517
  %519 = vmatmul.f32.gmra.mxu0 %v305
  %v520 = vpop.f32.mrf.mxu0
  %v521 = vadd.f32 0.0, %v520
  %522 = vmatmul.f32.gmra.mxu0 %v314
  %v523 = vpop.f32.mrf.mxu0
  %v524 = vadd.f32 0.0, %v523
  %525 = vmatmul.f32.gmra.mxu0 %v323
  %v526 = vpop.f32.mrf.mxu0
  %v527 = vadd.f32 0.0, %v526
  %528 = vmatmul.f32.gmra.mxu0 %v332
  %v529 = vpop.f32.mrf.mxu0
  %v530 = vadd.f32 0.0, %v529
  %531 = vmatmul.f32.gmra.mxu0 %v341
  %v532 = vpop.f32.mrf.mxu0
  %v533 = vadd.f32 0.0, %v532
  %534 = vmatmul.f32.gmra.mxu0 %v350
  %v535 = vpop.f32.mrf.mxu0
  %v536 = vadd.f32 0.0, %v535
  %537 = vmatmul.f32.gmra.mxu0 %v359
  %v538 = vpop.f32.mrf.mxu0
  %v539 = vadd.f32 0.0, %v538
  %540 = vmatmul.f32.gmra.mxu0 %v368
  %v541 = vpop.f32.mrf.mxu0
  %v542 = vadd.f32 0.0, %v541
  %543 = vmatmul.f32.gmra.mxu0 %v377
  %v544 = vpop.f32.mrf.mxu0
  %v545 = vadd.f32 0.0, %v544
  %546 = vmatmul.f32.gmra.mxu0 %v386
  %v547 = vpop.f32.mrf.mxu0
  %v548 = vadd.f32 0.0, %v547
  %549 = vmatmul.f32.gmra.mxu0 %v395
  %v550 = vpop.f32.mrf.mxu0
  %v551 = vadd.f32 0.0, %v550
  %552 = vmatmul.f32.gmra.mxu0 %v404
  %v553 = vpop.f32.mrf.mxu0
  %v554 = vadd.f32 0.0, %v553
  %555 = vmatmul.f32.gmra.mxu0 %v413
  %v556 = vpop.f32.mrf.mxu0
  %v557 = vadd.f32 0.0, %v556
  %558 = vmatmul.f32.gmra.mxu0 %v422
  %v559 = vpop.f32.mrf.mxu0
  %v560 = vadd.f32 0.0, %v559
  %561 = vmatmul.f32.gmra.mxu0 %v431
  %v562 = vpop.f32.mrf.mxu0
  %v563 = vadd.f32 0.0, %v562
  %564 = vmatmul.f32.gmra.mxu0 %v440
  %v565 = vpop.f32.mrf.mxu0
  %v566 = vadd.f32 0.0, %v565
  %567 = vmatmul.f32.gmra.mxu0 %v449
  %v568 = vpop.f32.mrf.mxu0
  %v569 = vadd.f32 0.0, %v568
  %570 = vdwg.mxu0
  %571 = vmatpush.msra.mxu0 %v57
  %572 = vmatpush.msra.mxu0 %v56
  %573 = vmatpush.msra.mxu0 %v55
  %574 = vmatpush.msra.mxu0 %v54
  %575 = vmatpush.msra.mxu0 %v53
  %576 = vmatpush.msra.mxu0 %v52
  %577 = vmatpush.msra.mxu0 %v51
  %578 = vmatpush.msra.mxu0 %v50
  %579 = vmatpush.msra.mxu0 %v49
  %580 = vmatpush.msra.mxu0 %v48
  %581 = vmatpush.msra.mxu0 %v47
  %582 = vmatpush.msra.mxu0 %v46
  %583 = vmatpush.msra.mxu0 %v45
  %584 = vmatpush.msra.mxu0 %v44
  %585 = vmatpush.msra.mxu0 %v43
  %586 = vmatpush.msra.mxu0 %v42
  %587 = vmatmul.f32.gmra.mxu0 %v171
  %v588 = vpop.f32.mrf.mxu0
  %v589 = vadd.f32 %v476, %v588
  %590 = vmatmul.f32.gmra.mxu0 %v180
  %v591 = vpop.f32.mrf.mxu0
  %v592 = vadd.f32 %v479, %v591
  %593 = vmatmul.f32.gmra.mxu0 %v189
  %v594 = vpop.f32.mrf.mxu0
  %v595 = vadd.f32 %v482, %v594
  %596 = vmatmul.f32.gmra.mxu0 %v198
  %v597 = vpop.f32.mrf.mxu0
  %v598 = vadd.f32 %v485, %v597
  %599 = vmatmul.f32.gmra.mxu0 %v207
  %v600 = vpop.f32.mrf.mxu0
  %v601 = vadd.f32 %v488, %v600
  %602 = vmatmul.f32.gmra.mxu0 %v216
  %v603 = vpop.f32.mrf.mxu0
  %v604 = vadd.f32 %v491, %v603
  %605 = vmatmul.f32.gmra.mxu0 %v225
  %v606 = vpop.f32.mrf.mxu0
  %v607 = vadd.f32 %v494, %v606
  %608 = vmatmul.f32.gmra.mxu0 %v234
  %v609 = vpop.f32.mrf.mxu0
  %v610 = vadd.f32 %v497, %v609
  %611 = vmatmul.f32.gmra.mxu0 %v243
  %v612 = vpop.f32.mrf.mxu0
  %v613 = vadd.f32 %v500, %v612
  %614 = vmatmul.f32.gmra.mxu0 %v252
  %v615 = vpop.f32.mrf.mxu0
  %v616 = vadd.f32 %v503, %v615
  %617 = vmatmul.f32.gmra.mxu0 %v261
  %v618 = vpop.f32.mrf.mxu0
  %v619 = vadd.f32 %v506, %v618
  %620 = vmatmul.f32.gmra.mxu0 %v270
  %v621 = vpop.f32.mrf.mxu0
  %v622 = vadd.f32 %v509, %v621
  %623 = vmatmul.f32.gmra.mxu0 %v279
  %v624 = vpop.f32.mrf.mxu0
  %v625 = vadd.f32 %v512, %v624
  %626 = vmatmul.f32.gmra.mxu0 %v288
  %v627 = vpop.f32.mrf.mxu0
  %v628 = vadd.f32 %v515, %v627
  %629 = vmatmul.f32.gmra.mxu0 %v297
  %v630 = vpop.f32.mrf.mxu0
  %v631 = vadd.f32 %v518, %v630
  %632 = vmatmul.f32.gmra.mxu0 %v306
  %v633 = vpop.f32.mrf.mxu0
  %v634 = vadd.f32 %v521, %v633
  %635 = vmatmul.f32.gmra.mxu0 %v315
  %v636 = vpop.f32.mrf.mxu0
  %v637 = vadd.f32 %v524, %v636
  %638 = vmatmul.f32.gmra.mxu0 %v324
  %v639 = vpop.f32.mrf.mxu0
  %v640 = vadd.f32 %v527, %v639
  %641 = vmatmul.f32.gmra.mxu0 %v333
  %v642 = vpop.f32.mrf.mxu0
  %v643 = vadd.f32 %v530, %v642
  %644 = vmatmul.f32.gmra.mxu0 %v342
  %v645 = vpop.f32.mrf.mxu0
  %v646 = vadd.f32 %v533, %v645
  %647 = vmatmul.f32.gmra.mxu0 %v351
  %v648 = vpop.f32.mrf.mxu0
  %v649 = vadd.f32 %v536, %v648
  %650 = vmatmul.f32.gmra.mxu0 %v360
  %v651 = vpop.f32.mrf.mxu0
  %v652 = vadd.f32 %v539, %v651
  %653 = vmatmul.f32.gmra.mxu0 %v369
  %v654 = vpop.f32.mrf.mxu0
  %v655 = vadd.f32 %v542, %v654
  %656 = vmatmul.f32.gmra.mxu0 %v378
  %v657 = vpop.f32.mrf.mxu0
  %v658 = vadd.f32 %v545, %v657
  %659 = vmatmul.f32.gmra.mxu0 %v387
  %v660 = vpop.f32.mrf.mxu0
  %v661 = vadd.f32 %v548, %v660
  %662 = vmatmul.f32.gmra.mxu0 %v396
  %v663 = vpop.f32.mrf.mxu0
  %v664 = vadd.f32 %v551, %v663
  %665 = vmatmul.f32.gmra.mxu0 %v405
  %v666 = vpop.f32.mrf.mxu0
  %v667 = vadd.f32 %v554, %v666
  %668 = vmatmul.f32.gmra.mxu0 %v414
  %v669 = vpop.f32.mrf.mxu0
  %v670 = vadd.f32 %v557, %v669
  %671 = vmatmul.f32.gmra.mxu0 %v423
  %v672 = vpop.f32.mrf.mxu0
  %v673 = vadd.f32 %v560, %v672
  %674 = vmatmul.f32.gmra.mxu0 %v432
  %v675 = vpop.f32.mrf.mxu0
  %v676 = vadd.f32 %v563, %v675
  %677 = vmatmul.f32.gmra.mxu0 %v441
  %v678 = vpop.f32.mrf.mxu0
  %v679 = vadd.f32 %v566, %v678
  %680 = vmatmul.f32.gmra.mxu0 %v450
  %v681 = vpop.f32.mrf.mxu0
  %v682 = vadd.f32 %v569, %v681
  %683 = vdwg.mxu0
  %684 = vmatpush.msra.mxu0 %v73
  %685 = vmatpush.msra.mxu0 %v72
  %686 = vmatpush.msra.mxu0 %v71
  %687 = vmatpush.msra.mxu0 %v70
  %688 = vmatpush.msra.mxu0 %v69
  %689 = vmatpush.msra.mxu0 %v68
  %690 = vmatpush.msra.mxu0 %v67
  %691 = vmatpush.msra.mxu0 %v66
  %692 = vmatpush.msra.mxu0 %v65
  %693 = vmatpush.msra.mxu0 %v64
  %694 = vmatpush.msra.mxu0 %v63
  %695 = vmatpush.msra.mxu0 %v62
  %696 = vmatpush.msra.mxu0 %v61
  %697 = vmatpush.msra.mxu0 %v60
  %698 = vmatpush.msra.mxu0 %v59
  %699 = vmatpush.msra.mxu0 %v58
  %700 = vmatmul.f32.gmra.mxu0 %v172
  %v701 = vpop.f32.mrf.mxu0
  %v702 = vadd.f32 %v589, %v701
  %703 = vmatmul.f32.gmra.mxu0 %v181
  %v704 = vpop.f32.mrf.mxu0
  %v705 = vadd.f32 %v592, %v704
  %706 = vmatmul.f32.gmra.mxu0 %v190
  %v707 = vpop.f32.mrf.mxu0
  %v708 = vadd.f32 %v595, %v707
  %709 = vmatmul.f32.gmra.mxu0 %v199
  %v710 = vpop.f32.mrf.mxu0
  %v711 = vadd.f32 %v598, %v710
  %712 = vmatmul.f32.gmra.mxu0 %v208
  %v713 = vpop.f32.mrf.mxu0
  %v714 = vadd.f32 %v601, %v713
  %715 = vmatmul.f32.gmra.mxu0 %v217
  %v716 = vpop.f32.mrf.mxu0
  %v717 = vadd.f32 %v604, %v716
  %718 = vmatmul.f32.gmra.mxu0 %v226
  %v719 = vpop.f32.mrf.mxu0
  %v720 = vadd.f32 %v607, %v719
  %721 = vmatmul.f32.gmra.mxu0 %v235
  %v722 = vpop.f32.mrf.mxu0
  %v723 = vadd.f32 %v610, %v722
  %724 = vmatmul.f32.gmra.mxu0 %v244
  %v725 = vpop.f32.mrf.mxu0
  %v726 = vadd.f32 %v613, %v725
  %727 = vmatmul.f32.gmra.mxu0 %v253
  %v728 = vpop.f32.mrf.mxu0
  %v729 = vadd.f32 %v616, %v728
  %730 = vmatmul.f32.gmra.mxu0 %v262
  %v731 = vpop.f32.mrf.mxu0
  %v732 = vadd.f32 %v619, %v731
  %733 = vmatmul.f32.gmra.mxu0 %v271
  %v734 = vpop.f32.mrf.mxu0
  %v735 = vadd.f32 %v622, %v734
  %736 = vmatmul.f32.gmra.mxu0 %v280
  %v737 = vpop.f32.mrf.mxu0
  %v738 = vadd.f32 %v625, %v737
  %739 = vmatmul.f32.gmra.mxu0 %v289
  %v740 = vpop.f32.mrf.mxu0
  %v741 = vadd.f32 %v628, %v740
  %742 = vmatmul.f32.gmra.mxu0 %v298
  %v743 = vpop.f32.mrf.mxu0
  %v744 = vadd.f32 %v631, %v743
  %745 = vmatmul.f32.gmra.mxu0 %v307
  %v746 = vpop.f32.mrf.mxu0
  %v747 = vadd.f32 %v634, %v746
  %748 = vmatmul.f32.gmra.mxu0 %v316
  %v749 = vpop.f32.mrf.mxu0
  %v750 = vadd.f32 %v637, %v749
  %751 = vmatmul.f32.gmra.mxu0 %v325
  %v752 = vpop.f32.mrf.mxu0
  %v753 = vadd.f32 %v640, %v752
  %754 = vmatmul.f32.gmra.mxu0 %v334
  %v755 = vpop.f32.mrf.mxu0
  %v756 = vadd.f32 %v643, %v755
  %757 = vmatmul.f32.gmra.mxu0 %v343
  %v758 = vpop.f32.mrf.mxu0
  %v759 = vadd.f32 %v646, %v758
  %760 = vmatmul.f32.gmra.mxu0 %v352
  %v761 = vpop.f32.mrf.mxu0
  %v762 = vadd.f32 %v649, %v761
  %763 = vmatmul.f32.gmra.mxu0 %v361
  %v764 = vpop.f32.mrf.mxu0
  %v765 = vadd.f32 %v652, %v764
  %766 = vmatmul.f32.gmra.mxu0 %v370
  %v767 = vpop.f32.mrf.mxu0
  %v768 = vadd.f32 %v655, %v767
  %769 = vmatmul.f32.gmra.mxu0 %v379
  %v770 = vpop.f32.mrf.mxu0
  %v771 = vadd.f32 %v658, %v770
  %772 = vmatmul.f32.gmra.mxu0 %v388
  %v773 = vpop.f32.mrf.mxu0
  %v774 = vadd.f32 %v661, %v773
  %775 = vmatmul.f32.gmra.mxu0 %v397
  %v776 = vpop.f32.mrf.mxu0
  %v777 = vadd.f32 %v664, %v776
  %778 = vmatmul.f32.gmra.mxu0 %v406
  %v779 = vpop.f32.mrf.mxu0
  %v780 = vadd.f32 %v667, %v779
  %781 = vmatmul.f32.gmra.mxu0 %v415
  %v782 = vpop.f32.mrf.mxu0
  %v783 = vadd.f32 %v670, %v782
  %784 = vmatmul.f32.gmra.mxu0 %v424
  %v785 = vpop.f32.mrf.mxu0
  %v786 = vadd.f32 %v673, %v785
  %787 = vmatmul.f32.gmra.mxu0 %v433
  %v788 = vpop.f32.mrf.mxu0
  %v789 = vadd.f32 %v676, %v788
  %790 = vmatmul.f32.gmra.mxu0 %v442
  %v791 = vpop.f32.mrf.mxu0
  %v792 = vadd.f32 %v679, %v791
  %793 = vmatmul.f32.gmra.mxu0 %v451
  %v794 = vpop.f32.mrf.mxu0
  %v795 = vadd.f32 %v682, %v794
  %796 = vdwg.mxu0
  %797 = vmatpush.msra.mxu0 %v89
  %798 = vmatpush.msra.mxu0 %v88
  %799 = vmatpush.msra.mxu0 %v87
  %800 = vmatpush.msra.mxu0 %v86
  %801 = vmatpush.msra.mxu0 %v85
  %802 = vmatpush.msra.mxu0 %v84
  %803 = vmatpush.msra.mxu0 %v83
  %804 = vmatpush.msra.mxu0 %v82
  %805 = vmatpush.msra.mxu0 %v81
  %806 = vmatpush.msra.mxu0 %v80
  %807 = vmatpush.msra.mxu0 %v79
  %808 = vmatpush.msra.mxu0 %v78
  %809 = vmatpush.msra.mxu0 %v77
  %810 = vmatpush.msra.mxu0 %v76
  %811 = vmatpush.msra.mxu0 %v75
  %812 = vmatpush.msra.mxu0 %v74
  %813 = vmatmul.f32.gmra.mxu0 %v173
  %v814 = vpop.f32.mrf.mxu0
  %v815 = vadd.f32 %v702, %v814
  %816 = vmatmul.f32.gmra.mxu0 %v182
  %v817 = vpop.f32.mrf.mxu0
  %v818 = vadd.f32 %v705, %v817
  %819 = vmatmul.f32.gmra.mxu0 %v191
  %v820 = vpop.f32.mrf.mxu0
  %v821 = vadd.f32 %v708, %v820
  %822 = vmatmul.f32.gmra.mxu0 %v200
  %v823 = vpop.f32.mrf.mxu0
  %v824 = vadd.f32 %v711, %v823
  %825 = vmatmul.f32.gmra.mxu0 %v209
  %v826 = vpop.f32.mrf.mxu0
  %v827 = vadd.f32 %v714, %v826
  %828 = vmatmul.f32.gmra.mxu0 %v218
  %v829 = vpop.f32.mrf.mxu0
  %v830 = vadd.f32 %v717, %v829
  %831 = vmatmul.f32.gmra.mxu0 %v227
  %v832 = vpop.f32.mrf.mxu0
  %v833 = vadd.f32 %v720, %v832
  %834 = vmatmul.f32.gmra.mxu0 %v236
  %v835 = vpop.f32.mrf.mxu0
  %v836 = vadd.f32 %v723, %v835
  %837 = vmatmul.f32.gmra.mxu0 %v245
  %v838 = vpop.f32.mrf.mxu0
  %v839 = vadd.f32 %v726, %v838
  %840 = vmatmul.f32.gmra.mxu0 %v254
  %v841 = vpop.f32.mrf.mxu0
  %v842 = vadd.f32 %v729, %v841
  %843 = vmatmul.f32.gmra.mxu0 %v263
  %v844 = vpop.f32.mrf.mxu0
  %v845 = vadd.f32 %v732, %v844
  %846 = vmatmul.f32.gmra.mxu0 %v272
  %v847 = vpop.f32.mrf.mxu0
  %v848 = vadd.f32 %v735, %v847
  %849 = vmatmul.f32.gmra.mxu0 %v281
  %v850 = vpop.f32.mrf.mxu0
  %v851 = vadd.f32 %v738, %v850
  %852 = vmatmul.f32.gmra.mxu0 %v290
  %v853 = vpop.f32.mrf.mxu0
  %v854 = vadd.f32 %v741, %v853
  %855 = vmatmul.f32.gmra.mxu0 %v299
  %v856 = vpop.f32.mrf.mxu0
  %v857 = vadd.f32 %v744, %v856
  %858 = vmatmul.f32.gmra.mxu0 %v308
  %v859 = vpop.f32.mrf.mxu0
  %v860 = vadd.f32 %v747, %v859
  %861 = vmatmul.f32.gmra.mxu0 %v317
  %v862 = vpop.f32.mrf.mxu0
  %v863 = vadd.f32 %v750, %v862
  %864 = vmatmul.f32.gmra.mxu0 %v326
  %v865 = vpop.f32.mrf.mxu0
  %v866 = vadd.f32 %v753, %v865
  %867 = vmatmul.f32.gmra.mxu0 %v335
  %v868 = vpop.f32.mrf.mxu0
  %v869 = vadd.f32 %v756, %v868
  %870 = vmatmul.f32.gmra.mxu0 %v344
  %v871 = vpop.f32.mrf.mxu0
  %v872 = vadd.f32 %v759, %v871
  %873 = vmatmul.f32.gmra.mxu0 %v353
  %v874 = vpop.f32.mrf.mxu0
  %v875 = vadd.f32 %v762, %v874
  %876 = vmatmul.f32.gmra.mxu0 %v362
  %v877 = vpop.f32.mrf.mxu0
  %v878 = vadd.f32 %v765, %v877
  %879 = vmatmul.f32.gmra.mxu0 %v371
  %v880 = vpop.f32.mrf.mxu0
  %v881 = vadd.f32 %v768, %v880
  %882 = vmatmul.f32.gmra.mxu0 %v380
  %v883 = vpop.f32.mrf.mxu0
  %v884 = vadd.f32 %v771, %v883
  %885 = vmatmul.f32.gmra.mxu0 %v389
  %v886 = vpop.f32.mrf.mxu0
  %v887 = vadd.f32 %v774, %v886
  %888 = vmatmul.f32.gmra.mxu0 %v398
  %v889 = vpop.f32.mrf.mxu0
  %v890 = vadd.f32 %v777, %v889
  %891 = vmatmul.f32.gmra.mxu0 %v407
  %v892 = vpop.f32.mrf.mxu0
  %v893 = vadd.f32 %v780, %v892
  %894 = vmatmul.f32.gmra.mxu0 %v416
  %v895 = vpop.f32.mrf.mxu0
  %v896 = vadd.f32 %v783, %v895
  %897 = vmatmul.f32.gmra.mxu0 %v425
  %v898 = vpop.f32.mrf.mxu0
  %v899 = vadd.f32 %v786, %v898
  %900 = vmatmul.f32.gmra.mxu0 %v434
  %v901 = vpop.f32.mrf.mxu0
  %v902 = vadd.f32 %v789, %v901
  %903 = vmatmul.f32.gmra.mxu0 %v443
  %v904 = vpop.f32.mrf.mxu0
  %v905 = vadd.f32 %v792, %v904
  %906 = vmatmul.f32.gmra.mxu0 %v452
  %v907 = vpop.f32.mrf.mxu0
  %v908 = vadd.f32 %v795, %v907
  %909 = vdwg.mxu0
  %910 = vmatpush.msra.mxu0 %v105
  %911 = vmatpush.msra.mxu0 %v104
  %912 = vmatpush.msra.mxu0 %v103
  %913 = vmatpush.msra.mxu0 %v102
  %914 = vmatpush.msra.mxu0 %v101
  %915 = vmatpush.msra.mxu0 %v100
  %916 = vmatpush.msra.mxu0 %v99
  %917 = vmatpush.msra.mxu0 %v98
  %918 = vmatpush.msra.mxu0 %v97
  %919 = vmatpush.msra.mxu0 %v96
  %920 = vmatpush.msra.mxu0 %v95
  %921 = vmatpush.msra.mxu0 %v94
  %922 = vmatpush.msra.mxu0 %v93
  %923 = vmatpush.msra.mxu0 %v92
  %924 = vmatpush.msra.mxu0 %v91
  %925 = vmatpush.msra.mxu0 %v90
  %926 = vmatmul.f32.gmra.mxu0 %v174
  %v927 = vpop.f32.mrf.mxu0
  %v928 = vadd.f32 %v815, %v927
  %929 = vmatmul.f32.gmra.mxu0 %v183
  %v930 = vpop.f32.mrf.mxu0
  %v931 = vadd.f32 %v818, %v930
  %932 = vmatmul.f32.gmra.mxu0 %v192
  %v933 = vpop.f32.mrf.mxu0
  %v934 = vadd.f32 %v821, %v933
  %935 = vmatmul.f32.gmra.mxu0 %v201
  %v936 = vpop.f32.mrf.mxu0
  %v937 = vadd.f32 %v824, %v936
  %938 = vmatmul.f32.gmra.mxu0 %v210
  %v939 = vpop.f32.mrf.mxu0
  %v940 = vadd.f32 %v827, %v939
  %941 = vmatmul.f32.gmra.mxu0 %v219
  %v942 = vpop.f32.mrf.mxu0
  %v943 = vadd.f32 %v830, %v942
  %944 = vmatmul.f32.gmra.mxu0 %v228
  %v945 = vpop.f32.mrf.mxu0
  %v946 = vadd.f32 %v833, %v945
  %947 = vmatmul.f32.gmra.mxu0 %v237
  %v948 = vpop.f32.mrf.mxu0
  %v949 = vadd.f32 %v836, %v948
  %950 = vmatmul.f32.gmra.mxu0 %v246
  %v951 = vpop.f32.mrf.mxu0
  %v952 = vadd.f32 %v839, %v951
  %953 = vmatmul.f32.gmra.mxu0 %v255
  %v954 = vpop.f32.mrf.mxu0
  %v955 = vadd.f32 %v842, %v954
  %956 = vmatmul.f32.gmra.mxu0 %v264
  %v957 = vpop.f32.mrf.mxu0
  %v958 = vadd.f32 %v845, %v957
  %959 = vmatmul.f32.gmra.mxu0 %v273
  %v960 = vpop.f32.mrf.mxu0
  %v961 = vadd.f32 %v848, %v960
  %962 = vmatmul.f32.gmra.mxu0 %v282
  %v963 = vpop.f32.mrf.mxu0
  %v964 = vadd.f32 %v851, %v963
  %965 = vmatmul.f32.gmra.mxu0 %v291
  %v966 = vpop.f32.mrf.mxu0
  %v967 = vadd.f32 %v854, %v966
  %968 = vmatmul.f32.gmra.mxu0 %v300
  %v969 = vpop.f32.mrf.mxu0
  %v970 = vadd.f32 %v857, %v969
  %971 = vmatmul.f32.gmra.mxu0 %v309
  %v972 = vpop.f32.mrf.mxu0
  %v973 = vadd.f32 %v860, %v972
  %974 = vmatmul.f32.gmra.mxu0 %v318
  %v975 = vpop.f32.mrf.mxu0
  %v976 = vadd.f32 %v863, %v975
  %977 = vmatmul.f32.gmra.mxu0 %v327
  %v978 = vpop.f32.mrf.mxu0
  %v979 = vadd.f32 %v866, %v978
  %980 = vmatmul.f32.gmra.mxu0 %v336
  %v981 = vpop.f32.mrf.mxu0
  %v982 = vadd.f32 %v869, %v981
  %983 = vmatmul.f32.gmra.mxu0 %v345
  %v984 = vpop.f32.mrf.mxu0
  %v985 = vadd.f32 %v872, %v984
  %986 = vmatmul.f32.gmra.mxu0 %v354
  %v987 = vpop.f32.mrf.mxu0
  %v988 = vadd.f32 %v875, %v987
  %989 = vmatmul.f32.gmra.mxu0 %v363
  %v990 = vpop.f32.mrf.mxu0
  %v991 = vadd.f32 %v878, %v990
  %992 = vmatmul.f32.gmra.mxu0 %v372
  %v993 = vpop.f32.mrf.mxu0
  %v994 = vadd.f32 %v881, %v993
  %995 = vmatmul.f32.gmra.mxu0 %v381
  %v996 = vpop.f32.mrf.mxu0
  %v997 = vadd.f32 %v884, %v996
  %998 = vmatmul.f32.gmra.mxu0 %v390
  %v999 = vpop.f32.mrf.mxu0
  %v1000 = vadd.f32 %v887, %v999
  %1001 = vmatmul.f32.gmra.mxu0 %v399
  %v1002 = vpop.f32.mrf.mxu0
  %v1003 = vadd.f32 %v890, %v1002
  %1004 = vmatmul.f32.gmra.mxu0 %v408
  %v1005 = vpop.f32.mrf.mxu0
  %v1006 = vadd.f32 %v893, %v1005
  %1007 = vmatmul.f32.gmra.mxu0 %v417
  %v1008 = vpop.f32.mrf.mxu0
  %v1009 = vadd.f32 %v896, %v1008
  %1010 = vmatmul.f32.gmra.mxu0 %v426
  %v1011 = vpop.f32.mrf.mxu0
  %v1012 = vadd.f32 %v899, %v1011
  %1013 = vmatmul.f32.gmra.mxu0 %v435
  %v1014 = vpop.f32.mrf.mxu0
  %v1015 = vadd.f32 %v902, %v1014
  %1016 = vmatmul.f32.gmra.mxu0 %v444
  %v1017 = vpop.f32.mrf.mxu0
  %v1018 = vadd.f32 %v905, %v1017
  %1019 = vmatmul.f32.gmra.mxu0 %v453
  %v1020 = vpop.f32.mrf.mxu0
  %v1021 = vadd.f32 %v908, %v1020
  %1022 = vdwg.mxu0
  %1023 = vmatpush.msra.mxu0 %v121
  %1024 = vmatpush.msra.mxu0 %v120
  %1025 = vmatpush.msra.mxu0 %v119
  %1026 = vmatpush.msra.mxu0 %v118
  %1027 = vmatpush.msra.mxu0 %v117
  %1028 = vmatpush.msra.mxu0 %v116
  %1029 = vmatpush.msra.mxu0 %v115
  %1030 = vmatpush.msra.mxu0 %v114
  %1031 = vmatpush.msra.mxu0 %v113
  %1032 = vmatpush.msra.mxu0 %v112
  %1033 = vmatpush.msra.mxu0 %v111
  %1034 = vmatpush.msra.mxu0 %v110
  %1035 = vmatpush.msra.mxu0 %v109
  %1036 = vmatpush.msra.mxu0 %v108
  %1037 = vmatpush.msra.mxu0 %v107
  %1038 = vmatpush.msra.mxu0 %v106
  %1039 = vmatmul.f32.gmra.mxu0 %v175
  %v1040 = vpop.f32.mrf.mxu0
  %v1041 = vadd.f32 %v928, %v1040
  %1042 = vmatmul.f32.gmra.mxu0 %v184
  %v1043 = vpop.f32.mrf.mxu0
  %v1044 = vadd.f32 %v931, %v1043
  %1045 = vmatmul.f32.gmra.mxu0 %v193
  %v1046 = vpop.f32.mrf.mxu0
  %v1047 = vadd.f32 %v934, %v1046
  %1048 = vmatmul.f32.gmra.mxu0 %v202
  %v1049 = vpop.f32.mrf.mxu0
  %v1050 = vadd.f32 %v937, %v1049
  %1051 = vmatmul.f32.gmra.mxu0 %v211
  %v1052 = vpop.f32.mrf.mxu0
  %v1053 = vadd.f32 %v940, %v1052
  %1054 = vmatmul.f32.gmra.mxu0 %v220
  %v1055 = vpop.f32.mrf.mxu0
  %v1056 = vadd.f32 %v943, %v1055
  %1057 = vmatmul.f32.gmra.mxu0 %v229
  %v1058 = vpop.f32.mrf.mxu0
  %v1059 = vadd.f32 %v946, %v1058
  %1060 = vmatmul.f32.gmra.mxu0 %v238
  %v1061 = vpop.f32.mrf.mxu0
  %v1062 = vadd.f32 %v949, %v1061
  %1063 = vmatmul.f32.gmra.mxu0 %v247
  %v1064 = vpop.f32.mrf.mxu0
  %v1065 = vadd.f32 %v952, %v1064
  %1066 = vmatmul.f32.gmra.mxu0 %v256
  %v1067 = vpop.f32.mrf.mxu0
  %v1068 = vadd.f32 %v955, %v1067
  %1069 = vmatmul.f32.gmra.mxu0 %v265
  %v1070 = vpop.f32.mrf.mxu0
  %v1071 = vadd.f32 %v958, %v1070
  %1072 = vmatmul.f32.gmra.mxu0 %v274
  %v1073 = vpop.f32.mrf.mxu0
  %v1074 = vadd.f32 %v961, %v1073
  %1075 = vmatmul.f32.gmra.mxu0 %v283
  %v1076 = vpop.f32.mrf.mxu0
  %v1077 = vadd.f32 %v964, %v1076
  %1078 = vmatmul.f32.gmra.mxu0 %v292
  %v1079 = vpop.f32.mrf.mxu0
  %v1080 = vadd.f32 %v967, %v1079
  %1081 = vmatmul.f32.gmra.mxu0 %v301
  %v1082 = vpop.f32.mrf.mxu0
  %v1083 = vadd.f32 %v970, %v1082
  %1084 = vmatmul.f32.gmra.mxu0 %v310
  %v1085 = vpop.f32.mrf.mxu0
  %v1086 = vadd.f32 %v973, %v1085
  %1087 = vmatmul.f32.gmra.mxu0 %v319
  %v1088 = vpop.f32.mrf.mxu0
  %v1089 = vadd.f32 %v976, %v1088
  %1090 = vmatmul.f32.gmra.mxu0 %v328
  %v1091 = vpop.f32.mrf.mxu0
  %v1092 = vadd.f32 %v979, %v1091
  %1093 = vmatmul.f32.gmra.mxu0 %v337
  %v1094 = vpop.f32.mrf.mxu0
  %v1095 = vadd.f32 %v982, %v1094
  %1096 = vmatmul.f32.gmra.mxu0 %v346
  %v1097 = vpop.f32.mrf.mxu0
  %v1098 = vadd.f32 %v985, %v1097
  %1099 = vmatmul.f32.gmra.mxu0 %v355
  %v1100 = vpop.f32.mrf.mxu0
  %v1101 = vadd.f32 %v988, %v1100
  %1102 = vmatmul.f32.gmra.mxu0 %v364
  %v1103 = vpop.f32.mrf.mxu0
  %v1104 = vadd.f32 %v991, %v1103
  %1105 = vmatmul.f32.gmra.mxu0 %v373
  %v1106 = vpop.f32.mrf.mxu0
  %v1107 = vadd.f32 %v994, %v1106
  %1108 = vmatmul.f32.gmra.mxu0 %v382
  %v1109 = vpop.f32.mrf.mxu0
  %v1110 = vadd.f32 %v997, %v1109
  %1111 = vmatmul.f32.gmra.mxu0 %v391
  %v1112 = vpop.f32.mrf.mxu0
  %v1113 = vadd.f32 %v1000, %v1112
  %1114 = vmatmul.f32.gmra.mxu0 %v400
  %v1115 = vpop.f32.mrf.mxu0
  %v1116 = vadd.f32 %v1003, %v1115
  %1117 = vmatmul.f32.gmra.mxu0 %v409
  %v1118 = vpop.f32.mrf.mxu0
  %v1119 = vadd.f32 %v1006, %v1118
  %1120 = vmatmul.f32.gmra.mxu0 %v418
  %v1121 = vpop.f32.mrf.mxu0
  %v1122 = vadd.f32 %v1009, %v1121
  %1123 = vmatmul.f32.gmra.mxu0 %v427
  %v1124 = vpop.f32.mrf.mxu0
  %v1125 = vadd.f32 %v1012, %v1124
  %1126 = vmatmul.f32.gmra.mxu0 %v436
  %v1127 = vpop.f32.mrf.mxu0
  %v1128 = vadd.f32 %v1015, %v1127
  %1129 = vmatmul.f32.gmra.mxu0 %v445
  %v1130 = vpop.f32.mrf.mxu0
  %v1131 = vadd.f32 %v1018, %v1130
  %1132 = vmatmul.f32.gmra.mxu0 %v454
  %v1133 = vpop.f32.mrf.mxu0
  %v1134 = vadd.f32 %v1021, %v1133
  %1135 = vdwg.mxu0
  %1136 = vmatpush.msra.mxu0 %v137
  %1137 = vmatpush.msra.mxu0 %v136
  %1138 = vmatpush.msra.mxu0 %v135
  %1139 = vmatpush.msra.mxu0 %v134
  %1140 = vmatpush.msra.mxu0 %v133
  %1141 = vmatpush.msra.mxu0 %v132
  %1142 = vmatpush.msra.mxu0 %v131
  %1143 = vmatpush.msra.mxu0 %v130
  %1144 = vmatpush.msra.mxu0 %v129
  %1145 = vmatpush.msra.mxu0 %v128
  %1146 = vmatpush.msra.mxu0 %v127
  %1147 = vmatpush.msra.mxu0 %v126
  %1148 = vmatpush.msra.mxu0 %v125
  %1149 = vmatpush.msra.mxu0 %v124
  %1150 = vmatpush.msra.mxu0 %v123
  %1151 = vmatpush.msra.mxu0 %v122
  %1152 = vmatmul.f32.gmra.mxu0 %v176
  %v1153 = vpop.f32.mrf.mxu0
  %v1154 = vadd.f32 %v1041, %v1153
  %1155 = vmatmul.f32.gmra.mxu0 %v185
  %v1156 = vpop.f32.mrf.mxu0
  %v1157 = vadd.f32 %v1044, %v1156
  %1158 = vmatmul.f32.gmra.mxu0 %v194
  %v1159 = vpop.f32.mrf.mxu0
  %v1160 = vadd.f32 %v1047, %v1159
  %1161 = vmatmul.f32.gmra.mxu0 %v203
  %v1162 = vpop.f32.mrf.mxu0
  %v1163 = vadd.f32 %v1050, %v1162
  %1164 = vmatmul.f32.gmra.mxu0 %v212
  %v1165 = vpop.f32.mrf.mxu0
  %v1166 = vadd.f32 %v1053, %v1165
  %1167 = vmatmul.f32.gmra.mxu0 %v221
  %v1168 = vpop.f32.mrf.mxu0
  %v1169 = vadd.f32 %v1056, %v1168
  %1170 = vmatmul.f32.gmra.mxu0 %v230
  %v1171 = vpop.f32.mrf.mxu0
  %v1172 = vadd.f32 %v1059, %v1171
  %1173 = vmatmul.f32.gmra.mxu0 %v239
  %v1174 = vpop.f32.mrf.mxu0
  %v1175 = vadd.f32 %v1062, %v1174
  %1176 = vmatmul.f32.gmra.mxu0 %v248
  %v1177 = vpop.f32.mrf.mxu0
  %v1178 = vadd.f32 %v1065, %v1177
  %1179 = vmatmul.f32.gmra.mxu0 %v257
  %v1180 = vpop.f32.mrf.mxu0
  %v1181 = vadd.f32 %v1068, %v1180
  %1182 = vmatmul.f32.gmra.mxu0 %v266
  %v1183 = vpop.f32.mrf.mxu0
  %v1184 = vadd.f32 %v1071, %v1183
  %1185 = vmatmul.f32.gmra.mxu0 %v275
  %v1186 = vpop.f32.mrf.mxu0
  %v1187 = vadd.f32 %v1074, %v1186
  %1188 = vmatmul.f32.gmra.mxu0 %v284
  %v1189 = vpop.f32.mrf.mxu0
  %v1190 = vadd.f32 %v1077, %v1189
  %1191 = vmatmul.f32.gmra.mxu0 %v293
  %v1192 = vpop.f32.mrf.mxu0
  %v1193 = vadd.f32 %v1080, %v1192
  %1194 = vmatmul.f32.gmra.mxu0 %v302
  %v1195 = vpop.f32.mrf.mxu0
  %v1196 = vadd.f32 %v1083, %v1195
  %1197 = vmatmul.f32.gmra.mxu0 %v311
  %v1198 = vpop.f32.mrf.mxu0
  %v1199 = vadd.f32 %v1086, %v1198
  %1200 = vmatmul.f32.gmra.mxu0 %v320
  %v1201 = vpop.f32.mrf.mxu0
  %v1202 = vadd.f32 %v1089, %v1201
  %1203 = vmatmul.f32.gmra.mxu0 %v329
  %v1204 = vpop.f32.mrf.mxu0
  %v1205 = vadd.f32 %v1092, %v1204
  %1206 = vmatmul.f32.gmra.mxu0 %v338
  %v1207 = vpop.f32.mrf.mxu0
  %v1208 = vadd.f32 %v1095, %v1207
  %1209 = vmatmul.f32.gmra.mxu0 %v347
  %v1210 = vpop.f32.mrf.mxu0
  %v1211 = vadd.f32 %v1098, %v1210
  %1212 = vmatmul.f32.gmra.mxu0 %v356
  %v1213 = vpop.f32.mrf.mxu0
  %v1214 = vadd.f32 %v1101, %v1213
  %1215 = vmatmul.f32.gmra.mxu0 %v365
  %v1216 = vpop.f32.mrf.mxu0
  %v1217 = vadd.f32 %v1104, %v1216
  %1218 = vmatmul.f32.gmra.mxu0 %v374
  %v1219 = vpop.f32.mrf.mxu0
  %v1220 = vadd.f32 %v1107, %v1219
  %1221 = vmatmul.f32.gmra.mxu0 %v383
  %v1222 = vpop.f32.mrf.mxu0
  %v1223 = vadd.f32 %v1110, %v1222
  %1224 = vmatmul.f32.gmra.mxu0 %v392
  %v1225 = vpop.f32.mrf.mxu0
  %v1226 = vadd.f32 %v1113, %v1225
  %1227 = vmatmul.f32.gmra.mxu0 %v401
  %v1228 = vpop.f32.mrf.mxu0
  %v1229 = vadd.f32 %v1116, %v1228
  %1230 = vmatmul.f32.gmra.mxu0 %v410
  %v1231 = vpop.f32.mrf.mxu0
  %v1232 = vadd.f32 %v1119, %v1231
  %1233 = vmatmul.f32.gmra.mxu0 %v419
  %v1234 = vpop.f32.mrf.mxu0
  %v1235 = vadd.f32 %v1122, %v1234
  %1236 = vmatmul.f32.gmra.mxu0 %v428
  %v1237 = vpop.f32.mrf.mxu0
  %v1238 = vadd.f32 %v1125, %v1237
  %1239 = vmatmul.f32.gmra.mxu0 %v437
  %v1240 = vpop.f32.mrf.mxu0
  %v1241 = vadd.f32 %v1128, %v1240
  %1242 = vmatmul.f32.gmra.mxu0 %v446
  %v1243 = vpop.f32.mrf.mxu0
  %v1244 = vadd.f32 %v1131, %v1243
  %1245 = vmatmul.f32.gmra.mxu0 %v455
  %v1246 = vpop.f32.mrf.mxu0
  %v1247 = vadd.f32 %v1134, %v1246
  %1248 = vdwg.mxu0
  %1249 = vmatpush.msra.mxu0 %v153
  %1250 = vmatpush.msra.mxu0 %v152
  %1251 = vmatpush.msra.mxu0 %v151
  %1252 = vmatpush.msra.mxu0 %v150
  %1253 = vmatpush.msra.mxu0 %v149
  %1254 = vmatpush.msra.mxu0 %v148
  %1255 = vmatpush.msra.mxu0 %v147
  %1256 = vmatpush.msra.mxu0 %v146
  %1257 = vmatpush.msra.mxu0 %v145
  %1258 = vmatpush.msra.mxu0 %v144
  %1259 = vmatpush.msra.mxu0 %v143
  %1260 = vmatpush.msra.mxu0 %v142
  %1261 = vmatpush.msra.mxu0 %v141
  %1262 = vmatpush.msra.mxu0 %v140
  %1263 = vmatpush.msra.mxu0 %v139
  %1264 = vmatpush.msra.mxu0 %v138
  %1265 = vmatmul.f32.gmra.mxu0 %v177
  %v1266 = vpop.f32.mrf.mxu0
  %v1267 = vadd.f32 %v1154, %v1266
  %1268 = vmatmul.f32.gmra.mxu0 %v186
  %v1269 = vpop.f32.mrf.mxu0
  %v1270 = vadd.f32 %v1157, %v1269
  %1271 = vmatmul.f32.gmra.mxu0 %v195
  %v1272 = vpop.f32.mrf.mxu0
  %v1273 = vadd.f32 %v1160, %v1272
  %1274 = vmatmul.f32.gmra.mxu0 %v204
  %v1275 = vpop.f32.mrf.mxu0
  %v1276 = vadd.f32 %v1163, %v1275
  %1277 = vmatmul.f32.gmra.mxu0 %v213
  %v1278 = vpop.f32.mrf.mxu0
  %v1279 = vadd.f32 %v1166, %v1278
  %1280 = vmatmul.f32.gmra.mxu0 %v222
  %v1281 = vpop.f32.mrf.mxu0
  %v1282 = vadd.f32 %v1169, %v1281
  %1283 = vmatmul.f32.gmra.mxu0 %v231
  %v1284 = vpop.f32.mrf.mxu0
  %v1285 = vadd.f32 %v1172, %v1284
  %1286 = vmatmul.f32.gmra.mxu0 %v240
  %v1287 = vpop.f32.mrf.mxu0
  %v1288 = vadd.f32 %v1175, %v1287
  %1289 = vmatmul.f32.gmra.mxu0 %v249
  %v1290 = vpop.f32.mrf.mxu0
  %v1291 = vadd.f32 %v1178, %v1290
  %1292 = vmatmul.f32.gmra.mxu0 %v258
  %v1293 = vpop.f32.mrf.mxu0
  %v1294 = vadd.f32 %v1181, %v1293
  %1295 = vmatmul.f32.gmra.mxu0 %v267
  %v1296 = vpop.f32.mrf.mxu0
  %v1297 = vadd.f32 %v1184, %v1296
  %1298 = vmatmul.f32.gmra.mxu0 %v276
  %v1299 = vpop.f32.mrf.mxu0
  %v1300 = vadd.f32 %v1187, %v1299
  %1301 = vmatmul.f32.gmra.mxu0 %v285
  %v1302 = vpop.f32.mrf.mxu0
  %v1303 = vadd.f32 %v1190, %v1302
  %1304 = vmatmul.f32.gmra.mxu0 %v294
  %v1305 = vpop.f32.mrf.mxu0
  %v1306 = vadd.f32 %v1193, %v1305
  %1307 = vmatmul.f32.gmra.mxu0 %v303
  %v1308 = vpop.f32.mrf.mxu0
  %v1309 = vadd.f32 %v1196, %v1308
  %1310 = vmatmul.f32.gmra.mxu0 %v312
  %v1311 = vpop.f32.mrf.mxu0
  %v1312 = vadd.f32 %v1199, %v1311
  %1313 = vmatmul.f32.gmra.mxu0 %v321
  %v1314 = vpop.f32.mrf.mxu0
  %v1315 = vadd.f32 %v1202, %v1314
  %1316 = vmatmul.f32.gmra.mxu0 %v330
  %v1317 = vpop.f32.mrf.mxu0
  %v1318 = vadd.f32 %v1205, %v1317
  %1319 = vmatmul.f32.gmra.mxu0 %v339
  %v1320 = vpop.f32.mrf.mxu0
  %v1321 = vadd.f32 %v1208, %v1320
  %1322 = vmatmul.f32.gmra.mxu0 %v348
  %v1323 = vpop.f32.mrf.mxu0
  %v1324 = vadd.f32 %v1211, %v1323
  %1325 = vmatmul.f32.gmra.mxu0 %v357
  %v1326 = vpop.f32.mrf.mxu0
  %v1327 = vadd.f32 %v1214, %v1326
  %1328 = vmatmul.f32.gmra.mxu0 %v366
  %v1329 = vpop.f32.mrf.mxu0
  %v1330 = vadd.f32 %v1217, %v1329
  %1331 = vmatmul.f32.gmra.mxu0 %v375
  %v1332 = vpop.f32.mrf.mxu0
  %v1333 = vadd.f32 %v1220, %v1332
  %1334 = vmatmul.f32.gmra.mxu0 %v384
  %v1335 = vpop.f32.mrf.mxu0
  %v1336 = vadd.f32 %v1223, %v1335
  %1337 = vmatmul.f32.gmra.mxu0 %v393
  %v1338 = vpop.f32.mrf.mxu0
  %v1339 = vadd.f32 %v1226, %v1338
  %1340 = vmatmul.f32.gmra.mxu0 %v402
  %v1341 = vpop.f32.mrf.mxu0
  %v1342 = vadd.f32 %v1229, %v1341
  %1343 = vmatmul.f32.gmra.mxu0 %v411
  %v1344 = vpop.f32.mrf.mxu0
  %v1345 = vadd.f32 %v1232, %v1344
  %1346 = vmatmul.f32.gmra.mxu0 %v420
  %v1347 = vpop.f32.mrf.mxu0
  %v1348 = vadd.f32 %v1235, %v1347
  %1349 = vmatmul.f32.gmra.mxu0 %v429
  %v1350 = vpop.f32.mrf.mxu0
  %v1351 = vadd.f32 %v1238, %v1350
  %1352 = vmatmul.f32.gmra.mxu0 %v438
  %v1353 = vpop.f32.mrf.mxu0
  %v1354 = vadd.f32 %v1241, %v1353
  %1355 = vmatmul.f32.gmra.mxu0 %v447
  %v1356 = vpop.f32.mrf.mxu0
  %v1357 = vadd.f32 %v1244, %v1356
  %1358 = vmatmul.f32.gmra.mxu0 %v456
  %v1359 = vpop.f32.mrf.mxu0
  %v1360 = vadd.f32 %v1247, %v1359
  %1361 = vdwg.mxu0
  %1362 = vmatpush.msra.mxu0 %v169
  %1363 = vmatpush.msra.mxu0 %v168
  %1364 = vmatpush.msra.mxu0 %v167
  %1365 = vmatpush.msra.mxu0 %v166
  %1366 = vmatpush.msra.mxu0 %v165
  %1367 = vmatpush.msra.mxu0 %v164
  %1368 = vmatpush.msra.mxu0 %v163
  %1369 = vmatpush.msra.mxu0 %v162
  %1370 = vmatpush.msra.mxu0 %v161
  %1371 = vmatpush.msra.mxu0 %v160
  %1372 = vmatpush.msra.mxu0 %v159
  %1373 = vmatpush.msra.mxu0 %v158
  %1374 = vmatpush.msra.mxu0 %v157
  %1375 = vmatpush.msra.mxu0 %v156
  %1376 = vmatpush.msra.mxu0 %v155
  %1377 = vmatpush.msra.mxu0 %v154
  %1378 = vmatmul.f32.gmra.mxu0 %v178
  %v1379 = vpop.f32.mrf.mxu0
  %v1380 = vadd.f32 %v1267, %v1379
  %1381 = vmatmul.f32.gmra.mxu0 %v187
  %v1382 = vpop.f32.mrf.mxu0
  %v1383 = vadd.f32 %v1270, %v1382
  %1384 = vmatmul.f32.gmra.mxu0 %v196
  %v1385 = vpop.f32.mrf.mxu0
  %v1386 = vadd.f32 %v1273, %v1385
  %1387 = vmatmul.f32.gmra.mxu0 %v205
  %v1388 = vpop.f32.mrf.mxu0
  %v1389 = vadd.f32 %v1276, %v1388
  %1390 = vmatmul.f32.gmra.mxu0 %v214
  %v1391 = vpop.f32.mrf.mxu0
  %v1392 = vadd.f32 %v1279, %v1391
  %1393 = vmatmul.f32.gmra.mxu0 %v223
  %v1394 = vpop.f32.mrf.mxu0
  %v1395 = vadd.f32 %v1282, %v1394
  %1396 = vmatmul.f32.gmra.mxu0 %v232
  %v1397 = vpop.f32.mrf.mxu0
  %v1398 = vadd.f32 %v1285, %v1397
  %1399 = vmatmul.f32.gmra.mxu0 %v241
  %v1400 = vpop.f32.mrf.mxu0
  %v1401 = vadd.f32 %v1288, %v1400
  %1402 = vmatmul.f32.gmra.mxu0 %v250
  %v1403 = vpop.f32.mrf.mxu0
  %v1404 = vadd.f32 %v1291, %v1403
  %1405 = vmatmul.f32.gmra.mxu0 %v259
  %v1406 = vpop.f32.mrf.mxu0
  %v1407 = vadd.f32 %v1294, %v1406
  %1408 = vmatmul.f32.gmra.mxu0 %v268
  %v1409 = vpop.f32.mrf.mxu0
  %v1410 = vadd.f32 %v1297, %v1409
  %1411 = vmatmul.f32.gmra.mxu0 %v277
  %v1412 = vpop.f32.mrf.mxu0
  %v1413 = vadd.f32 %v1300, %v1412
  %1414 = vmatmul.f32.gmra.mxu0 %v286
  %v1415 = vpop.f32.mrf.mxu0
  %v1416 = vadd.f32 %v1303, %v1415
  %1417 = vmatmul.f32.gmra.mxu0 %v295
  %v1418 = vpop.f32.mrf.mxu0
  %v1419 = vadd.f32 %v1306, %v1418
  %1420 = vmatmul.f32.gmra.mxu0 %v304
  %v1421 = vpop.f32.mrf.mxu0
  %v1422 = vadd.f32 %v1309, %v1421
  %1423 = vmatmul.f32.gmra.mxu0 %v313
  %v1424 = vpop.f32.mrf.mxu0
  %v1425 = vadd.f32 %v1312, %v1424
  %1426 = vmatmul.f32.gmra.mxu0 %v322
  %v1427 = vpop.f32.mrf.mxu0
  %v1428 = vadd.f32 %v1315, %v1427
  %1429 = vmatmul.f32.gmra.mxu0 %v331
  %v1430 = vpop.f32.mrf.mxu0
  %v1431 = vadd.f32 %v1318, %v1430
  %1432 = vmatmul.f32.gmra.mxu0 %v340
  %v1433 = vpop.f32.mrf.mxu0
  %v1434 = vadd.f32 %v1321, %v1433
  %1435 = vmatmul.f32.gmra.mxu0 %v349
  %v1436 = vpop.f32.mrf.mxu0
  %v1437 = vadd.f32 %v1324, %v1436
  %1438 = vmatmul.f32.gmra.mxu0 %v358
  %v1439 = vpop.f32.mrf.mxu0
  %v1440 = vadd.f32 %v1327, %v1439
  %1441 = vmatmul.f32.gmra.mxu0 %v367
  %v1442 = vpop.f32.mrf.mxu0
  %v1443 = vadd.f32 %v1330, %v1442
  %1444 = vmatmul.f32.gmra.mxu0 %v376
  %v1445 = vpop.f32.mrf.mxu0
  %v1446 = vadd.f32 %v1333, %v1445
  %1447 = vmatmul.f32.gmra.mxu0 %v385
  %v1448 = vpop.f32.mrf.mxu0
  %v1449 = vadd.f32 %v1336, %v1448
  %1450 = vmatmul.f32.gmra.mxu0 %v394
  %v1451 = vpop.f32.mrf.mxu0
  %v1452 = vadd.f32 %v1339, %v1451
  %1453 = vmatmul.f32.gmra.mxu0 %v403
  %v1454 = vpop.f32.mrf.mxu0
  %v1455 = vadd.f32 %v1342, %v1454
  %1456 = vmatmul.f32.gmra.mxu0 %v412
  %v1457 = vpop.f32.mrf.mxu0
  %v1458 = vadd.f32 %v1345, %v1457
  %1459 = vmatmul.f32.gmra.mxu0 %v421
  %v1460 = vpop.f32.mrf.mxu0
  %v1461 = vadd.f32 %v1348, %v1460
  %1462 = vmatmul.f32.gmra.mxu0 %v430
  %v1463 = vpop.f32.mrf.mxu0
  %v1464 = vadd.f32 %v1351, %v1463
  %1465 = vmatmul.f32.gmra.mxu0 %v439
  %v1466 = vpop.f32.mrf.mxu0
  %v1467 = vadd.f32 %v1354, %v1466
  %1468 = vmatmul.f32.gmra.mxu0 %v448
  %v1469 = vpop.f32.mrf.mxu0
  %v1470 = vadd.f32 %v1357, %v1469
  %1471 = vmatmul.f32.gmra.mxu0 %v457
  %v1472 = vpop.f32.mrf.mxu0
  %v1473 = vadd.f32 %v1360, %v1472
  %1474 = vdwg.mxu0
  %s1475 = scalar_lea.vmem %s1, 2304
  %v1476 = vld [vmem:[%s1475] sm:$0xff]
  %v1477 = vld [vmem:[%s1475 + $0x8] sm:$0xff]
  %v1478 = vld [vmem:[%s1475 + $0x10] sm:$0xff]
  %v1479 = vld [vmem:[%s1475 + $0x18] sm:$0xff]
  %v1480 = vld [vmem:[%s1475 + $0x20] sm:$0xff]
  %v1481 = vld [vmem:[%s1475 + $0x28] sm:$0xff]
  %v1482 = vld [vmem:[%s1475 + $0x30] sm:$0xff]
  %v1483 = vld [vmem:[%s1475 + $0x38] sm:$0xff]
  %v1484 = vld [vmem:[%s1475 + $0x40] sm:$0xff]
  %v1485 = vld [vmem:[%s1475 + $0x48] sm:$0xff]
  %v1486 = vld [vmem:[%s1475 + $0x50] sm:$0xff]
  %v1487 = vld [vmem:[%s1475 + $0x58] sm:$0xff]
  %v1488 = vld [vmem:[%s1475 + $0x60] sm:$0xff]
  %v1489 = vld [vmem:[%s1475 + $0x68] sm:$0xff]
  %v1490 = vld [vmem:[%s1475 + $0x70] sm:$0xff]
  %v1491 = vld [vmem:[%s1475 + $0x78] sm:$0xff]
  %v1492 = vld [vmem:[%s1475 + $0x80] sm:$0xff]
  %v1493 = vld [vmem:[%s1475 + $0x88] sm:$0xff]
  %v1494 = vld [vmem:[%s1475 + $0x90] sm:$0xff]
  %v1495 = vld [vmem:[%s1475 + $0x98] sm:$0xff]
  %v1496 = vld [vmem:[%s1475 + $0xa0] sm:$0xff]
  %v1497 = vld [vmem:[%s1475 + $0xa8] sm:$0xff]
  %v1498 = vld [vmem:[%s1475 + $0xb0] sm:$0xff]
  %v1499 = vld [vmem:[%s1475 + $0xb8] sm:$0xff]
  %v1500 = vld [vmem:[%s1475 + $0xc0] sm:$0xff]
  %v1501 = vld [vmem:[%s1475 + $0xc8] sm:$0xff]
  %v1502 = vld [vmem:[%s1475 + $0xd0] sm:$0xff]
  %v1503 = vld [vmem:[%s1475 + $0xd8] sm:$0xff]
  %v1504 = vld [vmem:[%s1475 + $0xe0] sm:$0xff]
  %v1505 = vld [vmem:[%s1475 + $0xe8] sm:$0xff]
  %v1506 = vld [vmem:[%s1475 + $0xf0] sm:$0xff]
  %v1507 = vld [vmem:[%s1475 + $0xf8] sm:$0xff]
  %v1508 = vld [vmem:[%s1475 + $0x100] sm:$0xff]
  %v1509 = vld [vmem:[%s1475 + $0x108] sm:$0xff]
  %v1510 = vld [vmem:[%s1475 + $0x110] sm:$0xff]
  %v1511 = vld [vmem:[%s1475 + $0x118] sm:$0xff]
  %v1512 = vld [vmem:[%s1475 + $0x120] sm:$0xff]
  %v1513 = vld [vmem:[%s1475 + $0x128] sm:$0xff]
  %v1514 = vld [vmem:[%s1475 + $0x130] sm:$0xff]
  %v1515 = vld [vmem:[%s1475 + $0x138] sm:$0xff]
  %v1516 = vld [vmem:[%s1475 + $0x140] sm:$0xff]
  %v1517 = vld [vmem:[%s1475 + $0x148] sm:$0xff]
  %v1518 = vld [vmem:[%s1475 + $0x150] sm:$0xff]
  %v1519 = vld [vmem:[%s1475 + $0x158] sm:$0xff]
  %v1520 = vld [vmem:[%s1475 + $0x160] sm:$0xff]
  %v1521 = vld [vmem:[%s1475 + $0x168] sm:$0xff]
  %v1522 = vld [vmem:[%s1475 + $0x170] sm:$0xff]
  %v1523 = vld [vmem:[%s1475 + $0x178] sm:$0xff]
  %v1524 = vld [vmem:[%s1475 + $0x180] sm:$0xff]
  %v1525 = vld [vmem:[%s1475 + $0x188] sm:$0xff]
  %v1526 = vld [vmem:[%s1475 + $0x190] sm:$0xff]
  %v1527 = vld [vmem:[%s1475 + $0x198] sm:$0xff]
  %v1528 = vld [vmem:[%s1475 + $0x1a0] sm:$0xff]
  %v1529 = vld [vmem:[%s1475 + $0x1a8] sm:$0xff]
  %v1530 = vld [vmem:[%s1475 + $0x1b0] sm:$0xff]
  %v1531 = vld [vmem:[%s1475 + $0x1b8] sm:$0xff]
  %v1532 = vld [vmem:[%s1475 + $0x1c0] sm:$0xff]
  %v1533 = vld [vmem:[%s1475 + $0x1c8] sm:$0xff]
  %v1534 = vld [vmem:[%s1475 + $0x1d0] sm:$0xff]
  %v1535 = vld [vmem:[%s1475 + $0x1d8] sm:$0xff]
  %v1536 = vld [vmem:[%s1475 + $0x1e0] sm:$0xff]
  %v1537 = vld [vmem:[%s1475 + $0x1e8] sm:$0xff]
  %v1538 = vld [vmem:[%s1475 + $0x1f0] sm:$0xff]
  %v1539 = vld [vmem:[%s1475 + $0x1f8] sm:$0xff]
  %v1540 = vld [vmem:[%s1475 + $0x200] sm:$0xff]
  %v1541 = vld [vmem:[%s1475 + $0x208] sm:$0xff]
  %v1542 = vld [vmem:[%s1475 + $0x210] sm:$0xff]
  %v1543 = vld [vmem:[%s1475 + $0x218] sm:$0xff]
  %v1544 = vld [vmem:[%s1475 + $0x220] sm:$0xff]
  %v1545 = vld [vmem:[%s1475 + $0x228] sm:$0xff]
  %v1546 = vld [vmem:[%s1475 + $0x230] sm:$0xff]
  %v1547 = vld [vmem:[%s1475 + $0x238] sm:$0xff]
  %v1548 = vld [vmem:[%s1475 + $0x240] sm:$0xff]
  %v1549 = vld [vmem:[%s1475 + $0x248] sm:$0xff]
  %v1550 = vld [vmem:[%s1475 + $0x250] sm:$0xff]
  %v1551 = vld [vmem:[%s1475 + $0x258] sm:$0xff]
  %v1552 = vld [vmem:[%s1475 + $0x260] sm:$0xff]
  %v1553 = vld [vmem:[%s1475 + $0x268] sm:$0xff]
  %v1554 = vld [vmem:[%s1475 + $0x270] sm:$0xff]
  %v1555 = vld [vmem:[%s1475 + $0x278] sm:$0xff]
  %v1556 = vld [vmem:[%s1475 + $0x280] sm:$0xff]
  %v1557 = vld [vmem:[%s1475 + $0x288] sm:$0xff]
  %v1558 = vld [vmem:[%s1475 + $0x290] sm:$0xff]
  %v1559 = vld [vmem:[%s1475 + $0x298] sm:$0xff]
  %v1560 = vld [vmem:[%s1475 + $0x2a0] sm:$0xff]
  %v1561 = vld [vmem:[%s1475 + $0x2a8] sm:$0xff]
  %v1562 = vld [vmem:[%s1475 + $0x2b0] sm:$0xff]
  %v1563 = vld [vmem:[%s1475 + $0x2b8] sm:$0xff]
  %v1564 = vld [vmem:[%s1475 + $0x2c0] sm:$0xff]
  %v1565 = vld [vmem:[%s1475 + $0x2c8] sm:$0xff]
  %v1566 = vld [vmem:[%s1475 + $0x2d0] sm:$0xff]
  %v1567 = vld [vmem:[%s1475 + $0x2d8] sm:$0xff]
  %v1568 = vld [vmem:[%s1475 + $0x2e0] sm:$0xff]
  %v1569 = vld [vmem:[%s1475 + $0x2e8] sm:$0xff]
  %v1570 = vld [vmem:[%s1475 + $0x2f0] sm:$0xff]
  %v1571 = vld [vmem:[%s1475 + $0x2f8] sm:$0xff]
  %v1572 = vld [vmem:[%s1475 + $0x300] sm:$0xff]
  %v1573 = vld [vmem:[%s1475 + $0x308] sm:$0xff]
  %v1574 = vld [vmem:[%s1475 + $0x310] sm:$0xff]
  %v1575 = vld [vmem:[%s1475 + $0x318] sm:$0xff]
  %v1576 = vld [vmem:[%s1475 + $0x320] sm:$0xff]
  %v1577 = vld [vmem:[%s1475 + $0x328] sm:$0xff]
  %v1578 = vld [vmem:[%s1475 + $0x330] sm:$0xff]
  %v1579 = vld [vmem:[%s1475 + $0x338] sm:$0xff]
  %v1580 = vld [vmem:[%s1475 + $0x340] sm:$0xff]
  %v1581 = vld [vmem:[%s1475 + $0x348] sm:$0xff]
  %v1582 = vld [vmem:[%s1475 + $0x350] sm:$0xff]
  %v1583 = vld [vmem:[%s1475 + $0x358] sm:$0xff]
  %v1584 = vld [vmem:[%s1475 + $0x360] sm:$0xff]
  %v1585 = vld [vmem:[%s1475 + $0x368] sm:$0xff]
  %v1586 = vld [vmem:[%s1475 + $0x370] sm:$0xff]
  %v1587 = vld [vmem:[%s1475 + $0x378] sm:$0xff]
  %v1588 = vld [vmem:[%s1475 + $0x380] sm:$0xff]
  %v1589 = vld [vmem:[%s1475 + $0x388] sm:$0xff]
  %v1590 = vld [vmem:[%s1475 + $0x390] sm:$0xff]
  %v1591 = vld [vmem:[%s1475 + $0x398] sm:$0xff]
  %v1592 = vld [vmem:[%s1475 + $0x3a0] sm:$0xff]
  %v1593 = vld [vmem:[%s1475 + $0x3a8] sm:$0xff]
  %v1594 = vld [vmem:[%s1475 + $0x3b0] sm:$0xff]
  %v1595 = vld [vmem:[%s1475 + $0x3b8] sm:$0xff]
  %v1596 = vld [vmem:[%s1475 + $0x3c0] sm:$0xff]
  %v1597 = vld [vmem:[%s1475 + $0x3c8] sm:$0xff]
  %v1598 = vld [vmem:[%s1475 + $0x3d0] sm:$0xff]
  %v1599 = vld [vmem:[%s1475 + $0x3d8] sm:$0xff]
  %v1600 = vld [vmem:[%s1475 + $0x3e0] sm:$0xff]
  %v1601 = vld [vmem:[%s1475 + $0x3e8] sm:$0xff]
  %v1602 = vld [vmem:[%s1475 + $0x3f0] sm:$0xff]
  %v1603 = vld [vmem:[%s1475 + $0x3f8] sm:$0xff]
  %v1604 = vld [vmem:[%s1475 + $0x400] sm:$0xff]
  %v1605 = vld [vmem:[%s1475 + $0x408] sm:$0xff]
  %v1606 = vld [vmem:[%s1475 + $0x410] sm:$0xff]
  %v1607 = vld [vmem:[%s1475 + $0x418] sm:$0xff]
  %v1608 = vld [vmem:[%s1475 + $0x420] sm:$0xff]
  %v1609 = vld [vmem:[%s1475 + $0x428] sm:$0xff]
  %v1610 = vld [vmem:[%s1475 + $0x430] sm:$0xff]
  %v1611 = vld [vmem:[%s1475 + $0x438] sm:$0xff]
  %v1612 = vld [vmem:[%s1475 + $0x440] sm:$0xff]
  %v1613 = vld [vmem:[%s1475 + $0x448] sm:$0xff]
  %v1614 = vld [vmem:[%s1475 + $0x450] sm:$0xff]
  %v1615 = vld [vmem:[%s1475 + $0x458] sm:$0xff]
  %v1616 = vld [vmem:[%s1475 + $0x460] sm:$0xff]
  %v1617 = vld [vmem:[%s1475 + $0x468] sm:$0xff]
  %v1618 = vld [vmem:[%s1475 + $0x470] sm:$0xff]
  %v1619 = vld [vmem:[%s1475 + $0x478] sm:$0xff]
  %v1620 = vld [vmem:[%s1475 + $0x480] sm:$0xff]
  %v1621 = vld [vmem:[%s1475 + $0x488] sm:$0xff]
  %v1622 = vld [vmem:[%s1475 + $0x490] sm:$0xff]
  %v1623 = vld [vmem:[%s1475 + $0x498] sm:$0xff]
  %v1624 = vld [vmem:[%s1475 + $0x4a0] sm:$0xff]
  %v1625 = vld [vmem:[%s1475 + $0x4a8] sm:$0xff]
  %v1626 = vld [vmem:[%s1475 + $0x4b0] sm:$0xff]
  %v1627 = vld [vmem:[%s1475 + $0x4b8] sm:$0xff]
  %v1628 = vld [vmem:[%s1475 + $0x4c0] sm:$0xff]
  %v1629 = vld [vmem:[%s1475 + $0x4c8] sm:$0xff]
  %v1630 = vld [vmem:[%s1475 + $0x4d0] sm:$0xff]
  %v1631 = vld [vmem:[%s1475 + $0x4d8] sm:$0xff]
  %v1632 = vld [vmem:[%s1475 + $0x4e0] sm:$0xff]
  %v1633 = vld [vmem:[%s1475 + $0x4e8] sm:$0xff]
  %v1634 = vld [vmem:[%s1475 + $0x4f0] sm:$0xff]
  %v1635 = vld [vmem:[%s1475 + $0x4f8] sm:$0xff]
  %v1636 = vld [vmem:[%s1475 + $0x500] sm:$0xff]
  %v1637 = vld [vmem:[%s1475 + $0x508] sm:$0xff]
  %v1638 = vld [vmem:[%s1475 + $0x510] sm:$0xff]
  %v1639 = vld [vmem:[%s1475 + $0x518] sm:$0xff]
  %v1640 = vld [vmem:[%s1475 + $0x520] sm:$0xff]
  %v1641 = vld [vmem:[%s1475 + $0x528] sm:$0xff]
  %v1642 = vld [vmem:[%s1475 + $0x530] sm:$0xff]
  %v1643 = vld [vmem:[%s1475 + $0x538] sm:$0xff]
  %v1644 = vld [vmem:[%s1475 + $0x540] sm:$0xff]
  %v1645 = vld [vmem:[%s1475 + $0x548] sm:$0xff]
  %v1646 = vld [vmem:[%s1475 + $0x550] sm:$0xff]
  %v1647 = vld [vmem:[%s1475 + $0x558] sm:$0xff]
  %v1648 = vld [vmem:[%s1475 + $0x560] sm:$0xff]
  %v1649 = vld [vmem:[%s1475 + $0x568] sm:$0xff]
  %v1650 = vld [vmem:[%s1475 + $0x570] sm:$0xff]
  %v1651 = vld [vmem:[%s1475 + $0x578] sm:$0xff]
  %v1652 = vld [vmem:[%s1475 + $0x580] sm:$0xff]
  %v1653 = vld [vmem:[%s1475 + $0x588] sm:$0xff]
  %v1654 = vld [vmem:[%s1475 + $0x590] sm:$0xff]
  %v1655 = vld [vmem:[%s1475 + $0x598] sm:$0xff]
  %v1656 = vld [vmem:[%s1475 + $0x5a0] sm:$0xff]
  %v1657 = vld [vmem:[%s1475 + $0x5a8] sm:$0xff]
  %v1658 = vld [vmem:[%s1475 + $0x5b0] sm:$0xff]
  %v1659 = vld [vmem:[%s1475 + $0x5b8] sm:$0xff]
  %v1660 = vld [vmem:[%s1475 + $0x5c0] sm:$0xff]
  %v1661 = vld [vmem:[%s1475 + $0x5c8] sm:$0xff]
  %v1662 = vld [vmem:[%s1475 + $0x5d0] sm:$0xff]
  %v1663 = vld [vmem:[%s1475 + $0x5d8] sm:$0xff]
  %v1664 = vld [vmem:[%s1475 + $0x5e0] sm:$0xff]
  %v1665 = vld [vmem:[%s1475 + $0x5e8] sm:$0xff]
  %v1666 = vld [vmem:[%s1475 + $0x5f0] sm:$0xff]
  %v1667 = vld [vmem:[%s1475 + $0x5f8] sm:$0xff]
  %v1668 = vld [vmem:[%s1475 + $0x600] sm:$0xff]
  %v1669 = vld [vmem:[%s1475 + $0x608] sm:$0xff]
  %v1670 = vld [vmem:[%s1475 + $0x610] sm:$0xff]
  %v1671 = vld [vmem:[%s1475 + $0x618] sm:$0xff]
  %v1672 = vld [vmem:[%s1475 + $0x620] sm:$0xff]
  %v1673 = vld [vmem:[%s1475 + $0x628] sm:$0xff]
  %v1674 = vld [vmem:[%s1475 + $0x630] sm:$0xff]
  %v1675 = vld [vmem:[%s1475 + $0x638] sm:$0xff]
  %v1676 = vld [vmem:[%s1475 + $0x640] sm:$0xff]
  %v1677 = vld [vmem:[%s1475 + $0x648] sm:$0xff]
  %v1678 = vld [vmem:[%s1475 + $0x650] sm:$0xff]
  %v1679 = vld [vmem:[%s1475 + $0x658] sm:$0xff]
  %v1680 = vld [vmem:[%s1475 + $0x660] sm:$0xff]
  %v1681 = vld [vmem:[%s1475 + $0x668] sm:$0xff]
  %v1682 = vld [vmem:[%s1475 + $0x670] sm:$0xff]
  %v1683 = vld [vmem:[%s1475 + $0x678] sm:$0xff]
  %v1684 = vld [vmem:[%s1475 + $0x680] sm:$0xff]
  %v1685 = vld [vmem:[%s1475 + $0x688] sm:$0xff]
  %v1686 = vld [vmem:[%s1475 + $0x690] sm:$0xff]
  %v1687 = vld [vmem:[%s1475 + $0x698] sm:$0xff]
  %v1688 = vld [vmem:[%s1475 + $0x6a0] sm:$0xff]
  %v1689 = vld [vmem:[%s1475 + $0x6a8] sm:$0xff]
  %v1690 = vld [vmem:[%s1475 + $0x6b0] sm:$0xff]
  %v1691 = vld [vmem:[%s1475 + $0x6b8] sm:$0xff]
  %v1692 = vld [vmem:[%s1475 + $0x6c0] sm:$0xff]
  %v1693 = vld [vmem:[%s1475 + $0x6c8] sm:$0xff]
  %v1694 = vld [vmem:[%s1475 + $0x6d0] sm:$0xff]
  %v1695 = vld [vmem:[%s1475 + $0x6d8] sm:$0xff]
  %v1696 = vld [vmem:[%s1475 + $0x6e0] sm:$0xff]
  %v1697 = vld [vmem:[%s1475 + $0x6e8] sm:$0xff]
  %v1698 = vld [vmem:[%s1475 + $0x6f0] sm:$0xff]
  %v1699 = vld [vmem:[%s1475 + $0x6f8] sm:$0xff]
  %v1700 = vld [vmem:[%s1475 + $0x700] sm:$0xff]
  %v1701 = vld [vmem:[%s1475 + $0x708] sm:$0xff]
  %v1702 = vld [vmem:[%s1475 + $0x710] sm:$0xff]
  %v1703 = vld [vmem:[%s1475 + $0x718] sm:$0xff]
  %v1704 = vld [vmem:[%s1475 + $0x720] sm:$0xff]
  %v1705 = vld [vmem:[%s1475 + $0x728] sm:$0xff]
  %v1706 = vld [vmem:[%s1475 + $0x730] sm:$0xff]
  %v1707 = vld [vmem:[%s1475 + $0x738] sm:$0xff]
  %v1708 = vld [vmem:[%s1475 + $0x740] sm:$0xff]
  %v1709 = vld [vmem:[%s1475 + $0x748] sm:$0xff]
  %v1710 = vld [vmem:[%s1475 + $0x750] sm:$0xff]
  %v1711 = vld [vmem:[%s1475 + $0x758] sm:$0xff]
  %v1712 = vld [vmem:[%s1475 + $0x760] sm:$0xff]
  %v1713 = vld [vmem:[%s1475 + $0x768] sm:$0xff]
  %v1714 = vld [vmem:[%s1475 + $0x770] sm:$0xff]
  %v1715 = vld [vmem:[%s1475 + $0x778] sm:$0xff]
  %v1716 = vld [vmem:[%s1475 + $0x780] sm:$0xff]
  %v1717 = vld [vmem:[%s1475 + $0x788] sm:$0xff]
  %v1718 = vld [vmem:[%s1475 + $0x790] sm:$0xff]
  %v1719 = vld [vmem:[%s1475 + $0x798] sm:$0xff]
  %v1720 = vld [vmem:[%s1475 + $0x7a0] sm:$0xff]
  %v1721 = vld [vmem:[%s1475 + $0x7a8] sm:$0xff]
  %v1722 = vld [vmem:[%s1475 + $0x7b0] sm:$0xff]
  %v1723 = vld [vmem:[%s1475 + $0x7b8] sm:$0xff]
  %v1724 = vld [vmem:[%s1475 + $0x7c0] sm:$0xff]
  %v1725 = vld [vmem:[%s1475 + $0x7c8] sm:$0xff]
  %v1726 = vld [vmem:[%s1475 + $0x7d0] sm:$0xff]
  %v1727 = vld [vmem:[%s1475 + $0x7d8] sm:$0xff]
  %v1728 = vld [vmem:[%s1475 + $0x7e0] sm:$0xff]
  %v1729 = vld [vmem:[%s1475 + $0x7e8] sm:$0xff]
  %v1730 = vld [vmem:[%s1475 + $0x7f0] sm:$0xff]
  %v1731 = vld [vmem:[%s1475 + $0x7f8] sm:$0xff]
  %v1732 = vld [vmem:[%s1475 + $0x800] sm:$0xff]
  %v1733 = vld [vmem:[%s1475 + $0x808] sm:$0xff]
  %v1734 = vld [vmem:[%s1475 + $0x810] sm:$0xff]
  %v1735 = vld [vmem:[%s1475 + $0x818] sm:$0xff]
  %v1736 = vld [vmem:[%s1475 + $0x820] sm:$0xff]
  %v1737 = vld [vmem:[%s1475 + $0x828] sm:$0xff]
  %v1738 = vld [vmem:[%s1475 + $0x830] sm:$0xff]
  %v1739 = vld [vmem:[%s1475 + $0x838] sm:$0xff]
  %v1740 = vld [vmem:[%s1475 + $0x840] sm:$0xff]
  %v1741 = vld [vmem:[%s1475 + $0x848] sm:$0xff]
  %v1742 = vld [vmem:[%s1475 + $0x850] sm:$0xff]
  %v1743 = vld [vmem:[%s1475 + $0x858] sm:$0xff]
  %v1744 = vld [vmem:[%s1475 + $0x860] sm:$0xff]
  %v1745 = vld [vmem:[%s1475 + $0x868] sm:$0xff]
  %v1746 = vld [vmem:[%s1475 + $0x870] sm:$0xff]
  %v1747 = vld [vmem:[%s1475 + $0x878] sm:$0xff]
  %v1748 = vld [vmem:[%s1475 + $0x880] sm:$0xff]
  %v1749 = vld [vmem:[%s1475 + $0x888] sm:$0xff]
  %v1750 = vld [vmem:[%s1475 + $0x890] sm:$0xff]
  %v1751 = vld [vmem:[%s1475 + $0x898] sm:$0xff]
  %v1752 = vld [vmem:[%s1475 + $0x8a0] sm:$0xff]
  %v1753 = vld [vmem:[%s1475 + $0x8a8] sm:$0xff]
  %v1754 = vld [vmem:[%s1475 + $0x8b0] sm:$0xff]
  %v1755 = vld [vmem:[%s1475 + $0x8b8] sm:$0xff]
  %v1756 = vld [vmem:[%s1475 + $0x8c0] sm:$0xff]
  %v1757 = vld [vmem:[%s1475 + $0x8c8] sm:$0xff]
  %v1758 = vld [vmem:[%s1475 + $0x8d0] sm:$0xff]
  %v1759 = vld [vmem:[%s1475 + $0x8d8] sm:$0xff]
  %v1760 = vld [vmem:[%s1475 + $0x8e0] sm:$0xff]
  %v1761 = vld [vmem:[%s1475 + $0x8e8] sm:$0xff]
  %v1762 = vld [vmem:[%s1475 + $0x8f0] sm:$0xff]
  %v1763 = vld [vmem:[%s1475 + $0x8f8] sm:$0xff]
  %1764 = vmatpush.msra.mxu0 %v41
  %1765 = vmatpush.msra.mxu0 %v40
  %1766 = vmatpush.msra.mxu0 %v39
  %1767 = vmatpush.msra.mxu0 %v38
  %1768 = vmatpush.msra.mxu0 %v37
  %1769 = vmatpush.msra.mxu0 %v36
  %1770 = vmatpush.msra.mxu0 %v35
  %1771 = vmatpush.msra.mxu0 %v34
  %1772 = vmatpush.msra.mxu0 %v33
  %1773 = vmatpush.msra.mxu0 %v32
  %1774 = vmatpush.msra.mxu0 %v31
  %1775 = vmatpush.msra.mxu0 %v30
  %1776 = vmatpush.msra.mxu0 %v29
  %1777 = vmatpush.msra.mxu0 %v28
  %1778 = vmatpush.msra.mxu0 %v27
  %1779 = vmatpush.msra.mxu0 %v26
  %1780 = vmatmul.f32.gmra.mxu0 %v1476
  %v1781 = vpop.f32.mrf.mxu0
  %v1782 = vadd.f32 0.0, %v1781
  %1783 = vmatmul.f32.gmra.mxu0 %v1485
  %v1784 = vpop.f32.mrf.mxu0
  %v1785 = vadd.f32 0.0, %v1784
  %1786 = vmatmul.f32.gmra.mxu0 %v1494
  %v1787 = vpop.f32.mrf.mxu0
  %v1788 = vadd.f32 0.0, %v1787
  %1789 = vmatmul.f32.gmra.mxu0 %v1503
  %v1790 = vpop.f32.mrf.mxu0
  %v1791 = vadd.f32 0.0, %v1790
  %1792 = vmatmul.f32.gmra.mxu0 %v1512
  %v1793 = vpop.f32.mrf.mxu0
  %v1794 = vadd.f32 0.0, %v1793
  %1795 = vmatmul.f32.gmra.mxu0 %v1521
  %v1796 = vpop.f32.mrf.mxu0
  %v1797 = vadd.f32 0.0, %v1796
  %1798 = vmatmul.f32.gmra.mxu0 %v1530
  %v1799 = vpop.f32.mrf.mxu0
  %v1800 = vadd.f32 0.0, %v1799
  %1801 = vmatmul.f32.gmra.mxu0 %v1539
  %v1802 = vpop.f32.mrf.mxu0
  %v1803 = vadd.f32 0.0, %v1802
  %1804 = vmatmul.f32.gmra.mxu0 %v1548
  %v1805 = vpop.f32.mrf.mxu0
  %v1806 = vadd.f32 0.0, %v1805
  %1807 = vmatmul.f32.gmra.mxu0 %v1557
  %v1808 = vpop.f32.mrf.mxu0
  %v1809 = vadd.f32 0.0, %v1808
  %1810 = vmatmul.f32.gmra.mxu0 %v1566
  %v1811 = vpop.f32.mrf.mxu0
  %v1812 = vadd.f32 0.0, %v1811
  %1813 = vmatmul.f32.gmra.mxu0 %v1575
  %v1814 = vpop.f32.mrf.mxu0
  %v1815 = vadd.f32 0.0, %v1814
  %1816 = vmatmul.f32.gmra.mxu0 %v1584
  %v1817 = vpop.f32.mrf.mxu0
  %v1818 = vadd.f32 0.0, %v1817
  %1819 = vmatmul.f32.gmra.mxu0 %v1593
  %v1820 = vpop.f32.mrf.mxu0
  %v1821 = vadd.f32 0.0, %v1820
  %1822 = vmatmul.f32.gmra.mxu0 %v1602
  %v1823 = vpop.f32.mrf.mxu0
  %v1824 = vadd.f32 0.0, %v1823
  %1825 = vmatmul.f32.gmra.mxu0 %v1611
  %v1826 = vpop.f32.mrf.mxu0
  %v1827 = vadd.f32 0.0, %v1826
  %1828 = vmatmul.f32.gmra.mxu0 %v1620
  %v1829 = vpop.f32.mrf.mxu0
  %v1830 = vadd.f32 0.0, %v1829
  %1831 = vmatmul.f32.gmra.mxu0 %v1629
  %v1832 = vpop.f32.mrf.mxu0
  %v1833 = vadd.f32 0.0, %v1832
  %1834 = vmatmul.f32.gmra.mxu0 %v1638
  %v1835 = vpop.f32.mrf.mxu0
  %v1836 = vadd.f32 0.0, %v1835
  %1837 = vmatmul.f32.gmra.mxu0 %v1647
  %v1838 = vpop.f32.mrf.mxu0
  %v1839 = vadd.f32 0.0, %v1838
  %1840 = vmatmul.f32.gmra.mxu0 %v1656
  %v1841 = vpop.f32.mrf.mxu0
  %v1842 = vadd.f32 0.0, %v1841
  %1843 = vmatmul.f32.gmra.mxu0 %v1665
  %v1844 = vpop.f32.mrf.mxu0
  %v1845 = vadd.f32 0.0, %v1844
  %1846 = vmatmul.f32.gmra.mxu0 %v1674
  %v1847 = vpop.f32.mrf.mxu0
  %v1848 = vadd.f32 0.0, %v1847
  %1849 = vmatmul.f32.gmra.mxu0 %v1683
  %v1850 = vpop.f32.mrf.mxu0
  %v1851 = vadd.f32 0.0, %v1850
  %1852 = vmatmul.f32.gmra.mxu0 %v1692
  %v1853 = vpop.f32.mrf.mxu0
  %v1854 = vadd.f32 0.0, %v1853
  %1855 = vmatmul.f32.gmra.mxu0 %v1701
  %v1856 = vpop.f32.mrf.mxu0
  %v1857 = vadd.f32 0.0, %v1856
  %1858 = vmatmul.f32.gmra.mxu0 %v1710
  %v1859 = vpop.f32.mrf.mxu0
  %v1860 = vadd.f32 0.0, %v1859
  %1861 = vmatmul.f32.gmra.mxu0 %v1719
  %v1862 = vpop.f32.mrf.mxu0
  %v1863 = vadd.f32 0.0, %v1862
  %1864 = vmatmul.f32.gmra.mxu0 %v1728
  %v1865 = vpop.f32.mrf.mxu0
  %v1866 = vadd.f32 0.0, %v1865
  %1867 = vmatmul.f32.gmra.mxu0 %v1737
  %v1868 = vpop.f32.mrf.mxu0
  %v1869 = vadd.f32 0.0, %v1868
  %1870 = vmatmul.f32.gmra.mxu0 %v1746
  %v1871 = vpop.f32.mrf.mxu0
  %v1872 = vadd.f32 0.0, %v1871
  %1873 = vmatmul.f32.gmra.mxu0 %v1755
  %v1874 = vpop.f32.mrf.mxu0
  %v1875 = vadd.f32 0.0, %v1874
  %1876 = vdwg.mxu0
  %1877 = vmatpush.msra.mxu0 %v57
  %1878 = vmatpush.msra.mxu0 %v56
  %1879 = vmatpush.msra.mxu0 %v55
  %1880 = vmatpush.msra.mxu0 %v54
  %1881 = vmatpush.msra.mxu0 %v53
  %1882 = vmatpush.msra.mxu0 %v52
  %1883 = vmatpush.msra.mxu0 %v51
  %1884 = vmatpush.msra.mxu0 %v50
  %1885 = vmatpush.msra.mxu0 %v49
  %1886 = vmatpush.msra.mxu0 %v48
  %1887 = vmatpush.msra.mxu0 %v47
  %1888 = vmatpush.msra.mxu0 %v46
  %1889 = vmatpush.msra.mxu0 %v45
  %1890 = vmatpush.msra.mxu0 %v44
  %1891 = vmatpush.msra.mxu0 %v43
  %1892 = vmatpush.msra.mxu0 %v42
  %1893 = vmatmul.f32.gmra.mxu0 %v1477
  %v1894 = vpop.f32.mrf.mxu0
  %v1895 = vadd.f32 %v1782, %v1894
  %1896 = vmatmul.f32.gmra.mxu0 %v1486
  %v1897 = vpop.f32.mrf.mxu0
  %v1898 = vadd.f32 %v1785, %v1897
  %1899 = vmatmul.f32.gmra.mxu0 %v1495
  %v1900 = vpop.f32.mrf.mxu0
  %v1901 = vadd.f32 %v1788, %v1900
  %1902 = vmatmul.f32.gmra.mxu0 %v1504
  %v1903 = vpop.f32.mrf.mxu0
  %v1904 = vadd.f32 %v1791, %v1903
  %1905 = vmatmul.f32.gmra.mxu0 %v1513
  %v1906 = vpop.f32.mrf.mxu0
  %v1907 = vadd.f32 %v1794, %v1906
  %1908 = vmatmul.f32.gmra.mxu0 %v1522
  %v1909 = vpop.f32.mrf.mxu0
  %v1910 = vadd.f32 %v1797, %v1909
  %1911 = vmatmul.f32.gmra.mxu0 %v1531
  %v1912 = vpop.f32.mrf.mxu0
  %v1913 = vadd.f32 %v1800, %v1912
  %1914 = vmatmul.f32.gmra.mxu0 %v1540
  %v1915 = vpop.f32.mrf.mxu0
  %v1916 = vadd.f32 %v1803, %v1915
  %1917 = vmatmul.f32.gmra.mxu0 %v1549
  %v1918 = vpop.f32.mrf.mxu0
  %v1919 = vadd.f32 %v1806, %v1918
  %1920 = vmatmul.f32.gmra.mxu0 %v1558
  %v1921 = vpop.f32.mrf.mxu0
  %v1922 = vadd.f32 %v1809, %v1921
  %1923 = vmatmul.f32.gmra.mxu0 %v1567
  %v1924 = vpop.f32.mrf.mxu0
  %v1925 = vadd.f32 %v1812, %v1924
  %1926 = vmatmul.f32.gmra.mxu0 %v1576
  %v1927 = vpop.f32.mrf.mxu0
  %v1928 = vadd.f32 %v1815, %v1927
  %1929 = vmatmul.f32.gmra.mxu0 %v1585
  %v1930 = vpop.f32.mrf.mxu0
  %v1931 = vadd.f32 %v1818, %v1930
  %1932 = vmatmul.f32.gmra.mxu0 %v1594
  %v1933 = vpop.f32.mrf.mxu0
  %v1934 = vadd.f32 %v1821, %v1933
  %1935 = vmatmul.f32.gmra.mxu0 %v1603
  %v1936 = vpop.f32.mrf.mxu0
  %v1937 = vadd.f32 %v1824, %v1936
  %1938 = vmatmul.f32.gmra.mxu0 %v1612
  %v1939 = vpop.f32.mrf.mxu0
  %v1940 = vadd.f32 %v1827, %v1939
  %1941 = vmatmul.f32.gmra.mxu0 %v1621
  %v1942 = vpop.f32.mrf.mxu0
  %v1943 = vadd.f32 %v1830, %v1942
  %1944 = vmatmul.f32.gmra.mxu0 %v1630
  %v1945 = vpop.f32.mrf.mxu0
  %v1946 = vadd.f32 %v1833, %v1945
  %1947 = vmatmul.f32.gmra.mxu0 %v1639
  %v1948 = vpop.f32.mrf.mxu0
  %v1949 = vadd.f32 %v1836, %v1948
  %1950 = vmatmul.f32.gmra.mxu0 %v1648
  %v1951 = vpop.f32.mrf.mxu0
  %v1952 = vadd.f32 %v1839, %v1951
  %1953 = vmatmul.f32.gmra.mxu0 %v1657
  %v1954 = vpop.f32.mrf.mxu0
  %v1955 = vadd.f32 %v1842, %v1954
  %1956 = vmatmul.f32.gmra.mxu0 %v1666
  %v1957 = vpop.f32.mrf.mxu0
  %v1958 = vadd.f32 %v1845, %v1957
  %1959 = vmatmul.f32.gmra.mxu0 %v1675
  %v1960 = vpop.f32.mrf.mxu0
  %v1961 = vadd.f32 %v1848, %v1960
  %1962 = vmatmul.f32.gmra.mxu0 %v1684
  %v1963 = vpop.f32.mrf.mxu0
  %v1964 = vadd.f32 %v1851, %v1963
  %1965 = vmatmul.f32.gmra.mxu0 %v1693
  %v1966 = vpop.f32.mrf.mxu0
  %v1967 = vadd.f32 %v1854, %v1966
  %1968 = vmatmul.f32.gmra.mxu0 %v1702
  %v1969 = vpop.f32.mrf.mxu0
  %v1970 = vadd.f32 %v1857, %v1969
  %1971 = vmatmul.f32.gmra.mxu0 %v1711
  %v1972 = vpop.f32.mrf.mxu0
  %v1973 = vadd.f32 %v1860, %v1972
  %1974 = vmatmul.f32.gmra.mxu0 %v1720
  %v1975 = vpop.f32.mrf.mxu0
  %v1976 = vadd.f32 %v1863, %v1975
  %1977 = vmatmul.f32.gmra.mxu0 %v1729
  %v1978 = vpop.f32.mrf.mxu0
  %v1979 = vadd.f32 %v1866, %v1978
  %1980 = vmatmul.f32.gmra.mxu0 %v1738
  %v1981 = vpop.f32.mrf.mxu0
  %v1982 = vadd.f32 %v1869, %v1981
  %1983 = vmatmul.f32.gmra.mxu0 %v1747
  %v1984 = vpop.f32.mrf.mxu0
  %v1985 = vadd.f32 %v1872, %v1984
  %1986 = vmatmul.f32.gmra.mxu0 %v1756
  %v1987 = vpop.f32.mrf.mxu0
  %v1988 = vadd.f32 %v1875, %v1987
  %1989 = vdwg.mxu0
  %1990 = vmatpush.msra.mxu0 %v73
  %1991 = vmatpush.msra.mxu0 %v72
  %1992 = vmatpush.msra.mxu0 %v71
  %1993 = vmatpush.msra.mxu0 %v70
  %1994 = vmatpush.msra.mxu0 %v69
  %1995 = vmatpush.msra.mxu0 %v68
  %1996 = vmatpush.msra.mxu0 %v67
  %1997 = vmatpush.msra.mxu0 %v66
  %1998 = vmatpush.msra.mxu0 %v65
  %1999 = vmatpush.msra.mxu0 %v64
  %2000 = vmatpush.msra.mxu0 %v63
  %2001 = vmatpush.msra.mxu0 %v62
  %2002 = vmatpush.msra.mxu0 %v61
  %2003 = vmatpush.msra.mxu0 %v60
  %2004 = vmatpush.msra.mxu0 %v59
  %2005 = vmatpush.msra.mxu0 %v58
  %2006 = vmatmul.f32.gmra.mxu0 %v1478
  %v2007 = vpop.f32.mrf.mxu0
  %v2008 = vadd.f32 %v1895, %v2007
  %2009 = vmatmul.f32.gmra.mxu0 %v1487
  %v2010 = vpop.f32.mrf.mxu0
  %v2011 = vadd.f32 %v1898, %v2010
  %2012 = vmatmul.f32.gmra.mxu0 %v1496
  %v2013 = vpop.f32.mrf.mxu0
  %v2014 = vadd.f32 %v1901, %v2013
  %2015 = vmatmul.f32.gmra.mxu0 %v1505
  %v2016 = vpop.f32.mrf.mxu0
  %v2017 = vadd.f32 %v1904, %v2016
  %2018 = vmatmul.f32.gmra.mxu0 %v1514
  %v2019 = vpop.f32.mrf.mxu0
  %v2020 = vadd.f32 %v1907, %v2019
  %2021 = vmatmul.f32.gmra.mxu0 %v1523
  %v2022 = vpop.f32.mrf.mxu0
  %v2023 = vadd.f32 %v1910, %v2022
  %2024 = vmatmul.f32.gmra.mxu0 %v1532
  %v2025 = vpop.f32.mrf.mxu0
  %v2026 = vadd.f32 %v1913, %v2025
  %2027 = vmatmul.f32.gmra.mxu0 %v1541
  %v2028 = vpop.f32.mrf.mxu0
  %v2029 = vadd.f32 %v1916, %v2028
  %2030 = vmatmul.f32.gmra.mxu0 %v1550
  %v2031 = vpop.f32.mrf.mxu0
  %v2032 = vadd.f32 %v1919, %v2031
  %2033 = vmatmul.f32.gmra.mxu0 %v1559
  %v2034 = vpop.f32.mrf.mxu0
  %v2035 = vadd.f32 %v1922, %v2034
  %2036 = vmatmul.f32.gmra.mxu0 %v1568
  %v2037 = vpop.f32.mrf.mxu0
  %v2038 = vadd.f32 %v1925, %v2037
  %2039 = vmatmul.f32.gmra.mxu0 %v1577
  %v2040 = vpop.f32.mrf.mxu0
  %v2041 = vadd.f32 %v1928, %v2040
  %2042 = vmatmul.f32.gmra.mxu0 %v1586
  %v2043 = vpop.f32.mrf.mxu0
  %v2044 = vadd.f32 %v1931, %v2043
  %2045 = vmatmul.f32.gmra.mxu0 %v1595
  %v2046 = vpop.f32.mrf.mxu0
  %v2047 = vadd.f32 %v1934, %v2046
  %2048 = vmatmul.f32.gmra.mxu0 %v1604
  %v2049 = vpop.f32.mrf.mxu0
  %v2050 = vadd.f32 %v1937, %v2049
  %2051 = vmatmul.f32.gmra.mxu0 %v1613
  %v2052 = vpop.f32.mrf.mxu0
  %v2053 = vadd.f32 %v1940, %v2052
  %2054 = vmatmul.f32.gmra.mxu0 %v1622
  %v2055 = vpop.f32.mrf.mxu0
  %v2056 = vadd.f32 %v1943, %v2055
  %2057 = vmatmul.f32.gmra.mxu0 %v1631
  %v2058 = vpop.f32.mrf.mxu0
  %v2059 = vadd.f32 %v1946, %v2058
  %2060 = vmatmul.f32.gmra.mxu0 %v1640
  %v2061 = vpop.f32.mrf.mxu0
  %v2062 = vadd.f32 %v1949, %v2061
  %2063 = vmatmul.f32.gmra.mxu0 %v1649
  %v2064 = vpop.f32.mrf.mxu0
  %v2065 = vadd.f32 %v1952, %v2064
  %2066 = vmatmul.f32.gmra.mxu0 %v1658
  %v2067 = vpop.f32.mrf.mxu0
  %v2068 = vadd.f32 %v1955, %v2067
  %2069 = vmatmul.f32.gmra.mxu0 %v1667
  %v2070 = vpop.f32.mrf.mxu0
  %v2071 = vadd.f32 %v1958, %v2070
  %2072 = vmatmul.f32.gmra.mxu0 %v1676
  %v2073 = vpop.f32.mrf.mxu0
  %v2074 = vadd.f32 %v1961, %v2073
  %2075 = vmatmul.f32.gmra.mxu0 %v1685
  %v2076 = vpop.f32.mrf.mxu0
  %v2077 = vadd.f32 %v1964, %v2076
  %2078 = vmatmul.f32.gmra.mxu0 %v1694
  %v2079 = vpop.f32.mrf.mxu0
  %v2080 = vadd.f32 %v1967, %v2079
  %2081 = vmatmul.f32.gmra.mxu0 %v1703
  %v2082 = vpop.f32.mrf.mxu0
  %v2083 = vadd.f32 %v1970, %v2082
  %2084 = vmatmul.f32.gmra.mxu0 %v1712
  %v2085 = vpop.f32.mrf.mxu0
  %v2086 = vadd.f32 %v1973, %v2085
  %2087 = vmatmul.f32.gmra.mxu0 %v1721
  %v2088 = vpop.f32.mrf.mxu0
  %v2089 = vadd.f32 %v1976, %v2088
  %2090 = vmatmul.f32.gmra.mxu0 %v1730
  %v2091 = vpop.f32.mrf.mxu0
  %v2092 = vadd.f32 %v1979, %v2091
  %2093 = vmatmul.f32.gmra.mxu0 %v1739
  %v2094 = vpop.f32.mrf.mxu0
  %v2095 = vadd.f32 %v1982, %v2094
  %2096 = vmatmul.f32.gmra.mxu0 %v1748
  %v2097 = vpop.f32.mrf.mxu0
  %v2098 = vadd.f32 %v1985, %v2097
  %2099 = vmatmul.f32.gmra.mxu0 %v1757
  %v2100 = vpop.f32.mrf.mxu0
  %v2101 = vadd.f32 %v1988, %v2100
  %2102 = vdwg.mxu0
  %2103 = vmatpush.msra.mxu0 %v89
  %2104 = vmatpush.msra.mxu0 %v88
  %2105 = vmatpush.msra.mxu0 %v87
  %2106 = vmatpush.msra.mxu0 %v86
  %2107 = vmatpush.msra.mxu0 %v85
  %2108 = vmatpush.msra.mxu0 %v84
  %2109 = vmatpush.msra.mxu0 %v83
  %2110 = vmatpush.msra.mxu0 %v82
  %2111 = vmatpush.msra.mxu0 %v81
  %2112 = vmatpush.msra.mxu0 %v80
  %2113 = vmatpush.msra.mxu0 %v79
  %2114 = vmatpush.msra.mxu0 %v78
  %2115 = vmatpush.msra.mxu0 %v77
  %2116 = vmatpush.msra.mxu0 %v76
  %2117 = vmatpush.msra.mxu0 %v75
  %2118 = vmatpush.msra.mxu0 %v74
  %2119 = vmatmul.f32.gmra.mxu0 %v1479
  %v2120 = vpop.f32.mrf.mxu0
  %v2121 = vadd.f32 %v2008, %v2120
  %2122 = vmatmul.f32.gmra.mxu0 %v1488
  %v2123 = vpop.f32.mrf.mxu0
  %v2124 = vadd.f32 %v2011, %v2123
  %2125 = vmatmul.f32.gmra.mxu0 %v1497
  %v2126 = vpop.f32.mrf.mxu0
  %v2127 = vadd.f32 %v2014, %v2126
  %2128 = vmatmul.f32.gmra.mxu0 %v1506
  %v2129 = vpop.f32.mrf.mxu0
  %v2130 = vadd.f32 %v2017, %v2129
  %2131 = vmatmul.f32.gmra.mxu0 %v1515
  %v2132 = vpop.f32.mrf.mxu0
  %v2133 = vadd.f32 %v2020, %v2132
  %2134 = vmatmul.f32.gmra.mxu0 %v1524
  %v2135 = vpop.f32.mrf.mxu0
  %v2136 = vadd.f32 %v2023, %v2135
  %2137 = vmatmul.f32.gmra.mxu0 %v1533
  %v2138 = vpop.f32.mrf.mxu0
  %v2139 = vadd.f32 %v2026, %v2138
  %2140 = vmatmul.f32.gmra.mxu0 %v1542
  %v2141 = vpop.f32.mrf.mxu0
  %v2142 = vadd.f32 %v2029, %v2141
  %2143 = vmatmul.f32.gmra.mxu0 %v1551
  %v2144 = vpop.f32.mrf.mxu0
  %v2145 = vadd.f32 %v2032, %v2144
  %2146 = vmatmul.f32.gmra.mxu0 %v1560
  %v2147 = vpop.f32.mrf.mxu0
  %v2148 = vadd.f32 %v2035, %v2147
  %2149 = vmatmul.f32.gmra.mxu0 %v1569
  %v2150 = vpop.f32.mrf.mxu0
  %v2151 = vadd.f32 %v2038, %v2150
  %2152 = vmatmul.f32.gmra.mxu0 %v1578
  %v2153 = vpop.f32.mrf.mxu0
  %v2154 = vadd.f32 %v2041, %v2153
  %2155 = vmatmul.f32.gmra.mxu0 %v1587
  %v2156 = vpop.f32.mrf.mxu0
  %v2157 = vadd.f32 %v2044, %v2156
  %2158 = vmatmul.f32.gmra.mxu0 %v1596
  %v2159 = vpop.f32.mrf.mxu0
  %v2160 = vadd.f32 %v2047, %v2159
  %2161 = vmatmul.f32.gmra.mxu0 %v1605
  %v2162 = vpop.f32.mrf.mxu0
  %v2163 = vadd.f32 %v2050, %v2162
  %2164 = vmatmul.f32.gmra.mxu0 %v1614
  %v2165 = vpop.f32.mrf.mxu0
  %v2166 = vadd.f32 %v2053, %v2165
  %2167 = vmatmul.f32.gmra.mxu0 %v1623
  %v2168 = vpop.f32.mrf.mxu0
  %v2169 = vadd.f32 %v2056, %v2168
  %2170 = vmatmul.f32.gmra.mxu0 %v1632
  %v2171 = vpop.f32.mrf.mxu0
  %v2172 = vadd.f32 %v2059, %v2171
  %2173 = vmatmul.f32.gmra.mxu0 %v1641
  %v2174 = vpop.f32.mrf.mxu0
  %v2175 = vadd.f32 %v2062, %v2174
  %2176 = vmatmul.f32.gmra.mxu0 %v1650
  %v2177 = vpop.f32.mrf.mxu0
  %v2178 = vadd.f32 %v2065, %v2177
  %2179 = vmatmul.f32.gmra.mxu0 %v1659
  %v2180 = vpop.f32.mrf.mxu0
  %v2181 = vadd.f32 %v2068, %v2180
  %2182 = vmatmul.f32.gmra.mxu0 %v1668
  %v2183 = vpop.f32.mrf.mxu0
  %v2184 = vadd.f32 %v2071, %v2183
  %2185 = vmatmul.f32.gmra.mxu0 %v1677
  %v2186 = vpop.f32.mrf.mxu0
  %v2187 = vadd.f32 %v2074, %v2186
  %2188 = vmatmul.f32.gmra.mxu0 %v1686
  %v2189 = vpop.f32.mrf.mxu0
  %v2190 = vadd.f32 %v2077, %v2189
  %2191 = vmatmul.f32.gmra.mxu0 %v1695
  %v2192 = vpop.f32.mrf.mxu0
  %v2193 = vadd.f32 %v2080, %v2192
  %2194 = vmatmul.f32.gmra.mxu0 %v1704
  %v2195 = vpop.f32.mrf.mxu0
  %v2196 = vadd.f32 %v2083, %v2195
  %2197 = vmatmul.f32.gmra.mxu0 %v1713
  %v2198 = vpop.f32.mrf.mxu0
  %v2199 = vadd.f32 %v2086, %v2198
  %2200 = vmatmul.f32.gmra.mxu0 %v1722
  %v2201 = vpop.f32.mrf.mxu0
  %v2202 = vadd.f32 %v2089, %v2201
  %2203 = vmatmul.f32.gmra.mxu0 %v1731
  %v2204 = vpop.f32.mrf.mxu0
  %v2205 = vadd.f32 %v2092, %v2204
  %2206 = vmatmul.f32.gmra.mxu0 %v1740
  %v2207 = vpop.f32.mrf.mxu0
  %v2208 = vadd.f32 %v2095, %v2207
  %2209 = vmatmul.f32.gmra.mxu0 %v1749
  %v2210 = vpop.f32.mrf.mxu0
  %v2211 = vadd.f32 %v2098, %v2210
  %2212 = vmatmul.f32.gmra.mxu0 %v1758
  %v2213 = vpop.f32.mrf.mxu0
  %v2214 = vadd.f32 %v2101, %v2213
  %2215 = vdwg.mxu0
  %2216 = vmatpush.msra.mxu0 %v105
  %2217 = vmatpush.msra.mxu0 %v104
  %2218 = vmatpush.msra.mxu0 %v103
  %2219 = vmatpush.msra.mxu0 %v102
  %2220 = vmatpush.msra.mxu0 %v101
  %2221 = vmatpush.msra.mxu0 %v100
  %2222 = vmatpush.msra.mxu0 %v99
  %2223 = vmatpush.msra.mxu0 %v98
  %2224 = vmatpush.msra.mxu0 %v97
  %2225 = vmatpush.msra.mxu0 %v96
  %2226 = vmatpush.msra.mxu0 %v95
  %2227 = vmatpush.msra.mxu0 %v94
  %2228 = vmatpush.msra.mxu0 %v93
  %2229 = vmatpush.msra.mxu0 %v92
  %2230 = vmatpush.msra.mxu0 %v91
  %2231 = vmatpush.msra.mxu0 %v90
  %2232 = vmatmul.f32.gmra.mxu0 %v1480
  %v2233 = vpop.f32.mrf.mxu0
  %v2234 = vadd.f32 %v2121, %v2233
  %2235 = vmatmul.f32.gmra.mxu0 %v1489
  %v2236 = vpop.f32.mrf.mxu0
  %v2237 = vadd.f32 %v2124, %v2236
  %2238 = vmatmul.f32.gmra.mxu0 %v1498
  %v2239 = vpop.f32.mrf.mxu0
  %v2240 = vadd.f32 %v2127, %v2239
  %2241 = vmatmul.f32.gmra.mxu0 %v1507
  %v2242 = vpop.f32.mrf.mxu0
  %v2243 = vadd.f32 %v2130, %v2242
  %2244 = vmatmul.f32.gmra.mxu0 %v1516
  %v2245 = vpop.f32.mrf.mxu0
  %v2246 = vadd.f32 %v2133, %v2245
  %2247 = vmatmul.f32.gmra.mxu0 %v1525
  %v2248 = vpop.f32.mrf.mxu0
  %v2249 = vadd.f32 %v2136, %v2248
  %2250 = vmatmul.f32.gmra.mxu0 %v1534
  %v2251 = vpop.f32.mrf.mxu0
  %v2252 = vadd.f32 %v2139, %v2251
  %2253 = vmatmul.f32.gmra.mxu0 %v1543
  %v2254 = vpop.f32.mrf.mxu0
  %v2255 = vadd.f32 %v2142, %v2254
  %2256 = vmatmul.f32.gmra.mxu0 %v1552
  %v2257 = vpop.f32.mrf.mxu0
  %v2258 = vadd.f32 %v2145, %v2257
  %2259 = vmatmul.f32.gmra.mxu0 %v1561
  %v2260 = vpop.f32.mrf.mxu0
  %v2261 = vadd.f32 %v2148, %v2260
  %2262 = vmatmul.f32.gmra.mxu0 %v1570
  %v2263 = vpop.f32.mrf.mxu0
  %v2264 = vadd.f32 %v2151, %v2263
  %2265 = vmatmul.f32.gmra.mxu0 %v1579
  %v2266 = vpop.f32.mrf.mxu0
  %v2267 = vadd.f32 %v2154, %v2266
  %2268 = vmatmul.f32.gmra.mxu0 %v1588
  %v2269 = vpop.f32.mrf.mxu0
  %v2270 = vadd.f32 %v2157, %v2269
  %2271 = vmatmul.f32.gmra.mxu0 %v1597
  %v2272 = vpop.f32.mrf.mxu0
  %v2273 = vadd.f32 %v2160, %v2272
  %2274 = vmatmul.f32.gmra.mxu0 %v1606
  %v2275 = vpop.f32.mrf.mxu0
  %v2276 = vadd.f32 %v2163, %v2275
  %2277 = vmatmul.f32.gmra.mxu0 %v1615
  %v2278 = vpop.f32.mrf.mxu0
  %v2279 = vadd.f32 %v2166, %v2278
  %2280 = vmatmul.f32.gmra.mxu0 %v1624
  %v2281 = vpop.f32.mrf.mxu0
  %v2282 = vadd.f32 %v2169, %v2281
  %2283 = vmatmul.f32.gmra.mxu0 %v1633
  %v2284 = vpop.f32.mrf.mxu0
  %v2285 = vadd.f32 %v2172, %v2284
  %2286 = vmatmul.f32.gmra.mxu0 %v1642
  %v2287 = vpop.f32.mrf.mxu0
  %v2288 = vadd.f32 %v2175, %v2287
  %2289 = vmatmul.f32.gmra.mxu0 %v1651
  %v2290 = vpop.f32.mrf.mxu0
  %v2291 = vadd.f32 %v2178, %v2290
  %2292 = vmatmul.f32.gmra.mxu0 %v1660
  %v2293 = vpop.f32.mrf.mxu0
  %v2294 = vadd.f32 %v2181, %v2293
  %2295 = vmatmul.f32.gmra.mxu0 %v1669
  %v2296 = vpop.f32.mrf.mxu0
  %v2297 = vadd.f32 %v2184, %v2296
  %2298 = vmatmul.f32.gmra.mxu0 %v1678
  %v2299 = vpop.f32.mrf.mxu0
  %v2300 = vadd.f32 %v2187, %v2299
  %2301 = vmatmul.f32.gmra.mxu0 %v1687
  %v2302 = vpop.f32.mrf.mxu0
  %v2303 = vadd.f32 %v2190, %v2302
  %2304 = vmatmul.f32.gmra.mxu0 %v1696
  %v2305 = vpop.f32.mrf.mxu0
  %v2306 = vadd.f32 %v2193, %v2305
  %2307 = vmatmul.f32.gmra.mxu0 %v1705
  %v2308 = vpop.f32.mrf.mxu0
  %v2309 = vadd.f32 %v2196, %v2308
  %2310 = vmatmul.f32.gmra.mxu0 %v1714
  %v2311 = vpop.f32.mrf.mxu0
  %v2312 = vadd.f32 %v2199, %v2311
  %2313 = vmatmul.f32.gmra.mxu0 %v1723
  %v2314 = vpop.f32.mrf.mxu0
  %v2315 = vadd.f32 %v2202, %v2314
  %2316 = vmatmul.f32.gmra.mxu0 %v1732
  %v2317 = vpop.f32.mrf.mxu0
  %v2318 = vadd.f32 %v2205, %v2317
  %2319 = vmatmul.f32.gmra.mxu0 %v1741
  %v2320 = vpop.f32.mrf.mxu0
  %v2321 = vadd.f32 %v2208, %v2320
  %2322 = vmatmul.f32.gmra.mxu0 %v1750
  %v2323 = vpop.f32.mrf.mxu0
  %v2324 = vadd.f32 %v2211, %v2323
  %2325 = vmatmul.f32.gmra.mxu0 %v1759
  %v2326 = vpop.f32.mrf.mxu0
  %v2327 = vadd.f32 %v2214, %v2326
  %2328 = vdwg.mxu0
  %2329 = vmatpush.msra.mxu0 %v121
  %2330 = vmatpush.msra.mxu0 %v120
  %2331 = vmatpush.msra.mxu0 %v119
  %2332 = vmatpush.msra.mxu0 %v118
  %2333 = vmatpush.msra.mxu0 %v117
  %2334 = vmatpush.msra.mxu0 %v116
  %2335 = vmatpush.msra.mxu0 %v115
  %2336 = vmatpush.msra.mxu0 %v114
  %2337 = vmatpush.msra.mxu0 %v113
  %2338 = vmatpush.msra.mxu0 %v112
  %2339 = vmatpush.msra.mxu0 %v111
  %2340 = vmatpush.msra.mxu0 %v110
  %2341 = vmatpush.msra.mxu0 %v109
  %2342 = vmatpush.msra.mxu0 %v108
  %2343 = vmatpush.msra.mxu0 %v107
  %2344 = vmatpush.msra.mxu0 %v106
  %2345 = vmatmul.f32.gmra.mxu0 %v1481
  %v2346 = vpop.f32.mrf.mxu0
  %v2347 = vadd.f32 %v2234, %v2346
  %2348 = vmatmul.f32.gmra.mxu0 %v1490
  %v2349 = vpop.f32.mrf.mxu0
  %v2350 = vadd.f32 %v2237, %v2349
  %2351 = vmatmul.f32.gmra.mxu0 %v1499
  %v2352 = vpop.f32.mrf.mxu0
  %v2353 = vadd.f32 %v2240, %v2352
  %2354 = vmatmul.f32.gmra.mxu0 %v1508
  %v2355 = vpop.f32.mrf.mxu0
  %v2356 = vadd.f32 %v2243, %v2355
  %2357 = vmatmul.f32.gmra.mxu0 %v1517
  %v2358 = vpop.f32.mrf.mxu0
  %v2359 = vadd.f32 %v2246, %v2358
  %2360 = vmatmul.f32.gmra.mxu0 %v1526
  %v2361 = vpop.f32.mrf.mxu0
  %v2362 = vadd.f32 %v2249, %v2361
  %2363 = vmatmul.f32.gmra.mxu0 %v1535
  %v2364 = vpop.f32.mrf.mxu0
  %v2365 = vadd.f32 %v2252, %v2364
  %2366 = vmatmul.f32.gmra.mxu0 %v1544
  %v2367 = vpop.f32.mrf.mxu0
  %v2368 = vadd.f32 %v2255, %v2367
  %2369 = vmatmul.f32.gmra.mxu0 %v1553
  %v2370 = vpop.f32.mrf.mxu0
  %v2371 = vadd.f32 %v2258, %v2370
  %2372 = vmatmul.f32.gmra.mxu0 %v1562
  %v2373 = vpop.f32.mrf.mxu0
  %v2374 = vadd.f32 %v2261, %v2373
  %2375 = vmatmul.f32.gmra.mxu0 %v1571
  %v2376 = vpop.f32.mrf.mxu0
  %v2377 = vadd.f32 %v2264, %v2376
  %2378 = vmatmul.f32.gmra.mxu0 %v1580
  %v2379 = vpop.f32.mrf.mxu0
  %v2380 = vadd.f32 %v2267, %v2379
  %2381 = vmatmul.f32.gmra.mxu0 %v1589
  %v2382 = vpop.f32.mrf.mxu0
  %v2383 = vadd.f32 %v2270, %v2382
  %2384 = vmatmul.f32.gmra.mxu0 %v1598
  %v2385 = vpop.f32.mrf.mxu0
  %v2386 = vadd.f32 %v2273, %v2385
  %2387 = vmatmul.f32.gmra.mxu0 %v1607
  %v2388 = vpop.f32.mrf.mxu0
  %v2389 = vadd.f32 %v2276, %v2388
  %2390 = vmatmul.f32.gmra.mxu0 %v1616
  %v2391 = vpop.f32.mrf.mxu0
  %v2392 = vadd.f32 %v2279, %v2391
  %2393 = vmatmul.f32.gmra.mxu0 %v1625
  %v2394 = vpop.f32.mrf.mxu0
  %v2395 = vadd.f32 %v2282, %v2394
  %2396 = vmatmul.f32.gmra.mxu0 %v1634
  %v2397 = vpop.f32.mrf.mxu0
  %v2398 = vadd.f32 %v2285, %v2397
  %2399 = vmatmul.f32.gmra.mxu0 %v1643
  %v2400 = vpop.f32.mrf.mxu0
  %v2401 = vadd.f32 %v2288, %v2400
  %2402 = vmatmul.f32.gmra.mxu0 %v1652
  %v2403 = vpop.f32.mrf.mxu0
  %v2404 = vadd.f32 %v2291, %v2403
  %2405 = vmatmul.f32.gmra.mxu0 %v1661
  %v2406 = vpop.f32.mrf.mxu0
  %v2407 = vadd.f32 %v2294, %v2406
  %2408 = vmatmul.f32.gmra.mxu0 %v1670
  %v2409 = vpop.f32.mrf.mxu0
  %v2410 = vadd.f32 %v2297, %v2409
  %2411 = vmatmul.f32.gmra.mxu0 %v1679
  %v2412 = vpop.f32.mrf.mxu0
  %v2413 = vadd.f32 %v2300, %v2412
  %2414 = vmatmul.f32.gmra.mxu0 %v1688
  %v2415 = vpop.f32.mrf.mxu0
  %v2416 = vadd.f32 %v2303, %v2415
  %2417 = vmatmul.f32.gmra.mxu0 %v1697
  %v2418 = vpop.f32.mrf.mxu0
  %v2419 = vadd.f32 %v2306, %v2418
  %2420 = vmatmul.f32.gmra.mxu0 %v1706
  %v2421 = vpop.f32.mrf.mxu0
  %v2422 = vadd.f32 %v2309, %v2421
  %2423 = vmatmul.f32.gmra.mxu0 %v1715
  %v2424 = vpop.f32.mrf.mxu0
  %v2425 = vadd.f32 %v2312, %v2424
  %2426 = vmatmul.f32.gmra.mxu0 %v1724
  %v2427 = vpop.f32.mrf.mxu0
  %v2428 = vadd.f32 %v2315, %v2427
  %2429 = vmatmul.f32.gmra.mxu0 %v1733
  %v2430 = vpop.f32.mrf.mxu0
  %v2431 = vadd.f32 %v2318, %v2430
  %2432 = vmatmul.f32.gmra.mxu0 %v1742
  %v2433 = vpop.f32.mrf.mxu0
  %v2434 = vadd.f32 %v2321, %v2433
  %2435 = vmatmul.f32.gmra.mxu0 %v1751
  %v2436 = vpop.f32.mrf.mxu0
  %v2437 = vadd.f32 %v2324, %v2436
  %2438 = vmatmul.f32.gmra.mxu0 %v1760
  %v2439 = vpop.f32.mrf.mxu0
  %v2440 = vadd.f32 %v2327, %v2439
  %2441 = vdwg.mxu0
  %2442 = vmatpush.msra.mxu0 %v137
  %2443 = vmatpush.msra.mxu0 %v136
  %2444 = vmatpush.msra.mxu0 %v135
  %2445 = vmatpush.msra.mxu0 %v134
  %2446 = vmatpush.msra.mxu0 %v133
  %2447 = vmatpush.msra.mxu0 %v132
  %2448 = vmatpush.msra.mxu0 %v131
  %2449 = vmatpush.msra.mxu0 %v130
  %2450 = vmatpush.msra.mxu0 %v129
  %2451 = vmatpush.msra.mxu0 %v128
  %2452 = vmatpush.msra.mxu0 %v127
  %2453 = vmatpush.msra.mxu0 %v126
  %2454 = vmatpush.msra.mxu0 %v125
  %2455 = vmatpush.msra.mxu0 %v124
  %2456 = vmatpush.msra.mxu0 %v123
  %2457 = vmatpush.msra.mxu0 %v122
  %2458 = vmatmul.f32.gmra.mxu0 %v1482
  %v2459 = vpop.f32.mrf.mxu0
  %v2460 = vadd.f32 %v2347, %v2459
  %2461 = vmatmul.f32.gmra.mxu0 %v1491
  %v2462 = vpop.f32.mrf.mxu0
  %v2463 = vadd.f32 %v2350, %v2462
  %2464 = vmatmul.f32.gmra.mxu0 %v1500
  %v2465 = vpop.f32.mrf.mxu0
  %v2466 = vadd.f32 %v2353, %v2465
  %2467 = vmatmul.f32.gmra.mxu0 %v1509
  %v2468 = vpop.f32.mrf.mxu0
  %v2469 = vadd.f32 %v2356, %v2468
  %2470 = vmatmul.f32.gmra.mxu0 %v1518
  %v2471 = vpop.f32.mrf.mxu0
  %v2472 = vadd.f32 %v2359, %v2471
  %2473 = vmatmul.f32.gmra.mxu0 %v1527
  %v2474 = vpop.f32.mrf.mxu0
  %v2475 = vadd.f32 %v2362, %v2474
  %2476 = vmatmul.f32.gmra.mxu0 %v1536
  %v2477 = vpop.f32.mrf.mxu0
  %v2478 = vadd.f32 %v2365, %v2477
  %2479 = vmatmul.f32.gmra.mxu0 %v1545
  %v2480 = vpop.f32.mrf.mxu0
  %v2481 = vadd.f32 %v2368, %v2480
  %2482 = vmatmul.f32.gmra.mxu0 %v1554
  %v2483 = vpop.f32.mrf.mxu0
  %v2484 = vadd.f32 %v2371, %v2483
  %2485 = vmatmul.f32.gmra.mxu0 %v1563
  %v2486 = vpop.f32.mrf.mxu0
  %v2487 = vadd.f32 %v2374, %v2486
  %2488 = vmatmul.f32.gmra.mxu0 %v1572
  %v2489 = vpop.f32.mrf.mxu0
  %v2490 = vadd.f32 %v2377, %v2489
  %2491 = vmatmul.f32.gmra.mxu0 %v1581
  %v2492 = vpop.f32.mrf.mxu0
  %v2493 = vadd.f32 %v2380, %v2492
  %2494 = vmatmul.f32.gmra.mxu0 %v1590
  %v2495 = vpop.f32.mrf.mxu0
  %v2496 = vadd.f32 %v2383, %v2495
  %2497 = vmatmul.f32.gmra.mxu0 %v1599
  %v2498 = vpop.f32.mrf.mxu0
  %v2499 = vadd.f32 %v2386, %v2498
  %2500 = vmatmul.f32.gmra.mxu0 %v1608
  %v2501 = vpop.f32.mrf.mxu0
  %v2502 = vadd.f32 %v2389, %v2501
  %2503 = vmatmul.f32.gmra.mxu0 %v1617
  %v2504 = vpop.f32.mrf.mxu0
  %v2505 = vadd.f32 %v2392, %v2504
  %2506 = vmatmul.f32.gmra.mxu0 %v1626
  %v2507 = vpop.f32.mrf.mxu0
  %v2508 = vadd.f32 %v2395, %v2507
  %2509 = vmatmul.f32.gmra.mxu0 %v1635
  %v2510 = vpop.f32.mrf.mxu0
  %v2511 = vadd.f32 %v2398, %v2510
  %2512 = vmatmul.f32.gmra.mxu0 %v1644
  %v2513 = vpop.f32.mrf.mxu0
  %v2514 = vadd.f32 %v2401, %v2513
  %2515 = vmatmul.f32.gmra.mxu0 %v1653
  %v2516 = vpop.f32.mrf.mxu0
  %v2517 = vadd.f32 %v2404, %v2516
  %2518 = vmatmul.f32.gmra.mxu0 %v1662
  %v2519 = vpop.f32.mrf.mxu0
  %v2520 = vadd.f32 %v2407, %v2519
  %2521 = vmatmul.f32.gmra.mxu0 %v1671
  %v2522 = vpop.f32.mrf.mxu0
  %v2523 = vadd.f32 %v2410, %v2522
  %2524 = vmatmul.f32.gmra.mxu0 %v1680
  %v2525 = vpop.f32.mrf.mxu0
  %v2526 = vadd.f32 %v2413, %v2525
  %2527 = vmatmul.f32.gmra.mxu0 %v1689
  %v2528 = vpop.f32.mrf.mxu0
  %v2529 = vadd.f32 %v2416, %v2528
  %2530 = vmatmul.f32.gmra.mxu0 %v1698
  %v2531 = vpop.f32.mrf.mxu0
  %v2532 = vadd.f32 %v2419, %v2531
  %2533 = vmatmul.f32.gmra.mxu0 %v1707
  %v2534 = vpop.f32.mrf.mxu0
  %v2535 = vadd.f32 %v2422, %v2534
  %2536 = vmatmul.f32.gmra.mxu0 %v1716
  %v2537 = vpop.f32.mrf.mxu0
  %v2538 = vadd.f32 %v2425, %v2537
  %2539 = vmatmul.f32.gmra.mxu0 %v1725
  %v2540 = vpop.f32.mrf.mxu0
  %v2541 = vadd.f32 %v2428, %v2540
  %2542 = vmatmul.f32.gmra.mxu0 %v1734
  %v2543 = vpop.f32.mrf.mxu0
  %v2544 = vadd.f32 %v2431, %v2543
  %2545 = vmatmul.f32.gmra.mxu0 %v1743
  %v2546 = vpop.f32.mrf.mxu0
  %v2547 = vadd.f32 %v2434, %v2546
  %2548 = vmatmul.f32.gmra.mxu0 %v1752
  %v2549 = vpop.f32.mrf.mxu0
  %v2550 = vadd.f32 %v2437, %v2549
  %2551 = vmatmul.f32.gmra.mxu0 %v1761
  %v2552 = vpop.f32.mrf.mxu0
  %v2553 = vadd.f32 %v2440, %v2552
  %2554 = vdwg.mxu0
  %2555 = vmatpush.msra.mxu0 %v153
  %2556 = vmatpush.msra.mxu0 %v152
  %2557 = vmatpush.msra.mxu0 %v151
  %2558 = vmatpush.msra.mxu0 %v150
  %2559 = vmatpush.msra.mxu0 %v149
  %2560 = vmatpush.msra.mxu0 %v148
  %2561 = vmatpush.msra.mxu0 %v147
  %2562 = vmatpush.msra.mxu0 %v146
  %2563 = vmatpush.msra.mxu0 %v145
  %2564 = vmatpush.msra.mxu0 %v144
  %2565 = vmatpush.msra.mxu0 %v143
  %2566 = vmatpush.msra.mxu0 %v142
  %2567 = vmatpush.msra.mxu0 %v141
  %2568 = vmatpush.msra.mxu0 %v140
  %2569 = vmatpush.msra.mxu0 %v139
  %2570 = vmatpush.msra.mxu0 %v138
  %2571 = vmatmul.f32.gmra.mxu0 %v1483
  %v2572 = vpop.f32.mrf.mxu0
  %v2573 = vadd.f32 %v2460, %v2572
  %2574 = vmatmul.f32.gmra.mxu0 %v1492
  %v2575 = vpop.f32.mrf.mxu0
  %v2576 = vadd.f32 %v2463, %v2575
  %2577 = vmatmul.f32.gmra.mxu0 %v1501
  %v2578 = vpop.f32.mrf.mxu0
  %v2579 = vadd.f32 %v2466, %v2578
  %2580 = vmatmul.f32.gmra.mxu0 %v1510
  %v2581 = vpop.f32.mrf.mxu0
  %v2582 = vadd.f32 %v2469, %v2581
  %2583 = vmatmul.f32.gmra.mxu0 %v1519
  %v2584 = vpop.f32.mrf.mxu0
  %v2585 = vadd.f32 %v2472, %v2584
  %2586 = vmatmul.f32.gmra.mxu0 %v1528
  %v2587 = vpop.f32.mrf.mxu0
  %v2588 = vadd.f32 %v2475, %v2587
  %2589 = vmatmul.f32.gmra.mxu0 %v1537
  %v2590 = vpop.f32.mrf.mxu0
  %v2591 = vadd.f32 %v2478, %v2590
  %2592 = vmatmul.f32.gmra.mxu0 %v1546
  %v2593 = vpop.f32.mrf.mxu0
  %v2594 = vadd.f32 %v2481, %v2593
  %2595 = vmatmul.f32.gmra.mxu0 %v1555
  %v2596 = vpop.f32.mrf.mxu0
  %v2597 = vadd.f32 %v2484, %v2596
  %2598 = vmatmul.f32.gmra.mxu0 %v1564
  %v2599 = vpop.f32.mrf.mxu0
  %v2600 = vadd.f32 %v2487, %v2599
  %2601 = vmatmul.f32.gmra.mxu0 %v1573
  %v2602 = vpop.f32.mrf.mxu0
  %v2603 = vadd.f32 %v2490, %v2602
  %2604 = vmatmul.f32.gmra.mxu0 %v1582
  %v2605 = vpop.f32.mrf.mxu0
  %v2606 = vadd.f32 %v2493, %v2605
  %2607 = vmatmul.f32.gmra.mxu0 %v1591
  %v2608 = vpop.f32.mrf.mxu0
  %v2609 = vadd.f32 %v2496, %v2608
  %2610 = vmatmul.f32.gmra.mxu0 %v1600
  %v2611 = vpop.f32.mrf.mxu0
  %v2612 = vadd.f32 %v2499, %v2611
  %2613 = vmatmul.f32.gmra.mxu0 %v1609
  %v2614 = vpop.f32.mrf.mxu0
  %v2615 = vadd.f32 %v2502, %v2614
  %2616 = vmatmul.f32.gmra.mxu0 %v1618
  %v2617 = vpop.f32.mrf.mxu0
  %v2618 = vadd.f32 %v2505, %v2617
  %2619 = vmatmul.f32.gmra.mxu0 %v1627
  %v2620 = vpop.f32.mrf.mxu0
  %v2621 = vadd.f32 %v2508, %v2620
  %2622 = vmatmul.f32.gmra.mxu0 %v1636
  %v2623 = vpop.f32.mrf.mxu0
  %v2624 = vadd.f32 %v2511, %v2623
  %2625 = vmatmul.f32.gmra.mxu0 %v1645
  %v2626 = vpop.f32.mrf.mxu0
  %v2627 = vadd.f32 %v2514, %v2626
  %2628 = vmatmul.f32.gmra.mxu0 %v1654
  %v2629 = vpop.f32.mrf.mxu0
  %v2630 = vadd.f32 %v2517, %v2629
  %2631 = vmatmul.f32.gmra.mxu0 %v1663
  %v2632 = vpop.f32.mrf.mxu0
  %v2633 = vadd.f32 %v2520, %v2632
  %2634 = vmatmul.f32.gmra.mxu0 %v1672
  %v2635 = vpop.f32.mrf.mxu0
  %v2636 = vadd.f32 %v2523, %v2635
  %2637 = vmatmul.f32.gmra.mxu0 %v1681
  %v2638 = vpop.f32.mrf.mxu0
  %v2639 = vadd.f32 %v2526, %v2638
  %2640 = vmatmul.f32.gmra.mxu0 %v1690
  %v2641 = vpop.f32.mrf.mxu0
  %v2642 = vadd.f32 %v2529, %v2641
  %2643 = vmatmul.f32.gmra.mxu0 %v1699
  %v2644 = vpop.f32.mrf.mxu0
  %v2645 = vadd.f32 %v2532, %v2644
  %2646 = vmatmul.f32.gmra.mxu0 %v1708
  %v2647 = vpop.f32.mrf.mxu0
  %v2648 = vadd.f32 %v2535, %v2647
  %2649 = vmatmul.f32.gmra.mxu0 %v1717
  %v2650 = vpop.f32.mrf.mxu0
  %v2651 = vadd.f32 %v2538, %v2650
  %2652 = vmatmul.f32.gmra.mxu0 %v1726
  %v2653 = vpop.f32.mrf.mxu0
  %v2654 = vadd.f32 %v2541, %v2653
  %2655 = vmatmul.f32.gmra.mxu0 %v1735
  %v2656 = vpop.f32.mrf.mxu0
  %v2657 = vadd.f32 %v2544, %v2656
  %2658 = vmatmul.f32.gmra.mxu0 %v1744
  %v2659 = vpop.f32.mrf.mxu0
  %v2660 = vadd.f32 %v2547, %v2659
  %2661 = vmatmul.f32.gmra.mxu0 %v1753
  %v2662 = vpop.f32.mrf.mxu0
  %v2663 = vadd.f32 %v2550, %v2662
  %2664 = vmatmul.f32.gmra.mxu0 %v1762
  %v2665 = vpop.f32.mrf.mxu0
  %v2666 = vadd.f32 %v2553, %v2665
  %2667 = vdwg.mxu0
  %2668 = vmatpush.msra.mxu0 %v169
  %2669 = vmatpush.msra.mxu0 %v168
  %2670 = vmatpush.msra.mxu0 %v167
  %2671 = vmatpush.msra.mxu0 %v166
  %2672 = vmatpush.msra.mxu0 %v165
  %2673 = vmatpush.msra.mxu0 %v164
  %2674 = vmatpush.msra.mxu0 %v163
  %2675 = vmatpush.msra.mxu0 %v162
  %2676 = vmatpush.msra.mxu0 %v161
  %2677 = vmatpush.msra.mxu0 %v160
  %2678 = vmatpush.msra.mxu0 %v159
  %2679 = vmatpush.msra.mxu0 %v158
  %2680 = vmatpush.msra.mxu0 %v157
  %2681 = vmatpush.msra.mxu0 %v156
  %2682 = vmatpush.msra.mxu0 %v155
  %2683 = vmatpush.msra.mxu0 %v154
  %2684 = vmatmul.f32.gmra.mxu0 %v1484
  %v2685 = vpop.f32.mrf.mxu0
  %v2686 = vadd.f32 %v2573, %v2685
  %2687 = vmatmul.f32.gmra.mxu0 %v1493
  %v2688 = vpop.f32.mrf.mxu0
  %v2689 = vadd.f32 %v2576, %v2688
  %2690 = vmatmul.f32.gmra.mxu0 %v1502
  %v2691 = vpop.f32.mrf.mxu0
  %v2692 = vadd.f32 %v2579, %v2691
  %2693 = vmatmul.f32.gmra.mxu0 %v1511
  %v2694 = vpop.f32.mrf.mxu0
  %v2695 = vadd.f32 %v2582, %v2694
  %2696 = vmatmul.f32.gmra.mxu0 %v1520
  %v2697 = vpop.f32.mrf.mxu0
  %v2698 = vadd.f32 %v2585, %v2697
  %2699 = vmatmul.f32.gmra.mxu0 %v1529
  %v2700 = vpop.f32.mrf.mxu0
  %v2701 = vadd.f32 %v2588, %v2700
  %2702 = vmatmul.f32.gmra.mxu0 %v1538
  %v2703 = vpop.f32.mrf.mxu0
  %v2704 = vadd.f32 %v2591, %v2703
  %2705 = vmatmul.f32.gmra.mxu0 %v1547
  %v2706 = vpop.f32.mrf.mxu0
  %v2707 = vadd.f32 %v2594, %v2706
  %2708 = vmatmul.f32.gmra.mxu0 %v1556
  %v2709 = vpop.f32.mrf.mxu0
  %v2710 = vadd.f32 %v2597, %v2709
  %2711 = vmatmul.f32.gmra.mxu0 %v1565
  %v2712 = vpop.f32.mrf.mxu0
  %v2713 = vadd.f32 %v2600, %v2712
  %2714 = vmatmul.f32.gmra.mxu0 %v1574
  %v2715 = vpop.f32.mrf.mxu0
  %v2716 = vadd.f32 %v2603, %v2715
  %2717 = vmatmul.f32.gmra.mxu0 %v1583
  %v2718 = vpop.f32.mrf.mxu0
  %v2719 = vadd.f32 %v2606, %v2718
  %2720 = vmatmul.f32.gmra.mxu0 %v1592
  %v2721 = vpop.f32.mrf.mxu0
  %v2722 = vadd.f32 %v2609, %v2721
  %2723 = vmatmul.f32.gmra.mxu0 %v1601
  %v2724 = vpop.f32.mrf.mxu0
  %v2725 = vadd.f32 %v2612, %v2724
  %2726 = vmatmul.f32.gmra.mxu0 %v1610
  %v2727 = vpop.f32.mrf.mxu0
  %v2728 = vadd.f32 %v2615, %v2727
  %2729 = vmatmul.f32.gmra.mxu0 %v1619
  %v2730 = vpop.f32.mrf.mxu0
  %v2731 = vadd.f32 %v2618, %v2730
  %2732 = vmatmul.f32.gmra.mxu0 %v1628
  %v2733 = vpop.f32.mrf.mxu0
  %v2734 = vadd.f32 %v2621, %v2733
  %2735 = vmatmul.f32.gmra.mxu0 %v1637
  %v2736 = vpop.f32.mrf.mxu0
  %v2737 = vadd.f32 %v2624, %v2736
  %2738 = vmatmul.f32.gmra.mxu0 %v1646
  %v2739 = vpop.f32.mrf.mxu0
  %v2740 = vadd.f32 %v2627, %v2739
  %2741 = vmatmul.f32.gmra.mxu0 %v1655
  %v2742 = vpop.f32.mrf.mxu0
  %v2743 = vadd.f32 %v2630, %v2742
  %2744 = vmatmul.f32.gmra.mxu0 %v1664
  %v2745 = vpop.f32.mrf.mxu0
  %v2746 = vadd.f32 %v2633, %v2745
  %2747 = vmatmul.f32.gmra.mxu0 %v1673
  %v2748 = vpop.f32.mrf.mxu0
  %v2749 = vadd.f32 %v2636, %v2748
  %2750 = vmatmul.f32.gmra.mxu0 %v1682
  %v2751 = vpop.f32.mrf.mxu0
  %v2752 = vadd.f32 %v2639, %v2751
  %2753 = vmatmul.f32.gmra.mxu0 %v1691
  %v2754 = vpop.f32.mrf.mxu0
  %v2755 = vadd.f32 %v2642, %v2754
  %2756 = vmatmul.f32.gmra.mxu0 %v1700
  %v2757 = vpop.f32.mrf.mxu0
  %v2758 = vadd.f32 %v2645, %v2757
  %2759 = vmatmul.f32.gmra.mxu0 %v1709
  %v2760 = vpop.f32.mrf.mxu0
  %v2761 = vadd.f32 %v2648, %v2760
  %2762 = vmatmul.f32.gmra.mxu0 %v1718
  %v2763 = vpop.f32.mrf.mxu0
  %v2764 = vadd.f32 %v2651, %v2763
  %2765 = vmatmul.f32.gmra.mxu0 %v1727
  %v2766 = vpop.f32.mrf.mxu0
  %v2767 = vadd.f32 %v2654, %v2766
  %2768 = vmatmul.f32.gmra.mxu0 %v1736
  %v2769 = vpop.f32.mrf.mxu0
  %v2770 = vadd.f32 %v2657, %v2769
  %2771 = vmatmul.f32.gmra.mxu0 %v1745
  %v2772 = vpop.f32.mrf.mxu0
  %v2773 = vadd.f32 %v2660, %v2772
  %2774 = vmatmul.f32.gmra.mxu0 %v1754
  %v2775 = vpop.f32.mrf.mxu0
  %v2776 = vadd.f32 %v2663, %v2775
  %2777 = vmatmul.f32.gmra.mxu0 %v1763
  %v2778 = vpop.f32.mrf.mxu0
  %v2779 = vadd.f32 %v2666, %v2778
  %2780 = vdwg.mxu0
  %v2781 = vmax.f32 %v1380, %v2686
  %v2782 = vmax.f32 %v1383, %v2689
  %v2783 = vmax.f32 %v1386, %v2692
  %v2784 = vmax.f32 %v1389, %v2695
  %v2785 = vmax.f32 %v1392, %v2698
  %v2786 = vmax.f32 %v1395, %v2701
  %v2787 = vmax.f32 %v1398, %v2704
  %v2788 = vmax.f32 %v1401, %v2707
  %v2789 = vmax.f32 %v1404, %v2710
  %v2790 = vmax.f32 %v1407, %v2713
  %v2791 = vmax.f32 %v1410, %v2716
  %v2792 = vmax.f32 %v1413, %v2719
  %v2793 = vmax.f32 %v1416, %v2722
  %v2794 = vmax.f32 %v1419, %v2725
  %v2795 = vmax.f32 %v1422, %v2728
  %v2796 = vmax.f32 %v1425, %v2731
  %v2797 = vmax.f32 %v1428, %v2734
  %v2798 = vmax.f32 %v1431, %v2737
  %v2799 = vmax.f32 %v1434, %v2740
  %v2800 = vmax.f32 %v1437, %v2743
  %v2801 = vmax.f32 %v1440, %v2746
  %v2802 = vmax.f32 %v1443, %v2749
  %v2803 = vmax.f32 %v1446, %v2752
  %v2804 = vmax.f32 %v1449, %v2755
  %v2805 = vmax.f32 %v1452, %v2758
  %v2806 = vmax.f32 %v1455, %v2761
  %v2807 = vmax.f32 %v1458, %v2764
  %v2808 = vmax.f32 %v1461, %v2767
  %v2809 = vmax.f32 %v1464, %v2770
  %v2810 = vmax.f32 %v1467, %v2773
  %v2811 = vmax.f32 %v1470, %v2776
  %v2812 = vmax.f32 %v1473, %v2779
  %s2813 = scalar_lea.vmem %s1, 4608
  %v2814 = vld [vmem:[%s2813] sm:$0xff]
  %v2815 = vld [vmem:[%s2813 + $0x8] sm:$0xff]
  %v2816 = vld [vmem:[%s2813 + $0x10] sm:$0xff]
  %v2817 = vld [vmem:[%s2813 + $0x18] sm:$0xff]
  %v2818 = vld [vmem:[%s2813 + $0x20] sm:$0xff]
  %v2819 = vld [vmem:[%s2813 + $0x28] sm:$0xff]
  %v2820 = vld [vmem:[%s2813 + $0x30] sm:$0xff]
  %v2821 = vld [vmem:[%s2813 + $0x38] sm:$0xff]
  %v2822 = vld [vmem:[%s2813 + $0x40] sm:$0xff]
  %v2823 = vld [vmem:[%s2813 + $0x48] sm:$0xff]
  %v2824 = vld [vmem:[%s2813 + $0x50] sm:$0xff]
  %v2825 = vld [vmem:[%s2813 + $0x58] sm:$0xff]
  %v2826 = vld [vmem:[%s2813 + $0x60] sm:$0xff]
  %v2827 = vld [vmem:[%s2813 + $0x68] sm:$0xff]
  %v2828 = vld [vmem:[%s2813 + $0x70] sm:$0xff]
  %v2829 = vld [vmem:[%s2813 + $0x78] sm:$0xff]
  %v2830 = vld [vmem:[%s2813 + $0x80] sm:$0xff]
  %v2831 = vld [vmem:[%s2813 + $0x88] sm:$0xff]
  %v2832 = vld [vmem:[%s2813 + $0x90] sm:$0xff]
  %v2833 = vld [vmem:[%s2813 + $0x98] sm:$0xff]
  %v2834 = vld [vmem:[%s2813 + $0xa0] sm:$0xff]
  %v2835 = vld [vmem:[%s2813 + $0xa8] sm:$0xff]
  %v2836 = vld [vmem:[%s2813 + $0xb0] sm:$0xff]
  %v2837 = vld [vmem:[%s2813 + $0xb8] sm:$0xff]
  %v2838 = vld [vmem:[%s2813 + $0xc0] sm:$0xff]
  %v2839 = vld [vmem:[%s2813 + $0xc8] sm:$0xff]
  %v2840 = vld [vmem:[%s2813 + $0xd0] sm:$0xff]
  %v2841 = vld [vmem:[%s2813 + $0xd8] sm:$0xff]
  %v2842 = vld [vmem:[%s2813 + $0xe0] sm:$0xff]
  %v2843 = vld [vmem:[%s2813 + $0xe8] sm:$0xff]
  %v2844 = vld [vmem:[%s2813 + $0xf0] sm:$0xff]
  %v2845 = vld [vmem:[%s2813 + $0xf8] sm:$0xff]
  %v2846 = vld [vmem:[%s2813 + $0x100] sm:$0xff]
  %v2847 = vld [vmem:[%s2813 + $0x108] sm:$0xff]
  %v2848 = vld [vmem:[%s2813 + $0x110] sm:$0xff]
  %v2849 = vld [vmem:[%s2813 + $0x118] sm:$0xff]
  %v2850 = vld [vmem:[%s2813 + $0x120] sm:$0xff]
  %v2851 = vld [vmem:[%s2813 + $0x128] sm:$0xff]
  %v2852 = vld [vmem:[%s2813 + $0x130] sm:$0xff]
  %v2853 = vld [vmem:[%s2813 + $0x138] sm:$0xff]
  %v2854 = vld [vmem:[%s2813 + $0x140] sm:$0xff]
  %v2855 = vld [vmem:[%s2813 + $0x148] sm:$0xff]
  %v2856 = vld [vmem:[%s2813 + $0x150] sm:$0xff]
  %v2857 = vld [vmem:[%s2813 + $0x158] sm:$0xff]
  %v2858 = vld [vmem:[%s2813 + $0x160] sm:$0xff]
  %v2859 = vld [vmem:[%s2813 + $0x168] sm:$0xff]
  %v2860 = vld [vmem:[%s2813 + $0x170] sm:$0xff]
  %v2861 = vld [vmem:[%s2813 + $0x178] sm:$0xff]
  %v2862 = vld [vmem:[%s2813 + $0x180] sm:$0xff]
  %v2863 = vld [vmem:[%s2813 + $0x188] sm:$0xff]
  %v2864 = vld [vmem:[%s2813 + $0x190] sm:$0xff]
  %v2865 = vld [vmem:[%s2813 + $0x198] sm:$0xff]
  %v2866 = vld [vmem:[%s2813 + $0x1a0] sm:$0xff]
  %v2867 = vld [vmem:[%s2813 + $0x1a8] sm:$0xff]
  %v2868 = vld [vmem:[%s2813 + $0x1b0] sm:$0xff]
  %v2869 = vld [vmem:[%s2813 + $0x1b8] sm:$0xff]
  %v2870 = vld [vmem:[%s2813 + $0x1c0] sm:$0xff]
  %v2871 = vld [vmem:[%s2813 + $0x1c8] sm:$0xff]
  %v2872 = vld [vmem:[%s2813 + $0x1d0] sm:$0xff]
  %v2873 = vld [vmem:[%s2813 + $0x1d8] sm:$0xff]
  %v2874 = vld [vmem:[%s2813 + $0x1e0] sm:$0xff]
  %v2875 = vld [vmem:[%s2813 + $0x1e8] sm:$0xff]
  %v2876 = vld [vmem:[%s2813 + $0x1f0] sm:$0xff]
  %v2877 = vld [vmem:[%s2813 + $0x1f8] sm:$0xff]
  %v2878 = vld [vmem:[%s2813 + $0x200] sm:$0xff]
  %v2879 = vld [vmem:[%s2813 + $0x208] sm:$0xff]
  %v2880 = vld [vmem:[%s2813 + $0x210] sm:$0xff]
  %v2881 = vld [vmem:[%s2813 + $0x218] sm:$0xff]
  %v2882 = vld [vmem:[%s2813 + $0x220] sm:$0xff]
  %v2883 = vld [vmem:[%s2813 + $0x228] sm:$0xff]
  %v2884 = vld [vmem:[%s2813 + $0x230] sm:$0xff]
  %v2885 = vld [vmem:[%s2813 + $0x238] sm:$0xff]
  %v2886 = vld [vmem:[%s2813 + $0x240] sm:$0xff]
  %v2887 = vld [vmem:[%s2813 + $0x248] sm:$0xff]
  %v2888 = vld [vmem:[%s2813 + $0x250] sm:$0xff]
  %v2889 = vld [vmem:[%s2813 + $0x258] sm:$0xff]
  %v2890 = vld [vmem:[%s2813 + $0x260] sm:$0xff]
  %v2891 = vld [vmem:[%s2813 + $0x268] sm:$0xff]
  %v2892 = vld [vmem:[%s2813 + $0x270] sm:$0xff]
  %v2893 = vld [vmem:[%s2813 + $0x278] sm:$0xff]
  %v2894 = vld [vmem:[%s2813 + $0x280] sm:$0xff]
  %v2895 = vld [vmem:[%s2813 + $0x288] sm:$0xff]
  %v2896 = vld [vmem:[%s2813 + $0x290] sm:$0xff]
  %v2897 = vld [vmem:[%s2813 + $0x298] sm:$0xff]
  %v2898 = vld [vmem:[%s2813 + $0x2a0] sm:$0xff]
  %v2899 = vld [vmem:[%s2813 + $0x2a8] sm:$0xff]
  %v2900 = vld [vmem:[%s2813 + $0x2b0] sm:$0xff]
  %v2901 = vld [vmem:[%s2813 + $0x2b8] sm:$0xff]
  %v2902 = vld [vmem:[%s2813 + $0x2c0] sm:$0xff]
  %v2903 = vld [vmem:[%s2813 + $0x2c8] sm:$0xff]
  %v2904 = vld [vmem:[%s2813 + $0x2d0] sm:$0xff]
  %v2905 = vld [vmem:[%s2813 + $0x2d8] sm:$0xff]
  %v2906 = vld [vmem:[%s2813 + $0x2e0] sm:$0xff]
  %v2907 = vld [vmem:[%s2813 + $0x2e8] sm:$0xff]
  %v2908 = vld [vmem:[%s2813 + $0x2f0] sm:$0xff]
  %v2909 = vld [vmem:[%s2813 + $0x2f8] sm:$0xff]
  %v2910 = vld [vmem:[%s2813 + $0x300] sm:$0xff]
  %v2911 = vld [vmem:[%s2813 + $0x308] sm:$0xff]
  %v2912 = vld [vmem:[%s2813 + $0x310] sm:$0xff]
  %v2913 = vld [vmem:[%s2813 + $0x318] sm:$0xff]
  %v2914 = vld [vmem:[%s2813 + $0x320] sm:$0xff]
  %v2915 = vld [vmem:[%s2813 + $0x328] sm:$0xff]
  %v2916 = vld [vmem:[%s2813 + $0x330] sm:$0xff]
  %v2917 = vld [vmem:[%s2813 + $0x338] sm:$0xff]
  %v2918 = vld [vmem:[%s2813 + $0x340] sm:$0xff]
  %v2919 = vld [vmem:[%s2813 + $0x348] sm:$0xff]
  %v2920 = vld [vmem:[%s2813 + $0x350] sm:$0xff]
  %v2921 = vld [vmem:[%s2813 + $0x358] sm:$0xff]
  %v2922 = vld [vmem:[%s2813 + $0x360] sm:$0xff]
  %v2923 = vld [vmem:[%s2813 + $0x368] sm:$0xff]
  %v2924 = vld [vmem:[%s2813 + $0x370] sm:$0xff]
  %v2925 = vld [vmem:[%s2813 + $0x378] sm:$0xff]
  %v2926 = vld [vmem:[%s2813 + $0x380] sm:$0xff]
  %v2927 = vld [vmem:[%s2813 + $0x388] sm:$0xff]
  %v2928 = vld [vmem:[%s2813 + $0x390] sm:$0xff]
  %v2929 = vld [vmem:[%s2813 + $0x398] sm:$0xff]
  %v2930 = vld [vmem:[%s2813 + $0x3a0] sm:$0xff]
  %v2931 = vld [vmem:[%s2813 + $0x3a8] sm:$0xff]
  %v2932 = vld [vmem:[%s2813 + $0x3b0] sm:$0xff]
  %v2933 = vld [vmem:[%s2813 + $0x3b8] sm:$0xff]
  %v2934 = vld [vmem:[%s2813 + $0x3c0] sm:$0xff]
  %v2935 = vld [vmem:[%s2813 + $0x3c8] sm:$0xff]
  %v2936 = vld [vmem:[%s2813 + $0x3d0] sm:$0xff]
  %v2937 = vld [vmem:[%s2813 + $0x3d8] sm:$0xff]
  %v2938 = vld [vmem:[%s2813 + $0x3e0] sm:$0xff]
  %v2939 = vld [vmem:[%s2813 + $0x3e8] sm:$0xff]
  %v2940 = vld [vmem:[%s2813 + $0x3f0] sm:$0xff]
  %v2941 = vld [vmem:[%s2813 + $0x3f8] sm:$0xff]
  %v2942 = vld [vmem:[%s2813 + $0x400] sm:$0xff]
  %v2943 = vld [vmem:[%s2813 + $0x408] sm:$0xff]
  %v2944 = vld [vmem:[%s2813 + $0x410] sm:$0xff]
  %v2945 = vld [vmem:[%s2813 + $0x418] sm:$0xff]
  %v2946 = vld [vmem:[%s2813 + $0x420] sm:$0xff]
  %v2947 = vld [vmem:[%s2813 + $0x428] sm:$0xff]
  %v2948 = vld [vmem:[%s2813 + $0x430] sm:$0xff]
  %v2949 = vld [vmem:[%s2813 + $0x438] sm:$0xff]
  %v2950 = vld [vmem:[%s2813 + $0x440] sm:$0xff]
  %v2951 = vld [vmem:[%s2813 + $0x448] sm:$0xff]
  %v2952 = vld [vmem:[%s2813 + $0x450] sm:$0xff]
  %v2953 = vld [vmem:[%s2813 + $0x458] sm:$0xff]
  %v2954 = vld [vmem:[%s2813 + $0x460] sm:$0xff]
  %v2955 = vld [vmem:[%s2813 + $0x468] sm:$0xff]
  %v2956 = vld [vmem:[%s2813 + $0x470] sm:$0xff]
  %v2957 = vld [vmem:[%s2813 + $0x478] sm:$0xff]
  %v2958 = vld [vmem:[%s2813 + $0x480] sm:$0xff]
  %v2959 = vld [vmem:[%s2813 + $0x488] sm:$0xff]
  %v2960 = vld [vmem:[%s2813 + $0x490] sm:$0xff]
  %v2961 = vld [vmem:[%s2813 + $0x498] sm:$0xff]
  %v2962 = vld [vmem:[%s2813 + $0x4a0] sm:$0xff]
  %v2963 = vld [vmem:[%s2813 + $0x4a8] sm:$0xff]
  %v2964 = vld [vmem:[%s2813 + $0x4b0] sm:$0xff]
  %v2965 = vld [vmem:[%s2813 + $0x4b8] sm:$0xff]
  %v2966 = vld [vmem:[%s2813 + $0x4c0] sm:$0xff]
  %v2967 = vld [vmem:[%s2813 + $0x4c8] sm:$0xff]
  %v2968 = vld [vmem:[%s2813 + $0x4d0] sm:$0xff]
  %v2969 = vld [vmem:[%s2813 + $0x4d8] sm:$0xff]
  %v2970 = vld [vmem:[%s2813 + $0x4e0] sm:$0xff]
  %v2971 = vld [vmem:[%s2813 + $0x4e8] sm:$0xff]
  %v2972 = vld [vmem:[%s2813 + $0x4f0] sm:$0xff]
  %v2973 = vld [vmem:[%s2813 + $0x4f8] sm:$0xff]
  %v2974 = vld [vmem:[%s2813 + $0x500] sm:$0xff]
  %v2975 = vld [vmem:[%s2813 + $0x508] sm:$0xff]
  %v2976 = vld [vmem:[%s2813 + $0x510] sm:$0xff]
  %v2977 = vld [vmem:[%s2813 + $0x518] sm:$0xff]
  %v2978 = vld [vmem:[%s2813 + $0x520] sm:$0xff]
  %v2979 = vld [vmem:[%s2813 + $0x528] sm:$0xff]
  %v2980 = vld [vmem:[%s2813 + $0x530] sm:$0xff]
  %v2981 = vld [vmem:[%s2813 + $0x538] sm:$0xff]
  %v2982 = vld [vmem:[%s2813 + $0x540] sm:$0xff]
  %v2983 = vld [vmem:[%s2813 + $0x548] sm:$0xff]
  %v2984 = vld [vmem:[%s2813 + $0x550] sm:$0xff]
  %v2985 = vld [vmem:[%s2813 + $0x558] sm:$0xff]
  %v2986 = vld [vmem:[%s2813 + $0x560] sm:$0xff]
  %v2987 = vld [vmem:[%s2813 + $0x568] sm:$0xff]
  %v2988 = vld [vmem:[%s2813 + $0x570] sm:$0xff]
  %v2989 = vld [vmem:[%s2813 + $0x578] sm:$0xff]
  %v2990 = vld [vmem:[%s2813 + $0x580] sm:$0xff]
  %v2991 = vld [vmem:[%s2813 + $0x588] sm:$0xff]
  %v2992 = vld [vmem:[%s2813 + $0x590] sm:$0xff]
  %v2993 = vld [vmem:[%s2813 + $0x598] sm:$0xff]
  %v2994 = vld [vmem:[%s2813 + $0x5a0] sm:$0xff]
  %v2995 = vld [vmem:[%s2813 + $0x5a8] sm:$0xff]
  %v2996 = vld [vmem:[%s2813 + $0x5b0] sm:$0xff]
  %v2997 = vld [vmem:[%s2813 + $0x5b8] sm:$0xff]
  %v2998 = vld [vmem:[%s2813 + $0x5c0] sm:$0xff]
  %v2999 = vld [vmem:[%s2813 + $0x5c8] sm:$0xff]
  %v3000 = vld [vmem:[%s2813 + $0x5d0] sm:$0xff]
  %v3001 = vld [vmem:[%s2813 + $0x5d8] sm:$0xff]
  %v3002 = vld [vmem:[%s2813 + $0x5e0] sm:$0xff]
  %v3003 = vld [vmem:[%s2813 + $0x5e8] sm:$0xff]
  %v3004 = vld [vmem:[%s2813 + $0x5f0] sm:$0xff]
  %v3005 = vld [vmem:[%s2813 + $0x5f8] sm:$0xff]
  %v3006 = vld [vmem:[%s2813 + $0x600] sm:$0xff]
  %v3007 = vld [vmem:[%s2813 + $0x608] sm:$0xff]
  %v3008 = vld [vmem:[%s2813 + $0x610] sm:$0xff]
  %v3009 = vld [vmem:[%s2813 + $0x618] sm:$0xff]
  %v3010 = vld [vmem:[%s2813 + $0x620] sm:$0xff]
  %v3011 = vld [vmem:[%s2813 + $0x628] sm:$0xff]
  %v3012 = vld [vmem:[%s2813 + $0x630] sm:$0xff]
  %v3013 = vld [vmem:[%s2813 + $0x638] sm:$0xff]
  %v3014 = vld [vmem:[%s2813 + $0x640] sm:$0xff]
  %v3015 = vld [vmem:[%s2813 + $0x648] sm:$0xff]
  %v3016 = vld [vmem:[%s2813 + $0x650] sm:$0xff]
  %v3017 = vld [vmem:[%s2813 + $0x658] sm:$0xff]
  %v3018 = vld [vmem:[%s2813 + $0x660] sm:$0xff]
  %v3019 = vld [vmem:[%s2813 + $0x668] sm:$0xff]
  %v3020 = vld [vmem:[%s2813 + $0x670] sm:$0xff]
  %v3021 = vld [vmem:[%s2813 + $0x678] sm:$0xff]
  %v3022 = vld [vmem:[%s2813 + $0x680] sm:$0xff]
  %v3023 = vld [vmem:[%s2813 + $0x688] sm:$0xff]
  %v3024 = vld [vmem:[%s2813 + $0x690] sm:$0xff]
  %v3025 = vld [vmem:[%s2813 + $0x698] sm:$0xff]
  %v3026 = vld [vmem:[%s2813 + $0x6a0] sm:$0xff]
  %v3027 = vld [vmem:[%s2813 + $0x6a8] sm:$0xff]
  %v3028 = vld [vmem:[%s2813 + $0x6b0] sm:$0xff]
  %v3029 = vld [vmem:[%s2813 + $0x6b8] sm:$0xff]
  %v3030 = vld [vmem:[%s2813 + $0x6c0] sm:$0xff]
  %v3031 = vld [vmem:[%s2813 + $0x6c8] sm:$0xff]
  %v3032 = vld [vmem:[%s2813 + $0x6d0] sm:$0xff]
  %v3033 = vld [vmem:[%s2813 + $0x6d8] sm:$0xff]
  %v3034 = vld [vmem:[%s2813 + $0x6e0] sm:$0xff]
  %v3035 = vld [vmem:[%s2813 + $0x6e8] sm:$0xff]
  %v3036 = vld [vmem:[%s2813 + $0x6f0] sm:$0xff]
  %v3037 = vld [vmem:[%s2813 + $0x6f8] sm:$0xff]
  %v3038 = vld [vmem:[%s2813 + $0x700] sm:$0xff]
  %v3039 = vld [vmem:[%s2813 + $0x708] sm:$0xff]
  %v3040 = vld [vmem:[%s2813 + $0x710] sm:$0xff]
  %v3041 = vld [vmem:[%s2813 + $0x718] sm:$0xff]
  %v3042 = vld [vmem:[%s2813 + $0x720] sm:$0xff]
  %v3043 = vld [vmem:[%s2813 + $0x728] sm:$0xff]
  %v3044 = vld [vmem:[%s2813 + $0x730] sm:$0xff]
  %v3045 = vld [vmem:[%s2813 + $0x738] sm:$0xff]
  %v3046 = vld [vmem:[%s2813 + $0x740] sm:$0xff]
  %v3047 = vld [vmem:[%s2813 + $0x748] sm:$0xff]
  %v3048 = vld [vmem:[%s2813 + $0x750] sm:$0xff]
  %v3049 = vld [vmem:[%s2813 + $0x758] sm:$0xff]
  %v3050 = vld [vmem:[%s2813 + $0x760] sm:$0xff]
  %v3051 = vld [vmem:[%s2813 + $0x768] sm:$0xff]
  %v3052 = vld [vmem:[%s2813 + $0x770] sm:$0xff]
  %v3053 = vld [vmem:[%s2813 + $0x778] sm:$0xff]
  %v3054 = vld [vmem:[%s2813 + $0x780] sm:$0xff]
  %v3055 = vld [vmem:[%s2813 + $0x788] sm:$0xff]
  %v3056 = vld [vmem:[%s2813 + $0x790] sm:$0xff]
  %v3057 = vld [vmem:[%s2813 + $0x798] sm:$0xff]
  %v3058 = vld [vmem:[%s2813 + $0x7a0] sm:$0xff]
  %v3059 = vld [vmem:[%s2813 + $0x7a8] sm:$0xff]
  %v3060 = vld [vmem:[%s2813 + $0x7b0] sm:$0xff]
  %v3061 = vld [vmem:[%s2813 + $0x7b8] sm:$0xff]
  %v3062 = vld [vmem:[%s2813 + $0x7c0] sm:$0xff]
  %v3063 = vld [vmem:[%s2813 + $0x7c8] sm:$0xff]
  %v3064 = vld [vmem:[%s2813 + $0x7d0] sm:$0xff]
  %v3065 = vld [vmem:[%s2813 + $0x7d8] sm:$0xff]
  %v3066 = vld [vmem:[%s2813 + $0x7e0] sm:$0xff]
  %v3067 = vld [vmem:[%s2813 + $0x7e8] sm:$0xff]
  %v3068 = vld [vmem:[%s2813 + $0x7f0] sm:$0xff]
  %v3069 = vld [vmem:[%s2813 + $0x7f8] sm:$0xff]
  %v3070 = vld [vmem:[%s2813 + $0x800] sm:$0xff]
  %v3071 = vld [vmem:[%s2813 + $0x808] sm:$0xff]
  %v3072 = vld [vmem:[%s2813 + $0x810] sm:$0xff]
  %v3073 = vld [vmem:[%s2813 + $0x818] sm:$0xff]
  %v3074 = vld [vmem:[%s2813 + $0x820] sm:$0xff]
  %v3075 = vld [vmem:[%s2813 + $0x828] sm:$0xff]
  %v3076 = vld [vmem:[%s2813 + $0x830] sm:$0xff]
  %v3077 = vld [vmem:[%s2813 + $0x838] sm:$0xff]
  %v3078 = vld [vmem:[%s2813 + $0x840] sm:$0xff]
  %v3079 = vld [vmem:[%s2813 + $0x848] sm:$0xff]
  %v3080 = vld [vmem:[%s2813 + $0x850] sm:$0xff]
  %v3081 = vld [vmem:[%s2813 + $0x858] sm:$0xff]
  %v3082 = vld [vmem:[%s2813 + $0x860] sm:$0xff]
  %v3083 = vld [vmem:[%s2813 + $0x868] sm:$0xff]
  %v3084 = vld [vmem:[%s2813 + $0x870] sm:$0xff]
  %v3085 = vld [vmem:[%s2813 + $0x878] sm:$0xff]
  %v3086 = vld [vmem:[%s2813 + $0x880] sm:$0xff]
  %v3087 = vld [vmem:[%s2813 + $0x888] sm:$0xff]
  %v3088 = vld [vmem:[%s2813 + $0x890] sm:$0xff]
  %v3089 = vld [vmem:[%s2813 + $0x898] sm:$0xff]
  %v3090 = vld [vmem:[%s2813 + $0x8a0] sm:$0xff]
  %v3091 = vld [vmem:[%s2813 + $0x8a8] sm:$0xff]
  %v3092 = vld [vmem:[%s2813 + $0x8b0] sm:$0xff]
  %v3093 = vld [vmem:[%s2813 + $0x8b8] sm:$0xff]
  %v3094 = vld [vmem:[%s2813 + $0x8c0] sm:$0xff]
  %v3095 = vld [vmem:[%s2813 + $0x8c8] sm:$0xff]
  %v3096 = vld [vmem:[%s2813 + $0x8d0] sm:$0xff]
  %v3097 = vld [vmem:[%s2813 + $0x8d8] sm:$0xff]
  %v3098 = vld [vmem:[%s2813 + $0x8e0] sm:$0xff]
  %v3099 = vld [vmem:[%s2813 + $0x8e8] sm:$0xff]
  %v3100 = vld [vmem:[%s2813 + $0x8f0] sm:$0xff]
  %v3101 = vld [vmem:[%s2813 + $0x8f8] sm:$0xff]
  %3102 = vmatpush.msra.mxu0 %v41
  %3103 = vmatpush.msra.mxu0 %v40
  %3104 = vmatpush.msra.mxu0 %v39
  %3105 = vmatpush.msra.mxu0 %v38
  %3106 = vmatpush.msra.mxu0 %v37
  %3107 = vmatpush.msra.mxu0 %v36
  %3108 = vmatpush.msra.mxu0 %v35
  %3109 = vmatpush.msra.mxu0 %v34
  %3110 = vmatpush.msra.mxu0 %v33
  %3111 = vmatpush.msra.mxu0 %v32
  %3112 = vmatpush.msra.mxu0 %v31
  %3113 = vmatpush.msra.mxu0 %v30
  %3114 = vmatpush.msra.mxu0 %v29
  %3115 = vmatpush.msra.mxu0 %v28
  %3116 = vmatpush.msra.mxu0 %v27
  %3117 = vmatpush.msra.mxu0 %v26
  %3118 = vmatmul.f32.gmra.mxu0 %v2814
  %v3119 = vpop.f32.mrf.mxu0
  %v3120 = vadd.f32 0.0, %v3119
  %3121 = vmatmul.f32.gmra.mxu0 %v2823
  %v3122 = vpop.f32.mrf.mxu0
  %v3123 = vadd.f32 0.0, %v3122
  %3124 = vmatmul.f32.gmra.mxu0 %v2832
  %v3125 = vpop.f32.mrf.mxu0
  %v3126 = vadd.f32 0.0, %v3125
  %3127 = vmatmul.f32.gmra.mxu0 %v2841
  %v3128 = vpop.f32.mrf.mxu0
  %v3129 = vadd.f32 0.0, %v3128
  %3130 = vmatmul.f32.gmra.mxu0 %v2850
  %v3131 = vpop.f32.mrf.mxu0
  %v3132 = vadd.f32 0.0, %v3131
  %3133 = vmatmul.f32.gmra.mxu0 %v2859
  %v3134 = vpop.f32.mrf.mxu0
  %v3135 = vadd.f32 0.0, %v3134
  %3136 = vmatmul.f32.gmra.mxu0 %v2868
  %v3137 = vpop.f32.mrf.mxu0
  %v3138 = vadd.f32 0.0, %v3137
  %3139 = vmatmul.f32.gmra.mxu0 %v2877
  %v3140 = vpop.f32.mrf.mxu0
  %v3141 = vadd.f32 0.0, %v3140
  %3142 = vmatmul.f32.gmra.mxu0 %v2886
  %v3143 = vpop.f32.mrf.mxu0
  %v3144 = vadd.f32 0.0, %v3143
  %3145 = vmatmul.f32.gmra.mxu0 %v2895
  %v3146 = vpop.f32.mrf.mxu0
  %v3147 = vadd.f32 0.0, %v3146
  %3148 = vmatmul.f32.gmra.mxu0 %v2904
  %v3149 = vpop.f32.mrf.mxu0
  %v3150 = vadd.f32 0.0, %v3149
  %3151 = vmatmul.f32.gmra.mxu0 %v2913
  %v3152 = vpop.f32.mrf.mxu0
  %v3153 = vadd.f32 0.0, %v3152
  %3154 = vmatmul.f32.gmra.mxu0 %v2922
  %v3155 = vpop.f32.mrf.mxu0
  %v3156 = vadd.f32 0.0, %v3155
  %3157 = vmatmul.f32.gmra.mxu0 %v2931
  %v3158 = vpop.f32.mrf.mxu0
  %v3159 = vadd.f32 0.0, %v3158
  %3160 = vmatmul.f32.gmra.mxu0 %v2940
  %v3161 = vpop.f32.mrf.mxu0
  %v3162 = vadd.f32 0.0, %v3161
  %3163 = vmatmul.f32.gmra.mxu0 %v2949
  %v3164 = vpop.f32.mrf.mxu0
  %v3165 = vadd.f32 0.0, %v3164
  %3166 = vmatmul.f32.gmra.mxu0 %v2958
  %v3167 = vpop.f32.mrf.mxu0
  %v3168 = vadd.f32 0.0, %v3167
  %3169 = vmatmul.f32.gmra.mxu0 %v2967
  %v3170 = vpop.f32.mrf.mxu0
  %v3171 = vadd.f32 0.0, %v3170
  %3172 = vmatmul.f32.gmra.mxu0 %v2976
  %v3173 = vpop.f32.mrf.mxu0
  %v3174 = vadd.f32 0.0, %v3173
  %3175 = vmatmul.f32.gmra.mxu0 %v2985
  %v3176 = vpop.f32.mrf.mxu0
  %v3177 = vadd.f32 0.0, %v3176
  %3178 = vmatmul.f32.gmra.mxu0 %v2994
  %v3179 = vpop.f32.mrf.mxu0
  %v3180 = vadd.f32 0.0, %v3179
  %3181 = vmatmul.f32.gmra.mxu0 %v3003
  %v3182 = vpop.f32.mrf.mxu0
  %v3183 = vadd.f32 0.0, %v3182
  %3184 = vmatmul.f32.gmra.mxu0 %v3012
  %v3185 = vpop.f32.mrf.mxu0
  %v3186 = vadd.f32 0.0, %v3185
  %3187 = vmatmul.f32.gmra.mxu0 %v3021
  %v3188 = vpop.f32.mrf.mxu0
  %v3189 = vadd.f32 0.0, %v3188
  %3190 = vmatmul.f32.gmra.mxu0 %v3030
  %v3191 = vpop.f32.mrf.mxu0
  %v3192 = vadd.f32 0.0, %v3191
  %3193 = vmatmul.f32.gmra.mxu0 %v3039
  %v3194 = vpop.f32.mrf.mxu0
  %v3195 = vadd.f32 0.0, %v3194
  %3196 = vmatmul.f32.gmra.mxu0 %v3048
  %v3197 = vpop.f32.mrf.mxu0
  %v3198 = vadd.f32 0.0, %v3197
  %3199 = vmatmul.f32.gmra.mxu0 %v3057
  %v3200 = vpop.f32.mrf.mxu0
  %v3201 = vadd.f32 0.0, %v3200
  %3202 = vmatmul.f32.gmra.mxu0 %v3066
  %v3203 = vpop.f32.mrf.mxu0
  %v3204 = vadd.f32 0.0, %v3203
  %3205 = vmatmul.f32.gmra.mxu0 %v3075
  %v3206 = vpop.f32.mrf.mxu0
  %v3207 = vadd.f32 0.0, %v3206
  %3208 = vmatmul.f32.gmra.mxu0 %v3084
  %v3209 = vpop.f32.mrf.mxu0
  %v3210 = vadd.f32 0.0, %v3209
  %3211 = vmatmul.f32.gmra.mxu0 %v3093
  %v3212 = vpop.f32.mrf.mxu0
  %v3213 = vadd.f32 0.0, %v3212
  %3214 = vdwg.mxu0
  %3215 = vmatpush.msra.mxu0 %v57
  %3216 = vmatpush.msra.mxu0 %v56
  %3217 = vmatpush.msra.mxu0 %v55
  %3218 = vmatpush.msra.mxu0 %v54
  %3219 = vmatpush.msra.mxu0 %v53
  %3220 = vmatpush.msra.mxu0 %v52
  %3221 = vmatpush.msra.mxu0 %v51
  %3222 = vmatpush.msra.mxu0 %v50
  %3223 = vmatpush.msra.mxu0 %v49
  %3224 = vmatpush.msra.mxu0 %v48
  %3225 = vmatpush.msra.mxu0 %v47
  %3226 = vmatpush.msra.mxu0 %v46
  %3227 = vmatpush.msra.mxu0 %v45
  %3228 = vmatpush.msra.mxu0 %v44
  %3229 = vmatpush.msra.mxu0 %v43
  %3230 = vmatpush.msra.mxu0 %v42
  %3231 = vmatmul.f32.gmra.mxu0 %v2815
  %v3232 = vpop.f32.mrf.mxu0
  %v3233 = vadd.f32 %v3120, %v3232
  %3234 = vmatmul.f32.gmra.mxu0 %v2824
  %v3235 = vpop.f32.mrf.mxu0
  %v3236 = vadd.f32 %v3123, %v3235
  %3237 = vmatmul.f32.gmra.mxu0 %v2833
  %v3238 = vpop.f32.mrf.mxu0
  %v3239 = vadd.f32 %v3126, %v3238
  %3240 = vmatmul.f32.gmra.mxu0 %v2842
  %v3241 = vpop.f32.mrf.mxu0
  %v3242 = vadd.f32 %v3129, %v3241
  %3243 = vmatmul.f32.gmra.mxu0 %v2851
  %v3244 = vpop.f32.mrf.mxu0
  %v3245 = vadd.f32 %v3132, %v3244
  %3246 = vmatmul.f32.gmra.mxu0 %v2860
  %v3247 = vpop.f32.mrf.mxu0
  %v3248 = vadd.f32 %v3135, %v3247
  %3249 = vmatmul.f32.gmra.mxu0 %v2869
  %v3250 = vpop.f32.mrf.mxu0
  %v3251 = vadd.f32 %v3138, %v3250
  %3252 = vmatmul.f32.gmra.mxu0 %v2878
  %v3253 = vpop.f32.mrf.mxu0
  %v3254 = vadd.f32 %v3141, %v3253
  %3255 = vmatmul.f32.gmra.mxu0 %v2887
  %v3256 = vpop.f32.mrf.mxu0
  %v3257 = vadd.f32 %v3144, %v3256
  %3258 = vmatmul.f32.gmra.mxu0 %v2896
  %v3259 = vpop.f32.mrf.mxu0
  %v3260 = vadd.f32 %v3147, %v3259
  %3261 = vmatmul.f32.gmra.mxu0 %v2905
  %v3262 = vpop.f32.mrf.mxu0
  %v3263 = vadd.f32 %v3150, %v3262
  %3264 = vmatmul.f32.gmra.mxu0 %v2914
  %v3265 = vpop.f32.mrf.mxu0
  %v3266 = vadd.f32 %v3153, %v3265
  %3267 = vmatmul.f32.gmra.mxu0 %v2923
  %v3268 = vpop.f32.mrf.mxu0
  %v3269 = vadd.f32 %v3156, %v3268
  %3270 = vmatmul.f32.gmra.mxu0 %v2932
  %v3271 = vpop.f32.mrf.mxu0
  %v3272 = vadd.f32 %v3159, %v3271
  %3273 = vmatmul.f32.gmra.mxu0 %v2941
  %v3274 = vpop.f32.mrf.mxu0
  %v3275 = vadd.f32 %v3162, %v3274
  %3276 = vmatmul.f32.gmra.mxu0 %v2950
  %v3277 = vpop.f32.mrf.mxu0
  %v3278 = vadd.f32 %v3165, %v3277
  %3279 = vmatmul.f32.gmra.mxu0 %v2959
  %v3280 = vpop.f32.mrf.mxu0
  %v3281 = vadd.f32 %v3168, %v3280
  %3282 = vmatmul.f32.gmra.mxu0 %v2968
  %v3283 = vpop.f32.mrf.mxu0
  %v3284 = vadd.f32 %v3171, %v3283
  %3285 = vmatmul.f32.gmra.mxu0 %v2977
  %v3286 = vpop.f32.mrf.mxu0
  %v3287 = vadd.f32 %v3174, %v3286
  %3288 = vmatmul.f32.gmra.mxu0 %v2986
  %v3289 = vpop.f32.mrf.mxu0
  %v3290 = vadd.f32 %v3177, %v3289
  %3291 = vmatmul.f32.gmra.mxu0 %v2995
  %v3292 = vpop.f32.mrf.mxu0
  %v3293 = vadd.f32 %v3180, %v3292
  %3294 = vmatmul.f32.gmra.mxu0 %v3004
  %v3295 = vpop.f32.mrf.mxu0
  %v3296 = vadd.f32 %v3183, %v3295
  %3297 = vmatmul.f32.gmra.mxu0 %v3013
  %v3298 = vpop.f32.mrf.mxu0
  %v3299 = vadd.f32 %v3186, %v3298
  %3300 = vmatmul.f32.gmra.mxu0 %v3022
  %v3301 = vpop.f32.mrf.mxu0
  %v3302 = vadd.f32 %v3189, %v3301
  %3303 = vmatmul.f32.gmra.mxu0 %v3031
  %v3304 = vpop.f32.mrf.mxu0
  %v3305 = vadd.f32 %v3192, %v3304
  %3306 = vmatmul.f32.gmra.mxu0 %v3040
  %v3307 = vpop.f32.mrf.mxu0
  %v3308 = vadd.f32 %v3195, %v3307
  %3309 = vmatmul.f32.gmra.mxu0 %v3049
  %v3310 = vpop.f32.mrf.mxu0
  %v3311 = vadd.f32 %v3198, %v3310
  %3312 = vmatmul.f32.gmra.mxu0 %v3058
  %v3313 = vpop.f32.mrf.mxu0
  %v3314 = vadd.f32 %v3201, %v3313
  %3315 = vmatmul.f32.gmra.mxu0 %v3067
  %v3316 = vpop.f32.mrf.mxu0
  %v3317 = vadd.f32 %v3204, %v3316
  %3318 = vmatmul.f32.gmra.mxu0 %v3076
  %v3319 = vpop.f32.mrf.mxu0
  %v3320 = vadd.f32 %v3207, %v3319
  %3321 = vmatmul.f32.gmra.mxu0 %v3085
  %v3322 = vpop.f32.mrf.mxu0
  %v3323 = vadd.f32 %v3210, %v3322
  %3324 = vmatmul.f32.gmra.mxu0 %v3094
  %v3325 = vpop.f32.mrf.mxu0
  %v3326 = vadd.f32 %v3213, %v3325
  %3327 = vdwg.mxu0
  %3328 = vmatpush.msra.mxu0 %v73
  %3329 = vmatpush.msra.mxu0 %v72
  %3330 = vmatpush.msra.mxu0 %v71
  %3331 = vmatpush.msra.mxu0 %v70
  %3332 = vmatpush.msra.mxu0 %v69
  %3333 = vmatpush.msra.mxu0 %v68
  %3334 = vmatpush.msra.mxu0 %v67
  %3335 = vmatpush.msra.mxu0 %v66
  %3336 = vmatpush.msra.mxu0 %v65
  %3337 = vmatpush.msra.mxu0 %v64
  %3338 = vmatpush.msra.mxu0 %v63
  %3339 = vmatpush.msra.mxu0 %v62
  %3340 = vmatpush.msra.mxu0 %v61
  %3341 = vmatpush.msra.mxu0 %v60
  %3342 = vmatpush.msra.mxu0 %v59
  %3343 = vmatpush.msra.mxu0 %v58
  %3344 = vmatmul.f32.gmra.mxu0 %v2816
  %v3345 = vpop.f32.mrf.mxu0
  %v3346 = vadd.f32 %v3233, %v3345
  %3347 = vmatmul.f32.gmra.mxu0 %v2825
  %v3348 = vpop.f32.mrf.mxu0
  %v3349 = vadd.f32 %v3236, %v3348
  %3350 = vmatmul.f32.gmra.mxu0 %v2834
  %v3351 = vpop.f32.mrf.mxu0
  %v3352 = vadd.f32 %v3239, %v3351
  %3353 = vmatmul.f32.gmra.mxu0 %v2843
  %v3354 = vpop.f32.mrf.mxu0
  %v3355 = vadd.f32 %v3242, %v3354
  %3356 = vmatmul.f32.gmra.mxu0 %v2852
  %v3357 = vpop.f32.mrf.mxu0
  %v3358 = vadd.f32 %v3245, %v3357
  %3359 = vmatmul.f32.gmra.mxu0 %v2861
  %v3360 = vpop.f32.mrf.mxu0
  %v3361 = vadd.f32 %v3248, %v3360
  %3362 = vmatmul.f32.gmra.mxu0 %v2870
  %v3363 = vpop.f32.mrf.mxu0
  %v3364 = vadd.f32 %v3251, %v3363
  %3365 = vmatmul.f32.gmra.mxu0 %v2879
  %v3366 = vpop.f32.mrf.mxu0
  %v3367 = vadd.f32 %v3254, %v3366
  %3368 = vmatmul.f32.gmra.mxu0 %v2888
  %v3369 = vpop.f32.mrf.mxu0
  %v3370 = vadd.f32 %v3257, %v3369
  %3371 = vmatmul.f32.gmra.mxu0 %v2897
  %v3372 = vpop.f32.mrf.mxu0
  %v3373 = vadd.f32 %v3260, %v3372
  %3374 = vmatmul.f32.gmra.mxu0 %v2906
  %v3375 = vpop.f32.mrf.mxu0
  %v3376 = vadd.f32 %v3263, %v3375
  %3377 = vmatmul.f32.gmra.mxu0 %v2915
  %v3378 = vpop.f32.mrf.mxu0
  %v3379 = vadd.f32 %v3266, %v3378
  %3380 = vmatmul.f32.gmra.mxu0 %v2924
  %v3381 = vpop.f32.mrf.mxu0
  %v3382 = vadd.f32 %v3269, %v3381
  %3383 = vmatmul.f32.gmra.mxu0 %v2933
  %v3384 = vpop.f32.mrf.mxu0
  %v3385 = vadd.f32 %v3272, %v3384
  %3386 = vmatmul.f32.gmra.mxu0 %v2942
  %v3387 = vpop.f32.mrf.mxu0
  %v3388 = vadd.f32 %v3275, %v3387
  %3389 = vmatmul.f32.gmra.mxu0 %v2951
  %v3390 = vpop.f32.mrf.mxu0
  %v3391 = vadd.f32 %v3278, %v3390
  %3392 = vmatmul.f32.gmra.mxu0 %v2960
  %v3393 = vpop.f32.mrf.mxu0
  %v3394 = vadd.f32 %v3281, %v3393
  %3395 = vmatmul.f32.gmra.mxu0 %v2969
  %v3396 = vpop.f32.mrf.mxu0
  %v3397 = vadd.f32 %v3284, %v3396
  %3398 = vmatmul.f32.gmra.mxu0 %v2978
  %v3399 = vpop.f32.mrf.mxu0
  %v3400 = vadd.f32 %v3287, %v3399
  %3401 = vmatmul.f32.gmra.mxu0 %v2987
  %v3402 = vpop.f32.mrf.mxu0
  %v3403 = vadd.f32 %v3290, %v3402
  %3404 = vmatmul.f32.gmra.mxu0 %v2996
  %v3405 = vpop.f32.mrf.mxu0
  %v3406 = vadd.f32 %v3293, %v3405
  %3407 = vmatmul.f32.gmra.mxu0 %v3005
  %v3408 = vpop.f32.mrf.mxu0
  %v3409 = vadd.f32 %v3296, %v3408
  %3410 = vmatmul.f32.gmra.mxu0 %v3014
  %v3411 = vpop.f32.mrf.mxu0
  %v3412 = vadd.f32 %v3299, %v3411
  %3413 = vmatmul.f32.gmra.mxu0 %v3023
  %v3414 = vpop.f32.mrf.mxu0
  %v3415 = vadd.f32 %v3302, %v3414
  %3416 = vmatmul.f32.gmra.mxu0 %v3032
  %v3417 = vpop.f32.mrf.mxu0
  %v3418 = vadd.f32 %v3305, %v3417
  %3419 = vmatmul.f32.gmra.mxu0 %v3041
  %v3420 = vpop.f32.mrf.mxu0
  %v3421 = vadd.f32 %v3308, %v3420
  %3422 = vmatmul.f32.gmra.mxu0 %v3050
  %v3423 = vpop.f32.mrf.mxu0
  %v3424 = vadd.f32 %v3311, %v3423
  %3425 = vmatmul.f32.gmra.mxu0 %v3059
  %v3426 = vpop.f32.mrf.mxu0
  %v3427 = vadd.f32 %v3314, %v3426
  %3428 = vmatmul.f32.gmra.mxu0 %v3068
  %v3429 = vpop.f32.mrf.mxu0
  %v3430 = vadd.f32 %v3317, %v3429
  %3431 = vmatmul.f32.gmra.mxu0 %v3077
  %v3432 = vpop.f32.mrf.mxu0
  %v3433 = vadd.f32 %v3320, %v3432
  %3434 = vmatmul.f32.gmra.mxu0 %v3086
  %v3435 = vpop.f32.mrf.mxu0
  %v3436 = vadd.f32 %v3323, %v3435
  %3437 = vmatmul.f32.gmra.mxu0 %v3095
  %v3438 = vpop.f32.mrf.mxu0
  %v3439 = vadd.f32 %v3326, %v3438
  %3440 = vdwg.mxu0
  %3441 = vmatpush.msra.mxu0 %v89
  %3442 = vmatpush.msra.mxu0 %v88
  %3443 = vmatpush.msra.mxu0 %v87
  %3444 = vmatpush.msra.mxu0 %v86
  %3445 = vmatpush.msra.mxu0 %v85
  %3446 = vmatpush.msra.mxu0 %v84
  %3447 = vmatpush.msra.mxu0 %v83
  %3448 = vmatpush.msra.mxu0 %v82
  %3449 = vmatpush.msra.mxu0 %v81
  %3450 = vmatpush.msra.mxu0 %v80
  %3451 = vmatpush.msra.mxu0 %v79
  %3452 = vmatpush.msra.mxu0 %v78
  %3453 = vmatpush.msra.mxu0 %v77
  %3454 = vmatpush.msra.mxu0 %v76
  %3455 = vmatpush.msra.mxu0 %v75
  %3456 = vmatpush.msra.mxu0 %v74
  %3457 = vmatmul.f32.gmra.mxu0 %v2817
  %v3458 = vpop.f32.mrf.mxu0
  %v3459 = vadd.f32 %v3346, %v3458
  %3460 = vmatmul.f32.gmra.mxu0 %v2826
  %v3461 = vpop.f32.mrf.mxu0
  %v3462 = vadd.f32 %v3349, %v3461
  %3463 = vmatmul.f32.gmra.mxu0 %v2835
  %v3464 = vpop.f32.mrf.mxu0
  %v3465 = vadd.f32 %v3352, %v3464
  %3466 = vmatmul.f32.gmra.mxu0 %v2844
  %v3467 = vpop.f32.mrf.mxu0
  %v3468 = vadd.f32 %v3355, %v3467
  %3469 = vmatmul.f32.gmra.mxu0 %v2853
  %v3470 = vpop.f32.mrf.mxu0
  %v3471 = vadd.f32 %v3358, %v3470
  %3472 = vmatmul.f32.gmra.mxu0 %v2862
  %v3473 = vpop.f32.mrf.mxu0
  %v3474 = vadd.f32 %v3361, %v3473
  %3475 = vmatmul.f32.gmra.mxu0 %v2871
  %v3476 = vpop.f32.mrf.mxu0
  %v3477 = vadd.f32 %v3364, %v3476
  %3478 = vmatmul.f32.gmra.mxu0 %v2880
  %v3479 = vpop.f32.mrf.mxu0
  %v3480 = vadd.f32 %v3367, %v3479
  %3481 = vmatmul.f32.gmra.mxu0 %v2889
  %v3482 = vpop.f32.mrf.mxu0
  %v3483 = vadd.f32 %v3370, %v3482
  %3484 = vmatmul.f32.gmra.mxu0 %v2898
  %v3485 = vpop.f32.mrf.mxu0
  %v3486 = vadd.f32 %v3373, %v3485
  %3487 = vmatmul.f32.gmra.mxu0 %v2907
  %v3488 = vpop.f32.mrf.mxu0
  %v3489 = vadd.f32 %v3376, %v3488
  %3490 = vmatmul.f32.gmra.mxu0 %v2916
  %v3491 = vpop.f32.mrf.mxu0
  %v3492 = vadd.f32 %v3379, %v3491
  %3493 = vmatmul.f32.gmra.mxu0 %v2925
  %v3494 = vpop.f32.mrf.mxu0
  %v3495 = vadd.f32 %v3382, %v3494
  %3496 = vmatmul.f32.gmra.mxu0 %v2934
  %v3497 = vpop.f32.mrf.mxu0
  %v3498 = vadd.f32 %v3385, %v3497
  %3499 = vmatmul.f32.gmra.mxu0 %v2943
  %v3500 = vpop.f32.mrf.mxu0
  %v3501 = vadd.f32 %v3388, %v3500
  %3502 = vmatmul.f32.gmra.mxu0 %v2952
  %v3503 = vpop.f32.mrf.mxu0
  %v3504 = vadd.f32 %v3391, %v3503
  %3505 = vmatmul.f32.gmra.mxu0 %v2961
  %v3506 = vpop.f32.mrf.mxu0
  %v3507 = vadd.f32 %v3394, %v3506
  %3508 = vmatmul.f32.gmra.mxu0 %v2970
  %v3509 = vpop.f32.mrf.mxu0
  %v3510 = vadd.f32 %v3397, %v3509
  %3511 = vmatmul.f32.gmra.mxu0 %v2979
  %v3512 = vpop.f32.mrf.mxu0
  %v3513 = vadd.f32 %v3400, %v3512
  %3514 = vmatmul.f32.gmra.mxu0 %v2988
  %v3515 = vpop.f32.mrf.mxu0
  %v3516 = vadd.f32 %v3403, %v3515
  %3517 = vmatmul.f32.gmra.mxu0 %v2997
  %v3518 = vpop.f32.mrf.mxu0
  %v3519 = vadd.f32 %v3406, %v3518
  %3520 = vmatmul.f32.gmra.mxu0 %v3006
  %v3521 = vpop.f32.mrf.mxu0
  %v3522 = vadd.f32 %v3409, %v3521
  %3523 = vmatmul.f32.gmra.mxu0 %v3015
  %v3524 = vpop.f32.mrf.mxu0
  %v3525 = vadd.f32 %v3412, %v3524
  %3526 = vmatmul.f32.gmra.mxu0 %v3024
  %v3527 = vpop.f32.mrf.mxu0
  %v3528 = vadd.f32 %v3415, %v3527
  %3529 = vmatmul.f32.gmra.mxu0 %v3033
  %v3530 = vpop.f32.mrf.mxu0
  %v3531 = vadd.f32 %v3418, %v3530
  %3532 = vmatmul.f32.gmra.mxu0 %v3042
  %v3533 = vpop.f32.mrf.mxu0
  %v3534 = vadd.f32 %v3421, %v3533
  %3535 = vmatmul.f32.gmra.mxu0 %v3051
  %v3536 = vpop.f32.mrf.mxu0
  %v3537 = vadd.f32 %v3424, %v3536
  %3538 = vmatmul.f32.gmra.mxu0 %v3060
  %v3539 = vpop.f32.mrf.mxu0
  %v3540 = vadd.f32 %v3427, %v3539
  %3541 = vmatmul.f32.gmra.mxu0 %v3069
  %v3542 = vpop.f32.mrf.mxu0
  %v3543 = vadd.f32 %v3430, %v3542
  %3544 = vmatmul.f32.gmra.mxu0 %v3078
  %v3545 = vpop.f32.mrf.mxu0
  %v3546 = vadd.f32 %v3433, %v3545
  %3547 = vmatmul.f32.gmra.mxu0 %v3087
  %v3548 = vpop.f32.mrf.mxu0
  %v3549 = vadd.f32 %v3436, %v3548
  %3550 = vmatmul.f32.gmra.mxu0 %v3096
  %v3551 = vpop.f32.mrf.mxu0
  %v3552 = vadd.f32 %v3439, %v3551
  %3553 = vdwg.mxu0
  %3554 = vmatpush.msra.mxu0 %v105
  %3555 = vmatpush.msra.mxu0 %v104
  %3556 = vmatpush.msra.mxu0 %v103
  %3557 = vmatpush.msra.mxu0 %v102
  %3558 = vmatpush.msra.mxu0 %v101
  %3559 = vmatpush.msra.mxu0 %v100
  %3560 = vmatpush.msra.mxu0 %v99
  %3561 = vmatpush.msra.mxu0 %v98
  %3562 = vmatpush.msra.mxu0 %v97
  %3563 = vmatpush.msra.mxu0 %v96
  %3564 = vmatpush.msra.mxu0 %v95
  %3565 = vmatpush.msra.mxu0 %v94
  %3566 = vmatpush.msra.mxu0 %v93
  %3567 = vmatpush.msra.mxu0 %v92
  %3568 = vmatpush.msra.mxu0 %v91
  %3569 = vmatpush.msra.mxu0 %v90
  %3570 = vmatmul.f32.gmra.mxu0 %v2818
  %v3571 = vpop.f32.mrf.mxu0
  %v3572 = vadd.f32 %v3459, %v3571
  %3573 = vmatmul.f32.gmra.mxu0 %v2827
  %v3574 = vpop.f32.mrf.mxu0
  %v3575 = vadd.f32 %v3462, %v3574
  %3576 = vmatmul.f32.gmra.mxu0 %v2836
  %v3577 = vpop.f32.mrf.mxu0
  %v3578 = vadd.f32 %v3465, %v3577
  %3579 = vmatmul.f32.gmra.mxu0 %v2845
  %v3580 = vpop.f32.mrf.mxu0
  %v3581 = vadd.f32 %v3468, %v3580
  %3582 = vmatmul.f32.gmra.mxu0 %v2854
  %v3583 = vpop.f32.mrf.mxu0
  %v3584 = vadd.f32 %v3471, %v3583
  %3585 = vmatmul.f32.gmra.mxu0 %v2863
  %v3586 = vpop.f32.mrf.mxu0
  %v3587 = vadd.f32 %v3474, %v3586
  %3588 = vmatmul.f32.gmra.mxu0 %v2872
  %v3589 = vpop.f32.mrf.mxu0
  %v3590 = vadd.f32 %v3477, %v3589
  %3591 = vmatmul.f32.gmra.mxu0 %v2881
  %v3592 = vpop.f32.mrf.mxu0
  %v3593 = vadd.f32 %v3480, %v3592
  %3594 = vmatmul.f32.gmra.mxu0 %v2890
  %v3595 = vpop.f32.mrf.mxu0
  %v3596 = vadd.f32 %v3483, %v3595
  %3597 = vmatmul.f32.gmra.mxu0 %v2899
  %v3598 = vpop.f32.mrf.mxu0
  %v3599 = vadd.f32 %v3486, %v3598
  %3600 = vmatmul.f32.gmra.mxu0 %v2908
  %v3601 = vpop.f32.mrf.mxu0
  %v3602 = vadd.f32 %v3489, %v3601
  %3603 = vmatmul.f32.gmra.mxu0 %v2917
  %v3604 = vpop.f32.mrf.mxu0
  %v3605 = vadd.f32 %v3492, %v3604
  %3606 = vmatmul.f32.gmra.mxu0 %v2926
  %v3607 = vpop.f32.mrf.mxu0
  %v3608 = vadd.f32 %v3495, %v3607
  %3609 = vmatmul.f32.gmra.mxu0 %v2935
  %v3610 = vpop.f32.mrf.mxu0
  %v3611 = vadd.f32 %v3498, %v3610
  %3612 = vmatmul.f32.gmra.mxu0 %v2944
  %v3613 = vpop.f32.mrf.mxu0
  %v3614 = vadd.f32 %v3501, %v3613
  %3615 = vmatmul.f32.gmra.mxu0 %v2953
  %v3616 = vpop.f32.mrf.mxu0
  %v3617 = vadd.f32 %v3504, %v3616
  %3618 = vmatmul.f32.gmra.mxu0 %v2962
  %v3619 = vpop.f32.mrf.mxu0
  %v3620 = vadd.f32 %v3507, %v3619
  %3621 = vmatmul.f32.gmra.mxu0 %v2971
  %v3622 = vpop.f32.mrf.mxu0
  %v3623 = vadd.f32 %v3510, %v3622
  %3624 = vmatmul.f32.gmra.mxu0 %v2980
  %v3625 = vpop.f32.mrf.mxu0
  %v3626 = vadd.f32 %v3513, %v3625
  %3627 = vmatmul.f32.gmra.mxu0 %v2989
  %v3628 = vpop.f32.mrf.mxu0
  %v3629 = vadd.f32 %v3516, %v3628
  %3630 = vmatmul.f32.gmra.mxu0 %v2998
  %v3631 = vpop.f32.mrf.mxu0
  %v3632 = vadd.f32 %v3519, %v3631
  %3633 = vmatmul.f32.gmra.mxu0 %v3007
  %v3634 = vpop.f32.mrf.mxu0
  %v3635 = vadd.f32 %v3522, %v3634
  %3636 = vmatmul.f32.gmra.mxu0 %v3016
  %v3637 = vpop.f32.mrf.mxu0
  %v3638 = vadd.f32 %v3525, %v3637
  %3639 = vmatmul.f32.gmra.mxu0 %v3025
  %v3640 = vpop.f32.mrf.mxu0
  %v3641 = vadd.f32 %v3528, %v3640
  %3642 = vmatmul.f32.gmra.mxu0 %v3034
  %v3643 = vpop.f32.mrf.mxu0
  %v3644 = vadd.f32 %v3531, %v3643
  %3645 = vmatmul.f32.gmra.mxu0 %v3043
  %v3646 = vpop.f32.mrf.mxu0
  %v3647 = vadd.f32 %v3534, %v3646
  %3648 = vmatmul.f32.gmra.mxu0 %v3052
  %v3649 = vpop.f32.mrf.mxu0
  %v3650 = vadd.f32 %v3537, %v3649
  %3651 = vmatmul.f32.gmra.mxu0 %v3061
  %v3652 = vpop.f32.mrf.mxu0
  %v3653 = vadd.f32 %v3540, %v3652
  %3654 = vmatmul.f32.gmra.mxu0 %v3070
  %v3655 = vpop.f32.mrf.mxu0
  %v3656 = vadd.f32 %v3543, %v3655
  %3657 = vmatmul.f32.gmra.mxu0 %v3079
  %v3658 = vpop.f32.mrf.mxu0
  %v3659 = vadd.f32 %v3546, %v3658
  %3660 = vmatmul.f32.gmra.mxu0 %v3088
  %v3661 = vpop.f32.mrf.mxu0
  %v3662 = vadd.f32 %v3549, %v3661
  %3663 = vmatmul.f32.gmra.mxu0 %v3097
  %v3664 = vpop.f32.mrf.mxu0
  %v3665 = vadd.f32 %v3552, %v3664
  %3666 = vdwg.mxu0
  %3667 = vmatpush.msra.mxu0 %v121
  %3668 = vmatpush.msra.mxu0 %v120
  %3669 = vmatpush.msra.mxu0 %v119
  %3670 = vmatpush.msra.mxu0 %v118
  %3671 = vmatpush.msra.mxu0 %v117
  %3672 = vmatpush.msra.mxu0 %v116
  %3673 = vmatpush.msra.mxu0 %v115
  %3674 = vmatpush.msra.mxu0 %v114
  %3675 = vmatpush.msra.mxu0 %v113
  %3676 = vmatpush.msra.mxu0 %v112
  %3677 = vmatpush.msra.mxu0 %v111
  %3678 = vmatpush.msra.mxu0 %v110
  %3679 = vmatpush.msra.mxu0 %v109
  %3680 = vmatpush.msra.mxu0 %v108
  %3681 = vmatpush.msra.mxu0 %v107
  %3682 = vmatpush.msra.mxu0 %v106
  %3683 = vmatmul.f32.gmra.mxu0 %v2819
  %v3684 = vpop.f32.mrf.mxu0
  %v3685 = vadd.f32 %v3572, %v3684
  %3686 = vmatmul.f32.gmra.mxu0 %v2828
  %v3687 = vpop.f32.mrf.mxu0
  %v3688 = vadd.f32 %v3575, %v3687
  %3689 = vmatmul.f32.gmra.mxu0 %v2837
  %v3690 = vpop.f32.mrf.mxu0
  %v3691 = vadd.f32 %v3578, %v3690
  %3692 = vmatmul.f32.gmra.mxu0 %v2846
  %v3693 = vpop.f32.mrf.mxu0
  %v3694 = vadd.f32 %v3581, %v3693
  %3695 = vmatmul.f32.gmra.mxu0 %v2855
  %v3696 = vpop.f32.mrf.mxu0
  %v3697 = vadd.f32 %v3584, %v3696
  %3698 = vmatmul.f32.gmra.mxu0 %v2864
  %v3699 = vpop.f32.mrf.mxu0
  %v3700 = vadd.f32 %v3587, %v3699
  %3701 = vmatmul.f32.gmra.mxu0 %v2873
  %v3702 = vpop.f32.mrf.mxu0
  %v3703 = vadd.f32 %v3590, %v3702
  %3704 = vmatmul.f32.gmra.mxu0 %v2882
  %v3705 = vpop.f32.mrf.mxu0
  %v3706 = vadd.f32 %v3593, %v3705
  %3707 = vmatmul.f32.gmra.mxu0 %v2891
  %v3708 = vpop.f32.mrf.mxu0
  %v3709 = vadd.f32 %v3596, %v3708
  %3710 = vmatmul.f32.gmra.mxu0 %v2900
  %v3711 = vpop.f32.mrf.mxu0
  %v3712 = vadd.f32 %v3599, %v3711
  %3713 = vmatmul.f32.gmra.mxu0 %v2909
  %v3714 = vpop.f32.mrf.mxu0
  %v3715 = vadd.f32 %v3602, %v3714
  %3716 = vmatmul.f32.gmra.mxu0 %v2918
  %v3717 = vpop.f32.mrf.mxu0
  %v3718 = vadd.f32 %v3605, %v3717
  %3719 = vmatmul.f32.gmra.mxu0 %v2927
  %v3720 = vpop.f32.mrf.mxu0
  %v3721 = vadd.f32 %v3608, %v3720
  %3722 = vmatmul.f32.gmra.mxu0 %v2936
  %v3723 = vpop.f32.mrf.mxu0
  %v3724 = vadd.f32 %v3611, %v3723
  %3725 = vmatmul.f32.gmra.mxu0 %v2945
  %v3726 = vpop.f32.mrf.mxu0
  %v3727 = vadd.f32 %v3614, %v3726
  %3728 = vmatmul.f32.gmra.mxu0 %v2954
  %v3729 = vpop.f32.mrf.mxu0
  %v3730 = vadd.f32 %v3617, %v3729
  %3731 = vmatmul.f32.gmra.mxu0 %v2963
  %v3732 = vpop.f32.mrf.mxu0
  %v3733 = vadd.f32 %v3620, %v3732
  %3734 = vmatmul.f32.gmra.mxu0 %v2972
  %v3735 = vpop.f32.mrf.mxu0
  %v3736 = vadd.f32 %v3623, %v3735
  %3737 = vmatmul.f32.gmra.mxu0 %v2981
  %v3738 = vpop.f32.mrf.mxu0
  %v3739 = vadd.f32 %v3626, %v3738
  %3740 = vmatmul.f32.gmra.mxu0 %v2990
  %v3741 = vpop.f32.mrf.mxu0
  %v3742 = vadd.f32 %v3629, %v3741
  %3743 = vmatmul.f32.gmra.mxu0 %v2999
  %v3744 = vpop.f32.mrf.mxu0
  %v3745 = vadd.f32 %v3632, %v3744
  %3746 = vmatmul.f32.gmra.mxu0 %v3008
  %v3747 = vpop.f32.mrf.mxu0
  %v3748 = vadd.f32 %v3635, %v3747
  %3749 = vmatmul.f32.gmra.mxu0 %v3017
  %v3750 = vpop.f32.mrf.mxu0
  %v3751 = vadd.f32 %v3638, %v3750
  %3752 = vmatmul.f32.gmra.mxu0 %v3026
  %v3753 = vpop.f32.mrf.mxu0
  %v3754 = vadd.f32 %v3641, %v3753
  %3755 = vmatmul.f32.gmra.mxu0 %v3035
  %v3756 = vpop.f32.mrf.mxu0
  %v3757 = vadd.f32 %v3644, %v3756
  %3758 = vmatmul.f32.gmra.mxu0 %v3044
  %v3759 = vpop.f32.mrf.mxu0
  %v3760 = vadd.f32 %v3647, %v3759
  %3761 = vmatmul.f32.gmra.mxu0 %v3053
  %v3762 = vpop.f32.mrf.mxu0
  %v3763 = vadd.f32 %v3650, %v3762
  %3764 = vmatmul.f32.gmra.mxu0 %v3062
  %v3765 = vpop.f32.mrf.mxu0
  %v3766 = vadd.f32 %v3653, %v3765
  %3767 = vmatmul.f32.gmra.mxu0 %v3071
  %v3768 = vpop.f32.mrf.mxu0
  %v3769 = vadd.f32 %v3656, %v3768
  %3770 = vmatmul.f32.gmra.mxu0 %v3080
  %v3771 = vpop.f32.mrf.mxu0
  %v3772 = vadd.f32 %v3659, %v3771
  %3773 = vmatmul.f32.gmra.mxu0 %v3089
  %v3774 = vpop.f32.mrf.mxu0
  %v3775 = vadd.f32 %v3662, %v3774
  %3776 = vmatmul.f32.gmra.mxu0 %v3098
  %v3777 = vpop.f32.mrf.mxu0
  %v3778 = vadd.f32 %v3665, %v3777
  %3779 = vdwg.mxu0
  %3780 = vmatpush.msra.mxu0 %v137
  %3781 = vmatpush.msra.mxu0 %v136
  %3782 = vmatpush.msra.mxu0 %v135
  %3783 = vmatpush.msra.mxu0 %v134
  %3784 = vmatpush.msra.mxu0 %v133
  %3785 = vmatpush.msra.mxu0 %v132
  %3786 = vmatpush.msra.mxu0 %v131
  %3787 = vmatpush.msra.mxu0 %v130
  %3788 = vmatpush.msra.mxu0 %v129
  %3789 = vmatpush.msra.mxu0 %v128
  %3790 = vmatpush.msra.mxu0 %v127
  %3791 = vmatpush.msra.mxu0 %v126
  %3792 = vmatpush.msra.mxu0 %v125
  %3793 = vmatpush.msra.mxu0 %v124
  %3794 = vmatpush.msra.mxu0 %v123
  %3795 = vmatpush.msra.mxu0 %v122
  %3796 = vmatmul.f32.gmra.mxu0 %v2820
  %v3797 = vpop.f32.mrf.mxu0
  %v3798 = vadd.f32 %v3685, %v3797
  %3799 = vmatmul.f32.gmra.mxu0 %v2829
  %v3800 = vpop.f32.mrf.mxu0
  %v3801 = vadd.f32 %v3688, %v3800
  %3802 = vmatmul.f32.gmra.mxu0 %v2838
  %v3803 = vpop.f32.mrf.mxu0
  %v3804 = vadd.f32 %v3691, %v3803
  %3805 = vmatmul.f32.gmra.mxu0 %v2847
  %v3806 = vpop.f32.mrf.mxu0
  %v3807 = vadd.f32 %v3694, %v3806
  %3808 = vmatmul.f32.gmra.mxu0 %v2856
  %v3809 = vpop.f32.mrf.mxu0
  %v3810 = vadd.f32 %v3697, %v3809
  %3811 = vmatmul.f32.gmra.mxu0 %v2865
  %v3812 = vpop.f32.mrf.mxu0
  %v3813 = vadd.f32 %v3700, %v3812
  %3814 = vmatmul.f32.gmra.mxu0 %v2874
  %v3815 = vpop.f32.mrf.mxu0
  %v3816 = vadd.f32 %v3703, %v3815
  %3817 = vmatmul.f32.gmra.mxu0 %v2883
  %v3818 = vpop.f32.mrf.mxu0
  %v3819 = vadd.f32 %v3706, %v3818
  %3820 = vmatmul.f32.gmra.mxu0 %v2892
  %v3821 = vpop.f32.mrf.mxu0
  %v3822 = vadd.f32 %v3709, %v3821
  %3823 = vmatmul.f32.gmra.mxu0 %v2901
  %v3824 = vpop.f32.mrf.mxu0
  %v3825 = vadd.f32 %v3712, %v3824
  %3826 = vmatmul.f32.gmra.mxu0 %v2910
  %v3827 = vpop.f32.mrf.mxu0
  %v3828 = vadd.f32 %v3715, %v3827
  %3829 = vmatmul.f32.gmra.mxu0 %v2919
  %v3830 = vpop.f32.mrf.mxu0
  %v3831 = vadd.f32 %v3718, %v3830
  %3832 = vmatmul.f32.gmra.mxu0 %v2928
  %v3833 = vpop.f32.mrf.mxu0
  %v3834 = vadd.f32 %v3721, %v3833
  %3835 = vmatmul.f32.gmra.mxu0 %v2937
  %v3836 = vpop.f32.mrf.mxu0
  %v3837 = vadd.f32 %v3724, %v3836
  %3838 = vmatmul.f32.gmra.mxu0 %v2946
  %v3839 = vpop.f32.mrf.mxu0
  %v3840 = vadd.f32 %v3727, %v3839
  %3841 = vmatmul.f32.gmra.mxu0 %v2955
  %v3842 = vpop.f32.mrf.mxu0
  %v3843 = vadd.f32 %v3730, %v3842
  %3844 = vmatmul.f32.gmra.mxu0 %v2964
  %v3845 = vpop.f32.mrf.mxu0
  %v3846 = vadd.f32 %v3733, %v3845
  %3847 = vmatmul.f32.gmra.mxu0 %v2973
  %v3848 = vpop.f32.mrf.mxu0
  %v3849 = vadd.f32 %v3736, %v3848
  %3850 = vmatmul.f32.gmra.mxu0 %v2982
  %v3851 = vpop.f32.mrf.mxu0
  %v3852 = vadd.f32 %v3739, %v3851
  %3853 = vmatmul.f32.gmra.mxu0 %v2991
  %v3854 = vpop.f32.mrf.mxu0
  %v3855 = vadd.f32 %v3742, %v3854
  %3856 = vmatmul.f32.gmra.mxu0 %v3000
  %v3857 = vpop.f32.mrf.mxu0
  %v3858 = vadd.f32 %v3745, %v3857
  %3859 = vmatmul.f32.gmra.mxu0 %v3009
  %v3860 = vpop.f32.mrf.mxu0
  %v3861 = vadd.f32 %v3748, %v3860
  %3862 = vmatmul.f32.gmra.mxu0 %v3018
  %v3863 = vpop.f32.mrf.mxu0
  %v3864 = vadd.f32 %v3751, %v3863
  %3865 = vmatmul.f32.gmra.mxu0 %v3027
  %v3866 = vpop.f32.mrf.mxu0
  %v3867 = vadd.f32 %v3754, %v3866
  %3868 = vmatmul.f32.gmra.mxu0 %v3036
  %v3869 = vpop.f32.mrf.mxu0
  %v3870 = vadd.f32 %v3757, %v3869
  %3871 = vmatmul.f32.gmra.mxu0 %v3045
  %v3872 = vpop.f32.mrf.mxu0
  %v3873 = vadd.f32 %v3760, %v3872
  %3874 = vmatmul.f32.gmra.mxu0 %v3054
  %v3875 = vpop.f32.mrf.mxu0
  %v3876 = vadd.f32 %v3763, %v3875
  %3877 = vmatmul.f32.gmra.mxu0 %v3063
  %v3878 = vpop.f32.mrf.mxu0
  %v3879 = vadd.f32 %v3766, %v3878
  %3880 = vmatmul.f32.gmra.mxu0 %v3072
  %v3881 = vpop.f32.mrf.mxu0
  %v3882 = vadd.f32 %v3769, %v3881
  %3883 = vmatmul.f32.gmra.mxu0 %v3081
  %v3884 = vpop.f32.mrf.mxu0
  %v3885 = vadd.f32 %v3772, %v3884
  %3886 = vmatmul.f32.gmra.mxu0 %v3090
  %v3887 = vpop.f32.mrf.mxu0
  %v3888 = vadd.f32 %v3775, %v3887
  %3889 = vmatmul.f32.gmra.mxu0 %v3099
  %v3890 = vpop.f32.mrf.mxu0
  %v3891 = vadd.f32 %v3778, %v3890
  %3892 = vdwg.mxu0
  %3893 = vmatpush.msra.mxu0 %v153
  %3894 = vmatpush.msra.mxu0 %v152
  %3895 = vmatpush.msra.mxu0 %v151
  %3896 = vmatpush.msra.mxu0 %v150
  %3897 = vmatpush.msra.mxu0 %v149
  %3898 = vmatpush.msra.mxu0 %v148
  %3899 = vmatpush.msra.mxu0 %v147
  %3900 = vmatpush.msra.mxu0 %v146
  %3901 = vmatpush.msra.mxu0 %v145
  %3902 = vmatpush.msra.mxu0 %v144
  %3903 = vmatpush.msra.mxu0 %v143
  %3904 = vmatpush.msra.mxu0 %v142
  %3905 = vmatpush.msra.mxu0 %v141
  %3906 = vmatpush.msra.mxu0 %v140
  %3907 = vmatpush.msra.mxu0 %v139
  %3908 = vmatpush.msra.mxu0 %v138
  %3909 = vmatmul.f32.gmra.mxu0 %v2821
  %v3910 = vpop.f32.mrf.mxu0
  %v3911 = vadd.f32 %v3798, %v3910
  %3912 = vmatmul.f32.gmra.mxu0 %v2830
  %v3913 = vpop.f32.mrf.mxu0
  %v3914 = vadd.f32 %v3801, %v3913
  %3915 = vmatmul.f32.gmra.mxu0 %v2839
  %v3916 = vpop.f32.mrf.mxu0
  %v3917 = vadd.f32 %v3804, %v3916
  %3918 = vmatmul.f32.gmra.mxu0 %v2848
  %v3919 = vpop.f32.mrf.mxu0
  %v3920 = vadd.f32 %v3807, %v3919
  %3921 = vmatmul.f32.gmra.mxu0 %v2857
  %v3922 = vpop.f32.mrf.mxu0
  %v3923 = vadd.f32 %v3810, %v3922
  %3924 = vmatmul.f32.gmra.mxu0 %v2866
  %v3925 = vpop.f32.mrf.mxu0
  %v3926 = vadd.f32 %v3813, %v3925
  %3927 = vmatmul.f32.gmra.mxu0 %v2875
  %v3928 = vpop.f32.mrf.mxu0
  %v3929 = vadd.f32 %v3816, %v3928
  %3930 = vmatmul.f32.gmra.mxu0 %v2884
  %v3931 = vpop.f32.mrf.mxu0
  %v3932 = vadd.f32 %v3819, %v3931
  %3933 = vmatmul.f32.gmra.mxu0 %v2893
  %v3934 = vpop.f32.mrf.mxu0
  %v3935 = vadd.f32 %v3822, %v3934
  %3936 = vmatmul.f32.gmra.mxu0 %v2902
  %v3937 = vpop.f32.mrf.mxu0
  %v3938 = vadd.f32 %v3825, %v3937
  %3939 = vmatmul.f32.gmra.mxu0 %v2911
  %v3940 = vpop.f32.mrf.mxu0
  %v3941 = vadd.f32 %v3828, %v3940
  %3942 = vmatmul.f32.gmra.mxu0 %v2920
  %v3943 = vpop.f32.mrf.mxu0
  %v3944 = vadd.f32 %v3831, %v3943
  %3945 = vmatmul.f32.gmra.mxu0 %v2929
  %v3946 = vpop.f32.mrf.mxu0
  %v3947 = vadd.f32 %v3834, %v3946
  %3948 = vmatmul.f32.gmra.mxu0 %v2938
  %v3949 = vpop.f32.mrf.mxu0
  %v3950 = vadd.f32 %v3837, %v3949
  %3951 = vmatmul.f32.gmra.mxu0 %v2947
  %v3952 = vpop.f32.mrf.mxu0
  %v3953 = vadd.f32 %v3840, %v3952
  %3954 = vmatmul.f32.gmra.mxu0 %v2956
  %v3955 = vpop.f32.mrf.mxu0
  %v3956 = vadd.f32 %v3843, %v3955
  %3957 = vmatmul.f32.gmra.mxu0 %v2965
  %v3958 = vpop.f32.mrf.mxu0
  %v3959 = vadd.f32 %v3846, %v3958
  %3960 = vmatmul.f32.gmra.mxu0 %v2974
  %v3961 = vpop.f32.mrf.mxu0
  %v3962 = vadd.f32 %v3849, %v3961
  %3963 = vmatmul.f32.gmra.mxu0 %v2983
  %v3964 = vpop.f32.mrf.mxu0
  %v3965 = vadd.f32 %v3852, %v3964
  %3966 = vmatmul.f32.gmra.mxu0 %v2992
  %v3967 = vpop.f32.mrf.mxu0
  %v3968 = vadd.f32 %v3855, %v3967
  %3969 = vmatmul.f32.gmra.mxu0 %v3001
  %v3970 = vpop.f32.mrf.mxu0
  %v3971 = vadd.f32 %v3858, %v3970
  %3972 = vmatmul.f32.gmra.mxu0 %v3010
  %v3973 = vpop.f32.mrf.mxu0
  %v3974 = vadd.f32 %v3861, %v3973
  %3975 = vmatmul.f32.gmra.mxu0 %v3019
  %v3976 = vpop.f32.mrf.mxu0
  %v3977 = vadd.f32 %v3864, %v3976
  %3978 = vmatmul.f32.gmra.mxu0 %v3028
  %v3979 = vpop.f32.mrf.mxu0
  %v3980 = vadd.f32 %v3867, %v3979
  %3981 = vmatmul.f32.gmra.mxu0 %v3037
  %v3982 = vpop.f32.mrf.mxu0
  %v3983 = vadd.f32 %v3870, %v3982
  %3984 = vmatmul.f32.gmra.mxu0 %v3046
  %v3985 = vpop.f32.mrf.mxu0
  %v3986 = vadd.f32 %v3873, %v3985
  %3987 = vmatmul.f32.gmra.mxu0 %v3055
  %v3988 = vpop.f32.mrf.mxu0
  %v3989 = vadd.f32 %v3876, %v3988
  %3990 = vmatmul.f32.gmra.mxu0 %v3064
  %v3991 = vpop.f32.mrf.mxu0
  %v3992 = vadd.f32 %v3879, %v3991
  %3993 = vmatmul.f32.gmra.mxu0 %v3073
  %v3994 = vpop.f32.mrf.mxu0
  %v3995 = vadd.f32 %v3882, %v3994
  %3996 = vmatmul.f32.gmra.mxu0 %v3082
  %v3997 = vpop.f32.mrf.mxu0
  %v3998 = vadd.f32 %v3885, %v3997
  %3999 = vmatmul.f32.gmra.mxu0 %v3091
  %v4000 = vpop.f32.mrf.mxu0
  %v4001 = vadd.f32 %v3888, %v4000
  %4002 = vmatmul.f32.gmra.mxu0 %v3100
  %v4003 = vpop.f32.mrf.mxu0
  %v4004 = vadd.f32 %v3891, %v4003
  %4005 = vdwg.mxu0
  %4006 = vmatpush.msra.mxu0 %v169
  %4007 = vmatpush.msra.mxu0 %v168
  %4008 = vmatpush.msra.mxu0 %v167
  %4009 = vmatpush.msra.mxu0 %v166
  %4010 = vmatpush.msra.mxu0 %v165
  %4011 = vmatpush.msra.mxu0 %v164
  %4012 = vmatpush.msra.mxu0 %v163
  %4013 = vmatpush.msra.mxu0 %v162
  %4014 = vmatpush.msra.mxu0 %v161
  %4015 = vmatpush.msra.mxu0 %v160
  %4016 = vmatpush.msra.mxu0 %v159
  %4017 = vmatpush.msra.mxu0 %v158
  %4018 = vmatpush.msra.mxu0 %v157
  %4019 = vmatpush.msra.mxu0 %v156
  %4020 = vmatpush.msra.mxu0 %v155
  %4021 = vmatpush.msra.mxu0 %v154
  %4022 = vmatmul.f32.gmra.mxu0 %v2822
  %v4023 = vpop.f32.mrf.mxu0
  %v4024 = vadd.f32 %v3911, %v4023
  %4025 = vmatmul.f32.gmra.mxu0 %v2831
  %v4026 = vpop.f32.mrf.mxu0
  %v4027 = vadd.f32 %v3914, %v4026
  %4028 = vmatmul.f32.gmra.mxu0 %v2840
  %v4029 = vpop.f32.mrf.mxu0
  %v4030 = vadd.f32 %v3917, %v4029
  %4031 = vmatmul.f32.gmra.mxu0 %v2849
  %v4032 = vpop.f32.mrf.mxu0
  %v4033 = vadd.f32 %v3920, %v4032
  %4034 = vmatmul.f32.gmra.mxu0 %v2858
  %v4035 = vpop.f32.mrf.mxu0
  %v4036 = vadd.f32 %v3923, %v4035
  %4037 = vmatmul.f32.gmra.mxu0 %v2867
  %v4038 = vpop.f32.mrf.mxu0
  %v4039 = vadd.f32 %v3926, %v4038
  %4040 = vmatmul.f32.gmra.mxu0 %v2876
  %v4041 = vpop.f32.mrf.mxu0
  %v4042 = vadd.f32 %v3929, %v4041
  %4043 = vmatmul.f32.gmra.mxu0 %v2885
  %v4044 = vpop.f32.mrf.mxu0
  %v4045 = vadd.f32 %v3932, %v4044
  %4046 = vmatmul.f32.gmra.mxu0 %v2894
  %v4047 = vpop.f32.mrf.mxu0
  %v4048 = vadd.f32 %v3935, %v4047
  %4049 = vmatmul.f32.gmra.mxu0 %v2903
  %v4050 = vpop.f32.mrf.mxu0
  %v4051 = vadd.f32 %v3938, %v4050
  %4052 = vmatmul.f32.gmra.mxu0 %v2912
  %v4053 = vpop.f32.mrf.mxu0
  %v4054 = vadd.f32 %v3941, %v4053
  %4055 = vmatmul.f32.gmra.mxu0 %v2921
  %v4056 = vpop.f32.mrf.mxu0
  %v4057 = vadd.f32 %v3944, %v4056
  %4058 = vmatmul.f32.gmra.mxu0 %v2930
  %v4059 = vpop.f32.mrf.mxu0
  %v4060 = vadd.f32 %v3947, %v4059
  %4061 = vmatmul.f32.gmra.mxu0 %v2939
  %v4062 = vpop.f32.mrf.mxu0
  %v4063 = vadd.f32 %v3950, %v4062
  %4064 = vmatmul.f32.gmra.mxu0 %v2948
  %v4065 = vpop.f32.mrf.mxu0
  %v4066 = vadd.f32 %v3953, %v4065
  %4067 = vmatmul.f32.gmra.mxu0 %v2957
  %v4068 = vpop.f32.mrf.mxu0
  %v4069 = vadd.f32 %v3956, %v4068
  %4070 = vmatmul.f32.gmra.mxu0 %v2966
  %v4071 = vpop.f32.mrf.mxu0
  %v4072 = vadd.f32 %v3959, %v4071
  %4073 = vmatmul.f32.gmra.mxu0 %v2975
  %v4074 = vpop.f32.mrf.mxu0
  %v4075 = vadd.f32 %v3962, %v4074
  %4076 = vmatmul.f32.gmra.mxu0 %v2984
  %v4077 = vpop.f32.mrf.mxu0
  %v4078 = vadd.f32 %v3965, %v4077
  %4079 = vmatmul.f32.gmra.mxu0 %v2993
  %v4080 = vpop.f32.mrf.mxu0
  %v4081 = vadd.f32 %v3968, %v4080
  %4082 = vmatmul.f32.gmra.mxu0 %v3002
  %v4083 = vpop.f32.mrf.mxu0
  %v4084 = vadd.f32 %v3971, %v4083
  %4085 = vmatmul.f32.gmra.mxu0 %v3011
  %v4086 = vpop.f32.mrf.mxu0
  %v4087 = vadd.f32 %v3974, %v4086
  %4088 = vmatmul.f32.gmra.mxu0 %v3020
  %v4089 = vpop.f32.mrf.mxu0
  %v4090 = vadd.f32 %v3977, %v4089
  %4091 = vmatmul.f32.gmra.mxu0 %v3029
  %v4092 = vpop.f32.mrf.mxu0
  %v4093 = vadd.f32 %v3980, %v4092
  %4094 = vmatmul.f32.gmra.mxu0 %v3038
  %v4095 = vpop.f32.mrf.mxu0
  %v4096 = vadd.f32 %v3983, %v4095
  %4097 = vmatmul.f32.gmra.mxu0 %v3047
  %v4098 = vpop.f32.mrf.mxu0
  %v4099 = vadd.f32 %v3986, %v4098
  %4100 = vmatmul.f32.gmra.mxu0 %v3056
  %v4101 = vpop.f32.mrf.mxu0
  %v4102 = vadd.f32 %v3989, %v4101
  %4103 = vmatmul.f32.gmra.mxu0 %v3065
  %v4104 = vpop.f32.mrf.mxu0
  %v4105 = vadd.f32 %v3992, %v4104
  %4106 = vmatmul.f32.gmra.mxu0 %v3074
  %v4107 = vpop.f32.mrf.mxu0
  %v4108 = vadd.f32 %v3995, %v4107
  %4109 = vmatmul.f32.gmra.mxu0 %v3083
  %v4110 = vpop.f32.mrf.mxu0
  %v4111 = vadd.f32 %v3998, %v4110
  %4112 = vmatmul.f32.gmra.mxu0 %v3092
  %v4113 = vpop.f32.mrf.mxu0
  %v4114 = vadd.f32 %v4001, %v4113
  %4115 = vmatmul.f32.gmra.mxu0 %v3101
  %v4116 = vpop.f32.mrf.mxu0
  %v4117 = vadd.f32 %v4004, %v4116
  %4118 = vdwg.mxu0
  %v4119 = vmax.f32 %v2781, %v4024
  %v4120 = vmax.f32 %v2782, %v4027
  %v4121 = vmax.f32 %v2783, %v4030
  %v4122 = vmax.f32 %v2784, %v4033
  %v4123 = vmax.f32 %v2785, %v4036
  %v4124 = vmax.f32 %v2786, %v4039
  %v4125 = vmax.f32 %v2787, %v4042
  %v4126 = vmax.f32 %v2788, %v4045
  %v4127 = vmax.f32 %v2789, %v4048
  %v4128 = vmax.f32 %v2790, %v4051
  %v4129 = vmax.f32 %v2791, %v4054
  %v4130 = vmax.f32 %v2792, %v4057
  %v4131 = vmax.f32 %v2793, %v4060
  %v4132 = vmax.f32 %v2794, %v4063
  %v4133 = vmax.f32 %v2795, %v4066
  %v4134 = vmax.f32 %v2796, %v4069
  %v4135 = vmax.f32 %v2797, %v4072
  %v4136 = vmax.f32 %v2798, %v4075
  %v4137 = vmax.f32 %v2799, %v4078
  %v4138 = vmax.f32 %v2800, %v4081
  %v4139 = vmax.f32 %v2801, %v4084
  %v4140 = vmax.f32 %v2802, %v4087
  %v4141 = vmax.f32 %v2803, %v4090
  %v4142 = vmax.f32 %v2804, %v4093
  %v4143 = vmax.f32 %v2805, %v4096
  %v4144 = vmax.f32 %v2806, %v4099
  %v4145 = vmax.f32 %v2807, %v4102
  %v4146 = vmax.f32 %v2808, %v4105
  %v4147 = vmax.f32 %v2809, %v4108
  %v4148 = vmax.f32 %v2810, %v4111
  %v4149 = vmax.f32 %v2811, %v4114
  %v4150 = vmax.f32 %v2812, %v4117
  %s4151 = scalar_lea.vmem %s1, 6912
  %v4152 = vld [vmem:[%s4151] sm:$0xff]
  %v4153 = vld [vmem:[%s4151 + $0x8] sm:$0xff]
  %v4154 = vld [vmem:[%s4151 + $0x10] sm:$0xff]
  %v4155 = vld [vmem:[%s4151 + $0x18] sm:$0xff]
  %v4156 = vld [vmem:[%s4151 + $0x20] sm:$0xff]
  %v4157 = vld [vmem:[%s4151 + $0x28] sm:$0xff]
  %v4158 = vld [vmem:[%s4151 + $0x30] sm:$0xff]
  %v4159 = vld [vmem:[%s4151 + $0x38] sm:$0xff]
  %v4160 = vld [vmem:[%s4151 + $0x40] sm:$0xff]
  %v4161 = vld [vmem:[%s4151 + $0x48] sm:$0xff]
  %v4162 = vld [vmem:[%s4151 + $0x50] sm:$0xff]
  %v4163 = vld [vmem:[%s4151 + $0x58] sm:$0xff]
  %v4164 = vld [vmem:[%s4151 + $0x60] sm:$0xff]
  %v4165 = vld [vmem:[%s4151 + $0x68] sm:$0xff]
  %v4166 = vld [vmem:[%s4151 + $0x70] sm:$0xff]
  %v4167 = vld [vmem:[%s4151 + $0x78] sm:$0xff]
  %v4168 = vld [vmem:[%s4151 + $0x80] sm:$0xff]
  %v4169 = vld [vmem:[%s4151 + $0x88] sm:$0xff]
  %v4170 = vld [vmem:[%s4151 + $0x90] sm:$0xff]
  %v4171 = vld [vmem:[%s4151 + $0x98] sm:$0xff]
  %v4172 = vld [vmem:[%s4151 + $0xa0] sm:$0xff]
  %v4173 = vld [vmem:[%s4151 + $0xa8] sm:$0xff]
  %v4174 = vld [vmem:[%s4151 + $0xb0] sm:$0xff]
  %v4175 = vld [vmem:[%s4151 + $0xb8] sm:$0xff]
  %v4176 = vld [vmem:[%s4151 + $0xc0] sm:$0xff]
  %v4177 = vld [vmem:[%s4151 + $0xc8] sm:$0xff]
  %v4178 = vld [vmem:[%s4151 + $0xd0] sm:$0xff]
  %v4179 = vld [vmem:[%s4151 + $0xd8] sm:$0xff]
  %v4180 = vld [vmem:[%s4151 + $0xe0] sm:$0xff]
  %v4181 = vld [vmem:[%s4151 + $0xe8] sm:$0xff]
  %v4182 = vld [vmem:[%s4151 + $0xf0] sm:$0xff]
  %v4183 = vld [vmem:[%s4151 + $0xf8] sm:$0xff]
  %v4184 = vld [vmem:[%s4151 + $0x100] sm:$0xff]
  %v4185 = vld [vmem:[%s4151 + $0x108] sm:$0xff]
  %v4186 = vld [vmem:[%s4151 + $0x110] sm:$0xff]
  %v4187 = vld [vmem:[%s4151 + $0x118] sm:$0xff]
  %v4188 = vld [vmem:[%s4151 + $0x120] sm:$0xff]
  %v4189 = vld [vmem:[%s4151 + $0x128] sm:$0xff]
  %v4190 = vld [vmem:[%s4151 + $0x130] sm:$0xff]
  %v4191 = vld [vmem:[%s4151 + $0x138] sm:$0xff]
  %v4192 = vld [vmem:[%s4151 + $0x140] sm:$0xff]
  %v4193 = vld [vmem:[%s4151 + $0x148] sm:$0xff]
  %v4194 = vld [vmem:[%s4151 + $0x150] sm:$0xff]
  %v4195 = vld [vmem:[%s4151 + $0x158] sm:$0xff]
  %v4196 = vld [vmem:[%s4151 + $0x160] sm:$0xff]
  %v4197 = vld [vmem:[%s4151 + $0x168] sm:$0xff]
  %v4198 = vld [vmem:[%s4151 + $0x170] sm:$0xff]
  %v4199 = vld [vmem:[%s4151 + $0x178] sm:$0xff]
  %v4200 = vld [vmem:[%s4151 + $0x180] sm:$0xff]
  %v4201 = vld [vmem:[%s4151 + $0x188] sm:$0xff]
  %v4202 = vld [vmem:[%s4151 + $0x190] sm:$0xff]
  %v4203 = vld [vmem:[%s4151 + $0x198] sm:$0xff]
  %v4204 = vld [vmem:[%s4151 + $0x1a0] sm:$0xff]
  %v4205 = vld [vmem:[%s4151 + $0x1a8] sm:$0xff]
  %v4206 = vld [vmem:[%s4151 + $0x1b0] sm:$0xff]
  %v4207 = vld [vmem:[%s4151 + $0x1b8] sm:$0xff]
  %v4208 = vld [vmem:[%s4151 + $0x1c0] sm:$0xff]
  %v4209 = vld [vmem:[%s4151 + $0x1c8] sm:$0xff]
  %v4210 = vld [vmem:[%s4151 + $0x1d0] sm:$0xff]
  %v4211 = vld [vmem:[%s4151 + $0x1d8] sm:$0xff]
  %v4212 = vld [vmem:[%s4151 + $0x1e0] sm:$0xff]
  %v4213 = vld [vmem:[%s4151 + $0x1e8] sm:$0xff]
  %v4214 = vld [vmem:[%s4151 + $0x1f0] sm:$0xff]
  %v4215 = vld [vmem:[%s4151 + $0x1f8] sm:$0xff]
  %v4216 = vld [vmem:[%s4151 + $0x200] sm:$0xff]
  %v4217 = vld [vmem:[%s4151 + $0x208] sm:$0xff]
  %v4218 = vld [vmem:[%s4151 + $0x210] sm:$0xff]
  %v4219 = vld [vmem:[%s4151 + $0x218] sm:$0xff]
  %v4220 = vld [vmem:[%s4151 + $0x220] sm:$0xff]
  %v4221 = vld [vmem:[%s4151 + $0x228] sm:$0xff]
  %v4222 = vld [vmem:[%s4151 + $0x230] sm:$0xff]
  %v4223 = vld [vmem:[%s4151 + $0x238] sm:$0xff]
  %v4224 = vld [vmem:[%s4151 + $0x240] sm:$0xff]
  %v4225 = vld [vmem:[%s4151 + $0x248] sm:$0xff]
  %v4226 = vld [vmem:[%s4151 + $0x250] sm:$0xff]
  %v4227 = vld [vmem:[%s4151 + $0x258] sm:$0xff]
  %v4228 = vld [vmem:[%s4151 + $0x260] sm:$0xff]
  %v4229 = vld [vmem:[%s4151 + $0x268] sm:$0xff]
  %v4230 = vld [vmem:[%s4151 + $0x270] sm:$0xff]
  %v4231 = vld [vmem:[%s4151 + $0x278] sm:$0xff]
  %v4232 = vld [vmem:[%s4151 + $0x280] sm:$0xff]
  %v4233 = vld [vmem:[%s4151 + $0x288] sm:$0xff]
  %v4234 = vld [vmem:[%s4151 + $0x290] sm:$0xff]
  %v4235 = vld [vmem:[%s4151 + $0x298] sm:$0xff]
  %v4236 = vld [vmem:[%s4151 + $0x2a0] sm:$0xff]
  %v4237 = vld [vmem:[%s4151 + $0x2a8] sm:$0xff]
  %v4238 = vld [vmem:[%s4151 + $0x2b0] sm:$0xff]
  %v4239 = vld [vmem:[%s4151 + $0x2b8] sm:$0xff]
  %v4240 = vld [vmem:[%s4151 + $0x2c0] sm:$0xff]
  %v4241 = vld [vmem:[%s4151 + $0x2c8] sm:$0xff]
  %v4242 = vld [vmem:[%s4151 + $0x2d0] sm:$0xff]
  %v4243 = vld [vmem:[%s4151 + $0x2d8] sm:$0xff]
  %v4244 = vld [vmem:[%s4151 + $0x2e0] sm:$0xff]
  %v4245 = vld [vmem:[%s4151 + $0x2e8] sm:$0xff]
  %v4246 = vld [vmem:[%s4151 + $0x2f0] sm:$0xff]
  %v4247 = vld [vmem:[%s4151 + $0x2f8] sm:$0xff]
  %v4248 = vld [vmem:[%s4151 + $0x300] sm:$0xff]
  %v4249 = vld [vmem:[%s4151 + $0x308] sm:$0xff]
  %v4250 = vld [vmem:[%s4151 + $0x310] sm:$0xff]
  %v4251 = vld [vmem:[%s4151 + $0x318] sm:$0xff]
  %v4252 = vld [vmem:[%s4151 + $0x320] sm:$0xff]
  %v4253 = vld [vmem:[%s4151 + $0x328] sm:$0xff]
  %v4254 = vld [vmem:[%s4151 + $0x330] sm:$0xff]
  %v4255 = vld [vmem:[%s4151 + $0x338] sm:$0xff]
  %v4256 = vld [vmem:[%s4151 + $0x340] sm:$0xff]
  %v4257 = vld [vmem:[%s4151 + $0x348] sm:$0xff]
  %v4258 = vld [vmem:[%s4151 + $0x350] sm:$0xff]
  %v4259 = vld [vmem:[%s4151 + $0x358] sm:$0xff]
  %v4260 = vld [vmem:[%s4151 + $0x360] sm:$0xff]
  %v4261 = vld [vmem:[%s4151 + $0x368] sm:$0xff]
  %v4262 = vld [vmem:[%s4151 + $0x370] sm:$0xff]
  %v4263 = vld [vmem:[%s4151 + $0x378] sm:$0xff]
  %v4264 = vld [vmem:[%s4151 + $0x380] sm:$0xff]
  %v4265 = vld [vmem:[%s4151 + $0x388] sm:$0xff]
  %v4266 = vld [vmem:[%s4151 + $0x390] sm:$0xff]
  %v4267 = vld [vmem:[%s4151 + $0x398] sm:$0xff]
  %v4268 = vld [vmem:[%s4151 + $0x3a0] sm:$0xff]
  %v4269 = vld [vmem:[%s4151 + $0x3a8] sm:$0xff]
  %v4270 = vld [vmem:[%s4151 + $0x3b0] sm:$0xff]
  %v4271 = vld [vmem:[%s4151 + $0x3b8] sm:$0xff]
  %v4272 = vld [vmem:[%s4151 + $0x3c0] sm:$0xff]
  %v4273 = vld [vmem:[%s4151 + $0x3c8] sm:$0xff]
  %v4274 = vld [vmem:[%s4151 + $0x3d0] sm:$0xff]
  %v4275 = vld [vmem:[%s4151 + $0x3d8] sm:$0xff]
  %v4276 = vld [vmem:[%s4151 + $0x3e0] sm:$0xff]
  %v4277 = vld [vmem:[%s4151 + $0x3e8] sm:$0xff]
  %v4278 = vld [vmem:[%s4151 + $0x3f0] sm:$0xff]
  %v4279 = vld [vmem:[%s4151 + $0x3f8] sm:$0xff]
  %v4280 = vld [vmem:[%s4151 + $0x400] sm:$0xff]
  %v4281 = vld [vmem:[%s4151 + $0x408] sm:$0xff]
  %v4282 = vld [vmem:[%s4151 + $0x410] sm:$0xff]
  %v4283 = vld [vmem:[%s4151 + $0x418] sm:$0xff]
  %v4284 = vld [vmem:[%s4151 + $0x420] sm:$0xff]
  %v4285 = vld [vmem:[%s4151 + $0x428] sm:$0xff]
  %v4286 = vld [vmem:[%s4151 + $0x430] sm:$0xff]
  %v4287 = vld [vmem:[%s4151 + $0x438] sm:$0xff]
  %v4288 = vld [vmem:[%s4151 + $0x440] sm:$0xff]
  %v4289 = vld [vmem:[%s4151 + $0x448] sm:$0xff]
  %v4290 = vld [vmem:[%s4151 + $0x450] sm:$0xff]
  %v4291 = vld [vmem:[%s4151 + $0x458] sm:$0xff]
  %v4292 = vld [vmem:[%s4151 + $0x460] sm:$0xff]
  %v4293 = vld [vmem:[%s4151 + $0x468] sm:$0xff]
  %v4294 = vld [vmem:[%s4151 + $0x470] sm:$0xff]
  %v4295 = vld [vmem:[%s4151 + $0x478] sm:$0xff]
  %v4296 = vld [vmem:[%s4151 + $0x480] sm:$0xff]
  %v4297 = vld [vmem:[%s4151 + $0x488] sm:$0xff]
  %v4298 = vld [vmem:[%s4151 + $0x490] sm:$0xff]
  %v4299 = vld [vmem:[%s4151 + $0x498] sm:$0xff]
  %v4300 = vld [vmem:[%s4151 + $0x4a0] sm:$0xff]
  %v4301 = vld [vmem:[%s4151 + $0x4a8] sm:$0xff]
  %v4302 = vld [vmem:[%s4151 + $0x4b0] sm:$0xff]
  %v4303 = vld [vmem:[%s4151 + $0x4b8] sm:$0xff]
  %v4304 = vld [vmem:[%s4151 + $0x4c0] sm:$0xff]
  %v4305 = vld [vmem:[%s4151 + $0x4c8] sm:$0xff]
  %v4306 = vld [vmem:[%s4151 + $0x4d0] sm:$0xff]
  %v4307 = vld [vmem:[%s4151 + $0x4d8] sm:$0xff]
  %v4308 = vld [vmem:[%s4151 + $0x4e0] sm:$0xff]
  %v4309 = vld [vmem:[%s4151 + $0x4e8] sm:$0xff]
  %v4310 = vld [vmem:[%s4151 + $0x4f0] sm:$0xff]
  %v4311 = vld [vmem:[%s4151 + $0x4f8] sm:$0xff]
  %v4312 = vld [vmem:[%s4151 + $0x500] sm:$0xff]
  %v4313 = vld [vmem:[%s4151 + $0x508] sm:$0xff]
  %v4314 = vld [vmem:[%s4151 + $0x510] sm:$0xff]
  %v4315 = vld [vmem:[%s4151 + $0x518] sm:$0xff]
  %v4316 = vld [vmem:[%s4151 + $0x520] sm:$0xff]
  %v4317 = vld [vmem:[%s4151 + $0x528] sm:$0xff]
  %v4318 = vld [vmem:[%s4151 + $0x530] sm:$0xff]
  %v4319 = vld [vmem:[%s4151 + $0x538] sm:$0xff]
  %v4320 = vld [vmem:[%s4151 + $0x540] sm:$0xff]
  %v4321 = vld [vmem:[%s4151 + $0x548] sm:$0xff]
  %v4322 = vld [vmem:[%s4151 + $0x550] sm:$0xff]
  %v4323 = vld [vmem:[%s4151 + $0x558] sm:$0xff]
  %v4324 = vld [vmem:[%s4151 + $0x560] sm:$0xff]
  %v4325 = vld [vmem:[%s4151 + $0x568] sm:$0xff]
  %v4326 = vld [vmem:[%s4151 + $0x570] sm:$0xff]
  %v4327 = vld [vmem:[%s4151 + $0x578] sm:$0xff]
  %v4328 = vld [vmem:[%s4151 + $0x580] sm:$0xff]
  %v4329 = vld [vmem:[%s4151 + $0x588] sm:$0xff]
  %v4330 = vld [vmem:[%s4151 + $0x590] sm:$0xff]
  %v4331 = vld [vmem:[%s4151 + $0x598] sm:$0xff]
  %v4332 = vld [vmem:[%s4151 + $0x5a0] sm:$0xff]
  %v4333 = vld [vmem:[%s4151 + $0x5a8] sm:$0xff]
  %v4334 = vld [vmem:[%s4151 + $0x5b0] sm:$0xff]
  %v4335 = vld [vmem:[%s4151 + $0x5b8] sm:$0xff]
  %v4336 = vld [vmem:[%s4151 + $0x5c0] sm:$0xff]
  %v4337 = vld [vmem:[%s4151 + $0x5c8] sm:$0xff]
  %v4338 = vld [vmem:[%s4151 + $0x5d0] sm:$0xff]
  %v4339 = vld [vmem:[%s4151 + $0x5d8] sm:$0xff]
  %v4340 = vld [vmem:[%s4151 + $0x5e0] sm:$0xff]
  %v4341 = vld [vmem:[%s4151 + $0x5e8] sm:$0xff]
  %v4342 = vld [vmem:[%s4151 + $0x5f0] sm:$0xff]
  %v4343 = vld [vmem:[%s4151 + $0x5f8] sm:$0xff]
  %v4344 = vld [vmem:[%s4151 + $0x600] sm:$0xff]
  %v4345 = vld [vmem:[%s4151 + $0x608] sm:$0xff]
  %v4346 = vld [vmem:[%s4151 + $0x610] sm:$0xff]
  %v4347 = vld [vmem:[%s4151 + $0x618] sm:$0xff]
  %v4348 = vld [vmem:[%s4151 + $0x620] sm:$0xff]
  %v4349 = vld [vmem:[%s4151 + $0x628] sm:$0xff]
  %v4350 = vld [vmem:[%s4151 + $0x630] sm:$0xff]
  %v4351 = vld [vmem:[%s4151 + $0x638] sm:$0xff]
  %v4352 = vld [vmem:[%s4151 + $0x640] sm:$0xff]
  %v4353 = vld [vmem:[%s4151 + $0x648] sm:$0xff]
  %v4354 = vld [vmem:[%s4151 + $0x650] sm:$0xff]
  %v4355 = vld [vmem:[%s4151 + $0x658] sm:$0xff]
  %v4356 = vld [vmem:[%s4151 + $0x660] sm:$0xff]
  %v4357 = vld [vmem:[%s4151 + $0x668] sm:$0xff]
  %v4358 = vld [vmem:[%s4151 + $0x670] sm:$0xff]
  %v4359 = vld [vmem:[%s4151 + $0x678] sm:$0xff]
  %v4360 = vld [vmem:[%s4151 + $0x680] sm:$0xff]
  %v4361 = vld [vmem:[%s4151 + $0x688] sm:$0xff]
  %v4362 = vld [vmem:[%s4151 + $0x690] sm:$0xff]
  %v4363 = vld [vmem:[%s4151 + $0x698] sm:$0xff]
  %v4364 = vld [vmem:[%s4151 + $0x6a0] sm:$0xff]
  %v4365 = vld [vmem:[%s4151 + $0x6a8] sm:$0xff]
  %v4366 = vld [vmem:[%s4151 + $0x6b0] sm:$0xff]
  %v4367 = vld [vmem:[%s4151 + $0x6b8] sm:$0xff]
  %v4368 = vld [vmem:[%s4151 + $0x6c0] sm:$0xff]
  %v4369 = vld [vmem:[%s4151 + $0x6c8] sm:$0xff]
  %v4370 = vld [vmem:[%s4151 + $0x6d0] sm:$0xff]
  %v4371 = vld [vmem:[%s4151 + $0x6d8] sm:$0xff]
  %v4372 = vld [vmem:[%s4151 + $0x6e0] sm:$0xff]
  %v4373 = vld [vmem:[%s4151 + $0x6e8] sm:$0xff]
  %v4374 = vld [vmem:[%s4151 + $0x6f0] sm:$0xff]
  %v4375 = vld [vmem:[%s4151 + $0x6f8] sm:$0xff]
  %v4376 = vld [vmem:[%s4151 + $0x700] sm:$0xff]
  %v4377 = vld [vmem:[%s4151 + $0x708] sm:$0xff]
  %v4378 = vld [vmem:[%s4151 + $0x710] sm:$0xff]
  %v4379 = vld [vmem:[%s4151 + $0x718] sm:$0xff]
  %v4380 = vld [vmem:[%s4151 + $0x720] sm:$0xff]
  %v4381 = vld [vmem:[%s4151 + $0x728] sm:$0xff]
  %v4382 = vld [vmem:[%s4151 + $0x730] sm:$0xff]
  %v4383 = vld [vmem:[%s4151 + $0x738] sm:$0xff]
  %v4384 = vld [vmem:[%s4151 + $0x740] sm:$0xff]
  %v4385 = vld [vmem:[%s4151 + $0x748] sm:$0xff]
  %v4386 = vld [vmem:[%s4151 + $0x750] sm:$0xff]
  %v4387 = vld [vmem:[%s4151 + $0x758] sm:$0xff]
  %v4388 = vld [vmem:[%s4151 + $0x760] sm:$0xff]
  %v4389 = vld [vmem:[%s4151 + $0x768] sm:$0xff]
  %v4390 = vld [vmem:[%s4151 + $0x770] sm:$0xff]
  %v4391 = vld [vmem:[%s4151 + $0x778] sm:$0xff]
  %v4392 = vld [vmem:[%s4151 + $0x780] sm:$0xff]
  %v4393 = vld [vmem:[%s4151 + $0x788] sm:$0xff]
  %v4394 = vld [vmem:[%s4151 + $0x790] sm:$0xff]
  %v4395 = vld [vmem:[%s4151 + $0x798] sm:$0xff]
  %v4396 = vld [vmem:[%s4151 + $0x7a0] sm:$0xff]
  %v4397 = vld [vmem:[%s4151 + $0x7a8] sm:$0xff]
  %v4398 = vld [vmem:[%s4151 + $0x7b0] sm:$0xff]
  %v4399 = vld [vmem:[%s4151 + $0x7b8] sm:$0xff]
  %v4400 = vld [vmem:[%s4151 + $0x7c0] sm:$0xff]
  %v4401 = vld [vmem:[%s4151 + $0x7c8] sm:$0xff]
  %v4402 = vld [vmem:[%s4151 + $0x7d0] sm:$0xff]
  %v4403 = vld [vmem:[%s4151 + $0x7d8] sm:$0xff]
  %v4404 = vld [vmem:[%s4151 + $0x7e0] sm:$0xff]
  %v4405 = vld [vmem:[%s4151 + $0x7e8] sm:$0xff]
  %v4406 = vld [vmem:[%s4151 + $0x7f0] sm:$0xff]
  %v4407 = vld [vmem:[%s4151 + $0x7f8] sm:$0xff]
  %v4408 = vld [vmem:[%s4151 + $0x800] sm:$0xff]
  %v4409 = vld [vmem:[%s4151 + $0x808] sm:$0xff]
  %v4410 = vld [vmem:[%s4151 + $0x810] sm:$0xff]
  %v4411 = vld [vmem:[%s4151 + $0x818] sm:$0xff]
  %v4412 = vld [vmem:[%s4151 + $0x820] sm:$0xff]
  %v4413 = vld [vmem:[%s4151 + $0x828] sm:$0xff]
  %v4414 = vld [vmem:[%s4151 + $0x830] sm:$0xff]
  %v4415 = vld [vmem:[%s4151 + $0x838] sm:$0xff]
  %v4416 = vld [vmem:[%s4151 + $0x840] sm:$0xff]
  %v4417 = vld [vmem:[%s4151 + $0x848] sm:$0xff]
  %v4418 = vld [vmem:[%s4151 + $0x850] sm:$0xff]
  %v4419 = vld [vmem:[%s4151 + $0x858] sm:$0xff]
  %v4420 = vld [vmem:[%s4151 + $0x860] sm:$0xff]
  %v4421 = vld [vmem:[%s4151 + $0x868] sm:$0xff]
  %v4422 = vld [vmem:[%s4151 + $0x870] sm:$0xff]
  %v4423 = vld [vmem:[%s4151 + $0x878] sm:$0xff]
  %v4424 = vld [vmem:[%s4151 + $0x880] sm:$0xff]
  %v4425 = vld [vmem:[%s4151 + $0x888] sm:$0xff]
  %v4426 = vld [vmem:[%s4151 + $0x890] sm:$0xff]
  %v4427 = vld [vmem:[%s4151 + $0x898] sm:$0xff]
  %v4428 = vld [vmem:[%s4151 + $0x8a0] sm:$0xff]
  %v4429 = vld [vmem:[%s4151 + $0x8a8] sm:$0xff]
  %v4430 = vld [vmem:[%s4151 + $0x8b0] sm:$0xff]
  %v4431 = vld [vmem:[%s4151 + $0x8b8] sm:$0xff]
  %v4432 = vld [vmem:[%s4151 + $0x8c0] sm:$0xff]
  %v4433 = vld [vmem:[%s4151 + $0x8c8] sm:$0xff]
  %v4434 = vld [vmem:[%s4151 + $0x8d0] sm:$0xff]
  %v4435 = vld [vmem:[%s4151 + $0x8d8] sm:$0xff]
  %v4436 = vld [vmem:[%s4151 + $0x8e0] sm:$0xff]
  %v4437 = vld [vmem:[%s4151 + $0x8e8] sm:$0xff]
  %v4438 = vld [vmem:[%s4151 + $0x8f0] sm:$0xff]
  %v4439 = vld [vmem:[%s4151 + $0x8f8] sm:$0xff]
  %4440 = vmatpush.msra.mxu0 %v41
  %4441 = vmatpush.msra.mxu0 %v40
  %4442 = vmatpush.msra.mxu0 %v39
  %4443 = vmatpush.msra.mxu0 %v38
  %4444 = vmatpush.msra.mxu0 %v37
  %4445 = vmatpush.msra.mxu0 %v36
  %4446 = vmatpush.msra.mxu0 %v35
  %4447 = vmatpush.msra.mxu0 %v34
  %4448 = vmatpush.msra.mxu0 %v33
  %4449 = vmatpush.msra.mxu0 %v32
  %4450 = vmatpush.msra.mxu0 %v31
  %4451 = vmatpush.msra.mxu0 %v30
  %4452 = vmatpush.msra.mxu0 %v29
  %4453 = vmatpush.msra.mxu0 %v28
  %4454 = vmatpush.msra.mxu0 %v27
  %4455 = vmatpush.msra.mxu0 %v26
  %4456 = vmatmul.f32.gmra.mxu0 %v4152
  %v4457 = vpop.f32.mrf.mxu0
  %v4458 = vadd.f32 0.0, %v4457
  %4459 = vmatmul.f32.gmra.mxu0 %v4161
  %v4460 = vpop.f32.mrf.mxu0
  %v4461 = vadd.f32 0.0, %v4460
  %4462 = vmatmul.f32.gmra.mxu0 %v4170
  %v4463 = vpop.f32.mrf.mxu0
  %v4464 = vadd.f32 0.0, %v4463
  %4465 = vmatmul.f32.gmra.mxu0 %v4179
  %v4466 = vpop.f32.mrf.mxu0
  %v4467 = vadd.f32 0.0, %v4466
  %4468 = vmatmul.f32.gmra.mxu0 %v4188
  %v4469 = vpop.f32.mrf.mxu0
  %v4470 = vadd.f32 0.0, %v4469
  %4471 = vmatmul.f32.gmra.mxu0 %v4197
  %v4472 = vpop.f32.mrf.mxu0
  %v4473 = vadd.f32 0.0, %v4472
  %4474 = vmatmul.f32.gmra.mxu0 %v4206
  %v4475 = vpop.f32.mrf.mxu0
  %v4476 = vadd.f32 0.0, %v4475
  %4477 = vmatmul.f32.gmra.mxu0 %v4215
  %v4478 = vpop.f32.mrf.mxu0
  %v4479 = vadd.f32 0.0, %v4478
  %4480 = vmatmul.f32.gmra.mxu0 %v4224
  %v4481 = vpop.f32.mrf.mxu0
  %v4482 = vadd.f32 0.0, %v4481
  %4483 = vmatmul.f32.gmra.mxu0 %v4233
  %v4484 = vpop.f32.mrf.mxu0
  %v4485 = vadd.f32 0.0, %v4484
  %4486 = vmatmul.f32.gmra.mxu0 %v4242
  %v4487 = vpop.f32.mrf.mxu0
  %v4488 = vadd.f32 0.0, %v4487
  %4489 = vmatmul.f32.gmra.mxu0 %v4251
  %v4490 = vpop.f32.mrf.mxu0
  %v4491 = vadd.f32 0.0, %v4490
  %4492 = vmatmul.f32.gmra.mxu0 %v4260
  %v4493 = vpop.f32.mrf.mxu0
  %v4494 = vadd.f32 0.0, %v4493
  %4495 = vmatmul.f32.gmra.mxu0 %v4269
  %v4496 = vpop.f32.mrf.mxu0
  %v4497 = vadd.f32 0.0, %v4496
  %4498 = vmatmul.f32.gmra.mxu0 %v4278
  %v4499 = vpop.f32.mrf.mxu0
  %v4500 = vadd.f32 0.0, %v4499
  %4501 = vmatmul.f32.gmra.mxu0 %v4287
  %v4502 = vpop.f32.mrf.mxu0
  %v4503 = vadd.f32 0.0, %v4502
  %4504 = vmatmul.f32.gmra.mxu0 %v4296
  %v4505 = vpop.f32.mrf.mxu0
  %v4506 = vadd.f32 0.0, %v4505
  %4507 = vmatmul.f32.gmra.mxu0 %v4305
  %v4508 = vpop.f32.mrf.mxu0
  %v4509 = vadd.f32 0.0, %v4508
  %4510 = vmatmul.f32.gmra.mxu0 %v4314
  %v4511 = vpop.f32.mrf.mxu0
  %v4512 = vadd.f32 0.0, %v4511
  %4513 = vmatmul.f32.gmra.mxu0 %v4323
  %v4514 = vpop.f32.mrf.mxu0
  %v4515 = vadd.f32 0.0, %v4514
  %4516 = vmatmul.f32.gmra.mxu0 %v4332
  %v4517 = vpop.f32.mrf.mxu0
  %v4518 = vadd.f32 0.0, %v4517
  %4519 = vmatmul.f32.gmra.mxu0 %v4341
  %v4520 = vpop.f32.mrf.mxu0
  %v4521 = vadd.f32 0.0, %v4520
  %4522 = vmatmul.f32.gmra.mxu0 %v4350
  %v4523 = vpop.f32.mrf.mxu0
  %v4524 = vadd.f32 0.0, %v4523
  %4525 = vmatmul.f32.gmra.mxu0 %v4359
  %v4526 = vpop.f32.mrf.mxu0
  %v4527 = vadd.f32 0.0, %v4526
  %4528 = vmatmul.f32.gmra.mxu0 %v4368
  %v4529 = vpop.f32.mrf.mxu0
  %v4530 = vadd.f32 0.0, %v4529
  %4531 = vmatmul.f32.gmra.mxu0 %v4377
  %v4532 = vpop.f32.mrf.mxu0
  %v4533 = vadd.f32 0.0, %v4532
  %4534 = vmatmul.f32.gmra.mxu0 %v4386
  %v4535 = vpop.f32.mrf.mxu0
  %v4536 = vadd.f32 0.0, %v4535
  %4537 = vmatmul.f32.gmra.mxu0 %v4395
  %v4538 = vpop.f32.mrf.mxu0
  %v4539 = vadd.f32 0.0, %v4538
  %4540 = vmatmul.f32.gmra.mxu0 %v4404
  %v4541 = vpop.f32.mrf.mxu0
  %v4542 = vadd.f32 0.0, %v4541
  %4543 = vmatmul.f32.gmra.mxu0 %v4413
  %v4544 = vpop.f32.mrf.mxu0
  %v4545 = vadd.f32 0.0, %v4544
  %4546 = vmatmul.f32.gmra.mxu0 %v4422
  %v4547 = vpop.f32.mrf.mxu0
  %v4548 = vadd.f32 0.0, %v4547
  %4549 = vmatmul.f32.gmra.mxu0 %v4431
  %v4550 = vpop.f32.mrf.mxu0
  %v4551 = vadd.f32 0.0, %v4550
  %4552 = vdwg.mxu0
  %4553 = vmatpush.msra.mxu0 %v57
  %4554 = vmatpush.msra.mxu0 %v56
  %4555 = vmatpush.msra.mxu0 %v55
  %4556 = vmatpush.msra.mxu0 %v54
  %4557 = vmatpush.msra.mxu0 %v53
  %4558 = vmatpush.msra.mxu0 %v52
  %4559 = vmatpush.msra.mxu0 %v51
  %4560 = vmatpush.msra.mxu0 %v50
  %4561 = vmatpush.msra.mxu0 %v49
  %4562 = vmatpush.msra.mxu0 %v48
  %4563 = vmatpush.msra.mxu0 %v47
  %4564 = vmatpush.msra.mxu0 %v46
  %4565 = vmatpush.msra.mxu0 %v45
  %4566 = vmatpush.msra.mxu0 %v44
  %4567 = vmatpush.msra.mxu0 %v43
  %4568 = vmatpush.msra.mxu0 %v42
  %4569 = vmatmul.f32.gmra.mxu0 %v4153
  %v4570 = vpop.f32.mrf.mxu0
  %v4571 = vadd.f32 %v4458, %v4570
  %4572 = vmatmul.f32.gmra.mxu0 %v4162
  %v4573 = vpop.f32.mrf.mxu0
  %v4574 = vadd.f32 %v4461, %v4573
  %4575 = vmatmul.f32.gmra.mxu0 %v4171
  %v4576 = vpop.f32.mrf.mxu0
  %v4577 = vadd.f32 %v4464, %v4576
  %4578 = vmatmul.f32.gmra.mxu0 %v4180
  %v4579 = vpop.f32.mrf.mxu0
  %v4580 = vadd.f32 %v4467, %v4579
  %4581 = vmatmul.f32.gmra.mxu0 %v4189
  %v4582 = vpop.f32.mrf.mxu0
  %v4583 = vadd.f32 %v4470, %v4582
  %4584 = vmatmul.f32.gmra.mxu0 %v4198
  %v4585 = vpop.f32.mrf.mxu0
  %v4586 = vadd.f32 %v4473, %v4585
  %4587 = vmatmul.f32.gmra.mxu0 %v4207
  %v4588 = vpop.f32.mrf.mxu0
  %v4589 = vadd.f32 %v4476, %v4588
  %4590 = vmatmul.f32.gmra.mxu0 %v4216
  %v4591 = vpop.f32.mrf.mxu0
  %v4592 = vadd.f32 %v4479, %v4591
  %4593 = vmatmul.f32.gmra.mxu0 %v4225
  %v4594 = vpop.f32.mrf.mxu0
  %v4595 = vadd.f32 %v4482, %v4594
  %4596 = vmatmul.f32.gmra.mxu0 %v4234
  %v4597 = vpop.f32.mrf.mxu0
  %v4598 = vadd.f32 %v4485, %v4597
  %4599 = vmatmul.f32.gmra.mxu0 %v4243
  %v4600 = vpop.f32.mrf.mxu0
  %v4601 = vadd.f32 %v4488, %v4600
  %4602 = vmatmul.f32.gmra.mxu0 %v4252
  %v4603 = vpop.f32.mrf.mxu0
  %v4604 = vadd.f32 %v4491, %v4603
  %4605 = vmatmul.f32.gmra.mxu0 %v4261
  %v4606 = vpop.f32.mrf.mxu0
  %v4607 = vadd.f32 %v4494, %v4606
  %4608 = vmatmul.f32.gmra.mxu0 %v4270
  %v4609 = vpop.f32.mrf.mxu0
  %v4610 = vadd.f32 %v4497, %v4609
  %4611 = vmatmul.f32.gmra.mxu0 %v4279
  %v4612 = vpop.f32.mrf.mxu0
  %v4613 = vadd.f32 %v4500, %v4612
  %4614 = vmatmul.f32.gmra.mxu0 %v4288
  %v4615 = vpop.f32.mrf.mxu0
  %v4616 = vadd.f32 %v4503, %v4615
  %4617 = vmatmul.f32.gmra.mxu0 %v4297
  %v4618 = vpop.f32.mrf.mxu0
  %v4619 = vadd.f32 %v4506, %v4618
  %4620 = vmatmul.f32.gmra.mxu0 %v4306
  %v4621 = vpop.f32.mrf.mxu0
  %v4622 = vadd.f32 %v4509, %v4621
  %4623 = vmatmul.f32.gmra.mxu0 %v4315
  %v4624 = vpop.f32.mrf.mxu0
  %v4625 = vadd.f32 %v4512, %v4624
  %4626 = vmatmul.f32.gmra.mxu0 %v4324
  %v4627 = vpop.f32.mrf.mxu0
  %v4628 = vadd.f32 %v4515, %v4627
  %4629 = vmatmul.f32.gmra.mxu0 %v4333
  %v4630 = vpop.f32.mrf.mxu0
  %v4631 = vadd.f32 %v4518, %v4630
  %4632 = vmatmul.f32.gmra.mxu0 %v4342
  %v4633 = vpop.f32.mrf.mxu0
  %v4634 = vadd.f32 %v4521, %v4633
  %4635 = vmatmul.f32.gmra.mxu0 %v4351
  %v4636 = vpop.f32.mrf.mxu0
  %v4637 = vadd.f32 %v4524, %v4636
  %4638 = vmatmul.f32.gmra.mxu0 %v4360
  %v4639 = vpop.f32.mrf.mxu0
  %v4640 = vadd.f32 %v4527, %v4639
  %4641 = vmatmul.f32.gmra.mxu0 %v4369
  %v4642 = vpop.f32.mrf.mxu0
  %v4643 = vadd.f32 %v4530, %v4642
  %4644 = vmatmul.f32.gmra.mxu0 %v4378
  %v4645 = vpop.f32.mrf.mxu0
  %v4646 = vadd.f32 %v4533, %v4645
  %4647 = vmatmul.f32.gmra.mxu0 %v4387
  %v4648 = vpop.f32.mrf.mxu0
  %v4649 = vadd.f32 %v4536, %v4648
  %4650 = vmatmul.f32.gmra.mxu0 %v4396
  %v4651 = vpop.f32.mrf.mxu0
  %v4652 = vadd.f32 %v4539, %v4651
  %4653 = vmatmul.f32.gmra.mxu0 %v4405
  %v4654 = vpop.f32.mrf.mxu0
  %v4655 = vadd.f32 %v4542, %v4654
  %4656 = vmatmul.f32.gmra.mxu0 %v4414
  %v4657 = vpop.f32.mrf.mxu0
  %v4658 = vadd.f32 %v4545, %v4657
  %4659 = vmatmul.f32.gmra.mxu0 %v4423
  %v4660 = vpop.f32.mrf.mxu0
  %v4661 = vadd.f32 %v4548, %v4660
  %4662 = vmatmul.f32.gmra.mxu0 %v4432
  %v4663 = vpop.f32.mrf.mxu0
  %v4664 = vadd.f32 %v4551, %v4663
  %4665 = vdwg.mxu0
  %4666 = vmatpush.msra.mxu0 %v73
  %4667 = vmatpush.msra.mxu0 %v72
  %4668 = vmatpush.msra.mxu0 %v71
  %4669 = vmatpush.msra.mxu0 %v70
  %4670 = vmatpush.msra.mxu0 %v69
  %4671 = vmatpush.msra.mxu0 %v68
  %4672 = vmatpush.msra.mxu0 %v67
  %4673 = vmatpush.msra.mxu0 %v66
  %4674 = vmatpush.msra.mxu0 %v65
  %4675 = vmatpush.msra.mxu0 %v64
  %4676 = vmatpush.msra.mxu0 %v63
  %4677 = vmatpush.msra.mxu0 %v62
  %4678 = vmatpush.msra.mxu0 %v61
  %4679 = vmatpush.msra.mxu0 %v60
  %4680 = vmatpush.msra.mxu0 %v59
  %4681 = vmatpush.msra.mxu0 %v58
  %4682 = vmatmul.f32.gmra.mxu0 %v4154
  %v4683 = vpop.f32.mrf.mxu0
  %v4684 = vadd.f32 %v4571, %v4683
  %4685 = vmatmul.f32.gmra.mxu0 %v4163
  %v4686 = vpop.f32.mrf.mxu0
  %v4687 = vadd.f32 %v4574, %v4686
  %4688 = vmatmul.f32.gmra.mxu0 %v4172
  %v4689 = vpop.f32.mrf.mxu0
  %v4690 = vadd.f32 %v4577, %v4689
  %4691 = vmatmul.f32.gmra.mxu0 %v4181
  %v4692 = vpop.f32.mrf.mxu0
  %v4693 = vadd.f32 %v4580, %v4692
  %4694 = vmatmul.f32.gmra.mxu0 %v4190
  %v4695 = vpop.f32.mrf.mxu0
  %v4696 = vadd.f32 %v4583, %v4695
  %4697 = vmatmul.f32.gmra.mxu0 %v4199
  %v4698 = vpop.f32.mrf.mxu0
  %v4699 = vadd.f32 %v4586, %v4698
  %4700 = vmatmul.f32.gmra.mxu0 %v4208
  %v4701 = vpop.f32.mrf.mxu0
  %v4702 = vadd.f32 %v4589, %v4701
  %4703 = vmatmul.f32.gmra.mxu0 %v4217
  %v4704 = vpop.f32.mrf.mxu0
  %v4705 = vadd.f32 %v4592, %v4704
  %4706 = vmatmul.f32.gmra.mxu0 %v4226
  %v4707 = vpop.f32.mrf.mxu0
  %v4708 = vadd.f32 %v4595, %v4707
  %4709 = vmatmul.f32.gmra.mxu0 %v4235
  %v4710 = vpop.f32.mrf.mxu0
  %v4711 = vadd.f32 %v4598, %v4710
  %4712 = vmatmul.f32.gmra.mxu0 %v4244
  %v4713 = vpop.f32.mrf.mxu0
  %v4714 = vadd.f32 %v4601, %v4713
  %4715 = vmatmul.f32.gmra.mxu0 %v4253
  %v4716 = vpop.f32.mrf.mxu0
  %v4717 = vadd.f32 %v4604, %v4716
  %4718 = vmatmul.f32.gmra.mxu0 %v4262
  %v4719 = vpop.f32.mrf.mxu0
  %v4720 = vadd.f32 %v4607, %v4719
  %4721 = vmatmul.f32.gmra.mxu0 %v4271
  %v4722 = vpop.f32.mrf.mxu0
  %v4723 = vadd.f32 %v4610, %v4722
  %4724 = vmatmul.f32.gmra.mxu0 %v4280
  %v4725 = vpop.f32.mrf.mxu0
  %v4726 = vadd.f32 %v4613, %v4725
  %4727 = vmatmul.f32.gmra.mxu0 %v4289
  %v4728 = vpop.f32.mrf.mxu0
  %v4729 = vadd.f32 %v4616, %v4728
  %4730 = vmatmul.f32.gmra.mxu0 %v4298
  %v4731 = vpop.f32.mrf.mxu0
  %v4732 = vadd.f32 %v4619, %v4731
  %4733 = vmatmul.f32.gmra.mxu0 %v4307
  %v4734 = vpop.f32.mrf.mxu0
  %v4735 = vadd.f32 %v4622, %v4734
  %4736 = vmatmul.f32.gmra.mxu0 %v4316
  %v4737 = vpop.f32.mrf.mxu0
  %v4738 = vadd.f32 %v4625, %v4737
  %4739 = vmatmul.f32.gmra.mxu0 %v4325
  %v4740 = vpop.f32.mrf.mxu0
  %v4741 = vadd.f32 %v4628, %v4740
  %4742 = vmatmul.f32.gmra.mxu0 %v4334
  %v4743 = vpop.f32.mrf.mxu0
  %v4744 = vadd.f32 %v4631, %v4743
  %4745 = vmatmul.f32.gmra.mxu0 %v4343
  %v4746 = vpop.f32.mrf.mxu0
  %v4747 = vadd.f32 %v4634, %v4746
  %4748 = vmatmul.f32.gmra.mxu0 %v4352
  %v4749 = vpop.f32.mrf.mxu0
  %v4750 = vadd.f32 %v4637, %v4749
  %4751 = vmatmul.f32.gmra.mxu0 %v4361
  %v4752 = vpop.f32.mrf.mxu0
  %v4753 = vadd.f32 %v4640, %v4752
  %4754 = vmatmul.f32.gmra.mxu0 %v4370
  %v4755 = vpop.f32.mrf.mxu0
  %v4756 = vadd.f32 %v4643, %v4755
  %4757 = vmatmul.f32.gmra.mxu0 %v4379
  %v4758 = vpop.f32.mrf.mxu0
  %v4759 = vadd.f32 %v4646, %v4758
  %4760 = vmatmul.f32.gmra.mxu0 %v4388
  %v4761 = vpop.f32.mrf.mxu0
  %v4762 = vadd.f32 %v4649, %v4761
  %4763 = vmatmul.f32.gmra.mxu0 %v4397
  %v4764 = vpop.f32.mrf.mxu0
  %v4765 = vadd.f32 %v4652, %v4764
  %4766 = vmatmul.f32.gmra.mxu0 %v4406
  %v4767 = vpop.f32.mrf.mxu0
  %v4768 = vadd.f32 %v4655, %v4767
  %4769 = vmatmul.f32.gmra.mxu0 %v4415
  %v4770 = vpop.f32.mrf.mxu0
  %v4771 = vadd.f32 %v4658, %v4770
  %4772 = vmatmul.f32.gmra.mxu0 %v4424
  %v4773 = vpop.f32.mrf.mxu0
  %v4774 = vadd.f32 %v4661, %v4773
  %4775 = vmatmul.f32.gmra.mxu0 %v4433
  %v4776 = vpop.f32.mrf.mxu0
  %v4777 = vadd.f32 %v4664, %v4776
  %4778 = vdwg.mxu0
  %4779 = vmatpush.msra.mxu0 %v89
  %4780 = vmatpush.msra.mxu0 %v88
  %4781 = vmatpush.msra.mxu0 %v87
  %4782 = vmatpush.msra.mxu0 %v86
  %4783 = vmatpush.msra.mxu0 %v85
  %4784 = vmatpush.msra.mxu0 %v84
  %4785 = vmatpush.msra.mxu0 %v83
  %4786 = vmatpush.msra.mxu0 %v82
  %4787 = vmatpush.msra.mxu0 %v81
  %4788 = vmatpush.msra.mxu0 %v80
  %4789 = vmatpush.msra.mxu0 %v79
  %4790 = vmatpush.msra.mxu0 %v78
  %4791 = vmatpush.msra.mxu0 %v77
  %4792 = vmatpush.msra.mxu0 %v76
  %4793 = vmatpush.msra.mxu0 %v75
  %4794 = vmatpush.msra.mxu0 %v74
  %4795 = vmatmul.f32.gmra.mxu0 %v4155
  %v4796 = vpop.f32.mrf.mxu0
  %v4797 = vadd.f32 %v4684, %v4796
  %4798 = vmatmul.f32.gmra.mxu0 %v4164
  %v4799 = vpop.f32.mrf.mxu0
  %v4800 = vadd.f32 %v4687, %v4799
  %4801 = vmatmul.f32.gmra.mxu0 %v4173
  %v4802 = vpop.f32.mrf.mxu0
  %v4803 = vadd.f32 %v4690, %v4802
  %4804 = vmatmul.f32.gmra.mxu0 %v4182
  %v4805 = vpop.f32.mrf.mxu0
  %v4806 = vadd.f32 %v4693, %v4805
  %4807 = vmatmul.f32.gmra.mxu0 %v4191
  %v4808 = vpop.f32.mrf.mxu0
  %v4809 = vadd.f32 %v4696, %v4808
  %4810 = vmatmul.f32.gmra.mxu0 %v4200
  %v4811 = vpop.f32.mrf.mxu0
  %v4812 = vadd.f32 %v4699, %v4811
  %4813 = vmatmul.f32.gmra.mxu0 %v4209
  %v4814 = vpop.f32.mrf.mxu0
  %v4815 = vadd.f32 %v4702, %v4814
  %4816 = vmatmul.f32.gmra.mxu0 %v4218
  %v4817 = vpop.f32.mrf.mxu0
  %v4818 = vadd.f32 %v4705, %v4817
  %4819 = vmatmul.f32.gmra.mxu0 %v4227
  %v4820 = vpop.f32.mrf.mxu0
  %v4821 = vadd.f32 %v4708, %v4820
  %4822 = vmatmul.f32.gmra.mxu0 %v4236
  %v4823 = vpop.f32.mrf.mxu0
  %v4824 = vadd.f32 %v4711, %v4823
  %4825 = vmatmul.f32.gmra.mxu0 %v4245
  %v4826 = vpop.f32.mrf.mxu0
  %v4827 = vadd.f32 %v4714, %v4826
  %4828 = vmatmul.f32.gmra.mxu0 %v4254
  %v4829 = vpop.f32.mrf.mxu0
  %v4830 = vadd.f32 %v4717, %v4829
  %4831 = vmatmul.f32.gmra.mxu0 %v4263
  %v4832 = vpop.f32.mrf.mxu0
  %v4833 = vadd.f32 %v4720, %v4832
  %4834 = vmatmul.f32.gmra.mxu0 %v4272
  %v4835 = vpop.f32.mrf.mxu0
  %v4836 = vadd.f32 %v4723, %v4835
  %4837 = vmatmul.f32.gmra.mxu0 %v4281
  %v4838 = vpop.f32.mrf.mxu0
  %v4839 = vadd.f32 %v4726, %v4838
  %4840 = vmatmul.f32.gmra.mxu0 %v4290
  %v4841 = vpop.f32.mrf.mxu0
  %v4842 = vadd.f32 %v4729, %v4841
  %4843 = vmatmul.f32.gmra.mxu0 %v4299
  %v4844 = vpop.f32.mrf.mxu0
  %v4845 = vadd.f32 %v4732, %v4844
  %4846 = vmatmul.f32.gmra.mxu0 %v4308
  %v4847 = vpop.f32.mrf.mxu0
  %v4848 = vadd.f32 %v4735, %v4847
  %4849 = vmatmul.f32.gmra.mxu0 %v4317
  %v4850 = vpop.f32.mrf.mxu0
  %v4851 = vadd.f32 %v4738, %v4850
  %4852 = vmatmul.f32.gmra.mxu0 %v4326
  %v4853 = vpop.f32.mrf.mxu0
  %v4854 = vadd.f32 %v4741, %v4853
  %4855 = vmatmul.f32.gmra.mxu0 %v4335
  %v4856 = vpop.f32.mrf.mxu0
  %v4857 = vadd.f32 %v4744, %v4856
  %4858 = vmatmul.f32.gmra.mxu0 %v4344
  %v4859 = vpop.f32.mrf.mxu0
  %v4860 = vadd.f32 %v4747, %v4859
  %4861 = vmatmul.f32.gmra.mxu0 %v4353
  %v4862 = vpop.f32.mrf.mxu0
  %v4863 = vadd.f32 %v4750, %v4862
  %4864 = vmatmul.f32.gmra.mxu0 %v4362
  %v4865 = vpop.f32.mrf.mxu0
  %v4866 = vadd.f32 %v4753, %v4865
  %4867 = vmatmul.f32.gmra.mxu0 %v4371
  %v4868 = vpop.f32.mrf.mxu0
  %v4869 = vadd.f32 %v4756, %v4868
  %4870 = vmatmul.f32.gmra.mxu0 %v4380
  %v4871 = vpop.f32.mrf.mxu0
  %v4872 = vadd.f32 %v4759, %v4871
  %4873 = vmatmul.f32.gmra.mxu0 %v4389
  %v4874 = vpop.f32.mrf.mxu0
  %v4875 = vadd.f32 %v4762, %v4874
  %4876 = vmatmul.f32.gmra.mxu0 %v4398
  %v4877 = vpop.f32.mrf.mxu0
  %v4878 = vadd.f32 %v4765, %v4877
  %4879 = vmatmul.f32.gmra.mxu0 %v4407
  %v4880 = vpop.f32.mrf.mxu0
  %v4881 = vadd.f32 %v4768, %v4880
  %4882 = vmatmul.f32.gmra.mxu0 %v4416
  %v4883 = vpop.f32.mrf.mxu0
  %v4884 = vadd.f32 %v4771, %v4883
  %4885 = vmatmul.f32.gmra.mxu0 %v4425
  %v4886 = vpop.f32.mrf.mxu0
  %v4887 = vadd.f32 %v4774, %v4886
  %4888 = vmatmul.f32.gmra.mxu0 %v4434
  %v4889 = vpop.f32.mrf.mxu0
  %v4890 = vadd.f32 %v4777, %v4889
  %4891 = vdwg.mxu0
  %4892 = vmatpush.msra.mxu0 %v105
  %4893 = vmatpush.msra.mxu0 %v104
  %4894 = vmatpush.msra.mxu0 %v103
  %4895 = vmatpush.msra.mxu0 %v102
  %4896 = vmatpush.msra.mxu0 %v101
  %4897 = vmatpush.msra.mxu0 %v100
  %4898 = vmatpush.msra.mxu0 %v99
  %4899 = vmatpush.msra.mxu0 %v98
  %4900 = vmatpush.msra.mxu0 %v97
  %4901 = vmatpush.msra.mxu0 %v96
  %4902 = vmatpush.msra.mxu0 %v95
  %4903 = vmatpush.msra.mxu0 %v94
  %4904 = vmatpush.msra.mxu0 %v93
  %4905 = vmatpush.msra.mxu0 %v92
  %4906 = vmatpush.msra.mxu0 %v91
  %4907 = vmatpush.msra.mxu0 %v90
  %4908 = vmatmul.f32.gmra.mxu0 %v4156
  %v4909 = vpop.f32.mrf.mxu0
  %v4910 = vadd.f32 %v4797, %v4909
  %4911 = vmatmul.f32.gmra.mxu0 %v4165
  %v4912 = vpop.f32.mrf.mxu0
  %v4913 = vadd.f32 %v4800, %v4912
  %4914 = vmatmul.f32.gmra.mxu0 %v4174
  %v4915 = vpop.f32.mrf.mxu0
  %v4916 = vadd.f32 %v4803, %v4915
  %4917 = vmatmul.f32.gmra.mxu0 %v4183
  %v4918 = vpop.f32.mrf.mxu0
  %v4919 = vadd.f32 %v4806, %v4918
  %4920 = vmatmul.f32.gmra.mxu0 %v4192
  %v4921 = vpop.f32.mrf.mxu0
  %v4922 = vadd.f32 %v4809, %v4921
  %4923 = vmatmul.f32.gmra.mxu0 %v4201
  %v4924 = vpop.f32.mrf.mxu0
  %v4925 = vadd.f32 %v4812, %v4924
  %4926 = vmatmul.f32.gmra.mxu0 %v4210
  %v4927 = vpop.f32.mrf.mxu0
  %v4928 = vadd.f32 %v4815, %v4927
  %4929 = vmatmul.f32.gmra.mxu0 %v4219
  %v4930 = vpop.f32.mrf.mxu0
  %v4931 = vadd.f32 %v4818, %v4930
  %4932 = vmatmul.f32.gmra.mxu0 %v4228
  %v4933 = vpop.f32.mrf.mxu0
  %v4934 = vadd.f32 %v4821, %v4933
  %4935 = vmatmul.f32.gmra.mxu0 %v4237
  %v4936 = vpop.f32.mrf.mxu0
  %v4937 = vadd.f32 %v4824, %v4936
  %4938 = vmatmul.f32.gmra.mxu0 %v4246
  %v4939 = vpop.f32.mrf.mxu0
  %v4940 = vadd.f32 %v4827, %v4939
  %4941 = vmatmul.f32.gmra.mxu0 %v4255
  %v4942 = vpop.f32.mrf.mxu0
  %v4943 = vadd.f32 %v4830, %v4942
  %4944 = vmatmul.f32.gmra.mxu0 %v4264
  %v4945 = vpop.f32.mrf.mxu0
  %v4946 = vadd.f32 %v4833, %v4945
  %4947 = vmatmul.f32.gmra.mxu0 %v4273
  %v4948 = vpop.f32.mrf.mxu0
  %v4949 = vadd.f32 %v4836, %v4948
  %4950 = vmatmul.f32.gmra.mxu0 %v4282
  %v4951 = vpop.f32.mrf.mxu0
  %v4952 = vadd.f32 %v4839, %v4951
  %4953 = vmatmul.f32.gmra.mxu0 %v4291
  %v4954 = vpop.f32.mrf.mxu0
  %v4955 = vadd.f32 %v4842, %v4954
  %4956 = vmatmul.f32.gmra.mxu0 %v4300
  %v4957 = vpop.f32.mrf.mxu0
  %v4958 = vadd.f32 %v4845, %v4957
  %4959 = vmatmul.f32.gmra.mxu0 %v4309
  %v4960 = vpop.f32.mrf.mxu0
  %v4961 = vadd.f32 %v4848, %v4960
  %4962 = vmatmul.f32.gmra.mxu0 %v4318
  %v4963 = vpop.f32.mrf.mxu0
  %v4964 = vadd.f32 %v4851, %v4963
  %4965 = vmatmul.f32.gmra.mxu0 %v4327
  %v4966 = vpop.f32.mrf.mxu0
  %v4967 = vadd.f32 %v4854, %v4966
  %4968 = vmatmul.f32.gmra.mxu0 %v4336
  %v4969 = vpop.f32.mrf.mxu0
  %v4970 = vadd.f32 %v4857, %v4969
  %4971 = vmatmul.f32.gmra.mxu0 %v4345
  %v4972 = vpop.f32.mrf.mxu0
  %v4973 = vadd.f32 %v4860, %v4972
  %4974 = vmatmul.f32.gmra.mxu0 %v4354
  %v4975 = vpop.f32.mrf.mxu0
  %v4976 = vadd.f32 %v4863, %v4975
  %4977 = vmatmul.f32.gmra.mxu0 %v4363
  %v4978 = vpop.f32.mrf.mxu0
  %v4979 = vadd.f32 %v4866, %v4978
  %4980 = vmatmul.f32.gmra.mxu0 %v4372
  %v4981 = vpop.f32.mrf.mxu0
  %v4982 = vadd.f32 %v4869, %v4981
  %4983 = vmatmul.f32.gmra.mxu0 %v4381
  %v4984 = vpop.f32.mrf.mxu0
  %v4985 = vadd.f32 %v4872, %v4984
  %4986 = vmatmul.f32.gmra.mxu0 %v4390
  %v4987 = vpop.f32.mrf.mxu0
  %v4988 = vadd.f32 %v4875, %v4987
  %4989 = vmatmul.f32.gmra.mxu0 %v4399
  %v4990 = vpop.f32.mrf.mxu0
  %v4991 = vadd.f32 %v4878, %v4990
  %4992 = vmatmul.f32.gmra.mxu0 %v4408
  %v4993 = vpop.f32.mrf.mxu0
  %v4994 = vadd.f32 %v4881, %v4993
  %4995 = vmatmul.f32.gmra.mxu0 %v4417
  %v4996 = vpop.f32.mrf.mxu0
  %v4997 = vadd.f32 %v4884, %v4996
  %4998 = vmatmul.f32.gmra.mxu0 %v4426
  %v4999 = vpop.f32.mrf.mxu0
  %v5000 = vadd.f32 %v4887, %v4999
  %5001 = vmatmul.f32.gmra.mxu0 %v4435
  %v5002 = vpop.f32.mrf.mxu0
  %v5003 = vadd.f32 %v4890, %v5002
  %5004 = vdwg.mxu0
  %5005 = vmatpush.msra.mxu0 %v121
  %5006 = vmatpush.msra.mxu0 %v120
  %5007 = vmatpush.msra.mxu0 %v119
  %5008 = vmatpush.msra.mxu0 %v118
  %5009 = vmatpush.msra.mxu0 %v117
  %5010 = vmatpush.msra.mxu0 %v116
  %5011 = vmatpush.msra.mxu0 %v115
  %5012 = vmatpush.msra.mxu0 %v114
  %5013 = vmatpush.msra.mxu0 %v113
  %5014 = vmatpush.msra.mxu0 %v112
  %5015 = vmatpush.msra.mxu0 %v111
  %5016 = vmatpush.msra.mxu0 %v110
  %5017 = vmatpush.msra.mxu0 %v109
  %5018 = vmatpush.msra.mxu0 %v108
  %5019 = vmatpush.msra.mxu0 %v107
  %5020 = vmatpush.msra.mxu0 %v106
  %5021 = vmatmul.f32.gmra.mxu0 %v4157
  %v5022 = vpop.f32.mrf.mxu0
  %v5023 = vadd.f32 %v4910, %v5022
  %5024 = vmatmul.f32.gmra.mxu0 %v4166
  %v5025 = vpop.f32.mrf.mxu0
  %v5026 = vadd.f32 %v4913, %v5025
  %5027 = vmatmul.f32.gmra.mxu0 %v4175
  %v5028 = vpop.f32.mrf.mxu0
  %v5029 = vadd.f32 %v4916, %v5028
  %5030 = vmatmul.f32.gmra.mxu0 %v4184
  %v5031 = vpop.f32.mrf.mxu0
  %v5032 = vadd.f32 %v4919, %v5031
  %5033 = vmatmul.f32.gmra.mxu0 %v4193
  %v5034 = vpop.f32.mrf.mxu0
  %v5035 = vadd.f32 %v4922, %v5034
  %5036 = vmatmul.f32.gmra.mxu0 %v4202
  %v5037 = vpop.f32.mrf.mxu0
  %v5038 = vadd.f32 %v4925, %v5037
  %5039 = vmatmul.f32.gmra.mxu0 %v4211
  %v5040 = vpop.f32.mrf.mxu0
  %v5041 = vadd.f32 %v4928, %v5040
  %5042 = vmatmul.f32.gmra.mxu0 %v4220
  %v5043 = vpop.f32.mrf.mxu0
  %v5044 = vadd.f32 %v4931, %v5043
  %5045 = vmatmul.f32.gmra.mxu0 %v4229
  %v5046 = vpop.f32.mrf.mxu0
  %v5047 = vadd.f32 %v4934, %v5046
  %5048 = vmatmul.f32.gmra.mxu0 %v4238
  %v5049 = vpop.f32.mrf.mxu0
  %v5050 = vadd.f32 %v4937, %v5049
  %5051 = vmatmul.f32.gmra.mxu0 %v4247
  %v5052 = vpop.f32.mrf.mxu0
  %v5053 = vadd.f32 %v4940, %v5052
  %5054 = vmatmul.f32.gmra.mxu0 %v4256
  %v5055 = vpop.f32.mrf.mxu0
  %v5056 = vadd.f32 %v4943, %v5055
  %5057 = vmatmul.f32.gmra.mxu0 %v4265
  %v5058 = vpop.f32.mrf.mxu0
  %v5059 = vadd.f32 %v4946, %v5058
  %5060 = vmatmul.f32.gmra.mxu0 %v4274
  %v5061 = vpop.f32.mrf.mxu0
  %v5062 = vadd.f32 %v4949, %v5061
  %5063 = vmatmul.f32.gmra.mxu0 %v4283
  %v5064 = vpop.f32.mrf.mxu0
  %v5065 = vadd.f32 %v4952, %v5064
  %5066 = vmatmul.f32.gmra.mxu0 %v4292
  %v5067 = vpop.f32.mrf.mxu0
  %v5068 = vadd.f32 %v4955, %v5067
  %5069 = vmatmul.f32.gmra.mxu0 %v4301
  %v5070 = vpop.f32.mrf.mxu0
  %v5071 = vadd.f32 %v4958, %v5070
  %5072 = vmatmul.f32.gmra.mxu0 %v4310
  %v5073 = vpop.f32.mrf.mxu0
  %v5074 = vadd.f32 %v4961, %v5073
  %5075 = vmatmul.f32.gmra.mxu0 %v4319
  %v5076 = vpop.f32.mrf.mxu0
  %v5077 = vadd.f32 %v4964, %v5076
  %5078 = vmatmul.f32.gmra.mxu0 %v4328
  %v5079 = vpop.f32.mrf.mxu0
  %v5080 = vadd.f32 %v4967, %v5079
  %5081 = vmatmul.f32.gmra.mxu0 %v4337
  %v5082 = vpop.f32.mrf.mxu0
  %v5083 = vadd.f32 %v4970, %v5082
  %5084 = vmatmul.f32.gmra.mxu0 %v4346
  %v5085 = vpop.f32.mrf.mxu0
  %v5086 = vadd.f32 %v4973, %v5085
  %5087 = vmatmul.f32.gmra.mxu0 %v4355
  %v5088 = vpop.f32.mrf.mxu0
  %v5089 = vadd.f32 %v4976, %v5088
  %5090 = vmatmul.f32.gmra.mxu0 %v4364
  %v5091 = vpop.f32.mrf.mxu0
  %v5092 = vadd.f32 %v4979, %v5091
  %5093 = vmatmul.f32.gmra.mxu0 %v4373
  %v5094 = vpop.f32.mrf.mxu0
  %v5095 = vadd.f32 %v4982, %v5094
  %5096 = vmatmul.f32.gmra.mxu0 %v4382
  %v5097 = vpop.f32.mrf.mxu0
  %v5098 = vadd.f32 %v4985, %v5097
  %5099 = vmatmul.f32.gmra.mxu0 %v4391
  %v5100 = vpop.f32.mrf.mxu0
  %v5101 = vadd.f32 %v4988, %v5100
  %5102 = vmatmul.f32.gmra.mxu0 %v4400
  %v5103 = vpop.f32.mrf.mxu0
  %v5104 = vadd.f32 %v4991, %v5103
  %5105 = vmatmul.f32.gmra.mxu0 %v4409
  %v5106 = vpop.f32.mrf.mxu0
  %v5107 = vadd.f32 %v4994, %v5106
  %5108 = vmatmul.f32.gmra.mxu0 %v4418
  %v5109 = vpop.f32.mrf.mxu0
  %v5110 = vadd.f32 %v4997, %v5109
  %5111 = vmatmul.f32.gmra.mxu0 %v4427
  %v5112 = vpop.f32.mrf.mxu0
  %v5113 = vadd.f32 %v5000, %v5112
  %5114 = vmatmul.f32.gmra.mxu0 %v4436
  %v5115 = vpop.f32.mrf.mxu0
  %v5116 = vadd.f32 %v5003, %v5115
  %5117 = vdwg.mxu0
  %5118 = vmatpush.msra.mxu0 %v137
  %5119 = vmatpush.msra.mxu0 %v136
  %5120 = vmatpush.msra.mxu0 %v135
  %5121 = vmatpush.msra.mxu0 %v134
  %5122 = vmatpush.msra.mxu0 %v133
  %5123 = vmatpush.msra.mxu0 %v132
  %5124 = vmatpush.msra.mxu0 %v131
  %5125 = vmatpush.msra.mxu0 %v130
  %5126 = vmatpush.msra.mxu0 %v129
  %5127 = vmatpush.msra.mxu0 %v128
  %5128 = vmatpush.msra.mxu0 %v127
  %5129 = vmatpush.msra.mxu0 %v126
  %5130 = vmatpush.msra.mxu0 %v125
  %5131 = vmatpush.msra.mxu0 %v124
  %5132 = vmatpush.msra.mxu0 %v123
  %5133 = vmatpush.msra.mxu0 %v122
  %5134 = vmatmul.f32.gmra.mxu0 %v4158
  %v5135 = vpop.f32.mrf.mxu0
  %v5136 = vadd.f32 %v5023, %v5135
  %5137 = vmatmul.f32.gmra.mxu0 %v4167
  %v5138 = vpop.f32.mrf.mxu0
  %v5139 = vadd.f32 %v5026, %v5138
  %5140 = vmatmul.f32.gmra.mxu0 %v4176
  %v5141 = vpop.f32.mrf.mxu0
  %v5142 = vadd.f32 %v5029, %v5141
  %5143 = vmatmul.f32.gmra.mxu0 %v4185
  %v5144 = vpop.f32.mrf.mxu0
  %v5145 = vadd.f32 %v5032, %v5144
  %5146 = vmatmul.f32.gmra.mxu0 %v4194
  %v5147 = vpop.f32.mrf.mxu0
  %v5148 = vadd.f32 %v5035, %v5147
  %5149 = vmatmul.f32.gmra.mxu0 %v4203
  %v5150 = vpop.f32.mrf.mxu0
  %v5151 = vadd.f32 %v5038, %v5150
  %5152 = vmatmul.f32.gmra.mxu0 %v4212
  %v5153 = vpop.f32.mrf.mxu0
  %v5154 = vadd.f32 %v5041, %v5153
  %5155 = vmatmul.f32.gmra.mxu0 %v4221
  %v5156 = vpop.f32.mrf.mxu0
  %v5157 = vadd.f32 %v5044, %v5156
  %5158 = vmatmul.f32.gmra.mxu0 %v4230
  %v5159 = vpop.f32.mrf.mxu0
  %v5160 = vadd.f32 %v5047, %v5159
  %5161 = vmatmul.f32.gmra.mxu0 %v4239
  %v5162 = vpop.f32.mrf.mxu0
  %v5163 = vadd.f32 %v5050, %v5162
  %5164 = vmatmul.f32.gmra.mxu0 %v4248
  %v5165 = vpop.f32.mrf.mxu0
  %v5166 = vadd.f32 %v5053, %v5165
  %5167 = vmatmul.f32.gmra.mxu0 %v4257
  %v5168 = vpop.f32.mrf.mxu0
  %v5169 = vadd.f32 %v5056, %v5168
  %5170 = vmatmul.f32.gmra.mxu0 %v4266
  %v5171 = vpop.f32.mrf.mxu0
  %v5172 = vadd.f32 %v5059, %v5171
  %5173 = vmatmul.f32.gmra.mxu0 %v4275
  %v5174 = vpop.f32.mrf.mxu0
  %v5175 = vadd.f32 %v5062, %v5174
  %5176 = vmatmul.f32.gmra.mxu0 %v4284
  %v5177 = vpop.f32.mrf.mxu0
  %v5178 = vadd.f32 %v5065, %v5177
  %5179 = vmatmul.f32.gmra.mxu0 %v4293
  %v5180 = vpop.f32.mrf.mxu0
  %v5181 = vadd.f32 %v5068, %v5180
  %5182 = vmatmul.f32.gmra.mxu0 %v4302
  %v5183 = vpop.f32.mrf.mxu0
  %v5184 = vadd.f32 %v5071, %v5183
  %5185 = vmatmul.f32.gmra.mxu0 %v4311
  %v5186 = vpop.f32.mrf.mxu0
  %v5187 = vadd.f32 %v5074, %v5186
  %5188 = vmatmul.f32.gmra.mxu0 %v4320
  %v5189 = vpop.f32.mrf.mxu0
  %v5190 = vadd.f32 %v5077, %v5189
  %5191 = vmatmul.f32.gmra.mxu0 %v4329
  %v5192 = vpop.f32.mrf.mxu0
  %v5193 = vadd.f32 %v5080, %v5192
  %5194 = vmatmul.f32.gmra.mxu0 %v4338
  %v5195 = vpop.f32.mrf.mxu0
  %v5196 = vadd.f32 %v5083, %v5195
  %5197 = vmatmul.f32.gmra.mxu0 %v4347
  %v5198 = vpop.f32.mrf.mxu0
  %v5199 = vadd.f32 %v5086, %v5198
  %5200 = vmatmul.f32.gmra.mxu0 %v4356
  %v5201 = vpop.f32.mrf.mxu0
  %v5202 = vadd.f32 %v5089, %v5201
  %5203 = vmatmul.f32.gmra.mxu0 %v4365
  %v5204 = vpop.f32.mrf.mxu0
  %v5205 = vadd.f32 %v5092, %v5204
  %5206 = vmatmul.f32.gmra.mxu0 %v4374
  %v5207 = vpop.f32.mrf.mxu0
  %v5208 = vadd.f32 %v5095, %v5207
  %5209 = vmatmul.f32.gmra.mxu0 %v4383
  %v5210 = vpop.f32.mrf.mxu0
  %v5211 = vadd.f32 %v5098, %v5210
  %5212 = vmatmul.f32.gmra.mxu0 %v4392
  %v5213 = vpop.f32.mrf.mxu0
  %v5214 = vadd.f32 %v5101, %v5213
  %5215 = vmatmul.f32.gmra.mxu0 %v4401
  %v5216 = vpop.f32.mrf.mxu0
  %v5217 = vadd.f32 %v5104, %v5216
  %5218 = vmatmul.f32.gmra.mxu0 %v4410
  %v5219 = vpop.f32.mrf.mxu0
  %v5220 = vadd.f32 %v5107, %v5219
  %5221 = vmatmul.f32.gmra.mxu0 %v4419
  %v5222 = vpop.f32.mrf.mxu0
  %v5223 = vadd.f32 %v5110, %v5222
  %5224 = vmatmul.f32.gmra.mxu0 %v4428
  %v5225 = vpop.f32.mrf.mxu0
  %v5226 = vadd.f32 %v5113, %v5225
  %5227 = vmatmul.f32.gmra.mxu0 %v4437
  %v5228 = vpop.f32.mrf.mxu0
  %v5229 = vadd.f32 %v5116, %v5228
  %5230 = vdwg.mxu0
  %5231 = vmatpush.msra.mxu0 %v153
  %5232 = vmatpush.msra.mxu0 %v152
  %5233 = vmatpush.msra.mxu0 %v151
  %5234 = vmatpush.msra.mxu0 %v150
  %5235 = vmatpush.msra.mxu0 %v149
  %5236 = vmatpush.msra.mxu0 %v148
  %5237 = vmatpush.msra.mxu0 %v147
  %5238 = vmatpush.msra.mxu0 %v146
  %5239 = vmatpush.msra.mxu0 %v145
  %5240 = vmatpush.msra.mxu0 %v144
  %5241 = vmatpush.msra.mxu0 %v143
  %5242 = vmatpush.msra.mxu0 %v142
  %5243 = vmatpush.msra.mxu0 %v141
  %5244 = vmatpush.msra.mxu0 %v140
  %5245 = vmatpush.msra.mxu0 %v139
  %5246 = vmatpush.msra.mxu0 %v138
  %5247 = vmatmul.f32.gmra.mxu0 %v4159
  %v5248 = vpop.f32.mrf.mxu0
  %v5249 = vadd.f32 %v5136, %v5248
  %5250 = vmatmul.f32.gmra.mxu0 %v4168
  %v5251 = vpop.f32.mrf.mxu0
  %v5252 = vadd.f32 %v5139, %v5251
  %5253 = vmatmul.f32.gmra.mxu0 %v4177
  %v5254 = vpop.f32.mrf.mxu0
  %v5255 = vadd.f32 %v5142, %v5254
  %5256 = vmatmul.f32.gmra.mxu0 %v4186
  %v5257 = vpop.f32.mrf.mxu0
  %v5258 = vadd.f32 %v5145, %v5257
  %5259 = vmatmul.f32.gmra.mxu0 %v4195
  %v5260 = vpop.f32.mrf.mxu0
  %v5261 = vadd.f32 %v5148, %v5260
  %5262 = vmatmul.f32.gmra.mxu0 %v4204
  %v5263 = vpop.f32.mrf.mxu0
  %v5264 = vadd.f32 %v5151, %v5263
  %5265 = vmatmul.f32.gmra.mxu0 %v4213
  %v5266 = vpop.f32.mrf.mxu0
  %v5267 = vadd.f32 %v5154, %v5266
  %5268 = vmatmul.f32.gmra.mxu0 %v4222
  %v5269 = vpop.f32.mrf.mxu0
  %v5270 = vadd.f32 %v5157, %v5269
  %5271 = vmatmul.f32.gmra.mxu0 %v4231
  %v5272 = vpop.f32.mrf.mxu0
  %v5273 = vadd.f32 %v5160, %v5272
  %5274 = vmatmul.f32.gmra.mxu0 %v4240
  %v5275 = vpop.f32.mrf.mxu0
  %v5276 = vadd.f32 %v5163, %v5275
  %5277 = vmatmul.f32.gmra.mxu0 %v4249
  %v5278 = vpop.f32.mrf.mxu0
  %v5279 = vadd.f32 %v5166, %v5278
  %5280 = vmatmul.f32.gmra.mxu0 %v4258
  %v5281 = vpop.f32.mrf.mxu0
  %v5282 = vadd.f32 %v5169, %v5281
  %5283 = vmatmul.f32.gmra.mxu0 %v4267
  %v5284 = vpop.f32.mrf.mxu0
  %v5285 = vadd.f32 %v5172, %v5284
  %5286 = vmatmul.f32.gmra.mxu0 %v4276
  %v5287 = vpop.f32.mrf.mxu0
  %v5288 = vadd.f32 %v5175, %v5287
  %5289 = vmatmul.f32.gmra.mxu0 %v4285
  %v5290 = vpop.f32.mrf.mxu0
  %v5291 = vadd.f32 %v5178, %v5290
  %5292 = vmatmul.f32.gmra.mxu0 %v4294
  %v5293 = vpop.f32.mrf.mxu0
  %v5294 = vadd.f32 %v5181, %v5293
  %5295 = vmatmul.f32.gmra.mxu0 %v4303
  %v5296 = vpop.f32.mrf.mxu0
  %v5297 = vadd.f32 %v5184, %v5296
  %5298 = vmatmul.f32.gmra.mxu0 %v4312
  %v5299 = vpop.f32.mrf.mxu0
  %v5300 = vadd.f32 %v5187, %v5299
  %5301 = vmatmul.f32.gmra.mxu0 %v4321
  %v5302 = vpop.f32.mrf.mxu0
  %v5303 = vadd.f32 %v5190, %v5302
  %5304 = vmatmul.f32.gmra.mxu0 %v4330
  %v5305 = vpop.f32.mrf.mxu0
  %v5306 = vadd.f32 %v5193, %v5305
  %5307 = vmatmul.f32.gmra.mxu0 %v4339
  %v5308 = vpop.f32.mrf.mxu0
  %v5309 = vadd.f32 %v5196, %v5308
  %5310 = vmatmul.f32.gmra.mxu0 %v4348
  %v5311 = vpop.f32.mrf.mxu0
  %v5312 = vadd.f32 %v5199, %v5311
  %5313 = vmatmul.f32.gmra.mxu0 %v4357
  %v5314 = vpop.f32.mrf.mxu0
  %v5315 = vadd.f32 %v5202, %v5314
  %5316 = vmatmul.f32.gmra.mxu0 %v4366
  %v5317 = vpop.f32.mrf.mxu0
  %v5318 = vadd.f32 %v5205, %v5317
  %5319 = vmatmul.f32.gmra.mxu0 %v4375
  %v5320 = vpop.f32.mrf.mxu0
  %v5321 = vadd.f32 %v5208, %v5320
  %5322 = vmatmul.f32.gmra.mxu0 %v4384
  %v5323 = vpop.f32.mrf.mxu0
  %v5324 = vadd.f32 %v5211, %v5323
  %5325 = vmatmul.f32.gmra.mxu0 %v4393
  %v5326 = vpop.f32.mrf.mxu0
  %v5327 = vadd.f32 %v5214, %v5326
  %5328 = vmatmul.f32.gmra.mxu0 %v4402
  %v5329 = vpop.f32.mrf.mxu0
  %v5330 = vadd.f32 %v5217, %v5329
  %5331 = vmatmul.f32.gmra.mxu0 %v4411
  %v5332 = vpop.f32.mrf.mxu0
  %v5333 = vadd.f32 %v5220, %v5332
  %5334 = vmatmul.f32.gmra.mxu0 %v4420
  %v5335 = vpop.f32.mrf.mxu0
  %v5336 = vadd.f32 %v5223, %v5335
  %5337 = vmatmul.f32.gmra.mxu0 %v4429
  %v5338 = vpop.f32.mrf.mxu0
  %v5339 = vadd.f32 %v5226, %v5338
  %5340 = vmatmul.f32.gmra.mxu0 %v4438
  %v5341 = vpop.f32.mrf.mxu0
  %v5342 = vadd.f32 %v5229, %v5341
  %5343 = vdwg.mxu0
  %5344 = vmatpush.msra.mxu0 %v169
  %5345 = vmatpush.msra.mxu0 %v168
  %5346 = vmatpush.msra.mxu0 %v167
  %5347 = vmatpush.msra.mxu0 %v166
  %5348 = vmatpush.msra.mxu0 %v165
  %5349 = vmatpush.msra.mxu0 %v164
  %5350 = vmatpush.msra.mxu0 %v163
  %5351 = vmatpush.msra.mxu0 %v162
  %5352 = vmatpush.msra.mxu0 %v161
  %5353 = vmatpush.msra.mxu0 %v160
  %5354 = vmatpush.msra.mxu0 %v159
  %5355 = vmatpush.msra.mxu0 %v158
  %5356 = vmatpush.msra.mxu0 %v157
  %5357 = vmatpush.msra.mxu0 %v156
  %5358 = vmatpush.msra.mxu0 %v155
  %5359 = vmatpush.msra.mxu0 %v154
  %5360 = vmatmul.f32.gmra.mxu0 %v4160
  %v5361 = vpop.f32.mrf.mxu0
  %v5362 = vadd.f32 %v5249, %v5361
  %5363 = vmatmul.f32.gmra.mxu0 %v4169
  %v5364 = vpop.f32.mrf.mxu0
  %v5365 = vadd.f32 %v5252, %v5364
  %5366 = vmatmul.f32.gmra.mxu0 %v4178
  %v5367 = vpop.f32.mrf.mxu0
  %v5368 = vadd.f32 %v5255, %v5367
  %5369 = vmatmul.f32.gmra.mxu0 %v4187
  %v5370 = vpop.f32.mrf.mxu0
  %v5371 = vadd.f32 %v5258, %v5370
  %5372 = vmatmul.f32.gmra.mxu0 %v4196
  %v5373 = vpop.f32.mrf.mxu0
  %v5374 = vadd.f32 %v5261, %v5373
  %5375 = vmatmul.f32.gmra.mxu0 %v4205
  %v5376 = vpop.f32.mrf.mxu0
  %v5377 = vadd.f32 %v5264, %v5376
  %5378 = vmatmul.f32.gmra.mxu0 %v4214
  %v5379 = vpop.f32.mrf.mxu0
  %v5380 = vadd.f32 %v5267, %v5379
  %5381 = vmatmul.f32.gmra.mxu0 %v4223
  %v5382 = vpop.f32.mrf.mxu0
  %v5383 = vadd.f32 %v5270, %v5382
  %5384 = vmatmul.f32.gmra.mxu0 %v4232
  %v5385 = vpop.f32.mrf.mxu0
  %v5386 = vadd.f32 %v5273, %v5385
  %5387 = vmatmul.f32.gmra.mxu0 %v4241
  %v5388 = vpop.f32.mrf.mxu0
  %v5389 = vadd.f32 %v5276, %v5388
  %5390 = vmatmul.f32.gmra.mxu0 %v4250
  %v5391 = vpop.f32.mrf.mxu0
  %v5392 = vadd.f32 %v5279, %v5391
  %5393 = vmatmul.f32.gmra.mxu0 %v4259
  %v5394 = vpop.f32.mrf.mxu0
  %v5395 = vadd.f32 %v5282, %v5394
  %5396 = vmatmul.f32.gmra.mxu0 %v4268
  %v5397 = vpop.f32.mrf.mxu0
  %v5398 = vadd.f32 %v5285, %v5397
  %5399 = vmatmul.f32.gmra.mxu0 %v4277
  %v5400 = vpop.f32.mrf.mxu0
  %v5401 = vadd.f32 %v5288, %v5400
  %5402 = vmatmul.f32.gmra.mxu0 %v4286
  %v5403 = vpop.f32.mrf.mxu0
  %v5404 = vadd.f32 %v5291, %v5403
  %5405 = vmatmul.f32.gmra.mxu0 %v4295
  %v5406 = vpop.f32.mrf.mxu0
  %v5407 = vadd.f32 %v5294, %v5406
  %5408 = vmatmul.f32.gmra.mxu0 %v4304
  %v5409 = vpop.f32.mrf.mxu0
  %v5410 = vadd.f32 %v5297, %v5409
  %5411 = vmatmul.f32.gmra.mxu0 %v4313
  %v5412 = vpop.f32.mrf.mxu0
  %v5413 = vadd.f32 %v5300, %v5412
  %5414 = vmatmul.f32.gmra.mxu0 %v4322
  %v5415 = vpop.f32.mrf.mxu0
  %v5416 = vadd.f32 %v5303, %v5415
  %5417 = vmatmul.f32.gmra.mxu0 %v4331
  %v5418 = vpop.f32.mrf.mxu0
  %v5419 = vadd.f32 %v5306, %v5418
  %5420 = vmatmul.f32.gmra.mxu0 %v4340
  %v5421 = vpop.f32.mrf.mxu0
  %v5422 = vadd.f32 %v5309, %v5421
  %5423 = vmatmul.f32.gmra.mxu0 %v4349
  %v5424 = vpop.f32.mrf.mxu0
  %v5425 = vadd.f32 %v5312, %v5424
  %5426 = vmatmul.f32.gmra.mxu0 %v4358
  %v5427 = vpop.f32.mrf.mxu0
  %v5428 = vadd.f32 %v5315, %v5427
  %5429 = vmatmul.f32.gmra.mxu0 %v4367
  %v5430 = vpop.f32.mrf.mxu0
  %v5431 = vadd.f32 %v5318, %v5430
  %5432 = vmatmul.f32.gmra.mxu0 %v4376
  %v5433 = vpop.f32.mrf.mxu0
  %v5434 = vadd.f32 %v5321, %v5433
  %5435 = vmatmul.f32.gmra.mxu0 %v4385
  %v5436 = vpop.f32.mrf.mxu0
  %v5437 = vadd.f32 %v5324, %v5436
  %5438 = vmatmul.f32.gmra.mxu0 %v4394
  %v5439 = vpop.f32.mrf.mxu0
  %v5440 = vadd.f32 %v5327, %v5439
  %5441 = vmatmul.f32.gmra.mxu0 %v4403
  %v5442 = vpop.f32.mrf.mxu0
  %v5443 = vadd.f32 %v5330, %v5442
  %5444 = vmatmul.f32.gmra.mxu0 %v4412
  %v5445 = vpop.f32.mrf.mxu0
  %v5446 = vadd.f32 %v5333, %v5445
  %5447 = vmatmul.f32.gmra.mxu0 %v4421
  %v5448 = vpop.f32.mrf.mxu0
  %v5449 = vadd.f32 %v5336, %v5448
  %5450 = vmatmul.f32.gmra.mxu0 %v4430
  %v5451 = vpop.f32.mrf.mxu0
  %v5452 = vadd.f32 %v5339, %v5451
  %5453 = vmatmul.f32.gmra.mxu0 %v4439
  %v5454 = vpop.f32.mrf.mxu0
  %v5455 = vadd.f32 %v5342, %v5454
  %5456 = vdwg.mxu0
  %v5457 = vmax.f32 %v4119, %v5362
  %v5458 = vmax.f32 %v4120, %v5365
  %v5459 = vmax.f32 %v4121, %v5368
  %v5460 = vmax.f32 %v4122, %v5371
  %v5461 = vmax.f32 %v4123, %v5374
  %v5462 = vmax.f32 %v4124, %v5377
  %v5463 = vmax.f32 %v4125, %v5380
  %v5464 = vmax.f32 %v4126, %v5383
  %v5465 = vmax.f32 %v4127, %v5386
  %v5466 = vmax.f32 %v4128, %v5389
  %v5467 = vmax.f32 %v4129, %v5392
  %v5468 = vmax.f32 %v4130, %v5395
  %v5469 = vmax.f32 %v4131, %v5398
  %v5470 = vmax.f32 %v4132, %v5401
  %v5471 = vmax.f32 %v4133, %v5404
  %v5472 = vmax.f32 %v4134, %v5407
  %v5473 = vmax.f32 %v4135, %v5410
  %v5474 = vmax.f32 %v4136, %v5413
  %v5475 = vmax.f32 %v4137, %v5416
  %v5476 = vmax.f32 %v4138, %v5419
  %v5477 = vmax.f32 %v4139, %v5422
  %v5478 = vmax.f32 %v4140, %v5425
  %v5479 = vmax.f32 %v4141, %v5428
  %v5480 = vmax.f32 %v4142, %v5431
  %v5481 = vmax.f32 %v4143, %v5434
  %v5482 = vmax.f32 %v4144, %v5437
  %v5483 = vmax.f32 %v4145, %v5440
  %v5484 = vmax.f32 %v4146, %v5443
  %v5485 = vmax.f32 %v4147, %v5446
  %v5486 = vmax.f32 %v4148, %v5449
  %v5487 = vmax.f32 %v4149, %v5452
  %v5488 = vmax.f32 %v4150, %v5455
  %v5489 = vld [vmem:[%s2] sm:$0xff]
  %v5490 = vld [vmem:[%s2 + $0x8] sm:$0xff]
  %v5491 = vld [vmem:[%s2 + $0x10] sm:$0xff]
  %v5492 = vld [vmem:[%s2 + $0x18] sm:$0xff]
  %v5493 = vld [vmem:[%s2 + $0x20] sm:$0xff]
  %v5494 = vld [vmem:[%s2 + $0x28] sm:$0xff]
  %v5495 = vld [vmem:[%s2 + $0x30] sm:$0xff]
  %v5496 = vld [vmem:[%s2 + $0x38] sm:$0xff]
  %v5497 = vld [vmem:[%s2 + $0x40] sm:$0xff]
  %v5498 = vld [vmem:[%s2 + $0x48] sm:$0xff]
  %v5499 = vld [vmem:[%s2 + $0x50] sm:$0xff]
  %v5500 = vld [vmem:[%s2 + $0x58] sm:$0xff]
  %v5501 = vld [vmem:[%s2 + $0x60] sm:$0xff]
  %v5502 = vld [vmem:[%s2 + $0x68] sm:$0xff]
  %v5503 = vld [vmem:[%s2 + $0x70] sm:$0xff]
  %v5504 = vld [vmem:[%s2 + $0x78] sm:$0xff]
  %v5505 = vld [vmem:[%s2 + $0x80] sm:$0xff]
  %v5506 = vld [vmem:[%s2 + $0x88] sm:$0xff]
  %v5507 = vld [vmem:[%s2 + $0x90] sm:$0xff]
  %v5508 = vld [vmem:[%s2 + $0x98] sm:$0xff]
  %v5509 = vld [vmem:[%s2 + $0xa0] sm:$0xff]
  %v5510 = vld [vmem:[%s2 + $0xa8] sm:$0xff]
  %v5511 = vld [vmem:[%s2 + $0xb0] sm:$0xff]
  %v5512 = vld [vmem:[%s2 + $0xb8] sm:$0xff]
  %v5513 = vld [vmem:[%s2 + $0xc0] sm:$0xff]
  %v5514 = vld [vmem:[%s2 + $0xc8] sm:$0xff]
  %v5515 = vld [vmem:[%s2 + $0xd0] sm:$0xff]
  %v5516 = vld [vmem:[%s2 + $0xd8] sm:$0xff]
  %v5517 = vld [vmem:[%s2 + $0xe0] sm:$0xff]
  %v5518 = vld [vmem:[%s2 + $0xe8] sm:$0xff]
  %v5519 = vld [vmem:[%s2 + $0xf0] sm:$0xff]
  %v5520 = vld [vmem:[%s2 + $0xf8] sm:$0xff]
  %5522 = vset.pattern.permute.xlu0 0
  %5523 = vperm.xlu0 %5522, %v5489
  %v5524 = vpop.permute.xlu0 %5523
  %5527 = vset.pattern.permute.xlu0 0
  %5528 = vperm.xlu0 %5527, %v5490
  %v5529 = vpop.permute.xlu0 %5528
  %5532 = vset.pattern.permute.xlu0 0
  %5533 = vperm.xlu0 %5532, %v5491
  %v5534 = vpop.permute.xlu0 %5533
  %5537 = vset.pattern.permute.xlu0 0
  %5538 = vperm.xlu0 %5537, %v5492
  %v5539 = vpop.permute.xlu0 %5538
  %5542 = vset.pattern.permute.xlu0 0
  %5543 = vperm.xlu0 %5542, %v5493
  %v5544 = vpop.permute.xlu0 %5543
  %5547 = vset.pattern.permute.xlu0 0
  %5548 = vperm.xlu0 %5547, %v5494
  %v5549 = vpop.permute.xlu0 %5548
  %5552 = vset.pattern.permute.xlu0 0
  %5553 = vperm.xlu0 %5552, %v5495
  %v5554 = vpop.permute.xlu0 %5553
  %5557 = vset.pattern.permute.xlu0 0
  %5558 = vperm.xlu0 %5557, %v5496
  %v5559 = vpop.permute.xlu0 %5558
  %5562 = vset.pattern.permute.xlu0 0
  %5563 = vperm.xlu0 %5562, %v5497
  %v5564 = vpop.permute.xlu0 %5563
  %5567 = vset.pattern.permute.xlu0 0
  %5568 = vperm.xlu0 %5567, %v5498
  %v5569 = vpop.permute.xlu0 %5568
  %5572 = vset.pattern.permute.xlu0 0
  %5573 = vperm.xlu0 %5572, %v5499
  %v5574 = vpop.permute.xlu0 %5573
  %5577 = vset.pattern.permute.xlu0 0
  %5578 = vperm.xlu0 %5577, %v5500
  %v5579 = vpop.permute.xlu0 %5578
  %5582 = vset.pattern.permute.xlu0 0
  %5583 = vperm.xlu0 %5582, %v5501
  %v5584 = vpop.permute.xlu0 %5583
  %5587 = vset.pattern.permute.xlu0 0
  %5588 = vperm.xlu0 %5587, %v5502
  %v5589 = vpop.permute.xlu0 %5588
  %5592 = vset.pattern.permute.xlu0 0
  %5593 = vperm.xlu0 %5592, %v5503
  %v5594 = vpop.permute.xlu0 %5593
  %5597 = vset.pattern.permute.xlu0 0
  %5598 = vperm.xlu0 %5597, %v5504
  %v5599 = vpop.permute.xlu0 %5598
  %5602 = vset.pattern.permute.xlu0 0
  %5603 = vperm.xlu0 %5602, %v5505
  %v5604 = vpop.permute.xlu0 %5603
  %5607 = vset.pattern.permute.xlu0 0
  %5608 = vperm.xlu0 %5607, %v5506
  %v5609 = vpop.permute.xlu0 %5608
  %5612 = vset.pattern.permute.xlu0 0
  %5613 = vperm.xlu0 %5612, %v5507
  %v5614 = vpop.permute.xlu0 %5613
  %5617 = vset.pattern.permute.xlu0 0
  %5618 = vperm.xlu0 %5617, %v5508
  %v5619 = vpop.permute.xlu0 %5618
  %5622 = vset.pattern.permute.xlu0 0
  %5623 = vperm.xlu0 %5622, %v5509
  %v5624 = vpop.permute.xlu0 %5623
  %5627 = vset.pattern.permute.xlu0 0
  %5628 = vperm.xlu0 %5627, %v5510
  %v5629 = vpop.permute.xlu0 %5628
  %5632 = vset.pattern.permute.xlu0 0
  %5633 = vperm.xlu0 %5632, %v5511
  %v5634 = vpop.permute.xlu0 %5633
  %5637 = vset.pattern.permute.xlu0 0
  %5638 = vperm.xlu0 %5637, %v5512
  %v5639 = vpop.permute.xlu0 %5638
  %5642 = vset.pattern.permute.xlu0 0
  %5643 = vperm.xlu0 %5642, %v5513
  %v5644 = vpop.permute.xlu0 %5643
  %5647 = vset.pattern.permute.xlu0 0
  %5648 = vperm.xlu0 %5647, %v5514
  %v5649 = vpop.permute.xlu0 %5648
  %5652 = vset.pattern.permute.xlu0 0
  %5653 = vperm.xlu0 %5652, %v5515
  %v5654 = vpop.permute.xlu0 %5653
  %5657 = vset.pattern.permute.xlu0 0
  %5658 = vperm.xlu0 %5657, %v5516
  %v5659 = vpop.permute.xlu0 %5658
  %5662 = vset.pattern.permute.xlu0 0
  %5663 = vperm.xlu0 %5662, %v5517
  %v5664 = vpop.permute.xlu0 %5663
  %5667 = vset.pattern.permute.xlu0 0
  %5668 = vperm.xlu0 %5667, %v5518
  %v5669 = vpop.permute.xlu0 %5668
  %5672 = vset.pattern.permute.xlu0 0
  %5673 = vperm.xlu0 %5672, %v5519
  %v5674 = vpop.permute.xlu0 %5673
  %5677 = vset.pattern.permute.xlu0 0
  %5678 = vperm.xlu0 %5677, %v5520
  %v5679 = vpop.permute.xlu0 %5678
  %v5681 = vadd.f32 %v5457, %v5524
  %v5682 = vadd.f32 %v5458, %v5529
  %v5683 = vadd.f32 %v5459, %v5534
  %v5684 = vadd.f32 %v5460, %v5539
  %v5685 = vadd.f32 %v5461, %v5544
  %v5686 = vadd.f32 %v5462, %v5549
  %v5687 = vadd.f32 %v5463, %v5554
  %v5688 = vadd.f32 %v5464, %v5559
  %v5689 = vadd.f32 %v5465, %v5564
  %v5690 = vadd.f32 %v5466, %v5569
  %v5691 = vadd.f32 %v5467, %v5574
  %v5692 = vadd.f32 %v5468, %v5579
  %v5693 = vadd.f32 %v5469, %v5584
  %v5694 = vadd.f32 %v5470, %v5589
  %v5695 = vadd.f32 %v5471, %v5594
  %v5696 = vadd.f32 %v5472, %v5599
  %v5697 = vadd.f32 %v5473, %v5604
  %v5698 = vadd.f32 %v5474, %v5609
  %v5699 = vadd.f32 %v5475, %v5614
  %v5700 = vadd.f32 %v5476, %v5619
  %v5701 = vadd.f32 %v5477, %v5624
  %v5702 = vadd.f32 %v5478, %v5629
  %v5703 = vadd.f32 %v5479, %v5634
  %v5704 = vadd.f32 %v5480, %v5639
  %v5705 = vadd.f32 %v5481, %v5644
  %v5706 = vadd.f32 %v5482, %v5649
  %v5707 = vadd.f32 %v5483, %v5654
  %v5708 = vadd.f32 %v5484, %v5659
  %v5709 = vadd.f32 %v5485, %v5664
  %v5710 = vadd.f32 %v5486, %v5669
  %v5711 = vadd.f32 %v5487, %v5674
  %v5712 = vadd.f32 %v5488, %v5679
  %v5713 = vmax.f32 %v5681, 0.0
  %v5714 = vmax.f32 %v5682, 0.0
  %v5715 = vmax.f32 %v5683, 0.0
  %v5716 = vmax.f32 %v5684, 0.0
  %v5717 = vmax.f32 %v5685, 0.0
  %v5718 = vmax.f32 %v5686, 0.0
  %v5719 = vmax.f32 %v5687, 0.0
  %v5720 = vmax.f32 %v5688, 0.0
  %v5721 = vmax.f32 %v5689, 0.0
  %v5722 = vmax.f32 %v5690, 0.0
  %v5723 = vmax.f32 %v5691, 0.0
  %v5724 = vmax.f32 %v5692, 0.0
  %v5725 = vmax.f32 %v5693, 0.0
  %v5726 = vmax.f32 %v5694, 0.0
  %v5727 = vmax.f32 %v5695, 0.0
  %v5728 = vmax.f32 %v5696, 0.0
  %v5729 = vmax.f32 %v5697, 0.0
  %v5730 = vmax.f32 %v5698, 0.0
  %v5731 = vmax.f32 %v5699, 0.0
  %v5732 = vmax.f32 %v5700, 0.0
  %v5733 = vmax.f32 %v5701, 0.0
  %v5734 = vmax.f32 %v5702, 0.0
  %v5735 = vmax.f32 %v5703, 0.0
  %v5736 = vmax.f32 %v5704, 0.0
  %v5737 = vmax.f32 %v5705, 0.0
  %v5738 = vmax.f32 %v5706, 0.0
  %v5739 = vmax.f32 %v5707, 0.0
  %v5740 = vmax.f32 %v5708, 0.0
  %v5741 = vmax.f32 %v5709, 0.0
  %v5742 = vmax.f32 %v5710, 0.0
  %v5743 = vmax.f32 %v5711, 0.0
  %v5744 = vmax.f32 %v5712, 0.0
  %v5745 = vld [vmem:[%s3] sm:$0xff]
  %v5746 = vld [vmem:[%s3 + $0x8] sm:$0xff]
  %v5747 = vld [vmem:[%s3 + $0x10] sm:$0xff]
  %v5748 = vld [vmem:[%s3 + $0x18] sm:$0xff]
  %v5749 = vld [vmem:[%s3 + $0x20] sm:$0xff]
  %v5750 = vld [vmem:[%s3 + $0x28] sm:$0xff]
  %v5751 = vld [vmem:[%s3 + $0x30] sm:$0xff]
  %v5752 = vld [vmem:[%s3 + $0x38] sm:$0xff]
  %v5753 = vld [vmem:[%s3 + $0x40] sm:$0xff]
  %v5754 = vld [vmem:[%s3 + $0x48] sm:$0xff]
  %v5755 = vld [vmem:[%s3 + $0x50] sm:$0xff]
  %v5756 = vld [vmem:[%s3 + $0x58] sm:$0xff]
  %v5757 = vld [vmem:[%s3 + $0x60] sm:$0xff]
  %v5758 = vld [vmem:[%s3 + $0x68] sm:$0xff]
  %v5759 = vld [vmem:[%s3 + $0x70] sm:$0xff]
  %v5760 = vld [vmem:[%s3 + $0x78] sm:$0xff]
  %v5761 = vld [vmem:[%s3 + $0x80] sm:$0xff]
  %v5762 = vld [vmem:[%s3 + $0x88] sm:$0xff]
  %v5763 = vld [vmem:[%s3 + $0x90] sm:$0xff]
  %v5764 = vld [vmem:[%s3 + $0x98] sm:$0xff]
  %v5765 = vld [vmem:[%s3 + $0xa0] sm:$0xff]
  %v5766 = vld [vmem:[%s3 + $0xa8] sm:$0xff]
  %v5767 = vld [vmem:[%s3 + $0xb0] sm:$0xff]
  %v5768 = vld [vmem:[%s3 + $0xb8] sm:$0xff]
  %v5769 = vld [vmem:[%s3 + $0xc0] sm:$0xff]
  %v5770 = vld [vmem:[%s3 + $0xc8] sm:$0xff]
  %v5771 = vld [vmem:[%s3 + $0xd0] sm:$0xff]
  %v5772 = vld [vmem:[%s3 + $0xd8] sm:$0xff]
  %v5773 = vld [vmem:[%s3 + $0xe0] sm:$0xff]
  %v5774 = vld [vmem:[%s3 + $0xe8] sm:$0xff]
  %v5775 = vld [vmem:[%s3 + $0xf0] sm:$0xff]
  %v5776 = vld [vmem:[%s3 + $0xf8] sm:$0xff]
  %v5777 = vld [vmem:[%s4] sm:$0xff]
  %v5778 = vld [vmem:[%s4 + $0x8] sm:$0xff]
  %v5779 = vld [vmem:[%s4 + $0x10] sm:$0xff]
  %v5780 = vld [vmem:[%s4 + $0x18] sm:$0xff]
  %v5781 = vld [vmem:[%s4 + $0x20] sm:$0xff]
  %v5782 = vld [vmem:[%s4 + $0x28] sm:$0xff]
  %v5783 = vld [vmem:[%s4 + $0x30] sm:$0xff]
  %v5784 = vld [vmem:[%s4 + $0x38] sm:$0xff]
  %v5785 = vld [vmem:[%s4 + $0x40] sm:$0xff]
  %v5786 = vld [vmem:[%s4 + $0x48] sm:$0xff]
  %v5787 = vld [vmem:[%s4 + $0x50] sm:$0xff]
  %v5788 = vld [vmem:[%s4 + $0x58] sm:$0xff]
  %v5789 = vld [vmem:[%s4 + $0x60] sm:$0xff]
  %v5790 = vld [vmem:[%s4 + $0x68] sm:$0xff]
  %v5791 = vld [vmem:[%s4 + $0x70] sm:$0xff]
  %v5792 = vld [vmem:[%s4 + $0x78] sm:$0xff]
  %5794 = vset.pattern.permute.xlu0 0
  %5795 = vperm.xlu0 %5794, %v5777
  %v5796 = vpop.permute.xlu0 %5795
  %5799 = vset.pattern.permute.xlu0 0
  %5800 = vperm.xlu0 %5799, %v5778
  %v5801 = vpop.permute.xlu0 %5800
  %5804 = vset.pattern.permute.xlu0 0
  %5805 = vperm.xlu0 %5804, %v5779
  %v5806 = vpop.permute.xlu0 %5805
  %5809 = vset.pattern.permute.xlu0 0
  %5810 = vperm.xlu0 %5809, %v5780
  %v5811 = vpop.permute.xlu0 %5810
  %5814 = vset.pattern.permute.xlu0 0
  %5815 = vperm.xlu0 %5814, %v5781
  %v5816 = vpop.permute.xlu0 %5815
  %5819 = vset.pattern.permute.xlu0 0
  %5820 = vperm.xlu0 %5819, %v5782
  %v5821 = vpop.permute.xlu0 %5820
  %5824 = vset.pattern.permute.xlu0 0
  %5825 = vperm.xlu0 %5824, %v5783
  %v5826 = vpop.permute.xlu0 %5825
  %5829 = vset.pattern.permute.xlu0 0
  %5830 = vperm.xlu0 %5829, %v5784
  %v5831 = vpop.permute.xlu0 %5830
  %5834 = vset.pattern.permute.xlu0 0
  %5835 = vperm.xlu0 %5834, %v5785
  %v5836 = vpop.permute.xlu0 %5835
  %5839 = vset.pattern.permute.xlu0 0
  %5840 = vperm.xlu0 %5839, %v5786
  %v5841 = vpop.permute.xlu0 %5840
  %5844 = vset.pattern.permute.xlu0 0
  %5845 = vperm.xlu0 %5844, %v5787
  %v5846 = vpop.permute.xlu0 %5845
  %5849 = vset.pattern.permute.xlu0 0
  %5850 = vperm.xlu0 %5849, %v5788
  %v5851 = vpop.permute.xlu0 %5850
  %5854 = vset.pattern.permute.xlu0 0
  %5855 = vperm.xlu0 %5854, %v5789
  %v5856 = vpop.permute.xlu0 %5855
  %5859 = vset.pattern.permute.xlu0 0
  %5860 = vperm.xlu0 %5859, %v5790
  %v5861 = vpop.permute.xlu0 %5860
  %5864 = vset.pattern.permute.xlu0 0
  %5865 = vperm.xlu0 %5864, %v5791
  %v5866 = vpop.permute.xlu0 %5865
  %5869 = vset.pattern.permute.xlu0 0
  %5870 = vperm.xlu0 %5869, %v5792
  %v5871 = vpop.permute.xlu0 %5870
  %5873 = vmatpush.msra.mxu0 %v5728
  %5874 = vmatpush.msra.mxu0 %v5727
  %5875 = vmatpush.msra.mxu0 %v5726
  %5876 = vmatpush.msra.mxu0 %v5725
  %5877 = vmatpush.msra.mxu0 %v5724
  %5878 = vmatpush.msra.mxu0 %v5723
  %5879 = vmatpush.msra.mxu0 %v5722
  %5880 = vmatpush.msra.mxu0 %v5721
  %5881 = vmatpush.msra.mxu0 %v5720
  %5882 = vmatpush.msra.mxu0 %v5719
  %5883 = vmatpush.msra.mxu0 %v5718
  %5884 = vmatpush.msra.mxu0 %v5717
  %5885 = vmatpush.msra.mxu0 %v5716
  %5886 = vmatpush.msra.mxu0 %v5715
  %5887 = vmatpush.msra.mxu0 %v5714
  %5888 = vmatpush.msra.mxu0 %v5713
  %5889 = vmatmul.f32.gmra.mxu0 %v5745
  %v5890 = vpop.f32.mrf.mxu0
  %v5891 = vadd.f32 %v5796, %v5890
  %5892 = vmatmul.f32.gmra.mxu0 %v5747
  %v5893 = vpop.f32.mrf.mxu0
  %v5894 = vadd.f32 %v5801, %v5893
  %5895 = vmatmul.f32.gmra.mxu0 %v5749
  %v5896 = vpop.f32.mrf.mxu0
  %v5897 = vadd.f32 %v5806, %v5896
  %5898 = vmatmul.f32.gmra.mxu0 %v5751
  %v5899 = vpop.f32.mrf.mxu0
  %v5900 = vadd.f32 %v5811, %v5899
  %5901 = vmatmul.f32.gmra.mxu0 %v5753
  %v5902 = vpop.f32.mrf.mxu0
  %v5903 = vadd.f32 %v5816, %v5902
  %5904 = vmatmul.f32.gmra.mxu0 %v5755
  %v5905 = vpop.f32.mrf.mxu0
  %v5906 = vadd.f32 %v5821, %v5905
  %5907 = vmatmul.f32.gmra.mxu0 %v5757
  %v5908 = vpop.f32.mrf.mxu0
  %v5909 = vadd.f32 %v5826, %v5908
  %5910 = vmatmul.f32.gmra.mxu0 %v5759
  %v5911 = vpop.f32.mrf.mxu0
  %v5912 = vadd.f32 %v5831, %v5911
  %5913 = vmatmul.f32.gmra.mxu0 %v5761
  %v5914 = vpop.f32.mrf.mxu0
  %v5915 = vadd.f32 %v5836, %v5914
  %5916 = vmatmul.f32.gmra.mxu0 %v5763
  %v5917 = vpop.f32.mrf.mxu0
  %v5918 = vadd.f32 %v5841, %v5917
  %5919 = vmatmul.f32.gmra.mxu0 %v5765
  %v5920 = vpop.f32.mrf.mxu0
  %v5921 = vadd.f32 %v5846, %v5920
  %5922 = vmatmul.f32.gmra.mxu0 %v5767
  %v5923 = vpop.f32.mrf.mxu0
  %v5924 = vadd.f32 %v5851, %v5923
  %5925 = vmatmul.f32.gmra.mxu0 %v5769
  %v5926 = vpop.f32.mrf.mxu0
  %v5927 = vadd.f32 %v5856, %v5926
  %5928 = vmatmul.f32.gmra.mxu0 %v5771
  %v5929 = vpop.f32.mrf.mxu0
  %v5930 = vadd.f32 %v5861, %v5929
  %5931 = vmatmul.f32.gmra.mxu0 %v5773
  %v5932 = vpop.f32.mrf.mxu0
  %v5933 = vadd.f32 %v5866, %v5932
  %5934 = vmatmul.f32.gmra.mxu0 %v5775
  %v5935 = vpop.f32.mrf.mxu0
  %v5936 = vadd.f32 %v5871, %v5935
  %5937 = vdwg.mxu0
  %5938 = vmatpush.msra.mxu0 %v5744
  %5939 = vmatpush.msra.mxu0 %v5743
  %5940 = vmatpush.msra.mxu0 %v5742
  %5941 = vmatpush.msra.mxu0 %v5741
  %5942 = vmatpush.msra.mxu0 %v5740
  %5943 = vmatpush.msra.mxu0 %v5739
  %5944 = vmatpush.msra.mxu0 %v5738
  %5945 = vmatpush.msra.mxu0 %v5737
  %5946 = vmatpush.msra.mxu0 %v5736
  %5947 = vmatpush.msra.mxu0 %v5735
  %5948 = vmatpush.msra.mxu0 %v5734
  %5949 = vmatpush.msra.mxu0 %v5733
  %5950 = vmatpush.msra.mxu0 %v5732
  %5951 = vmatpush.msra.mxu0 %v5731
  %5952 = vmatpush.msra.mxu0 %v5730
  %5953 = vmatpush.msra.mxu0 %v5729
  %5954 = vmatmul.f32.gmra.mxu0 %v5746
  %v5955 = vpop.f32.mrf.mxu0
  %v5956 = vadd.f32 %v5891, %v5955
  %5957 = vmatmul.f32.gmra.mxu0 %v5748
  %v5958 = vpop.f32.mrf.mxu0
  %v5959 = vadd.f32 %v5894, %v5958
  %5960 = vmatmul.f32.gmra.mxu0 %v5750
  %v5961 = vpop.f32.mrf.mxu0
  %v5962 = vadd.f32 %v5897, %v5961
  %5963 = vmatmul.f32.gmra.mxu0 %v5752
  %v5964 = vpop.f32.mrf.mxu0
  %v5965 = vadd.f32 %v5900, %v5964
  %5966 = vmatmul.f32.gmra.mxu0 %v5754
  %v5967 = vpop.f32.mrf.mxu0
  %v5968 = vadd.f32 %v5903, %v5967
  %5969 = vmatmul.f32.gmra.mxu0 %v5756
  %v5970 = vpop.f32.mrf.mxu0
  %v5971 = vadd.f32 %v5906, %v5970
  %5972 = vmatmul.f32.gmra.mxu0 %v5758
  %v5973 = vpop.f32.mrf.mxu0
  %v5974 = vadd.f32 %v5909, %v5973
  %5975 = vmatmul.f32.gmra.mxu0 %v5760
  %v5976 = vpop.f32.mrf.mxu0
  %v5977 = vadd.f32 %v5912, %v5976
  %5978 = vmatmul.f32.gmra.mxu0 %v5762
  %v5979 = vpop.f32.mrf.mxu0
  %v5980 = vadd.f32 %v5915, %v5979
  %5981 = vmatmul.f32.gmra.mxu0 %v5764
  %v5982 = vpop.f32.mrf.mxu0
  %v5983 = vadd.f32 %v5918, %v5982
  %5984 = vmatmul.f32.gmra.mxu0 %v5766
  %v5985 = vpop.f32.mrf.mxu0
  %v5986 = vadd.f32 %v5921, %v5985
  %5987 = vmatmul.f32.gmra.mxu0 %v5768
  %v5988 = vpop.f32.mrf.mxu0
  %v5989 = vadd.f32 %v5924, %v5988
  %5990 = vmatmul.f32.gmra.mxu0 %v5770
  %v5991 = vpop.f32.mrf.mxu0
  %v5992 = vadd.f32 %v5927, %v5991
  %5993 = vmatmul.f32.gmra.mxu0 %v5772
  %v5994 = vpop.f32.mrf.mxu0
  %v5995 = vadd.f32 %v5930, %v5994
  %5996 = vmatmul.f32.gmra.mxu0 %v5774
  %v5997 = vpop.f32.mrf.mxu0
  %v5998 = vadd.f32 %v5933, %v5997
  %5999 = vmatmul.f32.gmra.mxu0 %v5776
  %v6000 = vpop.f32.mrf.mxu0
  %v6001 = vadd.f32 %v5936, %v6000
  %6002 = vdwg.mxu0
  %v6003 = vld [vmem:[%s5] sm:$0x3]
  %v6004 = vld [vmem:[%s6] sm:$0x3]
  %6006 = vset.pattern.permute.xlu0 0
  %6007 = vperm.xlu0 %6006, %v6004
  %v6008 = vpop.permute.xlu0 %6007
  %6010 = vmatpush.msra.mxu0 %v6001
  %6011 = vmatpush.msra.mxu0 %v5998
  %6012 = vmatpush.msra.mxu0 %v5995
  %6013 = vmatpush.msra.mxu0 %v5992
  %6014 = vmatpush.msra.mxu0 %v5989
  %6015 = vmatpush.msra.mxu0 %v5986
  %6016 = vmatpush.msra.mxu0 %v5983
  %6017 = vmatpush.msra.mxu0 %v5980
  %6018 = vmatpush.msra.mxu0 %v5977
  %6019 = vmatpush.msra.mxu0 %v5974
  %6020 = vmatpush.msra.mxu0 %v5971
  %6021 = vmatpush.msra.mxu0 %v5968
  %6022 = vmatpush.msra.mxu0 %v5965
  %6023 = vmatpush.msra.mxu0 %v5962
  %6024 = vmatpush.msra.mxu0 %v5959
  %6025 = vmatpush.msra.mxu0 %v5956
  %6026 = vmatmul.f32.gmra.mxu0 %v6003
  %v6027 = vpop.f32.mrf.mxu0
  %v6028 = vadd.f32 %v6008, %v6027
  %6029 = vdwg.mxu0
  %vm6030 = vcmask 9216
  %6031 = vst.msk [vmem:[%s7] sm:$0x3] %vm6030, %v6028
  // Predicated region
  $region30: #{cnn_forward.9} parent=0 // pred_check
    _
  $region31: #{cnn_forward.9} parent=0 // pred_check_branch
    %6033 = sbr.rel (0) target = $region33
  $region32: #{cnn_forward.9} parent=0 // pred_region
    _
  $region33: #{cnn_forward.9} parent=0 // pred_fallthru
    _
  // Predicated region
  $region34: #{cnn_forward.9} parent=0 // pred_check
    _
  $region35: #{cnn_forward.9} parent=0 // pred_check_branch
    %6035 = sbr.rel (0) target = $region37
  $region36: #{cnn_forward.9} parent=0 // pred_region
    _
  $region37: #{cnn_forward.9} parent=0 // pred_fallthru
    _

</llo_original>
